<compile_context>
chip_gen: v7x
topology: tpu7x:2x2x1
jax: 0.10.0
libtpu: 0.0.40
codegen_flags: <defaults>
</compile_context>

<pallas_src>
import jax
import jax.numpy as jnp
from jax.experimental import pallas as pl
from jax.experimental.pallas import tpu as pltpu

# ---- module hyperparameters (from the PyTorch spec) ----
N_EMBD = 384
BLOCK_SIZE = 256                  # max context length (we run T <= BLOCK_SIZE)
N_HEAD = 6
HEAD_SIZE = N_EMBD // N_HEAD      # 64
HD = N_HEAD * HEAD_SIZE           # 384
SCALE = HEAD_SIZE ** (-0.5)
NEG_BIG = -1e30                   # finite additive mask (robust, no inf-inf NaN)


# --------------------------- Pallas kernel -----------------------------------

def mha_kernel(x_ref, bias_ref, wqkv_ref, wo_ref, bo_ref, out_ref):
    x = x_ref[0]                                                  # (T, C)
    T, C = x.shape

    # Head-batched fused QKV projection: one batched MXU contraction.
    #   xb:   (H, T, C)   (leading-dim broadcast, cheap)
    #   wqkv: (H, C, 3*hs)
    xb = jnp.broadcast_to(x[None], (N_HEAD, T, C))
    qkv = jnp.einsum('htc,hcd->htd', xb, wqkv_ref[...],
                     preferred_element_type=jnp.float32)          # (H, T, 3*hs)
    q = qkv[..., 0 * HEAD_SIZE:1 * HEAD_SIZE]                     # (H, T, hs)
    k = qkv[..., 1 * HEAD_SIZE:2 * HEAD_SIZE]
    v = qkv[..., 2 * HEAD_SIZE:3 * HEAD_SIZE]

    # Attention scores for all heads at once, additive causal bias (no select).
    s = jnp.einsum('htd,hsd->hts', q, k,
                   preferred_element_type=jnp.float32) * SCALE    # (H, T, T)
    s = s + bias_ref[...]                                         # (1,T,T) broadcast

    # Numerically-stable softmax, batched over heads; EUP reciprocal.
    s = s - jnp.max(s, axis=-1, keepdims=True)
    p = jnp.exp(s)
    p = p * pl.reciprocal(jnp.sum(p, axis=-1, keepdims=True), approx=True)
    # TODO(synk): attention-weight dropout (p=0.2) omitted (eval-mode identity).

    ctx = jnp.einsum('hts,hsd->htd', p, v,
                     preferred_element_type=jnp.float32)          # (H, T, hs)

    # Output projection without concatenating heads:
    #   concat_h(ctx_h) @ Wo  ==  sum_h  ctx_h @ Wo[h]
    proj_h = jnp.einsum('htd,hdc->htc', ctx, wo_ref[...],
                        preferred_element_type=jnp.float32)       # (H, T, C)
    out = jnp.sum(proj_h, axis=0) + bo_ref[...]                   # (T, C)
    # TODO(synk): projection dropout (p=0.2) omitted (eval-mode identity).
    out_ref[0] = out


# ------------------------------ wrapper ---------------------------------------

def multi_head_attention(x, params):
    """x: (B, T, C) fp32, T <= BLOCK_SIZE. Returns (B, T, C)."""
    B, T, C = x.shape
    assert C == N_EMBD and T <= BLOCK_SIZE

    # Additive causal bias, built once in JAX glue (outside the kernel).
    row = jax.lax.broadcasted_iota(jnp.int32, (T, T), 0)
    col = jax.lax.broadcasted_iota(jnp.int32, (T, T), 1)
    bias = jnp.where(row >= col, 0.0, NEG_BIG).astype(jnp.float32)[None]  # (1,T,T)

    wqkv = params['wqkv']          # (H, C, 3*hs)
    wo = params['wo']              # (H, hs, C)
    bo = params['bo']              # (1, C)

    return pl.pallas_call(
        mha_kernel,
        out_shape=jax.ShapeDtypeStruct((B, T, C), jnp.float32),
        grid=(B,),
        in_specs=[
            pl.BlockSpec((1, T, C), lambda b: (b, 0, 0)),
            pl.BlockSpec((1, T, T), lambda b: (0, 0, 0)),
            pl.BlockSpec((N_HEAD, C, 3 * HEAD_SIZE), lambda b: (0, 0, 0)),
            pl.BlockSpec((N_HEAD, HEAD_SIZE, C), lambda b: (0, 0, 0)),
            pl.BlockSpec((1, C), lambda b: (0, 0)),
        ],
        out_specs=pl.BlockSpec((1, T, C), lambda b: (b, 0, 0)),
        compiler_params=pltpu.CompilerParams(
            dimension_semantics=("parallel",)),   # v7x: one batch per TensorCore
    )(x, bias, wqkv, wo, bo)


# ------------------------ deterministic parameter init ------------------------

def init_params(key):
    std = 0.02
    kq, kk, kv, ko, kb = jax.random.split(key, 5)
    # Per-head q/k/v weights stored (in, out) = (C, hs), fused along the last dim.
    wq = (jax.random.normal(kq, (N_HEAD, N_EMBD, HEAD_SIZE)) * std).astype(jnp.float32)
    wk = (jax.random.normal(kk, (N_HEAD, N_EMBD, HEAD_SIZE)) * std).astype(jnp.float32)
    wv = (jax.random.normal(kv, (N_HEAD, N_EMBD, HEAD_SIZE)) * std).astype(jnp.float32)
    wqkv = jnp.concatenate([wq, wk, wv], axis=-1)                 # (H, C, 3*hs)
    # proj: Linear(H*hs, n_embd); stored transposed (H*hs, C), viewed per head.
    wo_flat = (jax.random.normal(ko, (HD, N_EMBD)) * std).astype(jnp.float32)
    wo = wo_flat.reshape(N_HEAD, HEAD_SIZE, N_EMBD)               # (H, hs, C)
    bo = (jax.random.normal(kb, (1, N_EMBD)) * std).astype(jnp.float32)
    return {'wqkv': wqkv, 'wo': wo, 'bo': bo}


# --------------------------- pure-JAX reference --------------------------------

def mha_ref(x, params):
    B, T, C = x.shape
    causal = jnp.tril(jnp.ones((T, T), bool))
    outs = []
    for h in range(N_HEAD):
        wq = params['wqkv'][h, :, 0 * HEAD_SIZE:1 * HEAD_SIZE]
        wk = params['wqkv'][h, :, 1 * HEAD_SIZE:2 * HEAD_SIZE]
        wv = params['wqkv'][h, :, 2 * HEAD_SIZE:3 * HEAD_SIZE]
        q, k, v = x @ wq, x @ wk, x @ wv
        wei = jnp.einsum('btd,bsd->bts', q, k) * SCALE
        wei = jnp.where(causal, wei, -jnp.inf)
        wei = jax.nn.softmax(wei, axis=-1)
        outs.append(jnp.einsum('bts,bsd->btd', wei, v))
    cat = jnp.concatenate(outs, axis=-1)                          # (B, T, H*hs)
    wo_flat = params['wo'].reshape(HD, N_EMBD)
    return cat @ wo_flat + params['bo']


if __name__ == "__main__":
    key = jax.random.PRNGKey(0)
    pkey, xkey = jax.random.split(key)
    params = init_params(pkey)

    B, T = 2, 128                     # T=128 -> M=128 rows per grid step
    x = jax.random.normal(xkey, (B, T, N_EMBD), dtype=jnp.float32)

    out = multi_head_attention(x, params)
    out = jax.block_until_ready(out)

    ref = mha_ref(x, params)
    assert out.shape == (B, T, N_EMBD)
    # tolerance loosened slightly for the EUP approx-reciprocal in the softmax
    assert jnp.allclose(out, ref, atol=2e-3, rtol=2e-3), "mismatch vs JAX reference"
    print("KERNEL_OK")
</pallas_src>

<mosaic_0001>
module attributes {stable_mosaic.version = 11 : i64} {
  func.func @mha_kernel(%arg0: i32, %arg1: memref<1x128x384xf32, #tpu.memory_space<vmem>>, %arg2: memref<1x128x128xf32, #tpu.memory_space<vmem>>, %arg3: memref<6x384x192xf32, #tpu.memory_space<vmem>>, %arg4: memref<6x64x384xf32, #tpu.memory_space<vmem>>, %arg5: memref<1x384xf32, #tpu.memory_space<vmem>>, %arg6: memref<1x128x384xf32, #tpu.memory_space<vmem>>) attributes {dimension_semantics = [#tpu.dimension_semantics<parallel>], iteration_bounds = array<i64: 2>, scalar_prefetch = 0 : i64, scratch_operands = 0 : i64, tpu.core_type = #tpu.core_type<tc>, window_params = [{transform_indices = @transform_0, window_bounds = array<i64: 1, 128, 384>}, {pipeline_mode = #tpu.pipeline_mode<synchronous>, transform_indices = @transform_1, window_bounds = array<i64: 1, 128, 128>}, {pipeline_mode = #tpu.pipeline_mode<synchronous>, transform_indices = @transform_2, window_bounds = array<i64: 6, 384, 192>}, {pipeline_mode = #tpu.pipeline_mode<synchronous>, transform_indices = @transform_3, window_bounds = array<i64: 6, 64, 384>}, {pipeline_mode = #tpu.pipeline_mode<synchronous>, transform_indices = @transform_4, window_bounds = array<i64: 1, 384>}, {transform_indices = @transform_5, window_bounds = array<i64: 1, 128, 384>}]} {
    %c0 = arith.constant 0 : index
    %c0_0 = arith.constant 0 : index
    %c0_1 = arith.constant 0 : index
    %0 = vector.load %arg1[%c0, %c0_0, %c0_1] : memref<1x128x384xf32, #tpu.memory_space<vmem>>, vector<1x128x384xf32>
    %1 = vector.shape_cast %0 : vector<1x128x384xf32> to vector<128x384xf32>
    %2 = vector.shape_cast %1 : vector<128x384xf32> to vector<1x128x384xf32>
    %3 = vector.shape_cast %2 : vector<1x128x384xf32> to vector<1x128x384xf32>
    %4 = vector.broadcast %3 : vector<1x128x384xf32> to vector<6x128x384xf32>
    %c0_2 = arith.constant 0 : index
    %c0_3 = arith.constant 0 : index
    %c0_4 = arith.constant 0 : index
    %5 = vector.load %arg3[%c0_2, %c0_3, %c0_4] : memref<6x384x192xf32, #tpu.memory_space<vmem>>, vector<6x384x192xf32>
    "tpu.trace_start"() <{level = 10 : i32, message = "htc,hcd->htd"}> : () -> ()
    %cst = arith.constant dense<0.000000e+00> : vector<6x128x192xf32>
    %6 = tpu.matmul %4, %5, %cst {dimension_numbers = #tpu.dot_dimension_numbers<[2], [1], [1], [2], [0, 0, 0, 1, 1, 2], [0], [0]>} : vector<6x128x384xf32>, vector<6x384x192xf32>, vector<6x128x192xf32> -> vector<6x128x192xf32>
    "tpu.trace_stop"() : () -> ()
    %7 = vector.extract_strided_slice %6 {offsets = [0, 0, 0], sizes = [6, 128, 64], strides = [1, 1, 1]} : vector<6x128x192xf32> to vector<6x128x64xf32>
    %8 = vector.extract_strided_slice %6 {offsets = [0, 0, 64], sizes = [6, 128, 64], strides = [1, 1, 1]} : vector<6x128x192xf32> to vector<6x128x64xf32>
    %9 = vector.extract_strided_slice %6 {offsets = [0, 0, 128], sizes = [6, 128, 64], strides = [1, 1, 1]} : vector<6x128x192xf32> to vector<6x128x64xf32>
    "tpu.trace_start"() <{level = 10 : i32, message = "htd,hsd->hts"}> : () -> ()
    %cst_5 = arith.constant dense<0.000000e+00> : vector<6x128x128xf32>
    %10 = tpu.matmul %7, %8, %cst_5 {dimension_numbers = #tpu.dot_dimension_numbers<[2], [2], [1], [1], [0, 0, 0, 1, 1, 1], [0], [0]>} : vector<6x128x64xf32>, vector<6x128x64xf32>, vector<6x128x128xf32> -> vector<6x128x128xf32>
    "tpu.trace_stop"() : () -> ()
    %cst_6 = arith.constant 1.250000e-01 : f32
    %11 = vector.broadcast %cst_6 : f32 to vector<6x128x128xf32>
    %12 = arith.mulf %10, %11 : vector<6x128x128xf32>
    %c0_7 = arith.constant 0 : index
    %c0_8 = arith.constant 0 : index
    %c0_9 = arith.constant 0 : index
    %13 = vector.load %arg2[%c0_7, %c0_8, %c0_9] : memref<1x128x128xf32, #tpu.memory_space<vmem>>, vector<1x128x128xf32>
    %14 = vector.broadcast %13 : vector<1x128x128xf32> to vector<6x128x128xf32>
    %15 = arith.addf %12, %14 : vector<6x128x128xf32>
    %cst_10 = arith.constant dense<0xFF800000> : vector<6x128xf32>
    %16 = vector.multi_reduction <maximumf>, %15, %cst_10 [2] : vector<6x128x128xf32> to vector<6x128xf32>
    %17 = vector.shape_cast %16 : vector<6x128xf32> to vector<6x128x1xf32>
    %18 = vector.broadcast %17 : vector<6x128x1xf32> to vector<6x128x128xf32>
    %19 = arith.subf %15, %18 : vector<6x128x128xf32>
    %20 = math.exp %19 : vector<6x128x128xf32>
    %cst_11 = arith.constant dense<0.000000e+00> : vector<6x128xf32>
    %21 = vector.multi_reduction <add>, %20, %cst_11 [2] : vector<6x128x128xf32> to vector<6x128xf32>
    %22 = vector.shape_cast %21 : vector<6x128xf32> to vector<6x128x1xf32>
    %23 = tpu.reciprocal %22 {approx = true} : vector<6x128x1xf32> -> vector<6x128x1xf32>
    %24 = vector.broadcast %23 : vector<6x128x1xf32> to vector<6x128x128xf32>
    %25 = arith.mulf %20, %24 : vector<6x128x128xf32>
    "tpu.trace_start"() <{level = 10 : i32, message = "hts,hsd->htd"}> : () -> ()
    %cst_12 = arith.constant dense<0.000000e+00> : vector<6x128x64xf32>
    %26 = tpu.matmul %25, %9, %cst_12 {dimension_numbers = #tpu.dot_dimension_numbers<[2], [1], [1], [2], [0, 0, 0, 1, 1, 2], [0], [0]>} : vector<6x128x128xf32>, vector<6x128x64xf32>, vector<6x128x64xf32> -> vector<6x128x64xf32>
    "tpu.trace_stop"() : () -> ()
    %c0_13 = arith.constant 0 : index
    %c0_14 = arith.constant 0 : index
    %c0_15 = arith.constant 0 : index
    %27 = vector.load %arg4[%c0_13, %c0_14, %c0_15] : memref<6x64x384xf32, #tpu.memory_space<vmem>>, vector<6x64x384xf32>
    "tpu.trace_start"() <{level = 10 : i32, message = "htd,hdc->htc"}> : () -> ()
    %cst_16 = arith.constant dense<0.000000e+00> : vector<6x128x384xf32>
    %28 = tpu.matmul %26, %27, %cst_16 {dimension_numbers = #tpu.dot_dimension_numbers<[2], [1], [1], [2], [0, 0, 0, 1, 1, 2], [0], [0]>} : vector<6x128x64xf32>, vector<6x64x384xf32>, vector<6x128x384xf32> -> vector<6x128x384xf32>
    "tpu.trace_stop"() : () -> ()
    %cst_17 = arith.constant dense<0.000000e+00> : vector<128x384xf32>
    %29 = vector.multi_reduction <add>, %28, %cst_17 [0] : vector<6x128x384xf32> to vector<128x384xf32>
    %c0_18 = arith.constant 0 : index
    %c0_19 = arith.constant 0 : index
    %30 = vector.load %arg5[%c0_18, %c0_19] : memref<1x384xf32, #tpu.memory_space<vmem>>, vector<1x384xf32>
    %31 = vector.broadcast %30 : vector<1x384xf32> to vector<128x384xf32>
    %32 = arith.addf %29, %31 : vector<128x384xf32>
    %c0_20 = arith.constant 0 : index
    %c0_21 = arith.constant 0 : index
    %c0_22 = arith.constant 0 : index
    %33 = vector.load %arg6[%c0_20, %c0_21, %c0_22] : memref<1x128x384xf32, #tpu.memory_space<vmem>>, vector<1x128x384xf32>
    %34 = vector.shape_cast %33 : vector<1x128x384xf32> to vector<128x384xf32>
    %35 = vector.shape_cast %32 : vector<128x384xf32> to vector<1x128x384xf32>
    tpu.vector_store %arg6[%c0_20, %c0_21, %c0_22], %35 {strides = array<i32>} : memref<1x128x384xf32, #tpu.memory_space<vmem>>, vector<1x128x384xf32>,
    return
  }
  func.func @transform_0(%arg0: i32) -> (i32, i32, i32) {
    %c0_i32 = arith.constant 0 : i32
    %c0_i32_0 = arith.constant 0 : i32
    %c0_i32_1 = arith.constant 0 : i32
    return %arg0, %c0_i32, %c0_i32_0 : i32, i32, i32
  }
  func.func @transform_1(%arg0: i32) -> (i32, i32, i32) {
    %c0_i32 = arith.constant 0 : i32
    %c0_i32_0 = arith.constant 0 : i32
    %c0_i32_1 = arith.constant 0 : i32
    %c0_i32_2 = arith.constant 0 : i32
    return %c0_i32, %c0_i32_0, %c0_i32_1 : i32, i32, i32
  }
  func.func @transform_2(%arg0: i32) -> (i32, i32, i32) {
    %c0_i32 = arith.constant 0 : i32
    %c0_i32_0 = arith.constant 0 : i32
    %c0_i32_1 = arith.constant 0 : i32
    %c0_i32_2 = arith.constant 0 : i32
    return %c0_i32, %c0_i32_0, %c0_i32_1 : i32, i32, i32
  }
  func.func @transform_3(%arg0: i32) -> (i32, i32, i32) {
    %c0_i32 = arith.constant 0 : i32
    %c0_i32_0 = arith.constant 0 : i32
    %c0_i32_1 = arith.constant 0 : i32
    %c0_i32_2 = arith.constant 0 : i32
    return %c0_i32, %c0_i32_0, %c0_i32_1 : i32, i32, i32
  }
  func.func @transform_4(%arg0: i32) -> (i32, i32) {
    %c0_i32 = arith.constant 0 : i32
    %c0_i32_0 = arith.constant 0 : i32
    %c0_i32_1 = arith.constant 0 : i32
    return %c0_i32, %c0_i32_0 : i32, i32
  }
  func.func @transform_5(%arg0: i32) -> (i32, i32, i32) {
    %c0_i32 = arith.constant 0 : i32
    %c0_i32_0 = arith.constant 0 : i32
    %c0_i32_1 = arith.constant 0 : i32
    return %arg0, %c0_i32, %c0_i32_0 : i32, i32, i32
  }
}

</mosaic_0001>

<llo_original>
// kernel: tpu_custom_call.1
$region0: #{tpu_custom_call.1}
  #allocation0 [shape = 'u32[]', space=smem, size = 0x4, offset = 0x4, fixed_abs, tag = 'smem constant byte address 0x4 - core index']
  #allocation1 [shape = 'u32[144,128]{1,0:T(1,128)}', space=vmem, size = 0x12000, scoped, tag = 'internal scratch']
  %s0 = inlined_call_operand.vmem [shape: f32[2,128,384], index: 0, kind: input, shape index: {}]
  %s1 = inlined_call_operand.vmem [shape: f32[1,128,128], index: 1, kind: input, shape index: {}]
  %s2 = inlined_call_operand.vmem [shape: f32[6,384,192], index: 2, kind: input, shape index: {}]
  %s3 = inlined_call_operand.vmem [shape: f32[6,64,384], index: 3, kind: input, shape index: {}]
  %s4 = inlined_call_operand.vmem [shape: f32[1,384], index: 4, kind: input, shape index: {}]
  %s5 = inlined_call_operand.hbm [shape: f32[2,128,384], index: 5, kind: output, shape index: {}]
  %s6 = sld [smem:[#allocation0]]
  $region53: #{tpu_custom_call.1} parent=0
    _
  %s8 = ssub.s32 1, %s6
  %s9 = scalar_select 0, %s8, %s6
  $region1: #{tpu_custom_call.1} parent=0
    #allocation2 [shape = 'u8[393216]{0}', space=vmem, size = 0x60000, scoped, tag = 'output window, operand 0']
    #allocation3 [shape = 's32[2]{0}', space=sflag, size = 0x8, scoped, tag = 'scoped memory for tpu_custom_call.1']
    %10 = vsyncpa [#allocation3], 0
    %s11 = scalar_lea.sflag [#allocation3], 1
    %12 = vsyncpa %s11, 0
    loop: start=0, step=1, limit=4
    $region2: #{tpu_custom_call.1} parent=1 // loop_pre_header
      _
    $region3: #{tpu_custom_call.1} parent=1 // loop_header
      %s14 = sphi 0, %s18
      %p15 = scmp.ge.s32.totalorder %s14, 4
      %s24 = sphi 0, %s26
      %s27 = sphi 0, %s24
      %s28 = sphi 0, %s27
      %s44 = sphi 0, %s28
      %s48 = sphi 0, %s48
      %s50 = sphi 0, %s48
      %s51 = sphi 0, %s50
      %s65 = sphi 0, %s51
      %s69 = sphi 0, %s69
      %s71 = sphi 0, %s69
      %s72 = sphi 0, %s71
      %s86 = sphi 0, %s72
      %s90 = sphi 0, %s90
      %s92 = sphi 0, %s90
      %s93 = sphi 0, %s92
      %s107 = sphi 0, %s93
      %s111 = sphi 0, %s111
      %s113 = sphi 0, %s111
      %s114 = sphi 0, %s113
      %s128 = sphi 0, %s114
      %s134 = sphi 0, %s136
      %s137 = sphi 0, %s134
      %s138 = sphi 0, %s137
      %s154 = sphi 0, %s138
    $region4: #{tpu_custom_call.1} parent=1 // loop_header_branch
      %17 = sbr.rel (%p15) target = $region8
    $region5: #{tpu_custom_call.1} parent=1 // loop_body
      %s19 = ssub.s32 %s14, 1
      %s20 = ssub.s32 %s14, 2
      %s21 = sadd.s32 %s14, 1
      %s22 = ssub.s32 %s14, %s21
      %p23 = scmp.eq.s32.totalorder %s22, 0
      %s25 = sadd.s32 %s24, 1
      %s26 = scalar_select %p23, %s24, %s25
      %p29 = pneg %p23
      %p30 = scmp.eq.s32.totalorder %s14, 1
      %p31 = por %p29, %p30
      %p32 = scmp.ne.s32.totalorder %s24, %s27
      %p33 = scmp.eq.s32.totalorder %s14, 0
      %p34 = por %p32, %p33
      %p35 = scmp.ne.s32.totalorder %s24, %s27
      %p36 = scmp.eq.s32.totalorder %s19, 1
      %p37 = por %p35, %p36
      %p38 = scmp.ne.s32.totalorder %s27, %s28
      %p39 = scmp.eq.s32.totalorder %s19, 0
      %p40 = por %p38, %p39
      %p41 = scmp.ne.s32.totalorder %s27, %s28
      %p42 = scmp.eq.s32.totalorder %s20, 1
      %p43 = por %p41, %p42
      %p45 = scmp.ne.s32.totalorder %s28, %s44
      %p46 = scmp.eq.s32.totalorder %s20, 0
      %p47 = por %p45, %p46
      %s49 = sadd.s32 %s48, 1
      %p52 = scmp.eq.s32.totalorder %s14, 1
      %p53 = scmp.ne.s32.totalorder %s48, %s50
      %p54 = scmp.eq.s32.totalorder %s14, 0
      %p55 = por %p53, %p54
      %p56 = scmp.ne.s32.totalorder %s48, %s50
      %p57 = scmp.eq.s32.totalorder %s19, 1
      %p58 = por %p56, %p57
      %p59 = scmp.ne.s32.totalorder %s50, %s51
      %p60 = scmp.eq.s32.totalorder %s19, 0
      %p61 = por %p59, %p60
      %p62 = scmp.ne.s32.totalorder %s50, %s51
      %p63 = scmp.eq.s32.totalorder %s20, 1
      %p64 = por %p62, %p63
      %p66 = scmp.ne.s32.totalorder %s51, %s65
      %p67 = scmp.eq.s32.totalorder %s20, 0
      %p68 = por %p66, %p67
      %s70 = sadd.s32 %s69, 1
      %p73 = scmp.eq.s32.totalorder %s14, 1
      %p74 = scmp.ne.s32.totalorder %s69, %s71
      %p75 = scmp.eq.s32.totalorder %s14, 0
      %p76 = por %p74, %p75
      %p77 = scmp.ne.s32.totalorder %s69, %s71
      %p78 = scmp.eq.s32.totalorder %s19, 1
      %p79 = por %p77, %p78
      %p80 = scmp.ne.s32.totalorder %s71, %s72
      %p81 = scmp.eq.s32.totalorder %s19, 0
      %p82 = por %p80, %p81
      %p83 = scmp.ne.s32.totalorder %s71, %s72
      %p84 = scmp.eq.s32.totalorder %s20, 1
      %p85 = por %p83, %p84
      %p87 = scmp.ne.s32.totalorder %s72, %s86
      %p88 = scmp.eq.s32.totalorder %s20, 0
      %p89 = por %p87, %p88
      %s91 = sadd.s32 %s90, 1
      %p94 = scmp.eq.s32.totalorder %s14, 1
      %p95 = scmp.ne.s32.totalorder %s90, %s92
      %p96 = scmp.eq.s32.totalorder %s14, 0
      %p97 = por %p95, %p96
      %p98 = scmp.ne.s32.totalorder %s90, %s92
      %p99 = scmp.eq.s32.totalorder %s19, 1
      %p100 = por %p98, %p99
      %p101 = scmp.ne.s32.totalorder %s92, %s93
      %p102 = scmp.eq.s32.totalorder %s19, 0
      %p103 = por %p101, %p102
      %p104 = scmp.ne.s32.totalorder %s92, %s93
      %p105 = scmp.eq.s32.totalorder %s20, 1
      %p106 = por %p104, %p105
      %p108 = scmp.ne.s32.totalorder %s93, %s107
      %p109 = scmp.eq.s32.totalorder %s20, 0
      %p110 = por %p108, %p109
      %s112 = sadd.s32 %s111, 1
      %p115 = scmp.eq.s32.totalorder %s14, 1
      %p116 = scmp.ne.s32.totalorder %s111, %s113
      %p117 = scmp.eq.s32.totalorder %s14, 0
      %p118 = por %p116, %p117
      %p119 = scmp.ne.s32.totalorder %s111, %s113
      %p120 = scmp.eq.s32.totalorder %s19, 1
      %p121 = por %p119, %p120
      %p122 = scmp.ne.s32.totalorder %s113, %s114
      %p123 = scmp.eq.s32.totalorder %s19, 0
      %p124 = por %p122, %p123
      %p125 = scmp.ne.s32.totalorder %s113, %s114
      %p126 = scmp.eq.s32.totalorder %s20, 1
      %p127 = por %p125, %p126
      %p129 = scmp.ne.s32.totalorder %s114, %s128
      %p130 = scmp.eq.s32.totalorder %s20, 0
      %p131 = por %p129, %p130
      %s132 = ssub.s32 %s14, %s21
      %p133 = scmp.eq.s32.totalorder %s132, 0
      %s135 = sadd.s32 %s134, 1
      %s136 = scalar_select %p133, %s134, %s135
      %p139 = pneg %p133
      %p140 = scmp.eq.s32.totalorder %s14, 1
      %p141 = por %p139, %p140
      %p142 = scmp.ne.s32.totalorder %s134, %s137
      %p143 = scmp.eq.s32.totalorder %s14, 0
      %p144 = por %p142, %p143
      %p145 = scmp.ne.s32.totalorder %s134, %s137
      %p146 = scmp.eq.s32.totalorder %s19, 1
      %p147 = por %p145, %p146
      %p148 = scmp.ne.s32.totalorder %s137, %s138
      %p149 = scmp.eq.s32.totalorder %s19, 0
      %p150 = por %p148, %p149
      %p151 = scmp.ne.s32.totalorder %s137, %s138
      %p152 = scmp.eq.s32.totalorder %s20, 1
      %p153 = por %p151, %p152
      %p155 = scmp.ne.s32.totalorder %s138, %s154
      %p156 = scmp.eq.s32.totalorder %s20, 0
      %p157 = por %p155, %p156
      %p158 = scmp.le.s32.totalorder 1, %s14
      %p159 = scmp.lt.s32.totalorder %s14, 3
      %p160 = pnand %p158, %p159
      %p161 = pneg %p160
      // Predicated region
      $region9: #{tpu_custom_call.1} parent=5 // pred_check
        _
      $region10: #{tpu_custom_call.1} parent=5 // pred_check_branch
        %163 = sbr.rel (%p160) target = $region12
      $region11: #{tpu_custom_call.1} parent=5 // pred_region
        %s164 = ssub.s32 %s14, 1
        // Predicated region
        $region13: #{tpu_custom_call.1} parent=11 // pred_check
          %p165 = pneg %p61
        $region14: #{tpu_custom_call.1} parent=11 // pred_check_branch
          %167 = sbr.rel (%p165) target = $region16
        $region15: #{tpu_custom_call.1} parent=11 // pred_region
          _
        $region16: #{tpu_custom_call.1} parent=11 // pred_fallthru
          _
        // Predicated region
        $region17: #{tpu_custom_call.1} parent=11 // pred_check
          %p168 = pneg %p82
        $region18: #{tpu_custom_call.1} parent=11 // pred_check_branch
          %170 = sbr.rel (%p168) target = $region20
        $region19: #{tpu_custom_call.1} parent=11 // pred_region
          _
        $region20: #{tpu_custom_call.1} parent=11 // pred_fallthru
          _
        // Predicated region
        $region21: #{tpu_custom_call.1} parent=11 // pred_check
          %p171 = pneg %p103
        $region22: #{tpu_custom_call.1} parent=11 // pred_check_branch
          %173 = sbr.rel (%p171) target = $region24
        $region23: #{tpu_custom_call.1} parent=11 // pred_region
          _
        $region24: #{tpu_custom_call.1} parent=11 // pred_fallthru
          _
        // Predicated region
        $region25: #{tpu_custom_call.1} parent=11 // pred_check
          %p174 = pneg %p124
        $region26: #{tpu_custom_call.1} parent=11 // pred_check_branch
          %176 = sbr.rel (%p174) target = $region28
        $region27: #{tpu_custom_call.1} parent=11 // pred_region
          _
        $region28: #{tpu_custom_call.1} parent=11 // pred_fallthru
          _
      $region12: #{tpu_custom_call.1} parent=5 // pred_fallthru
        _
      %p177 = scmp.lt.s32.totalorder %s14, 2
      // Predicated region
      $region29: #{tpu_custom_call.1} parent=5 // pred_check
        %p178 = pneg %p177
      $region30: #{tpu_custom_call.1} parent=5 // pred_check_branch
        %180 = sbr.rel (%p178) target = $region32
      $region31: #{tpu_custom_call.1} parent=5 // pred_region
        // Predicated region
        $region33: #{tpu_custom_call.1} parent=31 // pred_check
          %p181 = pneg %p34
        $region34: #{tpu_custom_call.1} parent=31 // pred_check_branch
          %183 = sbr.rel (%p181) target = $region36
        $region35: #{tpu_custom_call.1} parent=31 // pred_region
          %p184 = scmp.lt.s32.totalorder %s14, 1
          %s185 = scalar_select %p184, %s14, 1
          %s186 = smul.addr %s185, 48
          %s187 = smul.addr %s186, 8
          %s188 = scalar_lea.vmem %s0, %s187
        $region36: #{tpu_custom_call.1} parent=31 // pred_fallthru
          _
      $region32: #{tpu_custom_call.1} parent=5 // pred_fallthru
        _
      %p189 = scmp.le.s32.totalorder 1, %s14
      %p190 = scmp.lt.s32.totalorder %s14, 3
      %p191 = pnand %p189, %p190
      %p192 = pneg %p191
      // Predicated region
      $region37: #{tpu_custom_call.1} parent=5 // pred_check
        _
      $region38: #{tpu_custom_call.1} parent=5 // pred_check_branch
        %194 = sbr.rel (%p191) target = $region40
      $region39: #{tpu_custom_call.1} parent=5 // pred_region
        %s195 = ssub.s32 %s14, 1
        %p196 = scmp.lt.s32.totalorder %s19, 1
        %s197 = scalar_select %p196, %s19, 1
        %s198 = smul.addr %s197, 48
        %s199 = smul.addr %s198, 8
        %s200 = scalar_lea.vmem %s0, %s199
        %p201 = pneg %p40
        %p202 = pneg %p37
        %p203 = pneg %p61
        %p204 = pneg %p58
        %p205 = pneg %p82
        %p206 = pneg %p79
        %p207 = pneg %p103
        %p208 = pneg %p100
        %p209 = pneg %p124
        %p210 = pneg %p121
        %p211 = pneg %p150
        %p212 = pneg %p147
        %s213 = sand.u32 %s137, 1
        %s214 = scalar_lea.sflag [#allocation3], %s213
        %s215 = sand.u32 %s137, 1
        %s216 = smul.addr %s215, 384
        %s217 = scalar_lea.vmem [#allocation2], %s216
        %p218 = scmp.lt.s32.totalorder %s19, 1
        %s219 = scalar_select %p218, %s19, 1
        %s220 = smul.addr %s219, 48
        %s221 = smul.addr %s220, 8
        %s222 = scalar_lea.vmem %s0, %s221
        %v223 = vld [vmem:[%s222] sm:$0xff]
        %v224 = vld [vmem:[%s222 + $0x8] sm:$0xff]
        %v225 = vld [vmem:[%s222 + $0x10] sm:$0xff]
        %v226 = vld [vmem:[%s222 + $0x18] sm:$0xff]
        %v227 = vld [vmem:[%s222 + $0x20] sm:$0xff]
        %v228 = vld [vmem:[%s222 + $0x28] sm:$0xff]
        %v229 = vld [vmem:[%s222 + $0x30] sm:$0xff]
        %v230 = vld [vmem:[%s222 + $0x38] sm:$0xff]
        %v231 = vld [vmem:[%s222 + $0x40] sm:$0xff]
        %v232 = vld [vmem:[%s222 + $0x48] sm:$0xff]
        %v233 = vld [vmem:[%s222 + $0x50] sm:$0xff]
        %v234 = vld [vmem:[%s222 + $0x58] sm:$0xff]
        %v235 = vld [vmem:[%s222 + $0x60] sm:$0xff]
        %v236 = vld [vmem:[%s222 + $0x68] sm:$0xff]
        %v237 = vld [vmem:[%s222 + $0x70] sm:$0xff]
        %v238 = vld [vmem:[%s222 + $0x78] sm:$0xff]
        %v239 = vld [vmem:[%s222 + $0x80] sm:$0xff]
        %v240 = vld [vmem:[%s222 + $0x88] sm:$0xff]
        %v241 = vld [vmem:[%s222 + $0x90] sm:$0xff]
        %v242 = vld [vmem:[%s222 + $0x98] sm:$0xff]
        %v243 = vld [vmem:[%s222 + $0xa0] sm:$0xff]
        %v244 = vld [vmem:[%s222 + $0xa8] sm:$0xff]
        %v245 = vld [vmem:[%s222 + $0xb0] sm:$0xff]
        %v246 = vld [vmem:[%s222 + $0xb8] sm:$0xff]
        %v247 = vld [vmem:[%s222 + $0xc0] sm:$0xff]
        %v248 = vld [vmem:[%s222 + $0xc8] sm:$0xff]
        %v249 = vld [vmem:[%s222 + $0xd0] sm:$0xff]
        %v250 = vld [vmem:[%s222 + $0xd8] sm:$0xff]
        %v251 = vld [vmem:[%s222 + $0xe0] sm:$0xff]
        %v252 = vld [vmem:[%s222 + $0xe8] sm:$0xff]
        %v253 = vld [vmem:[%s222 + $0xf0] sm:$0xff]
        %v254 = vld [vmem:[%s222 + $0xf8] sm:$0xff]
        %v255 = vld [vmem:[%s222 + $0x100] sm:$0xff]
        %v256 = vld [vmem:[%s222 + $0x108] sm:$0xff]
        %v257 = vld [vmem:[%s222 + $0x110] sm:$0xff]
        %v258 = vld [vmem:[%s222 + $0x118] sm:$0xff]
        %v259 = vld [vmem:[%s222 + $0x120] sm:$0xff]
        %v260 = vld [vmem:[%s222 + $0x128] sm:$0xff]
        %v261 = vld [vmem:[%s222 + $0x130] sm:$0xff]
        %v262 = vld [vmem:[%s222 + $0x138] sm:$0xff]
        %v263 = vld [vmem:[%s222 + $0x140] sm:$0xff]
        %v264 = vld [vmem:[%s222 + $0x148] sm:$0xff]
        %v265 = vld [vmem:[%s222 + $0x150] sm:$0xff]
        %v266 = vld [vmem:[%s222 + $0x158] sm:$0xff]
        %v267 = vld [vmem:[%s222 + $0x160] sm:$0xff]
        %v268 = vld [vmem:[%s222 + $0x168] sm:$0xff]
        %v269 = vld [vmem:[%s222 + $0x170] sm:$0xff]
        %v270 = vld [vmem:[%s222 + $0x178] sm:$0xff]
        %v271 = vld [vmem:[%s2] sm:$0xff]
        %v272 = vld [vmem:[%s2 + $0x8] sm:$0xff]
        %v273 = vld [vmem:[%s2 + $0x10] sm:$0xff]
        %v274 = vld [vmem:[%s2 + $0x18] sm:$0xff]
        %v275 = vld [vmem:[%s2 + $0x20] sm:$0xff]
        %v276 = vld [vmem:[%s2 + $0x28] sm:$0xff]
        %v277 = vld [vmem:[%s2 + $0x30] sm:$0xff]
        %v278 = vld [vmem:[%s2 + $0x38] sm:$0xff]
        %v279 = vld [vmem:[%s2 + $0x40] sm:$0xff]
        %v280 = vld [vmem:[%s2 + $0x48] sm:$0xff]
        %v281 = vld [vmem:[%s2 + $0x50] sm:$0xff]
        %v282 = vld [vmem:[%s2 + $0x58] sm:$0xff]
        %v283 = vld [vmem:[%s2 + $0x60] sm:$0xff]
        %v284 = vld [vmem:[%s2 + $0x68] sm:$0xff]
        %v285 = vld [vmem:[%s2 + $0x70] sm:$0xff]
        %v286 = vld [vmem:[%s2 + $0x78] sm:$0xff]
        %v287 = vld [vmem:[%s2 + $0x80] sm:$0xff]
        %v288 = vld [vmem:[%s2 + $0x88] sm:$0xff]
        %v289 = vld [vmem:[%s2 + $0x90] sm:$0xff]
        %v290 = vld [vmem:[%s2 + $0x98] sm:$0xff]
        %v291 = vld [vmem:[%s2 + $0xa0] sm:$0xff]
        %v292 = vld [vmem:[%s2 + $0xa8] sm:$0xff]
        %v293 = vld [vmem:[%s2 + $0xb0] sm:$0xff]
        %v294 = vld [vmem:[%s2 + $0xb8] sm:$0xff]
        %v295 = vld [vmem:[%s2 + $0xc0] sm:$0xff]
        %v296 = vld [vmem:[%s2 + $0xc8] sm:$0xff]
        %v297 = vld [vmem:[%s2 + $0xd0] sm:$0xff]
        %v298 = vld [vmem:[%s2 + $0xd8] sm:$0xff]
        %v299 = vld [vmem:[%s2 + $0xe0] sm:$0xff]
        %v300 = vld [vmem:[%s2 + $0xe8] sm:$0xff]
        %v301 = vld [vmem:[%s2 + $0xf0] sm:$0xff]
        %v302 = vld [vmem:[%s2 + $0xf8] sm:$0xff]
        %v303 = vld [vmem:[%s2 + $0x100] sm:$0xff]
        %v304 = vld [vmem:[%s2 + $0x108] sm:$0xff]
        %v305 = vld [vmem:[%s2 + $0x110] sm:$0xff]
        %v306 = vld [vmem:[%s2 + $0x118] sm:$0xff]
        %v307 = vld [vmem:[%s2 + $0x120] sm:$0xff]
        %v308 = vld [vmem:[%s2 + $0x128] sm:$0xff]
        %v309 = vld [vmem:[%s2 + $0x130] sm:$0xff]
        %v310 = vld [vmem:[%s2 + $0x138] sm:$0xff]
        %v311 = vld [vmem:[%s2 + $0x140] sm:$0xff]
        %v312 = vld [vmem:[%s2 + $0x148] sm:$0xff]
        %v313 = vld [vmem:[%s2 + $0x150] sm:$0xff]
        %v314 = vld [vmem:[%s2 + $0x158] sm:$0xff]
        %v315 = vld [vmem:[%s2 + $0x160] sm:$0xff]
        %v316 = vld [vmem:[%s2 + $0x168] sm:$0xff]
        %v317 = vld [vmem:[%s2 + $0x170] sm:$0xff]
        %v318 = vld [vmem:[%s2 + $0x178] sm:$0xff]
        %v319 = vld [vmem:[%s2 + $0x180] sm:$0xff]
        %v320 = vld [vmem:[%s2 + $0x188] sm:$0xff]
        %v321 = vld [vmem:[%s2 + $0x190] sm:$0xff]
        %v322 = vld [vmem:[%s2 + $0x198] sm:$0xff]
        %v323 = vld [vmem:[%s2 + $0x1a0] sm:$0xff]
        %v324 = vld [vmem:[%s2 + $0x1a8] sm:$0xff]
        %v325 = vld [vmem:[%s2 + $0x1b0] sm:$0xff]
        %v326 = vld [vmem:[%s2 + $0x1b8] sm:$0xff]
        %v327 = vld [vmem:[%s2 + $0x1c0] sm:$0xff]
        %v328 = vld [vmem:[%s2 + $0x1c8] sm:$0xff]
        %v329 = vld [vmem:[%s2 + $0x1d0] sm:$0xff]
        %v330 = vld [vmem:[%s2 + $0x1d8] sm:$0xff]
        %v331 = vld [vmem:[%s2 + $0x1e0] sm:$0xff]
        %v332 = vld [vmem:[%s2 + $0x1e8] sm:$0xff]
        %v333 = vld [vmem:[%s2 + $0x1f0] sm:$0xff]
        %v334 = vld [vmem:[%s2 + $0x1f8] sm:$0xff]
        %v335 = vld [vmem:[%s2 + $0x200] sm:$0xff]
        %v336 = vld [vmem:[%s2 + $0x208] sm:$0xff]
        %v337 = vld [vmem:[%s2 + $0x210] sm:$0xff]
        %v338 = vld [vmem:[%s2 + $0x218] sm:$0xff]
        %v339 = vld [vmem:[%s2 + $0x220] sm:$0xff]
        %v340 = vld [vmem:[%s2 + $0x228] sm:$0xff]
        %v341 = vld [vmem:[%s2 + $0x230] sm:$0xff]
        %v342 = vld [vmem:[%s2 + $0x238] sm:$0xff]
        %v343 = vld [vmem:[%s2 + $0x240] sm:$0xff]
        %v344 = vld [vmem:[%s2 + $0x248] sm:$0xff]
        %v345 = vld [vmem:[%s2 + $0x250] sm:$0xff]
        %v346 = vld [vmem:[%s2 + $0x258] sm:$0xff]
        %v347 = vld [vmem:[%s2 + $0x260] sm:$0xff]
        %v348 = vld [vmem:[%s2 + $0x268] sm:$0xff]
        %v349 = vld [vmem:[%s2 + $0x270] sm:$0xff]
        %v350 = vld [vmem:[%s2 + $0x278] sm:$0xff]
        %v351 = vld [vmem:[%s2 + $0x280] sm:$0xff]
        %v352 = vld [vmem:[%s2 + $0x288] sm:$0xff]
        %v353 = vld [vmem:[%s2 + $0x290] sm:$0xff]
        %v354 = vld [vmem:[%s2 + $0x298] sm:$0xff]
        %v355 = vld [vmem:[%s2 + $0x2a0] sm:$0xff]
        %v356 = vld [vmem:[%s2 + $0x2a8] sm:$0xff]
        %v357 = vld [vmem:[%s2 + $0x2b0] sm:$0xff]
        %v358 = vld [vmem:[%s2 + $0x2b8] sm:$0xff]
        %v359 = vld [vmem:[%s2 + $0x2c0] sm:$0xff]
        %v360 = vld [vmem:[%s2 + $0x2c8] sm:$0xff]
        %v361 = vld [vmem:[%s2 + $0x2d0] sm:$0xff]
        %v362 = vld [vmem:[%s2 + $0x2d8] sm:$0xff]
        %v363 = vld [vmem:[%s2 + $0x2e0] sm:$0xff]
        %v364 = vld [vmem:[%s2 + $0x2e8] sm:$0xff]
        %v365 = vld [vmem:[%s2 + $0x2f0] sm:$0xff]
        %v366 = vld [vmem:[%s2 + $0x2f8] sm:$0xff]
        %v367 = vld [vmem:[%s2 + $0x300] sm:$0xff]
        %v368 = vld [vmem:[%s2 + $0x308] sm:$0xff]
        %v369 = vld [vmem:[%s2 + $0x310] sm:$0xff]
        %v370 = vld [vmem:[%s2 + $0x318] sm:$0xff]
        %v371 = vld [vmem:[%s2 + $0x320] sm:$0xff]
        %v372 = vld [vmem:[%s2 + $0x328] sm:$0xff]
        %v373 = vld [vmem:[%s2 + $0x330] sm:$0xff]
        %v374 = vld [vmem:[%s2 + $0x338] sm:$0xff]
        %v375 = vld [vmem:[%s2 + $0x340] sm:$0xff]
        %v376 = vld [vmem:[%s2 + $0x348] sm:$0xff]
        %v377 = vld [vmem:[%s2 + $0x350] sm:$0xff]
        %v378 = vld [vmem:[%s2 + $0x358] sm:$0xff]
        %v379 = vld [vmem:[%s2 + $0x360] sm:$0xff]
        %v380 = vld [vmem:[%s2 + $0x368] sm:$0xff]
        %v381 = vld [vmem:[%s2 + $0x370] sm:$0xff]
        %v382 = vld [vmem:[%s2 + $0x378] sm:$0xff]
        %v383 = vld [vmem:[%s2 + $0x380] sm:$0xff]
        %v384 = vld [vmem:[%s2 + $0x388] sm:$0xff]
        %v385 = vld [vmem:[%s2 + $0x390] sm:$0xff]
        %v386 = vld [vmem:[%s2 + $0x398] sm:$0xff]
        %v387 = vld [vmem:[%s2 + $0x3a0] sm:$0xff]
        %v388 = vld [vmem:[%s2 + $0x3a8] sm:$0xff]
        %v389 = vld [vmem:[%s2 + $0x3b0] sm:$0xff]
        %v390 = vld [vmem:[%s2 + $0x3b8] sm:$0xff]
        %v391 = vld [vmem:[%s2 + $0x3c0] sm:$0xff]
        %v392 = vld [vmem:[%s2 + $0x3c8] sm:$0xff]
        %v393 = vld [vmem:[%s2 + $0x3d0] sm:$0xff]
        %v394 = vld [vmem:[%s2 + $0x3d8] sm:$0xff]
        %v395 = vld [vmem:[%s2 + $0x3e0] sm:$0xff]
        %v396 = vld [vmem:[%s2 + $0x3e8] sm:$0xff]
        %v397 = vld [vmem:[%s2 + $0x3f0] sm:$0xff]
        %v398 = vld [vmem:[%s2 + $0x3f8] sm:$0xff]
        %v399 = vld [vmem:[%s2 + $0x400] sm:$0xff]
        %v400 = vld [vmem:[%s2 + $0x408] sm:$0xff]
        %v401 = vld [vmem:[%s2 + $0x410] sm:$0xff]
        %v402 = vld [vmem:[%s2 + $0x418] sm:$0xff]
        %v403 = vld [vmem:[%s2 + $0x420] sm:$0xff]
        %v404 = vld [vmem:[%s2 + $0x428] sm:$0xff]
        %v405 = vld [vmem:[%s2 + $0x430] sm:$0xff]
        %v406 = vld [vmem:[%s2 + $0x438] sm:$0xff]
        %v407 = vld [vmem:[%s2 + $0x440] sm:$0xff]
        %v408 = vld [vmem:[%s2 + $0x448] sm:$0xff]
        %v409 = vld [vmem:[%s2 + $0x450] sm:$0xff]
        %v410 = vld [vmem:[%s2 + $0x458] sm:$0xff]
        %v411 = vld [vmem:[%s2 + $0x460] sm:$0xff]
        %v412 = vld [vmem:[%s2 + $0x468] sm:$0xff]
        %v413 = vld [vmem:[%s2 + $0x470] sm:$0xff]
        %v414 = vld [vmem:[%s2 + $0x478] sm:$0xff]
        %v415 = vld [vmem:[%s2 + $0x480] sm:$0xff]
        %v416 = vld [vmem:[%s2 + $0x488] sm:$0xff]
        %v417 = vld [vmem:[%s2 + $0x490] sm:$0xff]
        %v418 = vld [vmem:[%s2 + $0x498] sm:$0xff]
        %v419 = vld [vmem:[%s2 + $0x4a0] sm:$0xff]
        %v420 = vld [vmem:[%s2 + $0x4a8] sm:$0xff]
        %v421 = vld [vmem:[%s2 + $0x4b0] sm:$0xff]
        %v422 = vld [vmem:[%s2 + $0x4b8] sm:$0xff]
        %v423 = vld [vmem:[%s2 + $0x4c0] sm:$0xff]
        %v424 = vld [vmem:[%s2 + $0x4c8] sm:$0xff]
        %v425 = vld [vmem:[%s2 + $0x4d0] sm:$0xff]
        %v426 = vld [vmem:[%s2 + $0x4d8] sm:$0xff]
        %v427 = vld [vmem:[%s2 + $0x4e0] sm:$0xff]
        %v428 = vld [vmem:[%s2 + $0x4e8] sm:$0xff]
        %v429 = vld [vmem:[%s2 + $0x4f0] sm:$0xff]
        %v430 = vld [vmem:[%s2 + $0x4f8] sm:$0xff]
        %v431 = vld [vmem:[%s2 + $0x500] sm:$0xff]
        %v432 = vld [vmem:[%s2 + $0x508] sm:$0xff]
        %v433 = vld [vmem:[%s2 + $0x510] sm:$0xff]
        %v434 = vld [vmem:[%s2 + $0x518] sm:$0xff]
        %v435 = vld [vmem:[%s2 + $0x520] sm:$0xff]
        %v436 = vld [vmem:[%s2 + $0x528] sm:$0xff]
        %v437 = vld [vmem:[%s2 + $0x530] sm:$0xff]
        %v438 = vld [vmem:[%s2 + $0x538] sm:$0xff]
        %v439 = vld [vmem:[%s2 + $0x540] sm:$0xff]
        %v440 = vld [vmem:[%s2 + $0x548] sm:$0xff]
        %v441 = vld [vmem:[%s2 + $0x550] sm:$0xff]
        %v442 = vld [vmem:[%s2 + $0x558] sm:$0xff]
        %v443 = vld [vmem:[%s2 + $0x560] sm:$0xff]
        %v444 = vld [vmem:[%s2 + $0x568] sm:$0xff]
        %v445 = vld [vmem:[%s2 + $0x570] sm:$0xff]
        %v446 = vld [vmem:[%s2 + $0x578] sm:$0xff]
        %v447 = vld [vmem:[%s2 + $0x580] sm:$0xff]
        %v448 = vld [vmem:[%s2 + $0x588] sm:$0xff]
        %v449 = vld [vmem:[%s2 + $0x590] sm:$0xff]
        %v450 = vld [vmem:[%s2 + $0x598] sm:$0xff]
        %v451 = vld [vmem:[%s2 + $0x5a0] sm:$0xff]
        %v452 = vld [vmem:[%s2 + $0x5a8] sm:$0xff]
        %v453 = vld [vmem:[%s2 + $0x5b0] sm:$0xff]
        %v454 = vld [vmem:[%s2 + $0x5b8] sm:$0xff]
        %v455 = vld [vmem:[%s2 + $0x5c0] sm:$0xff]
        %v456 = vld [vmem:[%s2 + $0x5c8] sm:$0xff]
        %v457 = vld [vmem:[%s2 + $0x5d0] sm:$0xff]
        %v458 = vld [vmem:[%s2 + $0x5d8] sm:$0xff]
        %v459 = vld [vmem:[%s2 + $0x5e0] sm:$0xff]
        %v460 = vld [vmem:[%s2 + $0x5e8] sm:$0xff]
        %v461 = vld [vmem:[%s2 + $0x5f0] sm:$0xff]
        %v462 = vld [vmem:[%s2 + $0x5f8] sm:$0xff]
        %v463 = vld [vmem:[%s2 + $0x600] sm:$0xff]
        %v464 = vld [vmem:[%s2 + $0x608] sm:$0xff]
        %v465 = vld [vmem:[%s2 + $0x610] sm:$0xff]
        %v466 = vld [vmem:[%s2 + $0x618] sm:$0xff]
        %v467 = vld [vmem:[%s2 + $0x620] sm:$0xff]
        %v468 = vld [vmem:[%s2 + $0x628] sm:$0xff]
        %v469 = vld [vmem:[%s2 + $0x630] sm:$0xff]
        %v470 = vld [vmem:[%s2 + $0x638] sm:$0xff]
        %v471 = vld [vmem:[%s2 + $0x640] sm:$0xff]
        %v472 = vld [vmem:[%s2 + $0x648] sm:$0xff]
        %v473 = vld [vmem:[%s2 + $0x650] sm:$0xff]
        %v474 = vld [vmem:[%s2 + $0x658] sm:$0xff]
        %v475 = vld [vmem:[%s2 + $0x660] sm:$0xff]
        %v476 = vld [vmem:[%s2 + $0x668] sm:$0xff]
        %v477 = vld [vmem:[%s2 + $0x670] sm:$0xff]
        %v478 = vld [vmem:[%s2 + $0x678] sm:$0xff]
        %v479 = vld [vmem:[%s2 + $0x680] sm:$0xff]
        %v480 = vld [vmem:[%s2 + $0x688] sm:$0xff]
        %v481 = vld [vmem:[%s2 + $0x690] sm:$0xff]
        %v482 = vld [vmem:[%s2 + $0x698] sm:$0xff]
        %v483 = vld [vmem:[%s2 + $0x6a0] sm:$0xff]
        %v484 = vld [vmem:[%s2 + $0x6a8] sm:$0xff]
        %v485 = vld [vmem:[%s2 + $0x6b0] sm:$0xff]
        %v486 = vld [vmem:[%s2 + $0x6b8] sm:$0xff]
        %v487 = vld [vmem:[%s2 + $0x6c0] sm:$0xff]
        %v488 = vld [vmem:[%s2 + $0x6c8] sm:$0xff]
        %v489 = vld [vmem:[%s2 + $0x6d0] sm:$0xff]
        %v490 = vld [vmem:[%s2 + $0x6d8] sm:$0xff]
        %v491 = vld [vmem:[%s2 + $0x6e0] sm:$0xff]
        %v492 = vld [vmem:[%s2 + $0x6e8] sm:$0xff]
        %v493 = vld [vmem:[%s2 + $0x6f0] sm:$0xff]
        %v494 = vld [vmem:[%s2 + $0x6f8] sm:$0xff]
        %v495 = vld [vmem:[%s2 + $0x700] sm:$0xff]
        %v496 = vld [vmem:[%s2 + $0x708] sm:$0xff]
        %v497 = vld [vmem:[%s2 + $0x710] sm:$0xff]
        %v498 = vld [vmem:[%s2 + $0x718] sm:$0xff]
        %v499 = vld [vmem:[%s2 + $0x720] sm:$0xff]
        %v500 = vld [vmem:[%s2 + $0x728] sm:$0xff]
        %v501 = vld [vmem:[%s2 + $0x730] sm:$0xff]
        %v502 = vld [vmem:[%s2 + $0x738] sm:$0xff]
        %v503 = vld [vmem:[%s2 + $0x740] sm:$0xff]
        %v504 = vld [vmem:[%s2 + $0x748] sm:$0xff]
        %v505 = vld [vmem:[%s2 + $0x750] sm:$0xff]
        %v506 = vld [vmem:[%s2 + $0x758] sm:$0xff]
        %v507 = vld [vmem:[%s2 + $0x760] sm:$0xff]
        %v508 = vld [vmem:[%s2 + $0x768] sm:$0xff]
        %v509 = vld [vmem:[%s2 + $0x770] sm:$0xff]
        %v510 = vld [vmem:[%s2 + $0x778] sm:$0xff]
        %v511 = vld [vmem:[%s2 + $0x780] sm:$0xff]
        %v512 = vld [vmem:[%s2 + $0x788] sm:$0xff]
        %v513 = vld [vmem:[%s2 + $0x790] sm:$0xff]
        %v514 = vld [vmem:[%s2 + $0x798] sm:$0xff]
        %v515 = vld [vmem:[%s2 + $0x7a0] sm:$0xff]
        %v516 = vld [vmem:[%s2 + $0x7a8] sm:$0xff]
        %v517 = vld [vmem:[%s2 + $0x7b0] sm:$0xff]
        %v518 = vld [vmem:[%s2 + $0x7b8] sm:$0xff]
        %v519 = vld [vmem:[%s2 + $0x7c0] sm:$0xff]
        %v520 = vld [vmem:[%s2 + $0x7c8] sm:$0xff]
        %v521 = vld [vmem:[%s2 + $0x7d0] sm:$0xff]
        %v522 = vld [vmem:[%s2 + $0x7d8] sm:$0xff]
        %v523 = vld [vmem:[%s2 + $0x7e0] sm:$0xff]
        %v524 = vld [vmem:[%s2 + $0x7e8] sm:$0xff]
        %v525 = vld [vmem:[%s2 + $0x7f0] sm:$0xff]
        %v526 = vld [vmem:[%s2 + $0x7f8] sm:$0xff]
        %v527 = vld [vmem:[%s2 + $0x800] sm:$0xff]
        %v528 = vld [vmem:[%s2 + $0x808] sm:$0xff]
        %v529 = vld [vmem:[%s2 + $0x810] sm:$0xff]
        %v530 = vld [vmem:[%s2 + $0x818] sm:$0xff]
        %v531 = vld [vmem:[%s2 + $0x820] sm:$0xff]
        %v532 = vld [vmem:[%s2 + $0x828] sm:$0xff]
        %v533 = vld [vmem:[%s2 + $0x830] sm:$0xff]
        %v534 = vld [vmem:[%s2 + $0x838] sm:$0xff]
        %v535 = vld [vmem:[%s2 + $0x840] sm:$0xff]
        %v536 = vld [vmem:[%s2 + $0x848] sm:$0xff]
        %v537 = vld [vmem:[%s2 + $0x850] sm:$0xff]
        %v538 = vld [vmem:[%s2 + $0x858] sm:$0xff]
        %v539 = vld [vmem:[%s2 + $0x860] sm:$0xff]
        %v540 = vld [vmem:[%s2 + $0x868] sm:$0xff]
        %v541 = vld [vmem:[%s2 + $0x870] sm:$0xff]
        %v542 = vld [vmem:[%s2 + $0x878] sm:$0xff]
        %v543 = vld [vmem:[%s2 + $0x880] sm:$0xff]
        %v544 = vld [vmem:[%s2 + $0x888] sm:$0xff]
        %v545 = vld [vmem:[%s2 + $0x890] sm:$0xff]
        %v546 = vld [vmem:[%s2 + $0x898] sm:$0xff]
        %v547 = vld [vmem:[%s2 + $0x8a0] sm:$0xff]
        %v548 = vld [vmem:[%s2 + $0x8a8] sm:$0xff]
        %v549 = vld [vmem:[%s2 + $0x8b0] sm:$0xff]
        %v550 = vld [vmem:[%s2 + $0x8b8] sm:$0xff]
        %v551 = vld [vmem:[%s2 + $0x8c0] sm:$0xff]
        %v552 = vld [vmem:[%s2 + $0x8c8] sm:$0xff]
        %v553 = vld [vmem:[%s2 + $0x8d0] sm:$0xff]
        %v554 = vld [vmem:[%s2 + $0x8d8] sm:$0xff]
        %v555 = vld [vmem:[%s2 + $0x8e0] sm:$0xff]
        %v556 = vld [vmem:[%s2 + $0x8e8] sm:$0xff]
        %v557 = vld [vmem:[%s2 + $0x8f0] sm:$0xff]
        %v558 = vld [vmem:[%s2 + $0x8f8] sm:$0xff]
        %v559 = vld [vmem:[%s2 + $0x900] sm:$0xff]
        %v560 = vld [vmem:[%s2 + $0x908] sm:$0xff]
        %v561 = vld [vmem:[%s2 + $0x910] sm:$0xff]
        %v562 = vld [vmem:[%s2 + $0x918] sm:$0xff]
        %v563 = vld [vmem:[%s2 + $0x920] sm:$0xff]
        %v564 = vld [vmem:[%s2 + $0x928] sm:$0xff]
        %v565 = vld [vmem:[%s2 + $0x930] sm:$0xff]
        %v566 = vld [vmem:[%s2 + $0x938] sm:$0xff]
        %v567 = vld [vmem:[%s2 + $0x940] sm:$0xff]
        %v568 = vld [vmem:[%s2 + $0x948] sm:$0xff]
        %v569 = vld [vmem:[%s2 + $0x950] sm:$0xff]
        %v570 = vld [vmem:[%s2 + $0x958] sm:$0xff]
        %v571 = vld [vmem:[%s2 + $0x960] sm:$0xff]
        %v572 = vld [vmem:[%s2 + $0x968] sm:$0xff]
        %v573 = vld [vmem:[%s2 + $0x970] sm:$0xff]
        %v574 = vld [vmem:[%s2 + $0x978] sm:$0xff]
        %v575 = vld [vmem:[%s2 + $0x980] sm:$0xff]
        %v576 = vld [vmem:[%s2 + $0x988] sm:$0xff]
        %v577 = vld [vmem:[%s2 + $0x990] sm:$0xff]
        %v578 = vld [vmem:[%s2 + $0x998] sm:$0xff]
        %v579 = vld [vmem:[%s2 + $0x9a0] sm:$0xff]
        %v580 = vld [vmem:[%s2 + $0x9a8] sm:$0xff]
        %v581 = vld [vmem:[%s2 + $0x9b0] sm:$0xff]
        %v582 = vld [vmem:[%s2 + $0x9b8] sm:$0xff]
        %v583 = vld [vmem:[%s2 + $0x9c0] sm:$0xff]
        %v584 = vld [vmem:[%s2 + $0x9c8] sm:$0xff]
        %v585 = vld [vmem:[%s2 + $0x9d0] sm:$0xff]
        %v586 = vld [vmem:[%s2 + $0x9d8] sm:$0xff]
        %v587 = vld [vmem:[%s2 + $0x9e0] sm:$0xff]
        %v588 = vld [vmem:[%s2 + $0x9e8] sm:$0xff]
        %v589 = vld [vmem:[%s2 + $0x9f0] sm:$0xff]
        %v590 = vld [vmem:[%s2 + $0x9f8] sm:$0xff]
        %v591 = vld [vmem:[%s2 + $0xa00] sm:$0xff]
        %v592 = vld [vmem:[%s2 + $0xa08] sm:$0xff]
        %v593 = vld [vmem:[%s2 + $0xa10] sm:$0xff]
        %v594 = vld [vmem:[%s2 + $0xa18] sm:$0xff]
        %v595 = vld [vmem:[%s2 + $0xa20] sm:$0xff]
        %v596 = vld [vmem:[%s2 + $0xa28] sm:$0xff]
        %v597 = vld [vmem:[%s2 + $0xa30] sm:$0xff]
        %v598 = vld [vmem:[%s2 + $0xa38] sm:$0xff]
        %v599 = vld [vmem:[%s2 + $0xa40] sm:$0xff]
        %v600 = vld [vmem:[%s2 + $0xa48] sm:$0xff]
        %v601 = vld [vmem:[%s2 + $0xa50] sm:$0xff]
        %v602 = vld [vmem:[%s2 + $0xa58] sm:$0xff]
        %v603 = vld [vmem:[%s2 + $0xa60] sm:$0xff]
        %v604 = vld [vmem:[%s2 + $0xa68] sm:$0xff]
        %v605 = vld [vmem:[%s2 + $0xa70] sm:$0xff]
        %v606 = vld [vmem:[%s2 + $0xa78] sm:$0xff]
        %v607 = vld [vmem:[%s2 + $0xa80] sm:$0xff]
        %v608 = vld [vmem:[%s2 + $0xa88] sm:$0xff]
        %v609 = vld [vmem:[%s2 + $0xa90] sm:$0xff]
        %v610 = vld [vmem:[%s2 + $0xa98] sm:$0xff]
        %v611 = vld [vmem:[%s2 + $0xaa0] sm:$0xff]
        %v612 = vld [vmem:[%s2 + $0xaa8] sm:$0xff]
        %v613 = vld [vmem:[%s2 + $0xab0] sm:$0xff]
        %v614 = vld [vmem:[%s2 + $0xab8] sm:$0xff]
        %v615 = vld [vmem:[%s2 + $0xac0] sm:$0xff]
        %v616 = vld [vmem:[%s2 + $0xac8] sm:$0xff]
        %v617 = vld [vmem:[%s2 + $0xad0] sm:$0xff]
        %v618 = vld [vmem:[%s2 + $0xad8] sm:$0xff]
        %v619 = vld [vmem:[%s2 + $0xae0] sm:$0xff]
        %v620 = vld [vmem:[%s2 + $0xae8] sm:$0xff]
        %v621 = vld [vmem:[%s2 + $0xaf0] sm:$0xff]
        %v622 = vld [vmem:[%s2 + $0xaf8] sm:$0xff]
        %v623 = vld [vmem:[%s2 + $0xb00] sm:$0xff]
        %v624 = vld [vmem:[%s2 + $0xb08] sm:$0xff]
        %v625 = vld [vmem:[%s2 + $0xb10] sm:$0xff]
        %v626 = vld [vmem:[%s2 + $0xb18] sm:$0xff]
        %v627 = vld [vmem:[%s2 + $0xb20] sm:$0xff]
        %v628 = vld [vmem:[%s2 + $0xb28] sm:$0xff]
        %v629 = vld [vmem:[%s2 + $0xb30] sm:$0xff]
        %v630 = vld [vmem:[%s2 + $0xb38] sm:$0xff]
        %v631 = vld [vmem:[%s2 + $0xb40] sm:$0xff]
        %v632 = vld [vmem:[%s2 + $0xb48] sm:$0xff]
        %v633 = vld [vmem:[%s2 + $0xb50] sm:$0xff]
        %v634 = vld [vmem:[%s2 + $0xb58] sm:$0xff]
        %v635 = vld [vmem:[%s2 + $0xb60] sm:$0xff]
        %v636 = vld [vmem:[%s2 + $0xb68] sm:$0xff]
        %v637 = vld [vmem:[%s2 + $0xb70] sm:$0xff]
        %v638 = vld [vmem:[%s2 + $0xb78] sm:$0xff]
        %v639 = vld [vmem:[%s2 + $0xb80] sm:$0xff]
        %v640 = vld [vmem:[%s2 + $0xb88] sm:$0xff]
        %v641 = vld [vmem:[%s2 + $0xb90] sm:$0xff]
        %v642 = vld [vmem:[%s2 + $0xb98] sm:$0xff]
        %v643 = vld [vmem:[%s2 + $0xba0] sm:$0xff]
        %v644 = vld [vmem:[%s2 + $0xba8] sm:$0xff]
        %v645 = vld [vmem:[%s2 + $0xbb0] sm:$0xff]
        %v646 = vld [vmem:[%s2 + $0xbb8] sm:$0xff]
        %v647 = vld [vmem:[%s2 + $0xbc0] sm:$0xff]
        %v648 = vld [vmem:[%s2 + $0xbc8] sm:$0xff]
        %v649 = vld [vmem:[%s2 + $0xbd0] sm:$0xff]
        %v650 = vld [vmem:[%s2 + $0xbd8] sm:$0xff]
        %v651 = vld [vmem:[%s2 + $0xbe0] sm:$0xff]
        %v652 = vld [vmem:[%s2 + $0xbe8] sm:$0xff]
        %v653 = vld [vmem:[%s2 + $0xbf0] sm:$0xff]
        %v654 = vld [vmem:[%s2 + $0xbf8] sm:$0xff]
        %v655 = vld [vmem:[%s2 + $0xc00] sm:$0xff]
        %v656 = vld [vmem:[%s2 + $0xc08] sm:$0xff]
        %v657 = vld [vmem:[%s2 + $0xc10] sm:$0xff]
        %v658 = vld [vmem:[%s2 + $0xc18] sm:$0xff]
        %v659 = vld [vmem:[%s2 + $0xc20] sm:$0xff]
        %v660 = vld [vmem:[%s2 + $0xc28] sm:$0xff]
        %v661 = vld [vmem:[%s2 + $0xc30] sm:$0xff]
        %v662 = vld [vmem:[%s2 + $0xc38] sm:$0xff]
        %v663 = vld [vmem:[%s2 + $0xc40] sm:$0xff]
        %v664 = vld [vmem:[%s2 + $0xc48] sm:$0xff]
        %v665 = vld [vmem:[%s2 + $0xc50] sm:$0xff]
        %v666 = vld [vmem:[%s2 + $0xc58] sm:$0xff]
        %v667 = vld [vmem:[%s2 + $0xc60] sm:$0xff]
        %v668 = vld [vmem:[%s2 + $0xc68] sm:$0xff]
        %v669 = vld [vmem:[%s2 + $0xc70] sm:$0xff]
        %v670 = vld [vmem:[%s2 + $0xc78] sm:$0xff]
        %v671 = vld [vmem:[%s2 + $0xc80] sm:$0xff]
        %v672 = vld [vmem:[%s2 + $0xc88] sm:$0xff]
        %v673 = vld [vmem:[%s2 + $0xc90] sm:$0xff]
        %v674 = vld [vmem:[%s2 + $0xc98] sm:$0xff]
        %v675 = vld [vmem:[%s2 + $0xca0] sm:$0xff]
        %v676 = vld [vmem:[%s2 + $0xca8] sm:$0xff]
        %v677 = vld [vmem:[%s2 + $0xcb0] sm:$0xff]
        %v678 = vld [vmem:[%s2 + $0xcb8] sm:$0xff]
        %v679 = vld [vmem:[%s2 + $0xcc0] sm:$0xff]
        %v680 = vld [vmem:[%s2 + $0xcc8] sm:$0xff]
        %v681 = vld [vmem:[%s2 + $0xcd0] sm:$0xff]
        %v682 = vld [vmem:[%s2 + $0xcd8] sm:$0xff]
        %v683 = vld [vmem:[%s2 + $0xce0] sm:$0xff]
        %v684 = vld [vmem:[%s2 + $0xce8] sm:$0xff]
        %v685 = vld [vmem:[%s2 + $0xcf0] sm:$0xff]
        %v686 = vld [vmem:[%s2 + $0xcf8] sm:$0xff]
        %v687 = vld [vmem:[%s2 + $0xd00] sm:$0xff]
        %v688 = vld [vmem:[%s2 + $0xd08] sm:$0xff]
        %v689 = vld [vmem:[%s2 + $0xd10] sm:$0xff]
        %v690 = vld [vmem:[%s2 + $0xd18] sm:$0xff]
        %v691 = vld [vmem:[%s2 + $0xd20] sm:$0xff]
        %v692 = vld [vmem:[%s2 + $0xd28] sm:$0xff]
        %v693 = vld [vmem:[%s2 + $0xd30] sm:$0xff]
        %v694 = vld [vmem:[%s2 + $0xd38] sm:$0xff]
        %v695 = vld [vmem:[%s2 + $0xd40] sm:$0xff]
        %v696 = vld [vmem:[%s2 + $0xd48] sm:$0xff]
        %v697 = vld [vmem:[%s2 + $0xd50] sm:$0xff]
        %v698 = vld [vmem:[%s2 + $0xd58] sm:$0xff]
        %v699 = vld [vmem:[%s2 + $0xd60] sm:$0xff]
        %v700 = vld [vmem:[%s2 + $0xd68] sm:$0xff]
        %v701 = vld [vmem:[%s2 + $0xd70] sm:$0xff]
        %v702 = vld [vmem:[%s2 + $0xd78] sm:$0xff]
        %v703 = vld [vmem:[%s2 + $0xd80] sm:$0xff]
        %v704 = vld [vmem:[%s2 + $0xd88] sm:$0xff]
        %v705 = vld [vmem:[%s2 + $0xd90] sm:$0xff]
        %v706 = vld [vmem:[%s2 + $0xd98] sm:$0xff]
        %v707 = vld [vmem:[%s2 + $0xda0] sm:$0xff]
        %v708 = vld [vmem:[%s2 + $0xda8] sm:$0xff]
        %v709 = vld [vmem:[%s2 + $0xdb0] sm:$0xff]
        %v710 = vld [vmem:[%s2 + $0xdb8] sm:$0xff]
        %v711 = vld [vmem:[%s2 + $0xdc0] sm:$0xff]
        %v712 = vld [vmem:[%s2 + $0xdc8] sm:$0xff]
        %v713 = vld [vmem:[%s2 + $0xdd0] sm:$0xff]
        %v714 = vld [vmem:[%s2 + $0xdd8] sm:$0xff]
        %v715 = vld [vmem:[%s2 + $0xde0] sm:$0xff]
        %v716 = vld [vmem:[%s2 + $0xde8] sm:$0xff]
        %v717 = vld [vmem:[%s2 + $0xdf0] sm:$0xff]
        %v718 = vld [vmem:[%s2 + $0xdf8] sm:$0xff]
        %v719 = vld [vmem:[%s2 + $0xe00] sm:$0xff]
        %v720 = vld [vmem:[%s2 + $0xe08] sm:$0xff]
        %v721 = vld [vmem:[%s2 + $0xe10] sm:$0xff]
        %v722 = vld [vmem:[%s2 + $0xe18] sm:$0xff]
        %v723 = vld [vmem:[%s2 + $0xe20] sm:$0xff]
        %v724 = vld [vmem:[%s2 + $0xe28] sm:$0xff]
        %v725 = vld [vmem:[%s2 + $0xe30] sm:$0xff]
        %v726 = vld [vmem:[%s2 + $0xe38] sm:$0xff]
        %v727 = vld [vmem:[%s2 + $0xe40] sm:$0xff]
        %v728 = vld [vmem:[%s2 + $0xe48] sm:$0xff]
        %v729 = vld [vmem:[%s2 + $0xe50] sm:$0xff]
        %v730 = vld [vmem:[%s2 + $0xe58] sm:$0xff]
        %v731 = vld [vmem:[%s2 + $0xe60] sm:$0xff]
        %v732 = vld [vmem:[%s2 + $0xe68] sm:$0xff]
        %v733 = vld [vmem:[%s2 + $0xe70] sm:$0xff]
        %v734 = vld [vmem:[%s2 + $0xe78] sm:$0xff]
        %v735 = vld [vmem:[%s2 + $0xe80] sm:$0xff]
        %v736 = vld [vmem:[%s2 + $0xe88] sm:$0xff]
        %v737 = vld [vmem:[%s2 + $0xe90] sm:$0xff]
        %v738 = vld [vmem:[%s2 + $0xe98] sm:$0xff]
        %v739 = vld [vmem:[%s2 + $0xea0] sm:$0xff]
        %v740 = vld [vmem:[%s2 + $0xea8] sm:$0xff]
        %v741 = vld [vmem:[%s2 + $0xeb0] sm:$0xff]
        %v742 = vld [vmem:[%s2 + $0xeb8] sm:$0xff]
        %v743 = vld [vmem:[%s2 + $0xec0] sm:$0xff]
        %v744 = vld [vmem:[%s2 + $0xec8] sm:$0xff]
        %v745 = vld [vmem:[%s2 + $0xed0] sm:$0xff]
        %v746 = vld [vmem:[%s2 + $0xed8] sm:$0xff]
        %v747 = vld [vmem:[%s2 + $0xee0] sm:$0xff]
        %v748 = vld [vmem:[%s2 + $0xee8] sm:$0xff]
        %v749 = vld [vmem:[%s2 + $0xef0] sm:$0xff]
        %v750 = vld [vmem:[%s2 + $0xef8] sm:$0xff]
        %v751 = vld [vmem:[%s2 + $0xf00] sm:$0xff]
        %v752 = vld [vmem:[%s2 + $0xf08] sm:$0xff]
        %v753 = vld [vmem:[%s2 + $0xf10] sm:$0xff]
        %v754 = vld [vmem:[%s2 + $0xf18] sm:$0xff]
        %v755 = vld [vmem:[%s2 + $0xf20] sm:$0xff]
        %v756 = vld [vmem:[%s2 + $0xf28] sm:$0xff]
        %v757 = vld [vmem:[%s2 + $0xf30] sm:$0xff]
        %v758 = vld [vmem:[%s2 + $0xf38] sm:$0xff]
        %v759 = vld [vmem:[%s2 + $0xf40] sm:$0xff]
        %v760 = vld [vmem:[%s2 + $0xf48] sm:$0xff]
        %v761 = vld [vmem:[%s2 + $0xf50] sm:$0xff]
        %v762 = vld [vmem:[%s2 + $0xf58] sm:$0xff]
        %v763 = vld [vmem:[%s2 + $0xf60] sm:$0xff]
        %v764 = vld [vmem:[%s2 + $0xf68] sm:$0xff]
        %v765 = vld [vmem:[%s2 + $0xf70] sm:$0xff]
        %v766 = vld [vmem:[%s2 + $0xf78] sm:$0xff]
        %v767 = vld [vmem:[%s2 + $0xf80] sm:$0xff]
        %v768 = vld [vmem:[%s2 + $0xf88] sm:$0xff]
        %v769 = vld [vmem:[%s2 + $0xf90] sm:$0xff]
        %v770 = vld [vmem:[%s2 + $0xf98] sm:$0xff]
        %v771 = vld [vmem:[%s2 + $0xfa0] sm:$0xff]
        %v772 = vld [vmem:[%s2 + $0xfa8] sm:$0xff]
        %v773 = vld [vmem:[%s2 + $0xfb0] sm:$0xff]
        %v774 = vld [vmem:[%s2 + $0xfb8] sm:$0xff]
        %v775 = vld [vmem:[%s2 + $0xfc0] sm:$0xff]
        %v776 = vld [vmem:[%s2 + $0xfc8] sm:$0xff]
        %v777 = vld [vmem:[%s2 + $0xfd0] sm:$0xff]
        %v778 = vld [vmem:[%s2 + $0xfd8] sm:$0xff]
        %v779 = vld [vmem:[%s2 + $0xfe0] sm:$0xff]
        %v780 = vld [vmem:[%s2 + $0xfe8] sm:$0xff]
        %v781 = vld [vmem:[%s2 + $0xff0] sm:$0xff]
        %v782 = vld [vmem:[%s2 + $0xff8] sm:$0xff]
        %v783 = vld [vmem:[%s2 + $0x1000] sm:$0xff]
        %v784 = vld [vmem:[%s2 + $0x1008] sm:$0xff]
        %v785 = vld [vmem:[%s2 + $0x1010] sm:$0xff]
        %v786 = vld [vmem:[%s2 + $0x1018] sm:$0xff]
        %v787 = vld [vmem:[%s2 + $0x1020] sm:$0xff]
        %v788 = vld [vmem:[%s2 + $0x1028] sm:$0xff]
        %v789 = vld [vmem:[%s2 + $0x1030] sm:$0xff]
        %v790 = vld [vmem:[%s2 + $0x1038] sm:$0xff]
        %v791 = vld [vmem:[%s2 + $0x1040] sm:$0xff]
        %v792 = vld [vmem:[%s2 + $0x1048] sm:$0xff]
        %v793 = vld [vmem:[%s2 + $0x1050] sm:$0xff]
        %v794 = vld [vmem:[%s2 + $0x1058] sm:$0xff]
        %v795 = vld [vmem:[%s2 + $0x1060] sm:$0xff]
        %v796 = vld [vmem:[%s2 + $0x1068] sm:$0xff]
        %v797 = vld [vmem:[%s2 + $0x1070] sm:$0xff]
        %v798 = vld [vmem:[%s2 + $0x1078] sm:$0xff]
        %v799 = vld [vmem:[%s2 + $0x1080] sm:$0xff]
        %v800 = vld [vmem:[%s2 + $0x1088] sm:$0xff]
        %v801 = vld [vmem:[%s2 + $0x1090] sm:$0xff]
        %v802 = vld [vmem:[%s2 + $0x1098] sm:$0xff]
        %v803 = vld [vmem:[%s2 + $0x10a0] sm:$0xff]
        %v804 = vld [vmem:[%s2 + $0x10a8] sm:$0xff]
        %v805 = vld [vmem:[%s2 + $0x10b0] sm:$0xff]
        %v806 = vld [vmem:[%s2 + $0x10b8] sm:$0xff]
        %v807 = vld [vmem:[%s2 + $0x10c0] sm:$0xff]
        %v808 = vld [vmem:[%s2 + $0x10c8] sm:$0xff]
        %v809 = vld [vmem:[%s2 + $0x10d0] sm:$0xff]
        %v810 = vld [vmem:[%s2 + $0x10d8] sm:$0xff]
        %v811 = vld [vmem:[%s2 + $0x10e0] sm:$0xff]
        %v812 = vld [vmem:[%s2 + $0x10e8] sm:$0xff]
        %v813 = vld [vmem:[%s2 + $0x10f0] sm:$0xff]
        %v814 = vld [vmem:[%s2 + $0x10f8] sm:$0xff]
        %v815 = vld [vmem:[%s2 + $0x1100] sm:$0xff]
        %v816 = vld [vmem:[%s2 + $0x1108] sm:$0xff]
        %v817 = vld [vmem:[%s2 + $0x1110] sm:$0xff]
        %v818 = vld [vmem:[%s2 + $0x1118] sm:$0xff]
        %v819 = vld [vmem:[%s2 + $0x1120] sm:$0xff]
        %v820 = vld [vmem:[%s2 + $0x1128] sm:$0xff]
        %v821 = vld [vmem:[%s2 + $0x1130] sm:$0xff]
        %v822 = vld [vmem:[%s2 + $0x1138] sm:$0xff]
        %v823 = vld [vmem:[%s2 + $0x1140] sm:$0xff]
        %v824 = vld [vmem:[%s2 + $0x1148] sm:$0xff]
        %v825 = vld [vmem:[%s2 + $0x1150] sm:$0xff]
        %v826 = vld [vmem:[%s2 + $0x1158] sm:$0xff]
        %v827 = vld [vmem:[%s2 + $0x1160] sm:$0xff]
        %v828 = vld [vmem:[%s2 + $0x1168] sm:$0xff]
        %v829 = vld [vmem:[%s2 + $0x1170] sm:$0xff]
        %v830 = vld [vmem:[%s2 + $0x1178] sm:$0xff]
        %v831 = vld [vmem:[%s2 + $0x1180] sm:$0xff]
        %v832 = vld [vmem:[%s2 + $0x1188] sm:$0xff]
        %v833 = vld [vmem:[%s2 + $0x1190] sm:$0xff]
        %v834 = vld [vmem:[%s2 + $0x1198] sm:$0xff]
        %v835 = vld [vmem:[%s2 + $0x11a0] sm:$0xff]
        %v836 = vld [vmem:[%s2 + $0x11a8] sm:$0xff]
        %v837 = vld [vmem:[%s2 + $0x11b0] sm:$0xff]
        %v838 = vld [vmem:[%s2 + $0x11b8] sm:$0xff]
        %v839 = vld [vmem:[%s2 + $0x11c0] sm:$0xff]
        %v840 = vld [vmem:[%s2 + $0x11c8] sm:$0xff]
        %v841 = vld [vmem:[%s2 + $0x11d0] sm:$0xff]
        %v842 = vld [vmem:[%s2 + $0x11d8] sm:$0xff]
        %v843 = vld [vmem:[%s2 + $0x11e0] sm:$0xff]
        %v844 = vld [vmem:[%s2 + $0x11e8] sm:$0xff]
        %v845 = vld [vmem:[%s2 + $0x11f0] sm:$0xff]
        %v846 = vld [vmem:[%s2 + $0x11f8] sm:$0xff]
        %847 = vmatprep.subr.mxu0 %v272
        %848 = vmatpush1.msra.mxu0 %v271
        %849 = vmatprep.subr.mxu0 %v274
        %850 = vmatpush1.msra.mxu0 %v273
        %851 = vmatprep.subr.mxu0 %v276
        %852 = vmatpush1.msra.mxu0 %v275
        %853 = vmatprep.subr.mxu0 %v278
        %854 = vmatpush1.msra.mxu0 %v277
        %855 = vmatprep.subr.mxu0 %v280
        %856 = vmatpush1.msra.mxu0 %v279
        %857 = vmatprep.subr.mxu0 %v282
        %858 = vmatpush1.msra.mxu0 %v281
        %859 = vmatprep.subr.mxu0 %v284
        %860 = vmatpush1.msra.mxu0 %v283
        %861 = vmatprep.subr.mxu0 %v286
        %862 = vmatpush1.msra.mxu0 %v285
        %863 = vmatprep.subr.mxu0 %v288
        %864 = vmatpush1.msra.mxu0 %v287
        %865 = vmatprep.subr.mxu0 %v290
        %866 = vmatpush1.msra.mxu0 %v289
        %867 = vmatprep.subr.mxu0 %v292
        %868 = vmatpush1.msra.mxu0 %v291
        %869 = vmatprep.subr.mxu0 %v294
        %870 = vmatpush1.msra.mxu0 %v293
        %871 = vmatprep.subr.mxu0 %v296
        %872 = vmatpush1.msra.mxu0 %v295
        %873 = vmatprep.subr.mxu0 %v298
        %874 = vmatpush1.msra.mxu0 %v297
        %875 = vmatprep.subr.mxu0 %v300
        %876 = vmatpush1.msra.mxu0 %v299
        %877 = vmatprep.subr.mxu0 %v302
        %878 = vmatpush1.msra.mxu0 %v301
        %879 = vmatprep.subr.mxu0 %v304
        %880 = vmatpush1.msra.mxu0 %v303
        %881 = vmatprep.subr.mxu0 %v306
        %882 = vmatpush1.msra.mxu0 %v305
        %883 = vmatprep.subr.mxu0 %v308
        %884 = vmatpush1.msra.mxu0 %v307
        %885 = vmatprep.subr.mxu0 %v310
        %886 = vmatpush1.msra.mxu0 %v309
        %887 = vmatprep.subr.mxu0 %v312
        %888 = vmatpush1.msra.mxu0 %v311
        %889 = vmatprep.subr.mxu0 %v314
        %890 = vmatpush1.msra.mxu0 %v313
        %891 = vmatprep.subr.mxu0 %v316
        %892 = vmatpush1.msra.mxu0 %v315
        %893 = vmatprep.subr.mxu0 %v318
        %894 = vmatpush1.msra.mxu0 %v317
        %895 = vmatprep.subr.mxu0 %v320
        %896 = vmatpush1.msra.mxu0 %v319
        %897 = vmatprep.subr.mxu0 %v322
        %898 = vmatpush1.msra.mxu0 %v321
        %899 = vmatprep.subr.mxu0 %v324
        %900 = vmatpush1.msra.mxu0 %v323
        %901 = vmatprep.subr.mxu0 %v326
        %902 = vmatpush1.msra.mxu0 %v325
        %903 = vmatprep.subr.mxu0 %v328
        %904 = vmatpush1.msra.mxu0 %v327
        %905 = vmatprep.subr.mxu0 %v330
        %906 = vmatpush1.msra.mxu0 %v329
        %907 = vmatprep.subr.mxu0 %v332
        %908 = vmatpush1.msra.mxu0 %v331
        %909 = vmatprep.subr.mxu0 %v334
        %910 = vmatpush1.msra.mxu0 %v333
        %911 = vmatprep.mubr.f32.mxu0 %v224
        %912 = vmatmul.mubr.f32.gmra.mrb[0].mxu0 %v223
        %v913 = vpop.f32.mrb[0].mxu0
        %v914 = vadd.f32 0.0, %v913
        %v915 = vpop.f32.mrb[0].mxu0
        %v916 = vadd.f32 0.0, %v915
        %917 = vmatprep.mubr.f32.mxu0 %v227
        %918 = vmatmul.mubr.f32.gmra.mrb[0].mxu0 %v226
        %v919 = vpop.f32.mrb[0].mxu0
        %v920 = vadd.f32 0.0, %v919
        %v921 = vpop.f32.mrb[0].mxu0
        %v922 = vadd.f32 0.0, %v921
        %923 = vmatprep.mubr.f32.mxu0 %v230
        %924 = vmatmul.mubr.f32.gmra.mrb[0].mxu0 %v229
        %v925 = vpop.f32.mrb[0].mxu0
        %v926 = vadd.f32 0.0, %v925
        %v927 = vpop.f32.mrb[0].mxu0
        %v928 = vadd.f32 0.0, %v927
        %929 = vmatprep.mubr.f32.mxu0 %v233
        %930 = vmatmul.mubr.f32.gmra.mrb[0].mxu0 %v232
        %v931 = vpop.f32.mrb[0].mxu0
        %v932 = vadd.f32 0.0, %v931
        %v933 = vpop.f32.mrb[0].mxu0
        %v934 = vadd.f32 0.0, %v933
        %935 = vmatprep.mubr.f32.mxu0 %v236
        %936 = vmatmul.mubr.f32.gmra.mrb[0].mxu0 %v235
        %v937 = vpop.f32.mrb[0].mxu0
        %v938 = vadd.f32 0.0, %v937
        %v939 = vpop.f32.mrb[0].mxu0
        %v940 = vadd.f32 0.0, %v939
        %941 = vmatprep.mubr.f32.mxu0 %v239
        %942 = vmatmul.mubr.f32.gmra.mrb[0].mxu0 %v238
        %v943 = vpop.f32.mrb[0].mxu0
        %v944 = vadd.f32 0.0, %v943
        %v945 = vpop.f32.mrb[0].mxu0
        %v946 = vadd.f32 0.0, %v945
        %947 = vmatprep.mubr.f32.mxu0 %v242
        %948 = vmatmul.mubr.f32.gmra.mrb[0].mxu0 %v241
        %v949 = vpop.f32.mrb[0].mxu0
        %v950 = vadd.f32 0.0, %v949
        %v951 = vpop.f32.mrb[0].mxu0
        %v952 = vadd.f32 0.0, %v951
        %953 = vmatprep.mubr.f32.mxu0 %v245
        %954 = vmatmul.mubr.f32.gmra.mrb[0].mxu0 %v244
        %v955 = vpop.f32.mrb[0].mxu0
        %v956 = vadd.f32 0.0, %v955
        %v957 = vpop.f32.mrb[0].mxu0
        %v958 = vadd.f32 0.0, %v957
        %959 = vmatprep.mubr.f32.mxu0 %v248
        %960 = vmatmul.mubr.f32.gmra.mrb[0].mxu0 %v247
        %v961 = vpop.f32.mrb[0].mxu0
        %v962 = vadd.f32 0.0, %v961
        %v963 = vpop.f32.mrb[0].mxu0
        %v964 = vadd.f32 0.0, %v963
        %965 = vmatprep.mubr.f32.mxu0 %v251
        %966 = vmatmul.mubr.f32.gmra.mrb[0].mxu0 %v250
        %v967 = vpop.f32.mrb[0].mxu0
        %v968 = vadd.f32 0.0, %v967
        %v969 = vpop.f32.mrb[0].mxu0
        %v970 = vadd.f32 0.0, %v969
        %971 = vmatprep.mubr.f32.mxu0 %v254
        %972 = vmatmul.mubr.f32.gmra.mrb[0].mxu0 %v253
        %v973 = vpop.f32.mrb[0].mxu0
        %v974 = vadd.f32 0.0, %v973
        %v975 = vpop.f32.mrb[0].mxu0
        %v976 = vadd.f32 0.0, %v975
        %977 = vmatprep.mubr.f32.mxu0 %v257
        %978 = vmatmul.mubr.f32.gmra.mrb[0].mxu0 %v256
        %v979 = vpop.f32.mrb[0].mxu0
        %v980 = vadd.f32 0.0, %v979
        %v981 = vpop.f32.mrb[0].mxu0
        %v982 = vadd.f32 0.0, %v981
        %983 = vmatprep.mubr.f32.mxu0 %v260
        %984 = vmatmul.mubr.f32.gmra.mrb[0].mxu0 %v259
        %v985 = vpop.f32.mrb[0].mxu0
        %v986 = vadd.f32 0.0, %v985
        %v987 = vpop.f32.mrb[0].mxu0
        %v988 = vadd.f32 0.0, %v987
        %989 = vmatprep.mubr.f32.mxu0 %v263
        %990 = vmatmul.mubr.f32.gmra.mrb[0].mxu0 %v262
        %v991 = vpop.f32.mrb[0].mxu0
        %v992 = vadd.f32 0.0, %v991
        %v993 = vpop.f32.mrb[0].mxu0
        %v994 = vadd.f32 0.0, %v993
        %995 = vmatprep.mubr.f32.mxu0 %v266
        %996 = vmatmul.mubr.f32.gmra.mrb[0].mxu0 %v265
        %v997 = vpop.f32.mrb[0].mxu0
        %v998 = vadd.f32 0.0, %v997
        %v999 = vpop.f32.mrb[0].mxu0
        %v1000 = vadd.f32 0.0, %v999
        %1001 = vmatprep.mubr.f32.mxu0 %v269
        %1002 = vmatmul.mubr.f32.gmra.mrb[0].mxu0 %v268
        %v1003 = vpop.f32.mrb[0].mxu0
        %v1004 = vadd.f32 0.0, %v1003
        %v1005 = vpop.f32.mrb[0].mxu0
        %v1006 = vadd.f32 0.0, %v1005
        %1007 = vdwg.mxu0
        %1008 = vmatprep.subr.mxu0 %v336
        %1009 = vmatpush1.msra.mxu0 %v335
        %1010 = vmatprep.subr.mxu0 %v338
        %1011 = vmatpush1.msra.mxu0 %v337
        %1012 = vmatprep.subr.mxu0 %v340
        %1013 = vmatpush1.msra.mxu0 %v339
        %1014 = vmatprep.subr.mxu0 %v342
        %1015 = vmatpush1.msra.mxu0 %v341
        %1016 = vmatprep.subr.mxu0 %v344
        %1017 = vmatpush1.msra.mxu0 %v343
        %1018 = vmatprep.subr.mxu0 %v346
        %1019 = vmatpush1.msra.mxu0 %v345
        %1020 = vmatprep.subr.mxu0 %v348
        %1021 = vmatpush1.msra.mxu0 %v347
        %1022 = vmatprep.subr.mxu0 %v350
        %1023 = vmatpush1.msra.mxu0 %v349
        %1024 = vmatprep.subr.mxu0 %v352
        %1025 = vmatpush1.msra.mxu0 %v351
        %1026 = vmatprep.subr.mxu0 %v354
        %1027 = vmatpush1.msra.mxu0 %v353
        %1028 = vmatprep.subr.mxu0 %v356
        %1029 = vmatpush1.msra.mxu0 %v355
        %1030 = vmatprep.subr.mxu0 %v358
        %1031 = vmatpush1.msra.mxu0 %v357
        %1032 = vmatprep.subr.mxu0 %v360
        %1033 = vmatpush1.msra.mxu0 %v359
        %1034 = vmatprep.subr.mxu0 %v362
        %1035 = vmatpush1.msra.mxu0 %v361
        %1036 = vmatprep.subr.mxu0 %v364
        %1037 = vmatpush1.msra.mxu0 %v363
        %1038 = vmatprep.subr.mxu0 %v366
        %1039 = vmatpush1.msra.mxu0 %v365
        %1040 = vmatprep.subr.mxu0 0.0
        %1041 = vmatpush1.msra.mxu0 0.0
        %1042 = vmatprep.subr.mxu0 0.0
        %1043 = vmatpush1.msra.mxu0 0.0
        %1044 = vmatprep.subr.mxu0 0.0
        %1045 = vmatpush1.msra.mxu0 0.0
        %1046 = vmatprep.subr.mxu0 0.0
        %1047 = vmatpush1.msra.mxu0 0.0
        %1048 = vmatprep.subr.mxu0 0.0
        %1049 = vmatpush1.msra.mxu0 0.0
        %1050 = vmatprep.subr.mxu0 0.0
        %1051 = vmatpush1.msra.mxu0 0.0
        %1052 = vmatprep.subr.mxu0 0.0
        %1053 = vmatpush1.msra.mxu0 0.0
        %1054 = vmatprep.subr.mxu0 0.0
        %1055 = vmatpush1.msra.mxu0 0.0
        %1056 = vmatprep.subr.mxu0 0.0
        %1057 = vmatpush1.msra.mxu0 0.0
        %1058 = vmatprep.subr.mxu0 0.0
        %1059 = vmatpush1.msra.mxu0 0.0
        %1060 = vmatprep.subr.mxu0 0.0
        %1061 = vmatpush1.msra.mxu0 0.0
        %1062 = vmatprep.subr.mxu0 0.0
        %1063 = vmatpush1.msra.mxu0 0.0
        %1064 = vmatprep.subr.mxu0 0.0
        %1065 = vmatpush1.msra.mxu0 0.0
        %1066 = vmatprep.subr.mxu0 0.0
        %1067 = vmatpush1.msra.mxu0 0.0
        %1068 = vmatprep.subr.mxu0 0.0
        %1069 = vmatpush1.msra.mxu0 0.0
        %1070 = vmatprep.subr.mxu0 0.0
        %1071 = vmatpush1.msra.mxu0 0.0
        %1072 = vmatprep.mubr.f32.mxu0 0.0
        %1073 = vmatmul.mubr.f32.gmra.mrb[0].mxu0 %v225
        %v1074 = vpop.f32.mrb[0].mxu0
        %v1075 = vadd.f32 %v914, %v1074
        %v1076 = vpop.f32.mrb[0].mxu0
        %v1077 = vadd.f32 %v916, %v1076
        %1078 = vmatprep.mubr.f32.mxu0 0.0
        %1079 = vmatmul.mubr.f32.gmra.mrb[0].mxu0 %v228
        %v1080 = vpop.f32.mrb[0].mxu0
        %v1081 = vadd.f32 %v920, %v1080
        %v1082 = vpop.f32.mrb[0].mxu0
        %v1083 = vadd.f32 %v922, %v1082
        %1084 = vmatprep.mubr.f32.mxu0 0.0
        %1085 = vmatmul.mubr.f32.gmra.mrb[0].mxu0 %v231
        %v1086 = vpop.f32.mrb[0].mxu0
        %v1087 = vadd.f32 %v926, %v1086
        %v1088 = vpop.f32.mrb[0].mxu0
        %v1089 = vadd.f32 %v928, %v1088
        %1090 = vmatprep.mubr.f32.mxu0 0.0
        %1091 = vmatmul.mubr.f32.gmra.mrb[0].mxu0 %v234
        %v1092 = vpop.f32.mrb[0].mxu0
        %v1093 = vadd.f32 %v932, %v1092
        %v1094 = vpop.f32.mrb[0].mxu0
        %v1095 = vadd.f32 %v934, %v1094
        %1096 = vmatprep.mubr.f32.mxu0 0.0
        %1097 = vmatmul.mubr.f32.gmra.mrb[0].mxu0 %v237
        %v1098 = vpop.f32.mrb[0].mxu0
        %v1099 = vadd.f32 %v938, %v1098
        %v1100 = vpop.f32.mrb[0].mxu0
        %v1101 = vadd.f32 %v940, %v1100
        %1102 = vmatprep.mubr.f32.mxu0 0.0
        %1103 = vmatmul.mubr.f32.gmra.mrb[0].mxu0 %v240
        %v1104 = vpop.f32.mrb[0].mxu0
        %v1105 = vadd.f32 %v944, %v1104
        %v1106 = vpop.f32.mrb[0].mxu0
        %v1107 = vadd.f32 %v946, %v1106
        %1108 = vmatprep.mubr.f32.mxu0 0.0
        %1109 = vmatmul.mubr.f32.gmra.mrb[0].mxu0 %v243
        %v1110 = vpop.f32.mrb[0].mxu0
        %v1111 = vadd.f32 %v950, %v1110
        %v1112 = vpop.f32.mrb[0].mxu0
        %v1113 = vadd.f32 %v952, %v1112
        %1114 = vmatprep.mubr.f32.mxu0 0.0
        %1115 = vmatmul.mubr.f32.gmra.mrb[0].mxu0 %v246
        %v1116 = vpop.f32.mrb[0].mxu0
        %v1117 = vadd.f32 %v956, %v1116
        %v1118 = vpop.f32.mrb[0].mxu0
        %v1119 = vadd.f32 %v958, %v1118
        %1120 = vmatprep.mubr.f32.mxu0 0.0
        %1121 = vmatmul.mubr.f32.gmra.mrb[0].mxu0 %v249
        %v1122 = vpop.f32.mrb[0].mxu0
        %v1123 = vadd.f32 %v962, %v1122
        %v1124 = vpop.f32.mrb[0].mxu0
        %v1125 = vadd.f32 %v964, %v1124
        %1126 = vmatprep.mubr.f32.mxu0 0.0
        %1127 = vmatmul.mubr.f32.gmra.mrb[0].mxu0 %v252
        %v1128 = vpop.f32.mrb[0].mxu0
        %v1129 = vadd.f32 %v968, %v1128
        %v1130 = vpop.f32.mrb[0].mxu0
        %v1131 = vadd.f32 %v970, %v1130
        %1132 = vmatprep.mubr.f32.mxu0 0.0
        %1133 = vmatmul.mubr.f32.gmra.mrb[0].mxu0 %v255
        %v1134 = vpop.f32.mrb[0].mxu0
        %v1135 = vadd.f32 %v974, %v1134
        %v1136 = vpop.f32.mrb[0].mxu0
        %v1137 = vadd.f32 %v976, %v1136
        %1138 = vmatprep.mubr.f32.mxu0 0.0
        %1139 = vmatmul.mubr.f32.gmra.mrb[0].mxu0 %v258
        %v1140 = vpop.f32.mrb[0].mxu0
        %v1141 = vadd.f32 %v980, %v1140
        %v1142 = vpop.f32.mrb[0].mxu0
        %v1143 = vadd.f32 %v982, %v1142
        %1144 = vmatprep.mubr.f32.mxu0 0.0
        %1145 = vmatmul.mubr.f32.gmra.mrb[0].mxu0 %v261
        %v1146 = vpop.f32.mrb[0].mxu0
        %v1147 = vadd.f32 %v986, %v1146
        %v1148 = vpop.f32.mrb[0].mxu0
        %v1149 = vadd.f32 %v988, %v1148
        %1150 = vmatprep.mubr.f32.mxu0 0.0
        %1151 = vmatmul.mubr.f32.gmra.mrb[0].mxu0 %v264
        %v1152 = vpop.f32.mrb[0].mxu0
        %v1153 = vadd.f32 %v992, %v1152
        %v1154 = vpop.f32.mrb[0].mxu0
        %v1155 = vadd.f32 %v994, %v1154
        %1156 = vmatprep.mubr.f32.mxu0 0.0
        %1157 = vmatmul.mubr.f32.gmra.mrb[0].mxu0 %v267
        %v1158 = vpop.f32.mrb[0].mxu0
        %v1159 = vadd.f32 %v998, %v1158
        %v1160 = vpop.f32.mrb[0].mxu0
        %v1161 = vadd.f32 %v1000, %v1160
        %1162 = vmatprep.mubr.f32.mxu0 0.0
        %1163 = vmatmul.mubr.f32.gmra.mrb[0].mxu0 %v270
        %v1164 = vpop.f32.mrb[0].mxu0
        %v1165 = vadd.f32 %v1004, %v1164
        %v1166 = vpop.f32.mrb[0].mxu0
        %v1167 = vadd.f32 %v1006, %v1166
        %1168 = vdwg.mxu0
        %1169 = vmatprep.subr.mxu0 %v368
        %1170 = vmatpush1.msra.mxu0 %v367
        %1171 = vmatprep.subr.mxu0 %v370
        %1172 = vmatpush1.msra.mxu0 %v369
        %1173 = vmatprep.subr.mxu0 %v372
        %1174 = vmatpush1.msra.mxu0 %v371
        %1175 = vmatprep.subr.mxu0 %v374
        %1176 = vmatpush1.msra.mxu0 %v373
        %1177 = vmatprep.subr.mxu0 %v376
        %1178 = vmatpush1.msra.mxu0 %v375
        %1179 = vmatprep.subr.mxu0 %v378
        %1180 = vmatpush1.msra.mxu0 %v377
        %1181 = vmatprep.subr.mxu0 %v380
        %1182 = vmatpush1.msra.mxu0 %v379
        %1183 = vmatprep.subr.mxu0 %v382
        %1184 = vmatpush1.msra.mxu0 %v381
        %1185 = vmatprep.subr.mxu0 %v384
        %1186 = vmatpush1.msra.mxu0 %v383
        %1187 = vmatprep.subr.mxu0 %v386
        %1188 = vmatpush1.msra.mxu0 %v385
        %1189 = vmatprep.subr.mxu0 %v388
        %1190 = vmatpush1.msra.mxu0 %v387
        %1191 = vmatprep.subr.mxu0 %v390
        %1192 = vmatpush1.msra.mxu0 %v389
        %1193 = vmatprep.subr.mxu0 %v392
        %1194 = vmatpush1.msra.mxu0 %v391
        %1195 = vmatprep.subr.mxu0 %v394
        %1196 = vmatpush1.msra.mxu0 %v393
        %1197 = vmatprep.subr.mxu0 %v396
        %1198 = vmatpush1.msra.mxu0 %v395
        %1199 = vmatprep.subr.mxu0 %v398
        %1200 = vmatpush1.msra.mxu0 %v397
        %1201 = vmatprep.subr.mxu0 %v400
        %1202 = vmatpush1.msra.mxu0 %v399
        %1203 = vmatprep.subr.mxu0 %v402
        %1204 = vmatpush1.msra.mxu0 %v401
        %1205 = vmatprep.subr.mxu0 %v404
        %1206 = vmatpush1.msra.mxu0 %v403
        %1207 = vmatprep.subr.mxu0 %v406
        %1208 = vmatpush1.msra.mxu0 %v405
        %1209 = vmatprep.subr.mxu0 %v408
        %1210 = vmatpush1.msra.mxu0 %v407
        %1211 = vmatprep.subr.mxu0 %v410
        %1212 = vmatpush1.msra.mxu0 %v409
        %1213 = vmatprep.subr.mxu0 %v412
        %1214 = vmatpush1.msra.mxu0 %v411
        %1215 = vmatprep.subr.mxu0 %v414
        %1216 = vmatpush1.msra.mxu0 %v413
        %1217 = vmatprep.subr.mxu0 %v416
        %1218 = vmatpush1.msra.mxu0 %v415
        %1219 = vmatprep.subr.mxu0 %v418
        %1220 = vmatpush1.msra.mxu0 %v417
        %1221 = vmatprep.subr.mxu0 %v420
        %1222 = vmatpush1.msra.mxu0 %v419
        %1223 = vmatprep.subr.mxu0 %v422
        %1224 = vmatpush1.msra.mxu0 %v421
        %1225 = vmatprep.subr.mxu0 %v424
        %1226 = vmatpush1.msra.mxu0 %v423
        %1227 = vmatprep.subr.mxu0 %v426
        %1228 = vmatpush1.msra.mxu0 %v425
        %1229 = vmatprep.subr.mxu0 %v428
        %1230 = vmatpush1.msra.mxu0 %v427
        %1231 = vmatprep.subr.mxu0 %v430
        %1232 = vmatpush1.msra.mxu0 %v429
        %1233 = vmatprep.mubr.f32.mxu0 %v224
        %1234 = vmatmul.mubr.f32.gmra.mrb[0].mxu0 %v223
        %v1235 = vpop.f32.mrb[0].mxu0
        %v1236 = vadd.f32 0.0, %v1235
        %v1237 = vpop.f32.mrb[0].mxu0
        %v1238 = vadd.f32 0.0, %v1237
        %1239 = vmatprep.mubr.f32.mxu0 %v227
        %1240 = vmatmul.mubr.f32.gmra.mrb[0].mxu0 %v226
        %v1241 = vpop.f32.mrb[0].mxu0
        %v1242 = vadd.f32 0.0, %v1241
        %v1243 = vpop.f32.mrb[0].mxu0
        %v1244 = vadd.f32 0.0, %v1243
        %1245 = vmatprep.mubr.f32.mxu0 %v230
        %1246 = vmatmul.mubr.f32.gmra.mrb[0].mxu0 %v229
        %v1247 = vpop.f32.mrb[0].mxu0
        %v1248 = vadd.f32 0.0, %v1247
        %v1249 = vpop.f32.mrb[0].mxu0
        %v1250 = vadd.f32 0.0, %v1249
        %1251 = vmatprep.mubr.f32.mxu0 %v233
        %1252 = vmatmul.mubr.f32.gmra.mrb[0].mxu0 %v232
        %v1253 = vpop.f32.mrb[0].mxu0
        %v1254 = vadd.f32 0.0, %v1253
        %v1255 = vpop.f32.mrb[0].mxu0
        %v1256 = vadd.f32 0.0, %v1255
        %1257 = vmatprep.mubr.f32.mxu0 %v236
        %1258 = vmatmul.mubr.f32.gmra.mrb[0].mxu0 %v235
        %v1259 = vpop.f32.mrb[0].mxu0
        %v1260 = vadd.f32 0.0, %v1259
        %v1261 = vpop.f32.mrb[0].mxu0
        %v1262 = vadd.f32 0.0, %v1261
        %1263 = vmatprep.mubr.f32.mxu0 %v239
        %1264 = vmatmul.mubr.f32.gmra.mrb[0].mxu0 %v238
        %v1265 = vpop.f32.mrb[0].mxu0
        %v1266 = vadd.f32 0.0, %v1265
        %v1267 = vpop.f32.mrb[0].mxu0
        %v1268 = vadd.f32 0.0, %v1267
        %1269 = vmatprep.mubr.f32.mxu0 %v242
        %1270 = vmatmul.mubr.f32.gmra.mrb[0].mxu0 %v241
        %v1271 = vpop.f32.mrb[0].mxu0
        %v1272 = vadd.f32 0.0, %v1271
        %v1273 = vpop.f32.mrb[0].mxu0
        %v1274 = vadd.f32 0.0, %v1273
        %1275 = vmatprep.mubr.f32.mxu0 %v245
        %1276 = vmatmul.mubr.f32.gmra.mrb[0].mxu0 %v244
        %v1277 = vpop.f32.mrb[0].mxu0
        %v1278 = vadd.f32 0.0, %v1277
        %v1279 = vpop.f32.mrb[0].mxu0
        %v1280 = vadd.f32 0.0, %v1279
        %1281 = vmatprep.mubr.f32.mxu0 %v248
        %1282 = vmatmul.mubr.f32.gmra.mrb[0].mxu0 %v247
        %v1283 = vpop.f32.mrb[0].mxu0
        %v1284 = vadd.f32 0.0, %v1283
        %v1285 = vpop.f32.mrb[0].mxu0
        %v1286 = vadd.f32 0.0, %v1285
        %1287 = vmatprep.mubr.f32.mxu0 %v251
        %1288 = vmatmul.mubr.f32.gmra.mrb[0].mxu0 %v250
        %v1289 = vpop.f32.mrb[0].mxu0
        %v1290 = vadd.f32 0.0, %v1289
        %v1291 = vpop.f32.mrb[0].mxu0
        %v1292 = vadd.f32 0.0, %v1291
        %1293 = vmatprep.mubr.f32.mxu0 %v254
        %1294 = vmatmul.mubr.f32.gmra.mrb[0].mxu0 %v253
        %v1295 = vpop.f32.mrb[0].mxu0
        %v1296 = vadd.f32 0.0, %v1295
        %v1297 = vpop.f32.mrb[0].mxu0
        %v1298 = vadd.f32 0.0, %v1297
        %1299 = vmatprep.mubr.f32.mxu0 %v257
        %1300 = vmatmul.mubr.f32.gmra.mrb[0].mxu0 %v256
        %v1301 = vpop.f32.mrb[0].mxu0
        %v1302 = vadd.f32 0.0, %v1301
        %v1303 = vpop.f32.mrb[0].mxu0
        %v1304 = vadd.f32 0.0, %v1303
        %1305 = vmatprep.mubr.f32.mxu0 %v260
        %1306 = vmatmul.mubr.f32.gmra.mrb[0].mxu0 %v259
        %v1307 = vpop.f32.mrb[0].mxu0
        %v1308 = vadd.f32 0.0, %v1307
        %v1309 = vpop.f32.mrb[0].mxu0
        %v1310 = vadd.f32 0.0, %v1309
        %1311 = vmatprep.mubr.f32.mxu0 %v263
        %1312 = vmatmul.mubr.f32.gmra.mrb[0].mxu0 %v262
        %v1313 = vpop.f32.mrb[0].mxu0
        %v1314 = vadd.f32 0.0, %v1313
        %v1315 = vpop.f32.mrb[0].mxu0
        %v1316 = vadd.f32 0.0, %v1315
        %1317 = vmatprep.mubr.f32.mxu0 %v266
        %1318 = vmatmul.mubr.f32.gmra.mrb[0].mxu0 %v265
        %v1319 = vpop.f32.mrb[0].mxu0
        %v1320 = vadd.f32 0.0, %v1319
        %v1321 = vpop.f32.mrb[0].mxu0
        %v1322 = vadd.f32 0.0, %v1321
        %1323 = vmatprep.mubr.f32.mxu0 %v269
        %1324 = vmatmul.mubr.f32.gmra.mrb[0].mxu0 %v268
        %v1325 = vpop.f32.mrb[0].mxu0
        %v1326 = vadd.f32 0.0, %v1325
        %v1327 = vpop.f32.mrb[0].mxu0
        %v1328 = vadd.f32 0.0, %v1327
        %1329 = vdwg.mxu0
        %1330 = vmatprep.subr.mxu0 %v432
        %1331 = vmatpush1.msra.mxu0 %v431
        %1332 = vmatprep.subr.mxu0 %v434
        %1333 = vmatpush1.msra.mxu0 %v433
        %1334 = vmatprep.subr.mxu0 %v436
        %1335 = vmatpush1.msra.mxu0 %v435
        %1336 = vmatprep.subr.mxu0 %v438
        %1337 = vmatpush1.msra.mxu0 %v437
        %1338 = vmatprep.subr.mxu0 %v440
        %1339 = vmatpush1.msra.mxu0 %v439
        %1340 = vmatprep.subr.mxu0 %v442
        %1341 = vmatpush1.msra.mxu0 %v441
        %1342 = vmatprep.subr.mxu0 %v444
        %1343 = vmatpush1.msra.mxu0 %v443
        %1344 = vmatprep.subr.mxu0 %v446
        %1345 = vmatpush1.msra.mxu0 %v445
        %1346 = vmatprep.subr.mxu0 %v448
        %1347 = vmatpush1.msra.mxu0 %v447
        %1348 = vmatprep.subr.mxu0 %v450
        %1349 = vmatpush1.msra.mxu0 %v449
        %1350 = vmatprep.subr.mxu0 %v452
        %1351 = vmatpush1.msra.mxu0 %v451
        %1352 = vmatprep.subr.mxu0 %v454
        %1353 = vmatpush1.msra.mxu0 %v453
        %1354 = vmatprep.subr.mxu0 %v456
        %1355 = vmatpush1.msra.mxu0 %v455
        %1356 = vmatprep.subr.mxu0 %v458
        %1357 = vmatpush1.msra.mxu0 %v457
        %1358 = vmatprep.subr.mxu0 %v460
        %1359 = vmatpush1.msra.mxu0 %v459
        %1360 = vmatprep.subr.mxu0 %v462
        %1361 = vmatpush1.msra.mxu0 %v461
        %1362 = vmatprep.subr.mxu0 0.0
        %1363 = vmatpush1.msra.mxu0 0.0
        %1364 = vmatprep.subr.mxu0 0.0
        %1365 = vmatpush1.msra.mxu0 0.0
        %1366 = vmatprep.subr.mxu0 0.0
        %1367 = vmatpush1.msra.mxu0 0.0
        %1368 = vmatprep.subr.mxu0 0.0
        %1369 = vmatpush1.msra.mxu0 0.0
        %1370 = vmatprep.subr.mxu0 0.0
        %1371 = vmatpush1.msra.mxu0 0.0
        %1372 = vmatprep.subr.mxu0 0.0
        %1373 = vmatpush1.msra.mxu0 0.0
        %1374 = vmatprep.subr.mxu0 0.0
        %1375 = vmatpush1.msra.mxu0 0.0
        %1376 = vmatprep.subr.mxu0 0.0
        %1377 = vmatpush1.msra.mxu0 0.0
        %1378 = vmatprep.subr.mxu0 0.0
        %1379 = vmatpush1.msra.mxu0 0.0
        %1380 = vmatprep.subr.mxu0 0.0
        %1381 = vmatpush1.msra.mxu0 0.0
        %1382 = vmatprep.subr.mxu0 0.0
        %1383 = vmatpush1.msra.mxu0 0.0
        %1384 = vmatprep.subr.mxu0 0.0
        %1385 = vmatpush1.msra.mxu0 0.0
        %1386 = vmatprep.subr.mxu0 0.0
        %1387 = vmatpush1.msra.mxu0 0.0
        %1388 = vmatprep.subr.mxu0 0.0
        %1389 = vmatpush1.msra.mxu0 0.0
        %1390 = vmatprep.subr.mxu0 0.0
        %1391 = vmatpush1.msra.mxu0 0.0
        %1392 = vmatprep.subr.mxu0 0.0
        %1393 = vmatpush1.msra.mxu0 0.0
        %1394 = vmatprep.mubr.f32.mxu0 0.0
        %1395 = vmatmul.mubr.f32.gmra.mrb[0].mxu0 %v225
        %v1396 = vpop.f32.mrb[0].mxu0
        %v1397 = vadd.f32 %v1236, %v1396
        %v1398 = vpop.f32.mrb[0].mxu0
        %v1399 = vadd.f32 %v1238, %v1398
        %1400 = vmatprep.mubr.f32.mxu0 0.0
        %1401 = vmatmul.mubr.f32.gmra.mrb[0].mxu0 %v228
        %v1402 = vpop.f32.mrb[0].mxu0
        %v1403 = vadd.f32 %v1242, %v1402
        %v1404 = vpop.f32.mrb[0].mxu0
        %v1405 = vadd.f32 %v1244, %v1404
        %1406 = vmatprep.mubr.f32.mxu0 0.0
        %1407 = vmatmul.mubr.f32.gmra.mrb[0].mxu0 %v231
        %v1408 = vpop.f32.mrb[0].mxu0
        %v1409 = vadd.f32 %v1248, %v1408
        %v1410 = vpop.f32.mrb[0].mxu0
        %v1411 = vadd.f32 %v1250, %v1410
        %1412 = vmatprep.mubr.f32.mxu0 0.0
        %1413 = vmatmul.mubr.f32.gmra.mrb[0].mxu0 %v234
        %v1414 = vpop.f32.mrb[0].mxu0
        %v1415 = vadd.f32 %v1254, %v1414
        %v1416 = vpop.f32.mrb[0].mxu0
        %v1417 = vadd.f32 %v1256, %v1416
        %1418 = vmatprep.mubr.f32.mxu0 0.0
        %1419 = vmatmul.mubr.f32.gmra.mrb[0].mxu0 %v237
        %v1420 = vpop.f32.mrb[0].mxu0
        %v1421 = vadd.f32 %v1260, %v1420
        %v1422 = vpop.f32.mrb[0].mxu0
        %v1423 = vadd.f32 %v1262, %v1422
        %1424 = vmatprep.mubr.f32.mxu0 0.0
        %1425 = vmatmul.mubr.f32.gmra.mrb[0].mxu0 %v240
        %v1426 = vpop.f32.mrb[0].mxu0
        %v1427 = vadd.f32 %v1266, %v1426
        %v1428 = vpop.f32.mrb[0].mxu0
        %v1429 = vadd.f32 %v1268, %v1428
        %1430 = vmatprep.mubr.f32.mxu0 0.0
        %1431 = vmatmul.mubr.f32.gmra.mrb[0].mxu0 %v243
        %v1432 = vpop.f32.mrb[0].mxu0
        %v1433 = vadd.f32 %v1272, %v1432
        %v1434 = vpop.f32.mrb[0].mxu0
        %v1435 = vadd.f32 %v1274, %v1434
        %1436 = vmatprep.mubr.f32.mxu0 0.0
        %1437 = vmatmul.mubr.f32.gmra.mrb[0].mxu0 %v246
        %v1438 = vpop.f32.mrb[0].mxu0
        %v1439 = vadd.f32 %v1278, %v1438
        %v1440 = vpop.f32.mrb[0].mxu0
        %v1441 = vadd.f32 %v1280, %v1440
        %1442 = vmatprep.mubr.f32.mxu0 0.0
        %1443 = vmatmul.mubr.f32.gmra.mrb[0].mxu0 %v249
        %v1444 = vpop.f32.mrb[0].mxu0
        %v1445 = vadd.f32 %v1284, %v1444
        %v1446 = vpop.f32.mrb[0].mxu0
        %v1447 = vadd.f32 %v1286, %v1446
        %1448 = vmatprep.mubr.f32.mxu0 0.0
        %1449 = vmatmul.mubr.f32.gmra.mrb[0].mxu0 %v252
        %v1450 = vpop.f32.mrb[0].mxu0
        %v1451 = vadd.f32 %v1290, %v1450
        %v1452 = vpop.f32.mrb[0].mxu0
        %v1453 = vadd.f32 %v1292, %v1452
        %1454 = vmatprep.mubr.f32.mxu0 0.0
        %1455 = vmatmul.mubr.f32.gmra.mrb[0].mxu0 %v255
        %v1456 = vpop.f32.mrb[0].mxu0
        %v1457 = vadd.f32 %v1296, %v1456
        %v1458 = vpop.f32.mrb[0].mxu0
        %v1459 = vadd.f32 %v1298, %v1458
        %1460 = vmatprep.mubr.f32.mxu0 0.0
        %1461 = vmatmul.mubr.f32.gmra.mrb[0].mxu0 %v258
        %v1462 = vpop.f32.mrb[0].mxu0
        %v1463 = vadd.f32 %v1302, %v1462
        %v1464 = vpop.f32.mrb[0].mxu0
        %v1465 = vadd.f32 %v1304, %v1464
        %1466 = vmatprep.mubr.f32.mxu0 0.0
        %1467 = vmatmul.mubr.f32.gmra.mrb[0].mxu0 %v261
        %v1468 = vpop.f32.mrb[0].mxu0
        %v1469 = vadd.f32 %v1308, %v1468
        %v1470 = vpop.f32.mrb[0].mxu0
        %v1471 = vadd.f32 %v1310, %v1470
        %1472 = vmatprep.mubr.f32.mxu0 0.0
        %1473 = vmatmul.mubr.f32.gmra.mrb[0].mxu0 %v264
        %v1474 = vpop.f32.mrb[0].mxu0
        %v1475 = vadd.f32 %v1314, %v1474
        %v1476 = vpop.f32.mrb[0].mxu0
        %v1477 = vadd.f32 %v1316, %v1476
        %1478 = vmatprep.mubr.f32.mxu0 0.0
        %1479 = vmatmul.mubr.f32.gmra.mrb[0].mxu0 %v267
        %v1480 = vpop.f32.mrb[0].mxu0
        %v1481 = vadd.f32 %v1320, %v1480
        %v1482 = vpop.f32.mrb[0].mxu0
        %v1483 = vadd.f32 %v1322, %v1482
        %1484 = vmatprep.mubr.f32.mxu0 0.0
        %1485 = vmatmul.mubr.f32.gmra.mrb[0].mxu0 %v270
        %v1486 = vpop.f32.mrb[0].mxu0
        %v1487 = vadd.f32 %v1326, %v1486
        %v1488 = vpop.f32.mrb[0].mxu0
        %v1489 = vadd.f32 %v1328, %v1488
        %1490 = vdwg.mxu0
        %1491 = vmatprep.subr.mxu0 %v464
        %1492 = vmatpush1.msra.mxu0 %v463
        %1493 = vmatprep.subr.mxu0 %v466
        %1494 = vmatpush1.msra.mxu0 %v465
        %1495 = vmatprep.subr.mxu0 %v468
        %1496 = vmatpush1.msra.mxu0 %v467
        %1497 = vmatprep.subr.mxu0 %v470
        %1498 = vmatpush1.msra.mxu0 %v469
        %1499 = vmatprep.subr.mxu0 %v472
        %1500 = vmatpush1.msra.mxu0 %v471
        %1501 = vmatprep.subr.mxu0 %v474
        %1502 = vmatpush1.msra.mxu0 %v473
        %1503 = vmatprep.subr.mxu0 %v476
        %1504 = vmatpush1.msra.mxu0 %v475
        %1505 = vmatprep.subr.mxu0 %v478
        %1506 = vmatpush1.msra.mxu0 %v477
        %1507 = vmatprep.subr.mxu0 %v480
        %1508 = vmatpush1.msra.mxu0 %v479
        %1509 = vmatprep.subr.mxu0 %v482
        %1510 = vmatpush1.msra.mxu0 %v481
        %1511 = vmatprep.subr.mxu0 %v484
        %1512 = vmatpush1.msra.mxu0 %v483
        %1513 = vmatprep.subr.mxu0 %v486
        %1514 = vmatpush1.msra.mxu0 %v485
        %1515 = vmatprep.subr.mxu0 %v488
        %1516 = vmatpush1.msra.mxu0 %v487
        %1517 = vmatprep.subr.mxu0 %v490
        %1518 = vmatpush1.msra.mxu0 %v489
        %1519 = vmatprep.subr.mxu0 %v492
        %1520 = vmatpush1.msra.mxu0 %v491
        %1521 = vmatprep.subr.mxu0 %v494
        %1522 = vmatpush1.msra.mxu0 %v493
        %1523 = vmatprep.subr.mxu0 %v496
        %1524 = vmatpush1.msra.mxu0 %v495
        %1525 = vmatprep.subr.mxu0 %v498
        %1526 = vmatpush1.msra.mxu0 %v497
        %1527 = vmatprep.subr.mxu0 %v500
        %1528 = vmatpush1.msra.mxu0 %v499
        %1529 = vmatprep.subr.mxu0 %v502
        %1530 = vmatpush1.msra.mxu0 %v501
        %1531 = vmatprep.subr.mxu0 %v504
        %1532 = vmatpush1.msra.mxu0 %v503
        %1533 = vmatprep.subr.mxu0 %v506
        %1534 = vmatpush1.msra.mxu0 %v505
        %1535 = vmatprep.subr.mxu0 %v508
        %1536 = vmatpush1.msra.mxu0 %v507
        %1537 = vmatprep.subr.mxu0 %v510
        %1538 = vmatpush1.msra.mxu0 %v509
        %1539 = vmatprep.subr.mxu0 %v512
        %1540 = vmatpush1.msra.mxu0 %v511
        %1541 = vmatprep.subr.mxu0 %v514
        %1542 = vmatpush1.msra.mxu0 %v513
        %1543 = vmatprep.subr.mxu0 %v516
        %1544 = vmatpush1.msra.mxu0 %v515
        %1545 = vmatprep.subr.mxu0 %v518
        %1546 = vmatpush1.msra.mxu0 %v517
        %1547 = vmatprep.subr.mxu0 %v520
        %1548 = vmatpush1.msra.mxu0 %v519
        %1549 = vmatprep.subr.mxu0 %v522
        %1550 = vmatpush1.msra.mxu0 %v521
        %1551 = vmatprep.subr.mxu0 %v524
        %1552 = vmatpush1.msra.mxu0 %v523
        %1553 = vmatprep.subr.mxu0 %v526
        %1554 = vmatpush1.msra.mxu0 %v525
        %1555 = vmatprep.mubr.f32.mxu0 %v224
        %1556 = vmatmul.mubr.f32.gmra.mrb[0].mxu0 %v223
        %v1557 = vpop.f32.mrb[0].mxu0
        %v1558 = vadd.f32 0.0, %v1557
        %v1559 = vpop.f32.mrb[0].mxu0
        %v1560 = vadd.f32 0.0, %v1559
        %1561 = vmatprep.mubr.f32.mxu0 %v227
        %1562 = vmatmul.mubr.f32.gmra.mrb[0].mxu0 %v226
        %v1563 = vpop.f32.mrb[0].mxu0
        %v1564 = vadd.f32 0.0, %v1563
        %v1565 = vpop.f32.mrb[0].mxu0
        %v1566 = vadd.f32 0.0, %v1565
        %1567 = vmatprep.mubr.f32.mxu0 %v230
        %1568 = vmatmul.mubr.f32.gmra.mrb[0].mxu0 %v229
        %v1569 = vpop.f32.mrb[0].mxu0
        %v1570 = vadd.f32 0.0, %v1569
        %v1571 = vpop.f32.mrb[0].mxu0
        %v1572 = vadd.f32 0.0, %v1571
        %1573 = vmatprep.mubr.f32.mxu0 %v233
        %1574 = vmatmul.mubr.f32.gmra.mrb[0].mxu0 %v232
        %v1575 = vpop.f32.mrb[0].mxu0
        %v1576 = vadd.f32 0.0, %v1575
        %v1577 = vpop.f32.mrb[0].mxu0
        %v1578 = vadd.f32 0.0, %v1577
        %1579 = vmatprep.mubr.f32.mxu0 %v236
        %1580 = vmatmul.mubr.f32.gmra.mrb[0].mxu0 %v235
        %v1581 = vpop.f32.mrb[0].mxu0
        %v1582 = vadd.f32 0.0, %v1581
        %v1583 = vpop.f32.mrb[0].mxu0
        %v1584 = vadd.f32 0.0, %v1583
        %1585 = vmatprep.mubr.f32.mxu0 %v239
        %1586 = vmatmul.mubr.f32.gmra.mrb[0].mxu0 %v238
        %v1587 = vpop.f32.mrb[0].mxu0
        %v1588 = vadd.f32 0.0, %v1587
        %v1589 = vpop.f32.mrb[0].mxu0
        %v1590 = vadd.f32 0.0, %v1589
        %1591 = vmatprep.mubr.f32.mxu0 %v242
        %1592 = vmatmul.mubr.f32.gmra.mrb[0].mxu0 %v241
        %v1593 = vpop.f32.mrb[0].mxu0
        %v1594 = vadd.f32 0.0, %v1593
        %v1595 = vpop.f32.mrb[0].mxu0
        %v1596 = vadd.f32 0.0, %v1595
        %1597 = vmatprep.mubr.f32.mxu0 %v245
        %1598 = vmatmul.mubr.f32.gmra.mrb[0].mxu0 %v244
        %v1599 = vpop.f32.mrb[0].mxu0
        %v1600 = vadd.f32 0.0, %v1599
        %v1601 = vpop.f32.mrb[0].mxu0
        %v1602 = vadd.f32 0.0, %v1601
        %1603 = vmatprep.mubr.f32.mxu0 %v248
        %1604 = vmatmul.mubr.f32.gmra.mrb[0].mxu0 %v247
        %v1605 = vpop.f32.mrb[0].mxu0
        %v1606 = vadd.f32 0.0, %v1605
        %v1607 = vpop.f32.mrb[0].mxu0
        %v1608 = vadd.f32 0.0, %v1607
        %1609 = vmatprep.mubr.f32.mxu0 %v251
        %1610 = vmatmul.mubr.f32.gmra.mrb[0].mxu0 %v250
        %v1611 = vpop.f32.mrb[0].mxu0
        %v1612 = vadd.f32 0.0, %v1611
        %v1613 = vpop.f32.mrb[0].mxu0
        %v1614 = vadd.f32 0.0, %v1613
        %1615 = vmatprep.mubr.f32.mxu0 %v254
        %1616 = vmatmul.mubr.f32.gmra.mrb[0].mxu0 %v253
        %v1617 = vpop.f32.mrb[0].mxu0
        %v1618 = vadd.f32 0.0, %v1617
        %v1619 = vpop.f32.mrb[0].mxu0
        %v1620 = vadd.f32 0.0, %v1619
        %1621 = vmatprep.mubr.f32.mxu0 %v257
        %1622 = vmatmul.mubr.f32.gmra.mrb[0].mxu0 %v256
        %v1623 = vpop.f32.mrb[0].mxu0
        %v1624 = vadd.f32 0.0, %v1623
        %v1625 = vpop.f32.mrb[0].mxu0
        %v1626 = vadd.f32 0.0, %v1625
        %1627 = vmatprep.mubr.f32.mxu0 %v260
        %1628 = vmatmul.mubr.f32.gmra.mrb[0].mxu0 %v259
        %v1629 = vpop.f32.mrb[0].mxu0
        %v1630 = vadd.f32 0.0, %v1629
        %v1631 = vpop.f32.mrb[0].mxu0
        %v1632 = vadd.f32 0.0, %v1631
        %1633 = vmatprep.mubr.f32.mxu0 %v263
        %1634 = vmatmul.mubr.f32.gmra.mrb[0].mxu0 %v262
        %v1635 = vpop.f32.mrb[0].mxu0
        %v1636 = vadd.f32 0.0, %v1635
        %v1637 = vpop.f32.mrb[0].mxu0
        %v1638 = vadd.f32 0.0, %v1637
        %1639 = vmatprep.mubr.f32.mxu0 %v266
        %1640 = vmatmul.mubr.f32.gmra.mrb[0].mxu0 %v265
        %v1641 = vpop.f32.mrb[0].mxu0
        %v1642 = vadd.f32 0.0, %v1641
        %v1643 = vpop.f32.mrb[0].mxu0
        %v1644 = vadd.f32 0.0, %v1643
        %1645 = vmatprep.mubr.f32.mxu0 %v269
        %1646 = vmatmul.mubr.f32.gmra.mrb[0].mxu0 %v268
        %v1647 = vpop.f32.mrb[0].mxu0
        %v1648 = vadd.f32 0.0, %v1647
        %v1649 = vpop.f32.mrb[0].mxu0
        %v1650 = vadd.f32 0.0, %v1649
        %1651 = vdwg.mxu0
        %1652 = vmatprep.subr.mxu0 %v528
        %1653 = vmatpush1.msra.mxu0 %v527
        %1654 = vmatprep.subr.mxu0 %v530
        %1655 = vmatpush1.msra.mxu0 %v529
        %1656 = vmatprep.subr.mxu0 %v532
        %1657 = vmatpush1.msra.mxu0 %v531
        %1658 = vmatprep.subr.mxu0 %v534
        %1659 = vmatpush1.msra.mxu0 %v533
        %1660 = vmatprep.subr.mxu0 %v536
        %1661 = vmatpush1.msra.mxu0 %v535
        %1662 = vmatprep.subr.mxu0 %v538
        %1663 = vmatpush1.msra.mxu0 %v537
        %1664 = vmatprep.subr.mxu0 %v540
        %1665 = vmatpush1.msra.mxu0 %v539
        %1666 = vmatprep.subr.mxu0 %v542
        %1667 = vmatpush1.msra.mxu0 %v541
        %1668 = vmatprep.subr.mxu0 %v544
        %1669 = vmatpush1.msra.mxu0 %v543
        %1670 = vmatprep.subr.mxu0 %v546
        %1671 = vmatpush1.msra.mxu0 %v545
        %1672 = vmatprep.subr.mxu0 %v548
        %1673 = vmatpush1.msra.mxu0 %v547
        %1674 = vmatprep.subr.mxu0 %v550
        %1675 = vmatpush1.msra.mxu0 %v549
        %1676 = vmatprep.subr.mxu0 %v552
        %1677 = vmatpush1.msra.mxu0 %v551
        %1678 = vmatprep.subr.mxu0 %v554
        %1679 = vmatpush1.msra.mxu0 %v553
        %1680 = vmatprep.subr.mxu0 %v556
        %1681 = vmatpush1.msra.mxu0 %v555
        %1682 = vmatprep.subr.mxu0 %v558
        %1683 = vmatpush1.msra.mxu0 %v557
        %1684 = vmatprep.subr.mxu0 0.0
        %1685 = vmatpush1.msra.mxu0 0.0
        %1686 = vmatprep.subr.mxu0 0.0
        %1687 = vmatpush1.msra.mxu0 0.0
        %1688 = vmatprep.subr.mxu0 0.0
        %1689 = vmatpush1.msra.mxu0 0.0
        %1690 = vmatprep.subr.mxu0 0.0
        %1691 = vmatpush1.msra.mxu0 0.0
        %1692 = vmatprep.subr.mxu0 0.0
        %1693 = vmatpush1.msra.mxu0 0.0
        %1694 = vmatprep.subr.mxu0 0.0
        %1695 = vmatpush1.msra.mxu0 0.0
        %1696 = vmatprep.subr.mxu0 0.0
        %1697 = vmatpush1.msra.mxu0 0.0
        %1698 = vmatprep.subr.mxu0 0.0
        %1699 = vmatpush1.msra.mxu0 0.0
        %1700 = vmatprep.subr.mxu0 0.0
        %1701 = vmatpush1.msra.mxu0 0.0
        %1702 = vmatprep.subr.mxu0 0.0
        %1703 = vmatpush1.msra.mxu0 0.0
        %1704 = vmatprep.subr.mxu0 0.0
        %1705 = vmatpush1.msra.mxu0 0.0
        %1706 = vmatprep.subr.mxu0 0.0
        %1707 = vmatpush1.msra.mxu0 0.0
        %1708 = vmatprep.subr.mxu0 0.0
        %1709 = vmatpush1.msra.mxu0 0.0
        %1710 = vmatprep.subr.mxu0 0.0
        %1711 = vmatpush1.msra.mxu0 0.0
        %1712 = vmatprep.subr.mxu0 0.0
        %1713 = vmatpush1.msra.mxu0 0.0
        %1714 = vmatprep.subr.mxu0 0.0
        %1715 = vmatpush1.msra.mxu0 0.0
        %1716 = vmatprep.mubr.f32.mxu0 0.0
        %1717 = vmatmul.mubr.f32.gmra.mrb[0].mxu0 %v225
        %v1718 = vpop.f32.mrb[0].mxu0
        %v1719 = vadd.f32 %v1558, %v1718
        %v1720 = vpop.f32.mrb[0].mxu0
        %v1721 = vadd.f32 %v1560, %v1720
        %1722 = vmatprep.mubr.f32.mxu0 0.0
        %1723 = vmatmul.mubr.f32.gmra.mrb[0].mxu0 %v228
        %v1724 = vpop.f32.mrb[0].mxu0
        %v1725 = vadd.f32 %v1564, %v1724
        %v1726 = vpop.f32.mrb[0].mxu0
        %v1727 = vadd.f32 %v1566, %v1726
        %1728 = vmatprep.mubr.f32.mxu0 0.0
        %1729 = vmatmul.mubr.f32.gmra.mrb[0].mxu0 %v231
        %v1730 = vpop.f32.mrb[0].mxu0
        %v1731 = vadd.f32 %v1570, %v1730
        %v1732 = vpop.f32.mrb[0].mxu0
        %v1733 = vadd.f32 %v1572, %v1732
        %1734 = vmatprep.mubr.f32.mxu0 0.0
        %1735 = vmatmul.mubr.f32.gmra.mrb[0].mxu0 %v234
        %v1736 = vpop.f32.mrb[0].mxu0
        %v1737 = vadd.f32 %v1576, %v1736
        %v1738 = vpop.f32.mrb[0].mxu0
        %v1739 = vadd.f32 %v1578, %v1738
        %1740 = vmatprep.mubr.f32.mxu0 0.0
        %1741 = vmatmul.mubr.f32.gmra.mrb[0].mxu0 %v237
        %v1742 = vpop.f32.mrb[0].mxu0
        %v1743 = vadd.f32 %v1582, %v1742
        %v1744 = vpop.f32.mrb[0].mxu0
        %v1745 = vadd.f32 %v1584, %v1744
        %1746 = vmatprep.mubr.f32.mxu0 0.0
        %1747 = vmatmul.mubr.f32.gmra.mrb[0].mxu0 %v240
        %v1748 = vpop.f32.mrb[0].mxu0
        %v1749 = vadd.f32 %v1588, %v1748
        %v1750 = vpop.f32.mrb[0].mxu0
        %v1751 = vadd.f32 %v1590, %v1750
        %1752 = vmatprep.mubr.f32.mxu0 0.0
        %1753 = vmatmul.mubr.f32.gmra.mrb[0].mxu0 %v243
        %v1754 = vpop.f32.mrb[0].mxu0
        %v1755 = vadd.f32 %v1594, %v1754
        %v1756 = vpop.f32.mrb[0].mxu0
        %v1757 = vadd.f32 %v1596, %v1756
        %1758 = vmatprep.mubr.f32.mxu0 0.0
        %1759 = vmatmul.mubr.f32.gmra.mrb[0].mxu0 %v246
        %v1760 = vpop.f32.mrb[0].mxu0
        %v1761 = vadd.f32 %v1600, %v1760
        %v1762 = vpop.f32.mrb[0].mxu0
        %v1763 = vadd.f32 %v1602, %v1762
        %1764 = vmatprep.mubr.f32.mxu0 0.0
        %1765 = vmatmul.mubr.f32.gmra.mrb[0].mxu0 %v249
        %v1766 = vpop.f32.mrb[0].mxu0
        %v1767 = vadd.f32 %v1606, %v1766
        %v1768 = vpop.f32.mrb[0].mxu0
        %v1769 = vadd.f32 %v1608, %v1768
        %1770 = vmatprep.mubr.f32.mxu0 0.0
        %1771 = vmatmul.mubr.f32.gmra.mrb[0].mxu0 %v252
        %v1772 = vpop.f32.mrb[0].mxu0
        %v1773 = vadd.f32 %v1612, %v1772
        %v1774 = vpop.f32.mrb[0].mxu0
        %v1775 = vadd.f32 %v1614, %v1774
        %1776 = vmatprep.mubr.f32.mxu0 0.0
        %1777 = vmatmul.mubr.f32.gmra.mrb[0].mxu0 %v255
        %v1778 = vpop.f32.mrb[0].mxu0
        %v1779 = vadd.f32 %v1618, %v1778
        %v1780 = vpop.f32.mrb[0].mxu0
        %v1781 = vadd.f32 %v1620, %v1780
        %1782 = vmatprep.mubr.f32.mxu0 0.0
        %1783 = vmatmul.mubr.f32.gmra.mrb[0].mxu0 %v258
        %v1784 = vpop.f32.mrb[0].mxu0
        %v1785 = vadd.f32 %v1624, %v1784
        %v1786 = vpop.f32.mrb[0].mxu0
        %v1787 = vadd.f32 %v1626, %v1786
        %1788 = vmatprep.mubr.f32.mxu0 0.0
        %1789 = vmatmul.mubr.f32.gmra.mrb[0].mxu0 %v261
        %v1790 = vpop.f32.mrb[0].mxu0
        %v1791 = vadd.f32 %v1630, %v1790
        %v1792 = vpop.f32.mrb[0].mxu0
        %v1793 = vadd.f32 %v1632, %v1792
        %1794 = vmatprep.mubr.f32.mxu0 0.0
        %1795 = vmatmul.mubr.f32.gmra.mrb[0].mxu0 %v264
        %v1796 = vpop.f32.mrb[0].mxu0
        %v1797 = vadd.f32 %v1636, %v1796
        %v1798 = vpop.f32.mrb[0].mxu0
        %v1799 = vadd.f32 %v1638, %v1798
        %1800 = vmatprep.mubr.f32.mxu0 0.0
        %1801 = vmatmul.mubr.f32.gmra.mrb[0].mxu0 %v267
        %v1802 = vpop.f32.mrb[0].mxu0
        %v1803 = vadd.f32 %v1642, %v1802
        %v1804 = vpop.f32.mrb[0].mxu0
        %v1805 = vadd.f32 %v1644, %v1804
        %1806 = vmatprep.mubr.f32.mxu0 0.0
        %1807 = vmatmul.mubr.f32.gmra.mrb[0].mxu0 %v270
        %v1808 = vpop.f32.mrb[0].mxu0
        %v1809 = vadd.f32 %v1648, %v1808
        %v1810 = vpop.f32.mrb[0].mxu0
        %v1811 = vadd.f32 %v1650, %v1810
        %1812 = vdwg.mxu0
        %1813 = vmatprep.subr.mxu0 %v560
        %1814 = vmatpush1.msra.mxu0 %v559
        %1815 = vmatprep.subr.mxu0 %v562
        %1816 = vmatpush1.msra.mxu0 %v561
        %1817 = vmatprep.subr.mxu0 %v564
        %1818 = vmatpush1.msra.mxu0 %v563
        %1819 = vmatprep.subr.mxu0 %v566
        %1820 = vmatpush1.msra.mxu0 %v565
        %1821 = vmatprep.subr.mxu0 %v568
        %1822 = vmatpush1.msra.mxu0 %v567
        %1823 = vmatprep.subr.mxu0 %v570
        %1824 = vmatpush1.msra.mxu0 %v569
        %1825 = vmatprep.subr.mxu0 %v572
        %1826 = vmatpush1.msra.mxu0 %v571
        %1827 = vmatprep.subr.mxu0 %v574
        %1828 = vmatpush1.msra.mxu0 %v573
        %1829 = vmatprep.subr.mxu0 %v576
        %1830 = vmatpush1.msra.mxu0 %v575
        %1831 = vmatprep.subr.mxu0 %v578
        %1832 = vmatpush1.msra.mxu0 %v577
        %1833 = vmatprep.subr.mxu0 %v580
        %1834 = vmatpush1.msra.mxu0 %v579
        %1835 = vmatprep.subr.mxu0 %v582
        %1836 = vmatpush1.msra.mxu0 %v581
        %1837 = vmatprep.subr.mxu0 %v584
        %1838 = vmatpush1.msra.mxu0 %v583
        %1839 = vmatprep.subr.mxu0 %v586
        %1840 = vmatpush1.msra.mxu0 %v585
        %1841 = vmatprep.subr.mxu0 %v588
        %1842 = vmatpush1.msra.mxu0 %v587
        %1843 = vmatprep.subr.mxu0 %v590
        %1844 = vmatpush1.msra.mxu0 %v589
        %1845 = vmatprep.subr.mxu0 %v592
        %1846 = vmatpush1.msra.mxu0 %v591
        %1847 = vmatprep.subr.mxu0 %v594
        %1848 = vmatpush1.msra.mxu0 %v593
        %1849 = vmatprep.subr.mxu0 %v596
        %1850 = vmatpush1.msra.mxu0 %v595
        %1851 = vmatprep.subr.mxu0 %v598
        %1852 = vmatpush1.msra.mxu0 %v597
        %1853 = vmatprep.subr.mxu0 %v600
        %1854 = vmatpush1.msra.mxu0 %v599
        %1855 = vmatprep.subr.mxu0 %v602
        %1856 = vmatpush1.msra.mxu0 %v601
        %1857 = vmatprep.subr.mxu0 %v604
        %1858 = vmatpush1.msra.mxu0 %v603
        %1859 = vmatprep.subr.mxu0 %v606
        %1860 = vmatpush1.msra.mxu0 %v605
        %1861 = vmatprep.subr.mxu0 %v608
        %1862 = vmatpush1.msra.mxu0 %v607
        %1863 = vmatprep.subr.mxu0 %v610
        %1864 = vmatpush1.msra.mxu0 %v609
        %1865 = vmatprep.subr.mxu0 %v612
        %1866 = vmatpush1.msra.mxu0 %v611
        %1867 = vmatprep.subr.mxu0 %v614
        %1868 = vmatpush1.msra.mxu0 %v613
        %1869 = vmatprep.subr.mxu0 %v616
        %1870 = vmatpush1.msra.mxu0 %v615
        %1871 = vmatprep.subr.mxu0 %v618
        %1872 = vmatpush1.msra.mxu0 %v617
        %1873 = vmatprep.subr.mxu0 %v620
        %1874 = vmatpush1.msra.mxu0 %v619
        %1875 = vmatprep.subr.mxu0 %v622
        %1876 = vmatpush1.msra.mxu0 %v621
        %1877 = vmatprep.mubr.f32.mxu0 %v224
        %1878 = vmatmul.mubr.f32.gmra.mrb[0].mxu0 %v223
        %v1879 = vpop.f32.mrb[0].mxu0
        %v1880 = vadd.f32 0.0, %v1879
        %v1881 = vpop.f32.mrb[0].mxu0
        %v1882 = vadd.f32 0.0, %v1881
        %1883 = vmatprep.mubr.f32.mxu0 %v227
        %1884 = vmatmul.mubr.f32.gmra.mrb[0].mxu0 %v226
        %v1885 = vpop.f32.mrb[0].mxu0
        %v1886 = vadd.f32 0.0, %v1885
        %v1887 = vpop.f32.mrb[0].mxu0
        %v1888 = vadd.f32 0.0, %v1887
        %1889 = vmatprep.mubr.f32.mxu0 %v230
        %1890 = vmatmul.mubr.f32.gmra.mrb[0].mxu0 %v229
        %v1891 = vpop.f32.mrb[0].mxu0
        %v1892 = vadd.f32 0.0, %v1891
        %v1893 = vpop.f32.mrb[0].mxu0
        %v1894 = vadd.f32 0.0, %v1893
        %1895 = vmatprep.mubr.f32.mxu0 %v233
        %1896 = vmatmul.mubr.f32.gmra.mrb[0].mxu0 %v232
        %v1897 = vpop.f32.mrb[0].mxu0
        %v1898 = vadd.f32 0.0, %v1897
        %v1899 = vpop.f32.mrb[0].mxu0
        %v1900 = vadd.f32 0.0, %v1899
        %1901 = vmatprep.mubr.f32.mxu0 %v236
        %1902 = vmatmul.mubr.f32.gmra.mrb[0].mxu0 %v235
        %v1903 = vpop.f32.mrb[0].mxu0
        %v1904 = vadd.f32 0.0, %v1903
        %v1905 = vpop.f32.mrb[0].mxu0
        %v1906 = vadd.f32 0.0, %v1905
        %1907 = vmatprep.mubr.f32.mxu0 %v239
        %1908 = vmatmul.mubr.f32.gmra.mrb[0].mxu0 %v238
        %v1909 = vpop.f32.mrb[0].mxu0
        %v1910 = vadd.f32 0.0, %v1909
        %v1911 = vpop.f32.mrb[0].mxu0
        %v1912 = vadd.f32 0.0, %v1911
        %1913 = vmatprep.mubr.f32.mxu0 %v242
        %1914 = vmatmul.mubr.f32.gmra.mrb[0].mxu0 %v241
        %v1915 = vpop.f32.mrb[0].mxu0
        %v1916 = vadd.f32 0.0, %v1915
        %v1917 = vpop.f32.mrb[0].mxu0
        %v1918 = vadd.f32 0.0, %v1917
        %1919 = vmatprep.mubr.f32.mxu0 %v245
        %1920 = vmatmul.mubr.f32.gmra.mrb[0].mxu0 %v244
        %v1921 = vpop.f32.mrb[0].mxu0
        %v1922 = vadd.f32 0.0, %v1921
        %v1923 = vpop.f32.mrb[0].mxu0
        %v1924 = vadd.f32 0.0, %v1923
        %1925 = vmatprep.mubr.f32.mxu0 %v248
        %1926 = vmatmul.mubr.f32.gmra.mrb[0].mxu0 %v247
        %v1927 = vpop.f32.mrb[0].mxu0
        %v1928 = vadd.f32 0.0, %v1927
        %v1929 = vpop.f32.mrb[0].mxu0
        %v1930 = vadd.f32 0.0, %v1929
        %1931 = vmatprep.mubr.f32.mxu0 %v251
        %1932 = vmatmul.mubr.f32.gmra.mrb[0].mxu0 %v250
        %v1933 = vpop.f32.mrb[0].mxu0
        %v1934 = vadd.f32 0.0, %v1933
        %v1935 = vpop.f32.mrb[0].mxu0
        %v1936 = vadd.f32 0.0, %v1935
        %1937 = vmatprep.mubr.f32.mxu0 %v254
        %1938 = vmatmul.mubr.f32.gmra.mrb[0].mxu0 %v253
        %v1939 = vpop.f32.mrb[0].mxu0
        %v1940 = vadd.f32 0.0, %v1939
        %v1941 = vpop.f32.mrb[0].mxu0
        %v1942 = vadd.f32 0.0, %v1941
        %1943 = vmatprep.mubr.f32.mxu0 %v257
        %1944 = vmatmul.mubr.f32.gmra.mrb[0].mxu0 %v256
        %v1945 = vpop.f32.mrb[0].mxu0
        %v1946 = vadd.f32 0.0, %v1945
        %v1947 = vpop.f32.mrb[0].mxu0
        %v1948 = vadd.f32 0.0, %v1947
        %1949 = vmatprep.mubr.f32.mxu0 %v260
        %1950 = vmatmul.mubr.f32.gmra.mrb[0].mxu0 %v259
        %v1951 = vpop.f32.mrb[0].mxu0
        %v1952 = vadd.f32 0.0, %v1951
        %v1953 = vpop.f32.mrb[0].mxu0
        %v1954 = vadd.f32 0.0, %v1953
        %1955 = vmatprep.mubr.f32.mxu0 %v263
        %1956 = vmatmul.mubr.f32.gmra.mrb[0].mxu0 %v262
        %v1957 = vpop.f32.mrb[0].mxu0
        %v1958 = vadd.f32 0.0, %v1957
        %v1959 = vpop.f32.mrb[0].mxu0
        %v1960 = vadd.f32 0.0, %v1959
        %1961 = vmatprep.mubr.f32.mxu0 %v266
        %1962 = vmatmul.mubr.f32.gmra.mrb[0].mxu0 %v265
        %v1963 = vpop.f32.mrb[0].mxu0
        %v1964 = vadd.f32 0.0, %v1963
        %v1965 = vpop.f32.mrb[0].mxu0
        %v1966 = vadd.f32 0.0, %v1965
        %1967 = vmatprep.mubr.f32.mxu0 %v269
        %1968 = vmatmul.mubr.f32.gmra.mrb[0].mxu0 %v268
        %v1969 = vpop.f32.mrb[0].mxu0
        %v1970 = vadd.f32 0.0, %v1969
        %v1971 = vpop.f32.mrb[0].mxu0
        %v1972 = vadd.f32 0.0, %v1971
        %1973 = vdwg.mxu0
        %1974 = vmatprep.subr.mxu0 %v624
        %1975 = vmatpush1.msra.mxu0 %v623
        %1976 = vmatprep.subr.mxu0 %v626
        %1977 = vmatpush1.msra.mxu0 %v625
        %1978 = vmatprep.subr.mxu0 %v628
        %1979 = vmatpush1.msra.mxu0 %v627
        %1980 = vmatprep.subr.mxu0 %v630
        %1981 = vmatpush1.msra.mxu0 %v629
        %1982 = vmatprep.subr.mxu0 %v632
        %1983 = vmatpush1.msra.mxu0 %v631
        %1984 = vmatprep.subr.mxu0 %v634
        %1985 = vmatpush1.msra.mxu0 %v633
        %1986 = vmatprep.subr.mxu0 %v636
        %1987 = vmatpush1.msra.mxu0 %v635
        %1988 = vmatprep.subr.mxu0 %v638
        %1989 = vmatpush1.msra.mxu0 %v637
        %1990 = vmatprep.subr.mxu0 %v640
        %1991 = vmatpush1.msra.mxu0 %v639
        %1992 = vmatprep.subr.mxu0 %v642
        %1993 = vmatpush1.msra.mxu0 %v641
        %1994 = vmatprep.subr.mxu0 %v644
        %1995 = vmatpush1.msra.mxu0 %v643
        %1996 = vmatprep.subr.mxu0 %v646
        %1997 = vmatpush1.msra.mxu0 %v645
        %1998 = vmatprep.subr.mxu0 %v648
        %1999 = vmatpush1.msra.mxu0 %v647
        %2000 = vmatprep.subr.mxu0 %v650
        %2001 = vmatpush1.msra.mxu0 %v649
        %2002 = vmatprep.subr.mxu0 %v652
        %2003 = vmatpush1.msra.mxu0 %v651
        %2004 = vmatprep.subr.mxu0 %v654
        %2005 = vmatpush1.msra.mxu0 %v653
        %2006 = vmatprep.subr.mxu0 0.0
        %2007 = vmatpush1.msra.mxu0 0.0
        %2008 = vmatprep.subr.mxu0 0.0
        %2009 = vmatpush1.msra.mxu0 0.0
        %2010 = vmatprep.subr.mxu0 0.0
        %2011 = vmatpush1.msra.mxu0 0.0
        %2012 = vmatprep.subr.mxu0 0.0
        %2013 = vmatpush1.msra.mxu0 0.0
        %2014 = vmatprep.subr.mxu0 0.0
        %2015 = vmatpush1.msra.mxu0 0.0
        %2016 = vmatprep.subr.mxu0 0.0
        %2017 = vmatpush1.msra.mxu0 0.0
        %2018 = vmatprep.subr.mxu0 0.0
        %2019 = vmatpush1.msra.mxu0 0.0
        %2020 = vmatprep.subr.mxu0 0.0
        %2021 = vmatpush1.msra.mxu0 0.0
        %2022 = vmatprep.subr.mxu0 0.0
        %2023 = vmatpush1.msra.mxu0 0.0
        %2024 = vmatprep.subr.mxu0 0.0
        %2025 = vmatpush1.msra.mxu0 0.0
        %2026 = vmatprep.subr.mxu0 0.0
        %2027 = vmatpush1.msra.mxu0 0.0
        %2028 = vmatprep.subr.mxu0 0.0
        %2029 = vmatpush1.msra.mxu0 0.0
        %2030 = vmatprep.subr.mxu0 0.0
        %2031 = vmatpush1.msra.mxu0 0.0
        %2032 = vmatprep.subr.mxu0 0.0
        %2033 = vmatpush1.msra.mxu0 0.0
        %2034 = vmatprep.subr.mxu0 0.0
        %2035 = vmatpush1.msra.mxu0 0.0
        %2036 = vmatprep.subr.mxu0 0.0
        %2037 = vmatpush1.msra.mxu0 0.0
        %2038 = vmatprep.mubr.f32.mxu0 0.0
        %2039 = vmatmul.mubr.f32.gmra.mrb[0].mxu0 %v225
        %v2040 = vpop.f32.mrb[0].mxu0
        %v2041 = vadd.f32 %v1880, %v2040
        %v2042 = vpop.f32.mrb[0].mxu0
        %v2043 = vadd.f32 %v1882, %v2042
        %2044 = vmatprep.mubr.f32.mxu0 0.0
        %2045 = vmatmul.mubr.f32.gmra.mrb[0].mxu0 %v228
        %v2046 = vpop.f32.mrb[0].mxu0
        %v2047 = vadd.f32 %v1886, %v2046
        %v2048 = vpop.f32.mrb[0].mxu0
        %v2049 = vadd.f32 %v1888, %v2048
        %2050 = vmatprep.mubr.f32.mxu0 0.0
        %2051 = vmatmul.mubr.f32.gmra.mrb[0].mxu0 %v231
        %v2052 = vpop.f32.mrb[0].mxu0
        %v2053 = vadd.f32 %v1892, %v2052
        %v2054 = vpop.f32.mrb[0].mxu0
        %v2055 = vadd.f32 %v1894, %v2054
        %2056 = vmatprep.mubr.f32.mxu0 0.0
        %2057 = vmatmul.mubr.f32.gmra.mrb[0].mxu0 %v234
        %v2058 = vpop.f32.mrb[0].mxu0
        %v2059 = vadd.f32 %v1898, %v2058
        %v2060 = vpop.f32.mrb[0].mxu0
        %v2061 = vadd.f32 %v1900, %v2060
        %2062 = vmatprep.mubr.f32.mxu0 0.0
        %2063 = vmatmul.mubr.f32.gmra.mrb[0].mxu0 %v237
        %v2064 = vpop.f32.mrb[0].mxu0
        %v2065 = vadd.f32 %v1904, %v2064
        %v2066 = vpop.f32.mrb[0].mxu0
        %v2067 = vadd.f32 %v1906, %v2066
        %2068 = vmatprep.mubr.f32.mxu0 0.0
        %2069 = vmatmul.mubr.f32.gmra.mrb[0].mxu0 %v240
        %v2070 = vpop.f32.mrb[0].mxu0
        %v2071 = vadd.f32 %v1910, %v2070
        %v2072 = vpop.f32.mrb[0].mxu0
        %v2073 = vadd.f32 %v1912, %v2072
        %2074 = vmatprep.mubr.f32.mxu0 0.0
        %2075 = vmatmul.mubr.f32.gmra.mrb[0].mxu0 %v243
        %v2076 = vpop.f32.mrb[0].mxu0
        %v2077 = vadd.f32 %v1916, %v2076
        %v2078 = vpop.f32.mrb[0].mxu0
        %v2079 = vadd.f32 %v1918, %v2078
        %2080 = vmatprep.mubr.f32.mxu0 0.0
        %2081 = vmatmul.mubr.f32.gmra.mrb[0].mxu0 %v246
        %v2082 = vpop.f32.mrb[0].mxu0
        %v2083 = vadd.f32 %v1922, %v2082
        %v2084 = vpop.f32.mrb[0].mxu0
        %v2085 = vadd.f32 %v1924, %v2084
        %2086 = vmatprep.mubr.f32.mxu0 0.0
        %2087 = vmatmul.mubr.f32.gmra.mrb[0].mxu0 %v249
        %v2088 = vpop.f32.mrb[0].mxu0
        %v2089 = vadd.f32 %v1928, %v2088
        %v2090 = vpop.f32.mrb[0].mxu0
        %v2091 = vadd.f32 %v1930, %v2090
        %2092 = vmatprep.mubr.f32.mxu0 0.0
        %2093 = vmatmul.mubr.f32.gmra.mrb[0].mxu0 %v252
        %v2094 = vpop.f32.mrb[0].mxu0
        %v2095 = vadd.f32 %v1934, %v2094
        %v2096 = vpop.f32.mrb[0].mxu0
        %v2097 = vadd.f32 %v1936, %v2096
        %2098 = vmatprep.mubr.f32.mxu0 0.0
        %2099 = vmatmul.mubr.f32.gmra.mrb[0].mxu0 %v255
        %v2100 = vpop.f32.mrb[0].mxu0
        %v2101 = vadd.f32 %v1940, %v2100
        %v2102 = vpop.f32.mrb[0].mxu0
        %v2103 = vadd.f32 %v1942, %v2102
        %2104 = vmatprep.mubr.f32.mxu0 0.0
        %2105 = vmatmul.mubr.f32.gmra.mrb[0].mxu0 %v258
        %v2106 = vpop.f32.mrb[0].mxu0
        %v2107 = vadd.f32 %v1946, %v2106
        %v2108 = vpop.f32.mrb[0].mxu0
        %v2109 = vadd.f32 %v1948, %v2108
        %2110 = vmatprep.mubr.f32.mxu0 0.0
        %2111 = vmatmul.mubr.f32.gmra.mrb[0].mxu0 %v261
        %v2112 = vpop.f32.mrb[0].mxu0
        %v2113 = vadd.f32 %v1952, %v2112
        %v2114 = vpop.f32.mrb[0].mxu0
        %v2115 = vadd.f32 %v1954, %v2114
        %2116 = vmatprep.mubr.f32.mxu0 0.0
        %2117 = vmatmul.mubr.f32.gmra.mrb[0].mxu0 %v264
        %v2118 = vpop.f32.mrb[0].mxu0
        %v2119 = vadd.f32 %v1958, %v2118
        %v2120 = vpop.f32.mrb[0].mxu0
        %v2121 = vadd.f32 %v1960, %v2120
        %2122 = vmatprep.mubr.f32.mxu0 0.0
        %2123 = vmatmul.mubr.f32.gmra.mrb[0].mxu0 %v267
        %v2124 = vpop.f32.mrb[0].mxu0
        %v2125 = vadd.f32 %v1964, %v2124
        %v2126 = vpop.f32.mrb[0].mxu0
        %v2127 = vadd.f32 %v1966, %v2126
        %2128 = vmatprep.mubr.f32.mxu0 0.0
        %2129 = vmatmul.mubr.f32.gmra.mrb[0].mxu0 %v270
        %v2130 = vpop.f32.mrb[0].mxu0
        %v2131 = vadd.f32 %v1970, %v2130
        %v2132 = vpop.f32.mrb[0].mxu0
        %v2133 = vadd.f32 %v1972, %v2132
        %2134 = vdwg.mxu0
        %2135 = vmatprep.subr.mxu0 %v656
        %2136 = vmatpush1.msra.mxu0 %v655
        %2137 = vmatprep.subr.mxu0 %v658
        %2138 = vmatpush1.msra.mxu0 %v657
        %2139 = vmatprep.subr.mxu0 %v660
        %2140 = vmatpush1.msra.mxu0 %v659
        %2141 = vmatprep.subr.mxu0 %v662
        %2142 = vmatpush1.msra.mxu0 %v661
        %2143 = vmatprep.subr.mxu0 %v664
        %2144 = vmatpush1.msra.mxu0 %v663
        %2145 = vmatprep.subr.mxu0 %v666
        %2146 = vmatpush1.msra.mxu0 %v665
        %2147 = vmatprep.subr.mxu0 %v668
        %2148 = vmatpush1.msra.mxu0 %v667
        %2149 = vmatprep.subr.mxu0 %v670
        %2150 = vmatpush1.msra.mxu0 %v669
        %2151 = vmatprep.subr.mxu0 %v672
        %2152 = vmatpush1.msra.mxu0 %v671
        %2153 = vmatprep.subr.mxu0 %v674
        %2154 = vmatpush1.msra.mxu0 %v673
        %2155 = vmatprep.subr.mxu0 %v676
        %2156 = vmatpush1.msra.mxu0 %v675
        %2157 = vmatprep.subr.mxu0 %v678
        %2158 = vmatpush1.msra.mxu0 %v677
        %2159 = vmatprep.subr.mxu0 %v680
        %2160 = vmatpush1.msra.mxu0 %v679
        %2161 = vmatprep.subr.mxu0 %v682
        %2162 = vmatpush1.msra.mxu0 %v681
        %2163 = vmatprep.subr.mxu0 %v684
        %2164 = vmatpush1.msra.mxu0 %v683
        %2165 = vmatprep.subr.mxu0 %v686
        %2166 = vmatpush1.msra.mxu0 %v685
        %2167 = vmatprep.subr.mxu0 %v688
        %2168 = vmatpush1.msra.mxu0 %v687
        %2169 = vmatprep.subr.mxu0 %v690
        %2170 = vmatpush1.msra.mxu0 %v689
        %2171 = vmatprep.subr.mxu0 %v692
        %2172 = vmatpush1.msra.mxu0 %v691
        %2173 = vmatprep.subr.mxu0 %v694
        %2174 = vmatpush1.msra.mxu0 %v693
        %2175 = vmatprep.subr.mxu0 %v696
        %2176 = vmatpush1.msra.mxu0 %v695
        %2177 = vmatprep.subr.mxu0 %v698
        %2178 = vmatpush1.msra.mxu0 %v697
        %2179 = vmatprep.subr.mxu0 %v700
        %2180 = vmatpush1.msra.mxu0 %v699
        %2181 = vmatprep.subr.mxu0 %v702
        %2182 = vmatpush1.msra.mxu0 %v701
        %2183 = vmatprep.subr.mxu0 %v704
        %2184 = vmatpush1.msra.mxu0 %v703
        %2185 = vmatprep.subr.mxu0 %v706
        %2186 = vmatpush1.msra.mxu0 %v705
        %2187 = vmatprep.subr.mxu0 %v708
        %2188 = vmatpush1.msra.mxu0 %v707
        %2189 = vmatprep.subr.mxu0 %v710
        %2190 = vmatpush1.msra.mxu0 %v709
        %2191 = vmatprep.subr.mxu0 %v712
        %2192 = vmatpush1.msra.mxu0 %v711
        %2193 = vmatprep.subr.mxu0 %v714
        %2194 = vmatpush1.msra.mxu0 %v713
        %2195 = vmatprep.subr.mxu0 %v716
        %2196 = vmatpush1.msra.mxu0 %v715
        %2197 = vmatprep.subr.mxu0 %v718
        %2198 = vmatpush1.msra.mxu0 %v717
        %2199 = vmatprep.mubr.f32.mxu0 %v224
        %2200 = vmatmul.mubr.f32.gmra.mrb[0].mxu0 %v223
        %v2201 = vpop.f32.mrb[0].mxu0
        %v2202 = vadd.f32 0.0, %v2201
        %v2203 = vpop.f32.mrb[0].mxu0
        %v2204 = vadd.f32 0.0, %v2203
        %2205 = vmatprep.mubr.f32.mxu0 %v227
        %2206 = vmatmul.mubr.f32.gmra.mrb[0].mxu0 %v226
        %v2207 = vpop.f32.mrb[0].mxu0
        %v2208 = vadd.f32 0.0, %v2207
        %v2209 = vpop.f32.mrb[0].mxu0
        %v2210 = vadd.f32 0.0, %v2209
        %2211 = vmatprep.mubr.f32.mxu0 %v230
        %2212 = vmatmul.mubr.f32.gmra.mrb[0].mxu0 %v229
        %v2213 = vpop.f32.mrb[0].mxu0
        %v2214 = vadd.f32 0.0, %v2213
        %v2215 = vpop.f32.mrb[0].mxu0
        %v2216 = vadd.f32 0.0, %v2215
        %2217 = vmatprep.mubr.f32.mxu0 %v233
        %2218 = vmatmul.mubr.f32.gmra.mrb[0].mxu0 %v232
        %v2219 = vpop.f32.mrb[0].mxu0
        %v2220 = vadd.f32 0.0, %v2219
        %v2221 = vpop.f32.mrb[0].mxu0
        %v2222 = vadd.f32 0.0, %v2221
        %2223 = vmatprep.mubr.f32.mxu0 %v236
        %2224 = vmatmul.mubr.f32.gmra.mrb[0].mxu0 %v235
        %v2225 = vpop.f32.mrb[0].mxu0
        %v2226 = vadd.f32 0.0, %v2225
        %v2227 = vpop.f32.mrb[0].mxu0
        %v2228 = vadd.f32 0.0, %v2227
        %2229 = vmatprep.mubr.f32.mxu0 %v239
        %2230 = vmatmul.mubr.f32.gmra.mrb[0].mxu0 %v238
        %v2231 = vpop.f32.mrb[0].mxu0
        %v2232 = vadd.f32 0.0, %v2231
        %v2233 = vpop.f32.mrb[0].mxu0
        %v2234 = vadd.f32 0.0, %v2233
        %2235 = vmatprep.mubr.f32.mxu0 %v242
        %2236 = vmatmul.mubr.f32.gmra.mrb[0].mxu0 %v241
        %v2237 = vpop.f32.mrb[0].mxu0
        %v2238 = vadd.f32 0.0, %v2237
        %v2239 = vpop.f32.mrb[0].mxu0
        %v2240 = vadd.f32 0.0, %v2239
        %2241 = vmatprep.mubr.f32.mxu0 %v245
        %2242 = vmatmul.mubr.f32.gmra.mrb[0].mxu0 %v244
        %v2243 = vpop.f32.mrb[0].mxu0
        %v2244 = vadd.f32 0.0, %v2243
        %v2245 = vpop.f32.mrb[0].mxu0
        %v2246 = vadd.f32 0.0, %v2245
        %2247 = vmatprep.mubr.f32.mxu0 %v248
        %2248 = vmatmul.mubr.f32.gmra.mrb[0].mxu0 %v247
        %v2249 = vpop.f32.mrb[0].mxu0
        %v2250 = vadd.f32 0.0, %v2249
        %v2251 = vpop.f32.mrb[0].mxu0
        %v2252 = vadd.f32 0.0, %v2251
        %2253 = vmatprep.mubr.f32.mxu0 %v251
        %2254 = vmatmul.mubr.f32.gmra.mrb[0].mxu0 %v250
        %v2255 = vpop.f32.mrb[0].mxu0
        %v2256 = vadd.f32 0.0, %v2255
        %v2257 = vpop.f32.mrb[0].mxu0
        %v2258 = vadd.f32 0.0, %v2257
        %2259 = vmatprep.mubr.f32.mxu0 %v254
        %2260 = vmatmul.mubr.f32.gmra.mrb[0].mxu0 %v253
        %v2261 = vpop.f32.mrb[0].mxu0
        %v2262 = vadd.f32 0.0, %v2261
        %v2263 = vpop.f32.mrb[0].mxu0
        %v2264 = vadd.f32 0.0, %v2263
        %2265 = vmatprep.mubr.f32.mxu0 %v257
        %2266 = vmatmul.mubr.f32.gmra.mrb[0].mxu0 %v256
        %v2267 = vpop.f32.mrb[0].mxu0
        %v2268 = vadd.f32 0.0, %v2267
        %v2269 = vpop.f32.mrb[0].mxu0
        %v2270 = vadd.f32 0.0, %v2269
        %2271 = vmatprep.mubr.f32.mxu0 %v260
        %2272 = vmatmul.mubr.f32.gmra.mrb[0].mxu0 %v259
        %v2273 = vpop.f32.mrb[0].mxu0
        %v2274 = vadd.f32 0.0, %v2273
        %v2275 = vpop.f32.mrb[0].mxu0
        %v2276 = vadd.f32 0.0, %v2275
        %2277 = vmatprep.mubr.f32.mxu0 %v263
        %2278 = vmatmul.mubr.f32.gmra.mrb[0].mxu0 %v262
        %v2279 = vpop.f32.mrb[0].mxu0
        %v2280 = vadd.f32 0.0, %v2279
        %v2281 = vpop.f32.mrb[0].mxu0
        %v2282 = vadd.f32 0.0, %v2281
        %2283 = vmatprep.mubr.f32.mxu0 %v266
        %2284 = vmatmul.mubr.f32.gmra.mrb[0].mxu0 %v265
        %v2285 = vpop.f32.mrb[0].mxu0
        %v2286 = vadd.f32 0.0, %v2285
        %v2287 = vpop.f32.mrb[0].mxu0
        %v2288 = vadd.f32 0.0, %v2287
        %2289 = vmatprep.mubr.f32.mxu0 %v269
        %2290 = vmatmul.mubr.f32.gmra.mrb[0].mxu0 %v268
        %v2291 = vpop.f32.mrb[0].mxu0
        %v2292 = vadd.f32 0.0, %v2291
        %v2293 = vpop.f32.mrb[0].mxu0
        %v2294 = vadd.f32 0.0, %v2293
        %2295 = vdwg.mxu0
        %2296 = vmatprep.subr.mxu0 %v720
        %2297 = vmatpush1.msra.mxu0 %v719
        %2298 = vmatprep.subr.mxu0 %v722
        %2299 = vmatpush1.msra.mxu0 %v721
        %2300 = vmatprep.subr.mxu0 %v724
        %2301 = vmatpush1.msra.mxu0 %v723
        %2302 = vmatprep.subr.mxu0 %v726
        %2303 = vmatpush1.msra.mxu0 %v725
        %2304 = vmatprep.subr.mxu0 %v728
        %2305 = vmatpush1.msra.mxu0 %v727
        %2306 = vmatprep.subr.mxu0 %v730
        %2307 = vmatpush1.msra.mxu0 %v729
        %2308 = vmatprep.subr.mxu0 %v732
        %2309 = vmatpush1.msra.mxu0 %v731
        %2310 = vmatprep.subr.mxu0 %v734
        %2311 = vmatpush1.msra.mxu0 %v733
        %2312 = vmatprep.subr.mxu0 %v736
        %2313 = vmatpush1.msra.mxu0 %v735
        %2314 = vmatprep.subr.mxu0 %v738
        %2315 = vmatpush1.msra.mxu0 %v737
        %2316 = vmatprep.subr.mxu0 %v740
        %2317 = vmatpush1.msra.mxu0 %v739
        %2318 = vmatprep.subr.mxu0 %v742
        %2319 = vmatpush1.msra.mxu0 %v741
        %2320 = vmatprep.subr.mxu0 %v744
        %2321 = vmatpush1.msra.mxu0 %v743
        %2322 = vmatprep.subr.mxu0 %v746
        %2323 = vmatpush1.msra.mxu0 %v745
        %2324 = vmatprep.subr.mxu0 %v748
        %2325 = vmatpush1.msra.mxu0 %v747
        %2326 = vmatprep.subr.mxu0 %v750
        %2327 = vmatpush1.msra.mxu0 %v749
        %2328 = vmatprep.subr.mxu0 0.0
        %2329 = vmatpush1.msra.mxu0 0.0
        %2330 = vmatprep.subr.mxu0 0.0
        %2331 = vmatpush1.msra.mxu0 0.0
        %2332 = vmatprep.subr.mxu0 0.0
        %2333 = vmatpush1.msra.mxu0 0.0
        %2334 = vmatprep.subr.mxu0 0.0
        %2335 = vmatpush1.msra.mxu0 0.0
        %2336 = vmatprep.subr.mxu0 0.0
        %2337 = vmatpush1.msra.mxu0 0.0
        %2338 = vmatprep.subr.mxu0 0.0
        %2339 = vmatpush1.msra.mxu0 0.0
        %2340 = vmatprep.subr.mxu0 0.0
        %2341 = vmatpush1.msra.mxu0 0.0
        %2342 = vmatprep.subr.mxu0 0.0
        %2343 = vmatpush1.msra.mxu0 0.0
        %2344 = vmatprep.subr.mxu0 0.0
        %2345 = vmatpush1.msra.mxu0 0.0
        %2346 = vmatprep.subr.mxu0 0.0
        %2347 = vmatpush1.msra.mxu0 0.0
        %2348 = vmatprep.subr.mxu0 0.0
        %2349 = vmatpush1.msra.mxu0 0.0
        %2350 = vmatprep.subr.mxu0 0.0
        %2351 = vmatpush1.msra.mxu0 0.0
        %2352 = vmatprep.subr.mxu0 0.0
        %2353 = vmatpush1.msra.mxu0 0.0
        %2354 = vmatprep.subr.mxu0 0.0
        %2355 = vmatpush1.msra.mxu0 0.0
        %2356 = vmatprep.subr.mxu0 0.0
        %2357 = vmatpush1.msra.mxu0 0.0
        %2358 = vmatprep.subr.mxu0 0.0
        %2359 = vmatpush1.msra.mxu0 0.0
        %2360 = vmatprep.mubr.f32.mxu0 0.0
        %2361 = vmatmul.mubr.f32.gmra.mrb[0].mxu0 %v225
        %v2362 = vpop.f32.mrb[0].mxu0
        %v2363 = vadd.f32 %v2202, %v2362
        %v2364 = vpop.f32.mrb[0].mxu0
        %v2365 = vadd.f32 %v2204, %v2364
        %2366 = vmatprep.mubr.f32.mxu0 0.0
        %2367 = vmatmul.mubr.f32.gmra.mrb[0].mxu0 %v228
        %v2368 = vpop.f32.mrb[0].mxu0
        %v2369 = vadd.f32 %v2208, %v2368
        %v2370 = vpop.f32.mrb[0].mxu0
        %v2371 = vadd.f32 %v2210, %v2370
        %2372 = vmatprep.mubr.f32.mxu0 0.0
        %2373 = vmatmul.mubr.f32.gmra.mrb[0].mxu0 %v231
        %v2374 = vpop.f32.mrb[0].mxu0
        %v2375 = vadd.f32 %v2214, %v2374
        %v2376 = vpop.f32.mrb[0].mxu0
        %v2377 = vadd.f32 %v2216, %v2376
        %2378 = vmatprep.mubr.f32.mxu0 0.0
        %2379 = vmatmul.mubr.f32.gmra.mrb[0].mxu0 %v234
        %v2380 = vpop.f32.mrb[0].mxu0
        %v2381 = vadd.f32 %v2220, %v2380
        %v2382 = vpop.f32.mrb[0].mxu0
        %v2383 = vadd.f32 %v2222, %v2382
        %2384 = vmatprep.mubr.f32.mxu0 0.0
        %2385 = vmatmul.mubr.f32.gmra.mrb[0].mxu0 %v237
        %v2386 = vpop.f32.mrb[0].mxu0
        %v2387 = vadd.f32 %v2226, %v2386
        %v2388 = vpop.f32.mrb[0].mxu0
        %v2389 = vadd.f32 %v2228, %v2388
        %2390 = vmatprep.mubr.f32.mxu0 0.0
        %2391 = vmatmul.mubr.f32.gmra.mrb[0].mxu0 %v240
        %v2392 = vpop.f32.mrb[0].mxu0
        %v2393 = vadd.f32 %v2232, %v2392
        %v2394 = vpop.f32.mrb[0].mxu0
        %v2395 = vadd.f32 %v2234, %v2394
        %2396 = vmatprep.mubr.f32.mxu0 0.0
        %2397 = vmatmul.mubr.f32.gmra.mrb[0].mxu0 %v243
        %v2398 = vpop.f32.mrb[0].mxu0
        %v2399 = vadd.f32 %v2238, %v2398
        %v2400 = vpop.f32.mrb[0].mxu0
        %v2401 = vadd.f32 %v2240, %v2400
        %2402 = vmatprep.mubr.f32.mxu0 0.0
        %2403 = vmatmul.mubr.f32.gmra.mrb[0].mxu0 %v246
        %v2404 = vpop.f32.mrb[0].mxu0
        %v2405 = vadd.f32 %v2244, %v2404
        %v2406 = vpop.f32.mrb[0].mxu0
        %v2407 = vadd.f32 %v2246, %v2406
        %2408 = vmatprep.mubr.f32.mxu0 0.0
        %2409 = vmatmul.mubr.f32.gmra.mrb[0].mxu0 %v249
        %v2410 = vpop.f32.mrb[0].mxu0
        %v2411 = vadd.f32 %v2250, %v2410
        %v2412 = vpop.f32.mrb[0].mxu0
        %v2413 = vadd.f32 %v2252, %v2412
        %2414 = vmatprep.mubr.f32.mxu0 0.0
        %2415 = vmatmul.mubr.f32.gmra.mrb[0].mxu0 %v252
        %v2416 = vpop.f32.mrb[0].mxu0
        %v2417 = vadd.f32 %v2256, %v2416
        %v2418 = vpop.f32.mrb[0].mxu0
        %v2419 = vadd.f32 %v2258, %v2418
        %2420 = vmatprep.mubr.f32.mxu0 0.0
        %2421 = vmatmul.mubr.f32.gmra.mrb[0].mxu0 %v255
        %v2422 = vpop.f32.mrb[0].mxu0
        %v2423 = vadd.f32 %v2262, %v2422
        %v2424 = vpop.f32.mrb[0].mxu0
        %v2425 = vadd.f32 %v2264, %v2424
        %2426 = vmatprep.mubr.f32.mxu0 0.0
        %2427 = vmatmul.mubr.f32.gmra.mrb[0].mxu0 %v258
        %v2428 = vpop.f32.mrb[0].mxu0
        %v2429 = vadd.f32 %v2268, %v2428
        %v2430 = vpop.f32.mrb[0].mxu0
        %v2431 = vadd.f32 %v2270, %v2430
        %2432 = vmatprep.mubr.f32.mxu0 0.0
        %2433 = vmatmul.mubr.f32.gmra.mrb[0].mxu0 %v261
        %v2434 = vpop.f32.mrb[0].mxu0
        %v2435 = vadd.f32 %v2274, %v2434
        %v2436 = vpop.f32.mrb[0].mxu0
        %v2437 = vadd.f32 %v2276, %v2436
        %2438 = vmatprep.mubr.f32.mxu0 0.0
        %2439 = vmatmul.mubr.f32.gmra.mrb[0].mxu0 %v264
        %v2440 = vpop.f32.mrb[0].mxu0
        %v2441 = vadd.f32 %v2280, %v2440
        %v2442 = vpop.f32.mrb[0].mxu0
        %v2443 = vadd.f32 %v2282, %v2442
        %2444 = vmatprep.mubr.f32.mxu0 0.0
        %2445 = vmatmul.mubr.f32.gmra.mrb[0].mxu0 %v267
        %v2446 = vpop.f32.mrb[0].mxu0
        %v2447 = vadd.f32 %v2286, %v2446
        %v2448 = vpop.f32.mrb[0].mxu0
        %v2449 = vadd.f32 %v2288, %v2448
        %2450 = vmatprep.mubr.f32.mxu0 0.0
        %2451 = vmatmul.mubr.f32.gmra.mrb[0].mxu0 %v270
        %v2452 = vpop.f32.mrb[0].mxu0
        %v2453 = vadd.f32 %v2292, %v2452
        %v2454 = vpop.f32.mrb[0].mxu0
        %v2455 = vadd.f32 %v2294, %v2454
        %2456 = vdwg.mxu0
        %2457 = vmatprep.subr.mxu0 %v752
        %2458 = vmatpush1.msra.mxu0 %v751
        %2459 = vmatprep.subr.mxu0 %v754
        %2460 = vmatpush1.msra.mxu0 %v753
        %2461 = vmatprep.subr.mxu0 %v756
        %2462 = vmatpush1.msra.mxu0 %v755
        %2463 = vmatprep.subr.mxu0 %v758
        %2464 = vmatpush1.msra.mxu0 %v757
        %2465 = vmatprep.subr.mxu0 %v760
        %2466 = vmatpush1.msra.mxu0 %v759
        %2467 = vmatprep.subr.mxu0 %v762
        %2468 = vmatpush1.msra.mxu0 %v761
        %2469 = vmatprep.subr.mxu0 %v764
        %2470 = vmatpush1.msra.mxu0 %v763
        %2471 = vmatprep.subr.mxu0 %v766
        %2472 = vmatpush1.msra.mxu0 %v765
        %2473 = vmatprep.subr.mxu0 %v768
        %2474 = vmatpush1.msra.mxu0 %v767
        %2475 = vmatprep.subr.mxu0 %v770
        %2476 = vmatpush1.msra.mxu0 %v769
        %2477 = vmatprep.subr.mxu0 %v772
        %2478 = vmatpush1.msra.mxu0 %v771
        %2479 = vmatprep.subr.mxu0 %v774
        %2480 = vmatpush1.msra.mxu0 %v773
        %2481 = vmatprep.subr.mxu0 %v776
        %2482 = vmatpush1.msra.mxu0 %v775
        %2483 = vmatprep.subr.mxu0 %v778
        %2484 = vmatpush1.msra.mxu0 %v777
        %2485 = vmatprep.subr.mxu0 %v780
        %2486 = vmatpush1.msra.mxu0 %v779
        %2487 = vmatprep.subr.mxu0 %v782
        %2488 = vmatpush1.msra.mxu0 %v781
        %2489 = vmatprep.subr.mxu0 %v784
        %2490 = vmatpush1.msra.mxu0 %v783
        %2491 = vmatprep.subr.mxu0 %v786
        %2492 = vmatpush1.msra.mxu0 %v785
        %2493 = vmatprep.subr.mxu0 %v788
        %2494 = vmatpush1.msra.mxu0 %v787
        %2495 = vmatprep.subr.mxu0 %v790
        %2496 = vmatpush1.msra.mxu0 %v789
        %2497 = vmatprep.subr.mxu0 %v792
        %2498 = vmatpush1.msra.mxu0 %v791
        %2499 = vmatprep.subr.mxu0 %v794
        %2500 = vmatpush1.msra.mxu0 %v793
        %2501 = vmatprep.subr.mxu0 %v796
        %2502 = vmatpush1.msra.mxu0 %v795
        %2503 = vmatprep.subr.mxu0 %v798
        %2504 = vmatpush1.msra.mxu0 %v797
        %2505 = vmatprep.subr.mxu0 %v800
        %2506 = vmatpush1.msra.mxu0 %v799
        %2507 = vmatprep.subr.mxu0 %v802
        %2508 = vmatpush1.msra.mxu0 %v801
        %2509 = vmatprep.subr.mxu0 %v804
        %2510 = vmatpush1.msra.mxu0 %v803
        %2511 = vmatprep.subr.mxu0 %v806
        %2512 = vmatpush1.msra.mxu0 %v805
        %2513 = vmatprep.subr.mxu0 %v808
        %2514 = vmatpush1.msra.mxu0 %v807
        %2515 = vmatprep.subr.mxu0 %v810
        %2516 = vmatpush1.msra.mxu0 %v809
        %2517 = vmatprep.subr.mxu0 %v812
        %2518 = vmatpush1.msra.mxu0 %v811
        %2519 = vmatprep.subr.mxu0 %v814
        %2520 = vmatpush1.msra.mxu0 %v813
        %2521 = vmatprep.mubr.f32.mxu0 %v224
        %2522 = vmatmul.mubr.f32.gmra.mrb[0].mxu0 %v223
        %v2523 = vpop.f32.mrb[0].mxu0
        %v2524 = vadd.f32 0.0, %v2523
        %v2525 = vpop.f32.mrb[0].mxu0
        %v2526 = vadd.f32 0.0, %v2525
        %2527 = vmatprep.mubr.f32.mxu0 %v227
        %2528 = vmatmul.mubr.f32.gmra.mrb[0].mxu0 %v226
        %v2529 = vpop.f32.mrb[0].mxu0
        %v2530 = vadd.f32 0.0, %v2529
        %v2531 = vpop.f32.mrb[0].mxu0
        %v2532 = vadd.f32 0.0, %v2531
        %2533 = vmatprep.mubr.f32.mxu0 %v230
        %2534 = vmatmul.mubr.f32.gmra.mrb[0].mxu0 %v229
        %v2535 = vpop.f32.mrb[0].mxu0
        %v2536 = vadd.f32 0.0, %v2535
        %v2537 = vpop.f32.mrb[0].mxu0
        %v2538 = vadd.f32 0.0, %v2537
        %2539 = vmatprep.mubr.f32.mxu0 %v233
        %2540 = vmatmul.mubr.f32.gmra.mrb[0].mxu0 %v232
        %v2541 = vpop.f32.mrb[0].mxu0
        %v2542 = vadd.f32 0.0, %v2541
        %v2543 = vpop.f32.mrb[0].mxu0
        %v2544 = vadd.f32 0.0, %v2543
        %2545 = vmatprep.mubr.f32.mxu0 %v236
        %2546 = vmatmul.mubr.f32.gmra.mrb[0].mxu0 %v235
        %v2547 = vpop.f32.mrb[0].mxu0
        %v2548 = vadd.f32 0.0, %v2547
        %v2549 = vpop.f32.mrb[0].mxu0
        %v2550 = vadd.f32 0.0, %v2549
        %2551 = vmatprep.mubr.f32.mxu0 %v239
        %2552 = vmatmul.mubr.f32.gmra.mrb[0].mxu0 %v238
        %v2553 = vpop.f32.mrb[0].mxu0
        %v2554 = vadd.f32 0.0, %v2553
        %v2555 = vpop.f32.mrb[0].mxu0
        %v2556 = vadd.f32 0.0, %v2555
        %2557 = vmatprep.mubr.f32.mxu0 %v242
        %2558 = vmatmul.mubr.f32.gmra.mrb[0].mxu0 %v241
        %v2559 = vpop.f32.mrb[0].mxu0
        %v2560 = vadd.f32 0.0, %v2559
        %v2561 = vpop.f32.mrb[0].mxu0
        %v2562 = vadd.f32 0.0, %v2561
        %2563 = vmatprep.mubr.f32.mxu0 %v245
        %2564 = vmatmul.mubr.f32.gmra.mrb[0].mxu0 %v244
        %v2565 = vpop.f32.mrb[0].mxu0
        %v2566 = vadd.f32 0.0, %v2565
        %v2567 = vpop.f32.mrb[0].mxu0
        %v2568 = vadd.f32 0.0, %v2567
        %2569 = vmatprep.mubr.f32.mxu0 %v248
        %2570 = vmatmul.mubr.f32.gmra.mrb[0].mxu0 %v247
        %v2571 = vpop.f32.mrb[0].mxu0
        %v2572 = vadd.f32 0.0, %v2571
        %v2573 = vpop.f32.mrb[0].mxu0
        %v2574 = vadd.f32 0.0, %v2573
        %2575 = vmatprep.mubr.f32.mxu0 %v251
        %2576 = vmatmul.mubr.f32.gmra.mrb[0].mxu0 %v250
        %v2577 = vpop.f32.mrb[0].mxu0
        %v2578 = vadd.f32 0.0, %v2577
        %v2579 = vpop.f32.mrb[0].mxu0
        %v2580 = vadd.f32 0.0, %v2579
        %2581 = vmatprep.mubr.f32.mxu0 %v254
        %2582 = vmatmul.mubr.f32.gmra.mrb[0].mxu0 %v253
        %v2583 = vpop.f32.mrb[0].mxu0
        %v2584 = vadd.f32 0.0, %v2583
        %v2585 = vpop.f32.mrb[0].mxu0
        %v2586 = vadd.f32 0.0, %v2585
        %2587 = vmatprep.mubr.f32.mxu0 %v257
        %2588 = vmatmul.mubr.f32.gmra.mrb[0].mxu0 %v256
        %v2589 = vpop.f32.mrb[0].mxu0
        %v2590 = vadd.f32 0.0, %v2589
        %v2591 = vpop.f32.mrb[0].mxu0
        %v2592 = vadd.f32 0.0, %v2591
        %2593 = vmatprep.mubr.f32.mxu0 %v260
        %2594 = vmatmul.mubr.f32.gmra.mrb[0].mxu0 %v259
        %v2595 = vpop.f32.mrb[0].mxu0
        %v2596 = vadd.f32 0.0, %v2595
        %v2597 = vpop.f32.mrb[0].mxu0
        %v2598 = vadd.f32 0.0, %v2597
        %2599 = vmatprep.mubr.f32.mxu0 %v263
        %2600 = vmatmul.mubr.f32.gmra.mrb[0].mxu0 %v262
        %v2601 = vpop.f32.mrb[0].mxu0
        %v2602 = vadd.f32 0.0, %v2601
        %v2603 = vpop.f32.mrb[0].mxu0
        %v2604 = vadd.f32 0.0, %v2603
        %2605 = vmatprep.mubr.f32.mxu0 %v266
        %2606 = vmatmul.mubr.f32.gmra.mrb[0].mxu0 %v265
        %v2607 = vpop.f32.mrb[0].mxu0
        %v2608 = vadd.f32 0.0, %v2607
        %v2609 = vpop.f32.mrb[0].mxu0
        %v2610 = vadd.f32 0.0, %v2609
        %2611 = vmatprep.mubr.f32.mxu0 %v269
        %2612 = vmatmul.mubr.f32.gmra.mrb[0].mxu0 %v268
        %v2613 = vpop.f32.mrb[0].mxu0
        %v2614 = vadd.f32 0.0, %v2613
        %v2615 = vpop.f32.mrb[0].mxu0
        %v2616 = vadd.f32 0.0, %v2615
        %2617 = vdwg.mxu0
        %2618 = vmatprep.subr.mxu0 %v816
        %2619 = vmatpush1.msra.mxu0 %v815
        %2620 = vmatprep.subr.mxu0 %v818
        %2621 = vmatpush1.msra.mxu0 %v817
        %2622 = vmatprep.subr.mxu0 %v820
        %2623 = vmatpush1.msra.mxu0 %v819
        %2624 = vmatprep.subr.mxu0 %v822
        %2625 = vmatpush1.msra.mxu0 %v821
        %2626 = vmatprep.subr.mxu0 %v824
        %2627 = vmatpush1.msra.mxu0 %v823
        %2628 = vmatprep.subr.mxu0 %v826
        %2629 = vmatpush1.msra.mxu0 %v825
        %2630 = vmatprep.subr.mxu0 %v828
        %2631 = vmatpush1.msra.mxu0 %v827
        %2632 = vmatprep.subr.mxu0 %v830
        %2633 = vmatpush1.msra.mxu0 %v829
        %2634 = vmatprep.subr.mxu0 %v832
        %2635 = vmatpush1.msra.mxu0 %v831
        %2636 = vmatprep.subr.mxu0 %v834
        %2637 = vmatpush1.msra.mxu0 %v833
        %2638 = vmatprep.subr.mxu0 %v836
        %2639 = vmatpush1.msra.mxu0 %v835
        %2640 = vmatprep.subr.mxu0 %v838
        %2641 = vmatpush1.msra.mxu0 %v837
        %2642 = vmatprep.subr.mxu0 %v840
        %2643 = vmatpush1.msra.mxu0 %v839
        %2644 = vmatprep.subr.mxu0 %v842
        %2645 = vmatpush1.msra.mxu0 %v841
        %2646 = vmatprep.subr.mxu0 %v844
        %2647 = vmatpush1.msra.mxu0 %v843
        %2648 = vmatprep.subr.mxu0 %v846
        %2649 = vmatpush1.msra.mxu0 %v845
        %2650 = vmatprep.subr.mxu0 0.0
        %2651 = vmatpush1.msra.mxu0 0.0
        %2652 = vmatprep.subr.mxu0 0.0
        %2653 = vmatpush1.msra.mxu0 0.0
        %2654 = vmatprep.subr.mxu0 0.0
        %2655 = vmatpush1.msra.mxu0 0.0
        %2656 = vmatprep.subr.mxu0 0.0
        %2657 = vmatpush1.msra.mxu0 0.0
        %2658 = vmatprep.subr.mxu0 0.0
        %2659 = vmatpush1.msra.mxu0 0.0
        %2660 = vmatprep.subr.mxu0 0.0
        %2661 = vmatpush1.msra.mxu0 0.0
        %2662 = vmatprep.subr.mxu0 0.0
        %2663 = vmatpush1.msra.mxu0 0.0
        %2664 = vmatprep.subr.mxu0 0.0
        %2665 = vmatpush1.msra.mxu0 0.0
        %2666 = vmatprep.subr.mxu0 0.0
        %2667 = vmatpush1.msra.mxu0 0.0
        %2668 = vmatprep.subr.mxu0 0.0
        %2669 = vmatpush1.msra.mxu0 0.0
        %2670 = vmatprep.subr.mxu0 0.0
        %2671 = vmatpush1.msra.mxu0 0.0
        %2672 = vmatprep.subr.mxu0 0.0
        %2673 = vmatpush1.msra.mxu0 0.0
        %2674 = vmatprep.subr.mxu0 0.0
        %2675 = vmatpush1.msra.mxu0 0.0
        %2676 = vmatprep.subr.mxu0 0.0
        %2677 = vmatpush1.msra.mxu0 0.0
        %2678 = vmatprep.subr.mxu0 0.0
        %2679 = vmatpush1.msra.mxu0 0.0
        %2680 = vmatprep.subr.mxu0 0.0
        %2681 = vmatpush1.msra.mxu0 0.0
        %2682 = vmatprep.mubr.f32.mxu0 0.0
        %2683 = vmatmul.mubr.f32.gmra.mrb[0].mxu0 %v225
        %v2684 = vpop.f32.mrb[0].mxu0
        %v2685 = vadd.f32 %v2524, %v2684
        %v2686 = vpop.f32.mrb[0].mxu0
        %v2687 = vadd.f32 %v2526, %v2686
        %2688 = vmatprep.mubr.f32.mxu0 0.0
        %2689 = vmatmul.mubr.f32.gmra.mrb[0].mxu0 %v228
        %v2690 = vpop.f32.mrb[0].mxu0
        %v2691 = vadd.f32 %v2530, %v2690
        %v2692 = vpop.f32.mrb[0].mxu0
        %v2693 = vadd.f32 %v2532, %v2692
        %2694 = vmatprep.mubr.f32.mxu0 0.0
        %2695 = vmatmul.mubr.f32.gmra.mrb[0].mxu0 %v231
        %v2696 = vpop.f32.mrb[0].mxu0
        %v2697 = vadd.f32 %v2536, %v2696
        %v2698 = vpop.f32.mrb[0].mxu0
        %v2699 = vadd.f32 %v2538, %v2698
        %2700 = vmatprep.mubr.f32.mxu0 0.0
        %2701 = vmatmul.mubr.f32.gmra.mrb[0].mxu0 %v234
        %v2702 = vpop.f32.mrb[0].mxu0
        %v2703 = vadd.f32 %v2542, %v2702
        %v2704 = vpop.f32.mrb[0].mxu0
        %v2705 = vadd.f32 %v2544, %v2704
        %2706 = vmatprep.mubr.f32.mxu0 0.0
        %2707 = vmatmul.mubr.f32.gmra.mrb[0].mxu0 %v237
        %v2708 = vpop.f32.mrb[0].mxu0
        %v2709 = vadd.f32 %v2548, %v2708
        %v2710 = vpop.f32.mrb[0].mxu0
        %v2711 = vadd.f32 %v2550, %v2710
        %2712 = vmatprep.mubr.f32.mxu0 0.0
        %2713 = vmatmul.mubr.f32.gmra.mrb[0].mxu0 %v240
        %v2714 = vpop.f32.mrb[0].mxu0
        %v2715 = vadd.f32 %v2554, %v2714
        %v2716 = vpop.f32.mrb[0].mxu0
        %v2717 = vadd.f32 %v2556, %v2716
        %2718 = vmatprep.mubr.f32.mxu0 0.0
        %2719 = vmatmul.mubr.f32.gmra.mrb[0].mxu0 %v243
        %v2720 = vpop.f32.mrb[0].mxu0
        %v2721 = vadd.f32 %v2560, %v2720
        %v2722 = vpop.f32.mrb[0].mxu0
        %v2723 = vadd.f32 %v2562, %v2722
        %2724 = vmatprep.mubr.f32.mxu0 0.0
        %2725 = vmatmul.mubr.f32.gmra.mrb[0].mxu0 %v246
        %v2726 = vpop.f32.mrb[0].mxu0
        %v2727 = vadd.f32 %v2566, %v2726
        %v2728 = vpop.f32.mrb[0].mxu0
        %v2729 = vadd.f32 %v2568, %v2728
        %2730 = vmatprep.mubr.f32.mxu0 0.0
        %2731 = vmatmul.mubr.f32.gmra.mrb[0].mxu0 %v249
        %v2732 = vpop.f32.mrb[0].mxu0
        %v2733 = vadd.f32 %v2572, %v2732
        %v2734 = vpop.f32.mrb[0].mxu0
        %v2735 = vadd.f32 %v2574, %v2734
        %2736 = vmatprep.mubr.f32.mxu0 0.0
        %2737 = vmatmul.mubr.f32.gmra.mrb[0].mxu0 %v252
        %v2738 = vpop.f32.mrb[0].mxu0
        %v2739 = vadd.f32 %v2578, %v2738
        %v2740 = vpop.f32.mrb[0].mxu0
        %v2741 = vadd.f32 %v2580, %v2740
        %2742 = vmatprep.mubr.f32.mxu0 0.0
        %2743 = vmatmul.mubr.f32.gmra.mrb[0].mxu0 %v255
        %v2744 = vpop.f32.mrb[0].mxu0
        %v2745 = vadd.f32 %v2584, %v2744
        %v2746 = vpop.f32.mrb[0].mxu0
        %v2747 = vadd.f32 %v2586, %v2746
        %2748 = vmatprep.mubr.f32.mxu0 0.0
        %2749 = vmatmul.mubr.f32.gmra.mrb[0].mxu0 %v258
        %v2750 = vpop.f32.mrb[0].mxu0
        %v2751 = vadd.f32 %v2590, %v2750
        %v2752 = vpop.f32.mrb[0].mxu0
        %v2753 = vadd.f32 %v2592, %v2752
        %2754 = vmatprep.mubr.f32.mxu0 0.0
        %2755 = vmatmul.mubr.f32.gmra.mrb[0].mxu0 %v261
        %v2756 = vpop.f32.mrb[0].mxu0
        %v2757 = vadd.f32 %v2596, %v2756
        %v2758 = vpop.f32.mrb[0].mxu0
        %v2759 = vadd.f32 %v2598, %v2758
        %2760 = vmatprep.mubr.f32.mxu0 0.0
        %2761 = vmatmul.mubr.f32.gmra.mrb[0].mxu0 %v264
        %v2762 = vpop.f32.mrb[0].mxu0
        %v2763 = vadd.f32 %v2602, %v2762
        %v2764 = vpop.f32.mrb[0].mxu0
        %v2765 = vadd.f32 %v2604, %v2764
        %2766 = vmatprep.mubr.f32.mxu0 0.0
        %2767 = vmatmul.mubr.f32.gmra.mrb[0].mxu0 %v267
        %v2768 = vpop.f32.mrb[0].mxu0
        %v2769 = vadd.f32 %v2608, %v2768
        %v2770 = vpop.f32.mrb[0].mxu0
        %v2771 = vadd.f32 %v2610, %v2770
        %2772 = vmatprep.mubr.f32.mxu0 0.0
        %2773 = vmatmul.mubr.f32.gmra.mrb[0].mxu0 %v270
        %v2774 = vpop.f32.mrb[0].mxu0
        %v2775 = vadd.f32 %v2614, %v2774
        %v2776 = vpop.f32.mrb[0].mxu0
        %v2777 = vadd.f32 %v2616, %v2776
        %2778 = vdwg.mxu0
        %2795 = vrot.lane.b32.xlu0 %v1075, 64
        %v2796 = vpop.permute.xlu0 %2795
        %2797 = vrot.lane.b32.xlu0 %v1081, 64
        %v2798 = vpop.permute.xlu0 %2797
        %2799 = vrot.lane.b32.xlu0 %v1087, 64
        %v2800 = vpop.permute.xlu0 %2799
        %2801 = vrot.lane.b32.xlu0 %v1093, 64
        %v2802 = vpop.permute.xlu0 %2801
        %2803 = vrot.lane.b32.xlu0 %v1099, 64
        %v2804 = vpop.permute.xlu0 %2803
        %2805 = vrot.lane.b32.xlu0 %v1105, 64
        %v2806 = vpop.permute.xlu0 %2805
        %2807 = vrot.lane.b32.xlu0 %v1111, 64
        %v2808 = vpop.permute.xlu0 %2807
        %2809 = vrot.lane.b32.xlu0 %v1117, 64
        %v2810 = vpop.permute.xlu0 %2809
        %2811 = vrot.lane.b32.xlu0 %v1123, 64
        %v2812 = vpop.permute.xlu0 %2811
        %2813 = vrot.lane.b32.xlu0 %v1129, 64
        %v2814 = vpop.permute.xlu0 %2813
        %2815 = vrot.lane.b32.xlu0 %v1135, 64
        %v2816 = vpop.permute.xlu0 %2815
        %2817 = vrot.lane.b32.xlu0 %v1141, 64
        %v2818 = vpop.permute.xlu0 %2817
        %2819 = vrot.lane.b32.xlu0 %v1147, 64
        %v2820 = vpop.permute.xlu0 %2819
        %2821 = vrot.lane.b32.xlu0 %v1153, 64
        %v2822 = vpop.permute.xlu0 %2821
        %2823 = vrot.lane.b32.xlu0 %v1159, 64
        %v2824 = vpop.permute.xlu0 %2823
        %2825 = vrot.lane.b32.xlu0 %v1165, 64
        %v2826 = vpop.permute.xlu0 %2825
        %vm2827 = vcmask 523264
        %v2828 = vsel %vm2827, %v1075, 0
        %v2830 = vsel %vm2827, %v1081, 0
        %v2832 = vsel %vm2827, %v1087, 0
        %v2834 = vsel %vm2827, %v1093, 0
        %v2836 = vsel %vm2827, %v1099, 0
        %v2838 = vsel %vm2827, %v1105, 0
        %v2840 = vsel %vm2827, %v1111, 0
        %v2842 = vsel %vm2827, %v1117, 0
        %v2844 = vsel %vm2827, %v1123, 0
        %v2846 = vsel %vm2827, %v1129, 0
        %v2848 = vsel %vm2827, %v1135, 0
        %v2850 = vsel %vm2827, %v1141, 0
        %v2852 = vsel %vm2827, %v1147, 0
        %v2854 = vsel %vm2827, %v1153, 0
        %v2856 = vsel %vm2827, %v1159, 0
        %v2858 = vsel %vm2827, %v1165, 0
        %v2860 = vsel %vm2827, %v2796, 0
        %v2862 = vsel %vm2827, %v2798, 0
        %v2864 = vsel %vm2827, %v2800, 0
        %v2866 = vsel %vm2827, %v2802, 0
        %v2868 = vsel %vm2827, %v2804, 0
        %v2870 = vsel %vm2827, %v2806, 0
        %v2872 = vsel %vm2827, %v2808, 0
        %v2874 = vsel %vm2827, %v2810, 0
        %v2876 = vsel %vm2827, %v2812, 0
        %v2878 = vsel %vm2827, %v2814, 0
        %v2880 = vsel %vm2827, %v2816, 0
        %v2882 = vsel %vm2827, %v2818, 0
        %v2884 = vsel %vm2827, %v2820, 0
        %v2886 = vsel %vm2827, %v2822, 0
        %v2888 = vsel %vm2827, %v2824, 0
        %v2890 = vsel %vm2827, %v2826, 0
        %2892 = vmatprep.subr.mxu0 0.0
        %2893 = vmatpush1.xpose.msra.mxu0 %v2860
        %2894 = vmatprep.subr.mxu0 0.0
        %2895 = vmatpush1.xpose.msra.mxu0 %v2862
        %2896 = vmatprep.subr.mxu0 0.0
        %2897 = vmatpush1.xpose.msra.mxu0 %v2864
        %2898 = vmatprep.subr.mxu0 0.0
        %2899 = vmatpush1.xpose.msra.mxu0 %v2866
        %2900 = vmatprep.subr.mxu0 0.0
        %2901 = vmatpush1.xpose.msra.mxu0 %v2868
        %2902 = vmatprep.subr.mxu0 0.0
        %2903 = vmatpush1.xpose.msra.mxu0 %v2870
        %2904 = vmatprep.subr.mxu0 0.0
        %2905 = vmatpush1.xpose.msra.mxu0 %v2872
        %2906 = vmatprep.subr.mxu0 0.0
        %2907 = vmatpush1.xpose.msra.mxu0 %v2874
        %2908 = vmatprep.subr.mxu0 0.0
        %2909 = vmatpush1.xpose.msra.mxu0 %v2876
        %2910 = vmatprep.subr.mxu0 0.0
        %2911 = vmatpush1.xpose.msra.mxu0 %v2878
        %2912 = vmatprep.subr.mxu0 0.0
        %2913 = vmatpush1.xpose.msra.mxu0 %v2880
        %2914 = vmatprep.subr.mxu0 0.0
        %2915 = vmatpush1.xpose.msra.mxu0 %v2882
        %2916 = vmatprep.subr.mxu0 0.0
        %2917 = vmatpush1.xpose.msra.mxu0 %v2884
        %2918 = vmatprep.subr.mxu0 0.0
        %2919 = vmatpush1.xpose.msra.mxu0 %v2886
        %2920 = vmatprep.subr.mxu0 0.0
        %2921 = vmatpush1.xpose.msra.mxu0 %v2888
        %2922 = vmatprep.subr.mxu0 0.0
        %2923 = vmatpush1.xpose.msra.mxu0 %v2890
        %2924 = vmatprep.subr.mxu0 0.0
        %2925 = vmatpush1.xpose.msra.mxu0 0.0
        %2926 = vmatprep.subr.mxu0 0.0
        %2927 = vmatpush1.xpose.msra.mxu0 0.0
        %2928 = vmatprep.subr.mxu0 0.0
        %2929 = vmatpush1.xpose.msra.mxu0 0.0
        %2930 = vmatprep.subr.mxu0 0.0
        %2931 = vmatpush1.xpose.msra.mxu0 0.0
        %2932 = vmatprep.subr.mxu0 0.0
        %2933 = vmatpush1.xpose.msra.mxu0 0.0
        %2934 = vmatprep.subr.mxu0 0.0
        %2935 = vmatpush1.xpose.msra.mxu0 0.0
        %2936 = vmatprep.subr.mxu0 0.0
        %2937 = vmatpush1.xpose.msra.mxu0 0.0
        %2938 = vmatprep.subr.mxu0 0.0
        %2939 = vmatpush1.xpose.msra.mxu0 0.0
        %2940 = vmatprep.subr.mxu0 0.0
        %2941 = vmatpush1.xpose.msra.mxu0 0.0
        %2942 = vmatprep.subr.mxu0 0.0
        %2943 = vmatpush1.xpose.msra.mxu0 0.0
        %2944 = vmatprep.subr.mxu0 0.0
        %2945 = vmatpush1.xpose.msra.mxu0 0.0
        %2946 = vmatprep.subr.mxu0 0.0
        %2947 = vmatpush1.xpose.msra.mxu0 0.0
        %2948 = vmatprep.subr.mxu0 0.0
        %2949 = vmatpush1.xpose.msra.mxu0 0.0
        %2950 = vmatprep.subr.mxu0 0.0
        %2951 = vmatpush1.xpose.msra.mxu0 0.0
        %2952 = vmatprep.subr.mxu0 0.0
        %2953 = vmatpush1.xpose.msra.mxu0 0.0
        %2954 = vmatprep.subr.mxu0 0.0
        %2955 = vmatpush1.xpose.msra.mxu0 0.0
        %2956 = vmatprep.mubr.f32.mxu0 0.0
        %2957 = vmatmul.mubr.f32.gmra.mrb[0].mxu0 %v2828
        %v2958 = vpop.f32.mrb[0].mxu0
        %v2959 = vadd.f32 0.0, %v2958
        %v2960 = vpop.f32.mrb[0].mxu0
        %2961 = vmatprep.mubr.f32.mxu0 0.0
        %2962 = vmatmul.mubr.f32.gmra.mrb[0].mxu0 %v2830
        %v2963 = vpop.f32.mrb[0].mxu0
        %v2964 = vadd.f32 0.0, %v2963
        %v2965 = vpop.f32.mrb[0].mxu0
        %2966 = vmatprep.mubr.f32.mxu0 0.0
        %2967 = vmatmul.mubr.f32.gmra.mrb[0].mxu0 %v2832
        %v2968 = vpop.f32.mrb[0].mxu0
        %v2969 = vadd.f32 0.0, %v2968
        %v2970 = vpop.f32.mrb[0].mxu0
        %2971 = vmatprep.mubr.f32.mxu0 0.0
        %2972 = vmatmul.mubr.f32.gmra.mrb[0].mxu0 %v2834
        %v2973 = vpop.f32.mrb[0].mxu0
        %v2974 = vadd.f32 0.0, %v2973
        %v2975 = vpop.f32.mrb[0].mxu0
        %2976 = vmatprep.mubr.f32.mxu0 0.0
        %2977 = vmatmul.mubr.f32.gmra.mrb[0].mxu0 %v2836
        %v2978 = vpop.f32.mrb[0].mxu0
        %v2979 = vadd.f32 0.0, %v2978
        %v2980 = vpop.f32.mrb[0].mxu0
        %2981 = vmatprep.mubr.f32.mxu0 0.0
        %2982 = vmatmul.mubr.f32.gmra.mrb[0].mxu0 %v2838
        %v2983 = vpop.f32.mrb[0].mxu0
        %v2984 = vadd.f32 0.0, %v2983
        %v2985 = vpop.f32.mrb[0].mxu0
        %2986 = vmatprep.mubr.f32.mxu0 0.0
        %2987 = vmatmul.mubr.f32.gmra.mrb[0].mxu0 %v2840
        %v2988 = vpop.f32.mrb[0].mxu0
        %v2989 = vadd.f32 0.0, %v2988
        %v2990 = vpop.f32.mrb[0].mxu0
        %2991 = vmatprep.mubr.f32.mxu0 0.0
        %2992 = vmatmul.mubr.f32.gmra.mrb[0].mxu0 %v2842
        %v2993 = vpop.f32.mrb[0].mxu0
        %v2994 = vadd.f32 0.0, %v2993
        %v2995 = vpop.f32.mrb[0].mxu0
        %2996 = vmatprep.mubr.f32.mxu0 0.0
        %2997 = vmatmul.mubr.f32.gmra.mrb[0].mxu0 %v2844
        %v2998 = vpop.f32.mrb[0].mxu0
        %v2999 = vadd.f32 0.0, %v2998
        %v3000 = vpop.f32.mrb[0].mxu0
        %3001 = vmatprep.mubr.f32.mxu0 0.0
        %3002 = vmatmul.mubr.f32.gmra.mrb[0].mxu0 %v2846
        %v3003 = vpop.f32.mrb[0].mxu0
        %v3004 = vadd.f32 0.0, %v3003
        %v3005 = vpop.f32.mrb[0].mxu0
        %3006 = vmatprep.mubr.f32.mxu0 0.0
        %3007 = vmatmul.mubr.f32.gmra.mrb[0].mxu0 %v2848
        %v3008 = vpop.f32.mrb[0].mxu0
        %v3009 = vadd.f32 0.0, %v3008
        %v3010 = vpop.f32.mrb[0].mxu0
        %3011 = vmatprep.mubr.f32.mxu0 0.0
        %3012 = vmatmul.mubr.f32.gmra.mrb[0].mxu0 %v2850
        %v3013 = vpop.f32.mrb[0].mxu0
        %v3014 = vadd.f32 0.0, %v3013
        %v3015 = vpop.f32.mrb[0].mxu0
        %3016 = vmatprep.mubr.f32.mxu0 0.0
        %3017 = vmatmul.mubr.f32.gmra.mrb[0].mxu0 %v2852
        %v3018 = vpop.f32.mrb[0].mxu0
        %v3019 = vadd.f32 0.0, %v3018
        %v3020 = vpop.f32.mrb[0].mxu0
        %3021 = vmatprep.mubr.f32.mxu0 0.0
        %3022 = vmatmul.mubr.f32.gmra.mrb[0].mxu0 %v2854
        %v3023 = vpop.f32.mrb[0].mxu0
        %v3024 = vadd.f32 0.0, %v3023
        %v3025 = vpop.f32.mrb[0].mxu0
        %3026 = vmatprep.mubr.f32.mxu0 0.0
        %3027 = vmatmul.mubr.f32.gmra.mrb[0].mxu0 %v2856
        %v3028 = vpop.f32.mrb[0].mxu0
        %v3029 = vadd.f32 0.0, %v3028
        %v3030 = vpop.f32.mrb[0].mxu0
        %3031 = vmatprep.mubr.f32.mxu0 0.0
        %3032 = vmatmul.mubr.f32.gmra.mrb[0].mxu0 %v2858
        %v3033 = vpop.f32.mrb[0].mxu0
        %v3034 = vadd.f32 0.0, %v3033
        %v3035 = vpop.f32.mrb[0].mxu0
        %3036 = vdwg.mxu0
        %3053 = vrot.lane.b32.xlu0 %v1397, 64
        %v3054 = vpop.permute.xlu0 %3053
        %3055 = vrot.lane.b32.xlu0 %v1403, 64
        %v3056 = vpop.permute.xlu0 %3055
        %3057 = vrot.lane.b32.xlu0 %v1409, 64
        %v3058 = vpop.permute.xlu0 %3057
        %3059 = vrot.lane.b32.xlu0 %v1415, 64
        %v3060 = vpop.permute.xlu0 %3059
        %3061 = vrot.lane.b32.xlu0 %v1421, 64
        %v3062 = vpop.permute.xlu0 %3061
        %3063 = vrot.lane.b32.xlu0 %v1427, 64
        %v3064 = vpop.permute.xlu0 %3063
        %3065 = vrot.lane.b32.xlu0 %v1433, 64
        %v3066 = vpop.permute.xlu0 %3065
        %3067 = vrot.lane.b32.xlu0 %v1439, 64
        %v3068 = vpop.permute.xlu0 %3067
        %3069 = vrot.lane.b32.xlu0 %v1445, 64
        %v3070 = vpop.permute.xlu0 %3069
        %3071 = vrot.lane.b32.xlu0 %v1451, 64
        %v3072 = vpop.permute.xlu0 %3071
        %3073 = vrot.lane.b32.xlu0 %v1457, 64
        %v3074 = vpop.permute.xlu0 %3073
        %3075 = vrot.lane.b32.xlu0 %v1463, 64
        %v3076 = vpop.permute.xlu0 %3075
        %3077 = vrot.lane.b32.xlu0 %v1469, 64
        %v3078 = vpop.permute.xlu0 %3077
        %3079 = vrot.lane.b32.xlu0 %v1475, 64
        %v3080 = vpop.permute.xlu0 %3079
        %3081 = vrot.lane.b32.xlu0 %v1481, 64
        %v3082 = vpop.permute.xlu0 %3081
        %3083 = vrot.lane.b32.xlu0 %v1487, 64
        %v3084 = vpop.permute.xlu0 %3083
        %v3085 = vsel %vm2827, %v1397, 0
        %v3087 = vsel %vm2827, %v1403, 0
        %v3089 = vsel %vm2827, %v1409, 0
        %v3091 = vsel %vm2827, %v1415, 0
        %v3093 = vsel %vm2827, %v1421, 0
        %v3095 = vsel %vm2827, %v1427, 0
        %v3097 = vsel %vm2827, %v1433, 0
        %v3099 = vsel %vm2827, %v1439, 0
        %v3101 = vsel %vm2827, %v1445, 0
        %v3103 = vsel %vm2827, %v1451, 0
        %v3105 = vsel %vm2827, %v1457, 0
        %v3107 = vsel %vm2827, %v1463, 0
        %v3109 = vsel %vm2827, %v1469, 0
        %v3111 = vsel %vm2827, %v1475, 0
        %v3113 = vsel %vm2827, %v1481, 0
        %v3115 = vsel %vm2827, %v1487, 0
        %v3117 = vsel %vm2827, %v3054, 0
        %v3119 = vsel %vm2827, %v3056, 0
        %v3121 = vsel %vm2827, %v3058, 0
        %v3123 = vsel %vm2827, %v3060, 0
        %v3125 = vsel %vm2827, %v3062, 0
        %v3127 = vsel %vm2827, %v3064, 0
        %v3129 = vsel %vm2827, %v3066, 0
        %v3131 = vsel %vm2827, %v3068, 0
        %v3133 = vsel %vm2827, %v3070, 0
        %v3135 = vsel %vm2827, %v3072, 0
        %v3137 = vsel %vm2827, %v3074, 0
        %v3139 = vsel %vm2827, %v3076, 0
        %v3141 = vsel %vm2827, %v3078, 0
        %v3143 = vsel %vm2827, %v3080, 0
        %v3145 = vsel %vm2827, %v3082, 0
        %v3147 = vsel %vm2827, %v3084, 0
        %3149 = vmatprep.subr.mxu0 0.0
        %3150 = vmatpush1.xpose.msra.mxu0 %v3117
        %3151 = vmatprep.subr.mxu0 0.0
        %3152 = vmatpush1.xpose.msra.mxu0 %v3119
        %3153 = vmatprep.subr.mxu0 0.0
        %3154 = vmatpush1.xpose.msra.mxu0 %v3121
        %3155 = vmatprep.subr.mxu0 0.0
        %3156 = vmatpush1.xpose.msra.mxu0 %v3123
        %3157 = vmatprep.subr.mxu0 0.0
        %3158 = vmatpush1.xpose.msra.mxu0 %v3125
        %3159 = vmatprep.subr.mxu0 0.0
        %3160 = vmatpush1.xpose.msra.mxu0 %v3127
        %3161 = vmatprep.subr.mxu0 0.0
        %3162 = vmatpush1.xpose.msra.mxu0 %v3129
        %3163 = vmatprep.subr.mxu0 0.0
        %3164 = vmatpush1.xpose.msra.mxu0 %v3131
        %3165 = vmatprep.subr.mxu0 0.0
        %3166 = vmatpush1.xpose.msra.mxu0 %v3133
        %3167 = vmatprep.subr.mxu0 0.0
        %3168 = vmatpush1.xpose.msra.mxu0 %v3135
        %3169 = vmatprep.subr.mxu0 0.0
        %3170 = vmatpush1.xpose.msra.mxu0 %v3137
        %3171 = vmatprep.subr.mxu0 0.0
        %3172 = vmatpush1.xpose.msra.mxu0 %v3139
        %3173 = vmatprep.subr.mxu0 0.0
        %3174 = vmatpush1.xpose.msra.mxu0 %v3141
        %3175 = vmatprep.subr.mxu0 0.0
        %3176 = vmatpush1.xpose.msra.mxu0 %v3143
        %3177 = vmatprep.subr.mxu0 0.0
        %3178 = vmatpush1.xpose.msra.mxu0 %v3145
        %3179 = vmatprep.subr.mxu0 0.0
        %3180 = vmatpush1.xpose.msra.mxu0 %v3147
        %3181 = vmatprep.subr.mxu0 0.0
        %3182 = vmatpush1.xpose.msra.mxu0 0.0
        %3183 = vmatprep.subr.mxu0 0.0
        %3184 = vmatpush1.xpose.msra.mxu0 0.0
        %3185 = vmatprep.subr.mxu0 0.0
        %3186 = vmatpush1.xpose.msra.mxu0 0.0
        %3187 = vmatprep.subr.mxu0 0.0
        %3188 = vmatpush1.xpose.msra.mxu0 0.0
        %3189 = vmatprep.subr.mxu0 0.0
        %3190 = vmatpush1.xpose.msra.mxu0 0.0
        %3191 = vmatprep.subr.mxu0 0.0
        %3192 = vmatpush1.xpose.msra.mxu0 0.0
        %3193 = vmatprep.subr.mxu0 0.0
        %3194 = vmatpush1.xpose.msra.mxu0 0.0
        %3195 = vmatprep.subr.mxu0 0.0
        %3196 = vmatpush1.xpose.msra.mxu0 0.0
        %3197 = vmatprep.subr.mxu0 0.0
        %3198 = vmatpush1.xpose.msra.mxu0 0.0
        %3199 = vmatprep.subr.mxu0 0.0
        %3200 = vmatpush1.xpose.msra.mxu0 0.0
        %3201 = vmatprep.subr.mxu0 0.0
        %3202 = vmatpush1.xpose.msra.mxu0 0.0
        %3203 = vmatprep.subr.mxu0 0.0
        %3204 = vmatpush1.xpose.msra.mxu0 0.0
        %3205 = vmatprep.subr.mxu0 0.0
        %3206 = vmatpush1.xpose.msra.mxu0 0.0
        %3207 = vmatprep.subr.mxu0 0.0
        %3208 = vmatpush1.xpose.msra.mxu0 0.0
        %3209 = vmatprep.subr.mxu0 0.0
        %3210 = vmatpush1.xpose.msra.mxu0 0.0
        %3211 = vmatprep.subr.mxu0 0.0
        %3212 = vmatpush1.xpose.msra.mxu0 0.0
        %3213 = vmatprep.mubr.f32.mxu0 0.0
        %3214 = vmatmul.mubr.f32.gmra.mrb[0].mxu0 %v3085
        %v3215 = vpop.f32.mrb[0].mxu0
        %v3216 = vadd.f32 0.0, %v3215
        %v3217 = vpop.f32.mrb[0].mxu0
        %3218 = vmatprep.mubr.f32.mxu0 0.0
        %3219 = vmatmul.mubr.f32.gmra.mrb[0].mxu0 %v3087
        %v3220 = vpop.f32.mrb[0].mxu0
        %v3221 = vadd.f32 0.0, %v3220
        %v3222 = vpop.f32.mrb[0].mxu0
        %3223 = vmatprep.mubr.f32.mxu0 0.0
        %3224 = vmatmul.mubr.f32.gmra.mrb[0].mxu0 %v3089
        %v3225 = vpop.f32.mrb[0].mxu0
        %v3226 = vadd.f32 0.0, %v3225
        %v3227 = vpop.f32.mrb[0].mxu0
        %3228 = vmatprep.mubr.f32.mxu0 0.0
        %3229 = vmatmul.mubr.f32.gmra.mrb[0].mxu0 %v3091
        %v3230 = vpop.f32.mrb[0].mxu0
        %v3231 = vadd.f32 0.0, %v3230
        %v3232 = vpop.f32.mrb[0].mxu0
        %3233 = vmatprep.mubr.f32.mxu0 0.0
        %3234 = vmatmul.mubr.f32.gmra.mrb[0].mxu0 %v3093
        %v3235 = vpop.f32.mrb[0].mxu0
        %v3236 = vadd.f32 0.0, %v3235
        %v3237 = vpop.f32.mrb[0].mxu0
        %3238 = vmatprep.mubr.f32.mxu0 0.0
        %3239 = vmatmul.mubr.f32.gmra.mrb[0].mxu0 %v3095
        %v3240 = vpop.f32.mrb[0].mxu0
        %v3241 = vadd.f32 0.0, %v3240
        %v3242 = vpop.f32.mrb[0].mxu0
        %3243 = vmatprep.mubr.f32.mxu0 0.0
        %3244 = vmatmul.mubr.f32.gmra.mrb[0].mxu0 %v3097
        %v3245 = vpop.f32.mrb[0].mxu0
        %v3246 = vadd.f32 0.0, %v3245
        %v3247 = vpop.f32.mrb[0].mxu0
        %3248 = vmatprep.mubr.f32.mxu0 0.0
        %3249 = vmatmul.mubr.f32.gmra.mrb[0].mxu0 %v3099
        %v3250 = vpop.f32.mrb[0].mxu0
        %v3251 = vadd.f32 0.0, %v3250
        %v3252 = vpop.f32.mrb[0].mxu0
        %3253 = vmatprep.mubr.f32.mxu0 0.0
        %3254 = vmatmul.mubr.f32.gmra.mrb[0].mxu0 %v3101
        %v3255 = vpop.f32.mrb[0].mxu0
        %v3256 = vadd.f32 0.0, %v3255
        %v3257 = vpop.f32.mrb[0].mxu0
        %3258 = vmatprep.mubr.f32.mxu0 0.0
        %3259 = vmatmul.mubr.f32.gmra.mrb[0].mxu0 %v3103
        %v3260 = vpop.f32.mrb[0].mxu0
        %v3261 = vadd.f32 0.0, %v3260
        %v3262 = vpop.f32.mrb[0].mxu0
        %3263 = vmatprep.mubr.f32.mxu0 0.0
        %3264 = vmatmul.mubr.f32.gmra.mrb[0].mxu0 %v3105
        %v3265 = vpop.f32.mrb[0].mxu0
        %v3266 = vadd.f32 0.0, %v3265
        %v3267 = vpop.f32.mrb[0].mxu0
        %3268 = vmatprep.mubr.f32.mxu0 0.0
        %3269 = vmatmul.mubr.f32.gmra.mrb[0].mxu0 %v3107
        %v3270 = vpop.f32.mrb[0].mxu0
        %v3271 = vadd.f32 0.0, %v3270
        %v3272 = vpop.f32.mrb[0].mxu0
        %3273 = vmatprep.mubr.f32.mxu0 0.0
        %3274 = vmatmul.mubr.f32.gmra.mrb[0].mxu0 %v3109
        %v3275 = vpop.f32.mrb[0].mxu0
        %v3276 = vadd.f32 0.0, %v3275
        %v3277 = vpop.f32.mrb[0].mxu0
        %3278 = vmatprep.mubr.f32.mxu0 0.0
        %3279 = vmatmul.mubr.f32.gmra.mrb[0].mxu0 %v3111
        %v3280 = vpop.f32.mrb[0].mxu0
        %v3281 = vadd.f32 0.0, %v3280
        %v3282 = vpop.f32.mrb[0].mxu0
        %3283 = vmatprep.mubr.f32.mxu0 0.0
        %3284 = vmatmul.mubr.f32.gmra.mrb[0].mxu0 %v3113
        %v3285 = vpop.f32.mrb[0].mxu0
        %v3286 = vadd.f32 0.0, %v3285
        %v3287 = vpop.f32.mrb[0].mxu0
        %3288 = vmatprep.mubr.f32.mxu0 0.0
        %3289 = vmatmul.mubr.f32.gmra.mrb[0].mxu0 %v3115
        %v3290 = vpop.f32.mrb[0].mxu0
        %v3291 = vadd.f32 0.0, %v3290
        %v3292 = vpop.f32.mrb[0].mxu0
        %3293 = vdwg.mxu0
        %3310 = vrot.lane.b32.xlu0 %v1719, 64
        %v3311 = vpop.permute.xlu0 %3310
        %3312 = vrot.lane.b32.xlu0 %v1725, 64
        %v3313 = vpop.permute.xlu0 %3312
        %3314 = vrot.lane.b32.xlu0 %v1731, 64
        %v3315 = vpop.permute.xlu0 %3314
        %3316 = vrot.lane.b32.xlu0 %v1737, 64
        %v3317 = vpop.permute.xlu0 %3316
        %3318 = vrot.lane.b32.xlu0 %v1743, 64
        %v3319 = vpop.permute.xlu0 %3318
        %3320 = vrot.lane.b32.xlu0 %v1749, 64
        %v3321 = vpop.permute.xlu0 %3320
        %3322 = vrot.lane.b32.xlu0 %v1755, 64
        %v3323 = vpop.permute.xlu0 %3322
        %3324 = vrot.lane.b32.xlu0 %v1761, 64
        %v3325 = vpop.permute.xlu0 %3324
        %3326 = vrot.lane.b32.xlu0 %v1767, 64
        %v3327 = vpop.permute.xlu0 %3326
        %3328 = vrot.lane.b32.xlu0 %v1773, 64
        %v3329 = vpop.permute.xlu0 %3328
        %3330 = vrot.lane.b32.xlu0 %v1779, 64
        %v3331 = vpop.permute.xlu0 %3330
        %3332 = vrot.lane.b32.xlu0 %v1785, 64
        %v3333 = vpop.permute.xlu0 %3332
        %3334 = vrot.lane.b32.xlu0 %v1791, 64
        %v3335 = vpop.permute.xlu0 %3334
        %3336 = vrot.lane.b32.xlu0 %v1797, 64
        %v3337 = vpop.permute.xlu0 %3336
        %3338 = vrot.lane.b32.xlu0 %v1803, 64
        %v3339 = vpop.permute.xlu0 %3338
        %3340 = vrot.lane.b32.xlu0 %v1809, 64
        %v3341 = vpop.permute.xlu0 %3340
        %v3342 = vsel %vm2827, %v1719, 0
        %v3344 = vsel %vm2827, %v1725, 0
        %v3346 = vsel %vm2827, %v1731, 0
        %v3348 = vsel %vm2827, %v1737, 0
        %v3350 = vsel %vm2827, %v1743, 0
        %v3352 = vsel %vm2827, %v1749, 0
        %v3354 = vsel %vm2827, %v1755, 0
        %v3356 = vsel %vm2827, %v1761, 0
        %v3358 = vsel %vm2827, %v1767, 0
        %v3360 = vsel %vm2827, %v1773, 0
        %v3362 = vsel %vm2827, %v1779, 0
        %v3364 = vsel %vm2827, %v1785, 0
        %v3366 = vsel %vm2827, %v1791, 0
        %v3368 = vsel %vm2827, %v1797, 0
        %v3370 = vsel %vm2827, %v1803, 0
        %v3372 = vsel %vm2827, %v1809, 0
        %v3374 = vsel %vm2827, %v3311, 0
        %v3376 = vsel %vm2827, %v3313, 0
        %v3378 = vsel %vm2827, %v3315, 0
        %v3380 = vsel %vm2827, %v3317, 0
        %v3382 = vsel %vm2827, %v3319, 0
        %v3384 = vsel %vm2827, %v3321, 0
        %v3386 = vsel %vm2827, %v3323, 0
        %v3388 = vsel %vm2827, %v3325, 0
        %v3390 = vsel %vm2827, %v3327, 0
        %v3392 = vsel %vm2827, %v3329, 0
        %v3394 = vsel %vm2827, %v3331, 0
        %v3396 = vsel %vm2827, %v3333, 0
        %v3398 = vsel %vm2827, %v3335, 0
        %v3400 = vsel %vm2827, %v3337, 0
        %v3402 = vsel %vm2827, %v3339, 0
        %v3404 = vsel %vm2827, %v3341, 0
        %3406 = vmatprep.subr.mxu0 0.0
        %3407 = vmatpush1.xpose.msra.mxu0 %v3374
        %3408 = vmatprep.subr.mxu0 0.0
        %3409 = vmatpush1.xpose.msra.mxu0 %v3376
        %3410 = vmatprep.subr.mxu0 0.0
        %3411 = vmatpush1.xpose.msra.mxu0 %v3378
        %3412 = vmatprep.subr.mxu0 0.0
        %3413 = vmatpush1.xpose.msra.mxu0 %v3380
        %3414 = vmatprep.subr.mxu0 0.0
        %3415 = vmatpush1.xpose.msra.mxu0 %v3382
        %3416 = vmatprep.subr.mxu0 0.0
        %3417 = vmatpush1.xpose.msra.mxu0 %v3384
        %3418 = vmatprep.subr.mxu0 0.0
        %3419 = vmatpush1.xpose.msra.mxu0 %v3386
        %3420 = vmatprep.subr.mxu0 0.0
        %3421 = vmatpush1.xpose.msra.mxu0 %v3388
        %3422 = vmatprep.subr.mxu0 0.0
        %3423 = vmatpush1.xpose.msra.mxu0 %v3390
        %3424 = vmatprep.subr.mxu0 0.0
        %3425 = vmatpush1.xpose.msra.mxu0 %v3392
        %3426 = vmatprep.subr.mxu0 0.0
        %3427 = vmatpush1.xpose.msra.mxu0 %v3394
        %3428 = vmatprep.subr.mxu0 0.0
        %3429 = vmatpush1.xpose.msra.mxu0 %v3396
        %3430 = vmatprep.subr.mxu0 0.0
        %3431 = vmatpush1.xpose.msra.mxu0 %v3398
        %3432 = vmatprep.subr.mxu0 0.0
        %3433 = vmatpush1.xpose.msra.mxu0 %v3400
        %3434 = vmatprep.subr.mxu0 0.0
        %3435 = vmatpush1.xpose.msra.mxu0 %v3402
        %3436 = vmatprep.subr.mxu0 0.0
        %3437 = vmatpush1.xpose.msra.mxu0 %v3404
        %3438 = vmatprep.subr.mxu0 0.0
        %3439 = vmatpush1.xpose.msra.mxu0 0.0
        %3440 = vmatprep.subr.mxu0 0.0
        %3441 = vmatpush1.xpose.msra.mxu0 0.0
        %3442 = vmatprep.subr.mxu0 0.0
        %3443 = vmatpush1.xpose.msra.mxu0 0.0
        %3444 = vmatprep.subr.mxu0 0.0
        %3445 = vmatpush1.xpose.msra.mxu0 0.0
        %3446 = vmatprep.subr.mxu0 0.0
        %3447 = vmatpush1.xpose.msra.mxu0 0.0
        %3448 = vmatprep.subr.mxu0 0.0
        %3449 = vmatpush1.xpose.msra.mxu0 0.0
        %3450 = vmatprep.subr.mxu0 0.0
        %3451 = vmatpush1.xpose.msra.mxu0 0.0
        %3452 = vmatprep.subr.mxu0 0.0
        %3453 = vmatpush1.xpose.msra.mxu0 0.0
        %3454 = vmatprep.subr.mxu0 0.0
        %3455 = vmatpush1.xpose.msra.mxu0 0.0
        %3456 = vmatprep.subr.mxu0 0.0
        %3457 = vmatpush1.xpose.msra.mxu0 0.0
        %3458 = vmatprep.subr.mxu0 0.0
        %3459 = vmatpush1.xpose.msra.mxu0 0.0
        %3460 = vmatprep.subr.mxu0 0.0
        %3461 = vmatpush1.xpose.msra.mxu0 0.0
        %3462 = vmatprep.subr.mxu0 0.0
        %3463 = vmatpush1.xpose.msra.mxu0 0.0
        %3464 = vmatprep.subr.mxu0 0.0
        %3465 = vmatpush1.xpose.msra.mxu0 0.0
        %3466 = vmatprep.subr.mxu0 0.0
        %3467 = vmatpush1.xpose.msra.mxu0 0.0
        %3468 = vmatprep.subr.mxu0 0.0
        %3469 = vmatpush1.xpose.msra.mxu0 0.0
        %3470 = vmatprep.mubr.f32.mxu0 0.0
        %3471 = vmatmul.mubr.f32.gmra.mrb[0].mxu0 %v3342
        %v3472 = vpop.f32.mrb[0].mxu0
        %v3473 = vadd.f32 0.0, %v3472
        %v3474 = vpop.f32.mrb[0].mxu0
        %3475 = vmatprep.mubr.f32.mxu0 0.0
        %3476 = vmatmul.mubr.f32.gmra.mrb[0].mxu0 %v3344
        %v3477 = vpop.f32.mrb[0].mxu0
        %v3478 = vadd.f32 0.0, %v3477
        %v3479 = vpop.f32.mrb[0].mxu0
        %3480 = vmatprep.mubr.f32.mxu0 0.0
        %3481 = vmatmul.mubr.f32.gmra.mrb[0].mxu0 %v3346
        %v3482 = vpop.f32.mrb[0].mxu0
        %v3483 = vadd.f32 0.0, %v3482
        %v3484 = vpop.f32.mrb[0].mxu0
        %3485 = vmatprep.mubr.f32.mxu0 0.0
        %3486 = vmatmul.mubr.f32.gmra.mrb[0].mxu0 %v3348
        %v3487 = vpop.f32.mrb[0].mxu0
        %v3488 = vadd.f32 0.0, %v3487
        %v3489 = vpop.f32.mrb[0].mxu0
        %3490 = vmatprep.mubr.f32.mxu0 0.0
        %3491 = vmatmul.mubr.f32.gmra.mrb[0].mxu0 %v3350
        %v3492 = vpop.f32.mrb[0].mxu0
        %v3493 = vadd.f32 0.0, %v3492
        %v3494 = vpop.f32.mrb[0].mxu0
        %3495 = vmatprep.mubr.f32.mxu0 0.0
        %3496 = vmatmul.mubr.f32.gmra.mrb[0].mxu0 %v3352
        %v3497 = vpop.f32.mrb[0].mxu0
        %v3498 = vadd.f32 0.0, %v3497
        %v3499 = vpop.f32.mrb[0].mxu0
        %3500 = vmatprep.mubr.f32.mxu0 0.0
        %3501 = vmatmul.mubr.f32.gmra.mrb[0].mxu0 %v3354
        %v3502 = vpop.f32.mrb[0].mxu0
        %v3503 = vadd.f32 0.0, %v3502
        %v3504 = vpop.f32.mrb[0].mxu0
        %3505 = vmatprep.mubr.f32.mxu0 0.0
        %3506 = vmatmul.mubr.f32.gmra.mrb[0].mxu0 %v3356
        %v3507 = vpop.f32.mrb[0].mxu0
        %v3508 = vadd.f32 0.0, %v3507
        %v3509 = vpop.f32.mrb[0].mxu0
        %3510 = vmatprep.mubr.f32.mxu0 0.0
        %3511 = vmatmul.mubr.f32.gmra.mrb[0].mxu0 %v3358
        %v3512 = vpop.f32.mrb[0].mxu0
        %v3513 = vadd.f32 0.0, %v3512
        %v3514 = vpop.f32.mrb[0].mxu0
        %3515 = vmatprep.mubr.f32.mxu0 0.0
        %3516 = vmatmul.mubr.f32.gmra.mrb[0].mxu0 %v3360
        %v3517 = vpop.f32.mrb[0].mxu0
        %v3518 = vadd.f32 0.0, %v3517
        %v3519 = vpop.f32.mrb[0].mxu0
        %3520 = vmatprep.mubr.f32.mxu0 0.0
        %3521 = vmatmul.mubr.f32.gmra.mrb[0].mxu0 %v3362
        %v3522 = vpop.f32.mrb[0].mxu0
        %v3523 = vadd.f32 0.0, %v3522
        %v3524 = vpop.f32.mrb[0].mxu0
        %3525 = vmatprep.mubr.f32.mxu0 0.0
        %3526 = vmatmul.mubr.f32.gmra.mrb[0].mxu0 %v3364
        %v3527 = vpop.f32.mrb[0].mxu0
        %v3528 = vadd.f32 0.0, %v3527
        %v3529 = vpop.f32.mrb[0].mxu0
        %3530 = vmatprep.mubr.f32.mxu0 0.0
        %3531 = vmatmul.mubr.f32.gmra.mrb[0].mxu0 %v3366
        %v3532 = vpop.f32.mrb[0].mxu0
        %v3533 = vadd.f32 0.0, %v3532
        %v3534 = vpop.f32.mrb[0].mxu0
        %3535 = vmatprep.mubr.f32.mxu0 0.0
        %3536 = vmatmul.mubr.f32.gmra.mrb[0].mxu0 %v3368
        %v3537 = vpop.f32.mrb[0].mxu0
        %v3538 = vadd.f32 0.0, %v3537
        %v3539 = vpop.f32.mrb[0].mxu0
        %3540 = vmatprep.mubr.f32.mxu0 0.0
        %3541 = vmatmul.mubr.f32.gmra.mrb[0].mxu0 %v3370
        %v3542 = vpop.f32.mrb[0].mxu0
        %v3543 = vadd.f32 0.0, %v3542
        %v3544 = vpop.f32.mrb[0].mxu0
        %3545 = vmatprep.mubr.f32.mxu0 0.0
        %3546 = vmatmul.mubr.f32.gmra.mrb[0].mxu0 %v3372
        %v3547 = vpop.f32.mrb[0].mxu0
        %v3548 = vadd.f32 0.0, %v3547
        %v3549 = vpop.f32.mrb[0].mxu0
        %3550 = vdwg.mxu0
        %3567 = vrot.lane.b32.xlu0 %v2041, 64
        %v3568 = vpop.permute.xlu0 %3567
        %3569 = vrot.lane.b32.xlu0 %v2047, 64
        %v3570 = vpop.permute.xlu0 %3569
        %3571 = vrot.lane.b32.xlu0 %v2053, 64
        %v3572 = vpop.permute.xlu0 %3571
        %3573 = vrot.lane.b32.xlu0 %v2059, 64
        %v3574 = vpop.permute.xlu0 %3573
        %3575 = vrot.lane.b32.xlu0 %v2065, 64
        %v3576 = vpop.permute.xlu0 %3575
        %3577 = vrot.lane.b32.xlu0 %v2071, 64
        %v3578 = vpop.permute.xlu0 %3577
        %3579 = vrot.lane.b32.xlu0 %v2077, 64
        %v3580 = vpop.permute.xlu0 %3579
        %3581 = vrot.lane.b32.xlu0 %v2083, 64
        %v3582 = vpop.permute.xlu0 %3581
        %3583 = vrot.lane.b32.xlu0 %v2089, 64
        %v3584 = vpop.permute.xlu0 %3583
        %3585 = vrot.lane.b32.xlu0 %v2095, 64
        %v3586 = vpop.permute.xlu0 %3585
        %3587 = vrot.lane.b32.xlu0 %v2101, 64
        %v3588 = vpop.permute.xlu0 %3587
        %3589 = vrot.lane.b32.xlu0 %v2107, 64
        %v3590 = vpop.permute.xlu0 %3589
        %3591 = vrot.lane.b32.xlu0 %v2113, 64
        %v3592 = vpop.permute.xlu0 %3591
        %3593 = vrot.lane.b32.xlu0 %v2119, 64
        %v3594 = vpop.permute.xlu0 %3593
        %3595 = vrot.lane.b32.xlu0 %v2125, 64
        %v3596 = vpop.permute.xlu0 %3595
        %3597 = vrot.lane.b32.xlu0 %v2131, 64
        %v3598 = vpop.permute.xlu0 %3597
        %v3599 = vsel %vm2827, %v2041, 0
        %v3601 = vsel %vm2827, %v2047, 0
        %v3603 = vsel %vm2827, %v2053, 0
        %v3605 = vsel %vm2827, %v2059, 0
        %v3607 = vsel %vm2827, %v2065, 0
        %v3609 = vsel %vm2827, %v2071, 0
        %v3611 = vsel %vm2827, %v2077, 0
        %v3613 = vsel %vm2827, %v2083, 0
        %v3615 = vsel %vm2827, %v2089, 0
        %v3617 = vsel %vm2827, %v2095, 0
        %v3619 = vsel %vm2827, %v2101, 0
        %v3621 = vsel %vm2827, %v2107, 0
        %v3623 = vsel %vm2827, %v2113, 0
        %v3625 = vsel %vm2827, %v2119, 0
        %v3627 = vsel %vm2827, %v2125, 0
        %v3629 = vsel %vm2827, %v2131, 0
        %v3631 = vsel %vm2827, %v3568, 0
        %v3633 = vsel %vm2827, %v3570, 0
        %v3635 = vsel %vm2827, %v3572, 0
        %v3637 = vsel %vm2827, %v3574, 0
        %v3639 = vsel %vm2827, %v3576, 0
        %v3641 = vsel %vm2827, %v3578, 0
        %v3643 = vsel %vm2827, %v3580, 0
        %v3645 = vsel %vm2827, %v3582, 0
        %v3647 = vsel %vm2827, %v3584, 0
        %v3649 = vsel %vm2827, %v3586, 0
        %v3651 = vsel %vm2827, %v3588, 0
        %v3653 = vsel %vm2827, %v3590, 0
        %v3655 = vsel %vm2827, %v3592, 0
        %v3657 = vsel %vm2827, %v3594, 0
        %v3659 = vsel %vm2827, %v3596, 0
        %v3661 = vsel %vm2827, %v3598, 0
        %3663 = vmatprep.subr.mxu0 0.0
        %3664 = vmatpush1.xpose.msra.mxu0 %v3631
        %3665 = vmatprep.subr.mxu0 0.0
        %3666 = vmatpush1.xpose.msra.mxu0 %v3633
        %3667 = vmatprep.subr.mxu0 0.0
        %3668 = vmatpush1.xpose.msra.mxu0 %v3635
        %3669 = vmatprep.subr.mxu0 0.0
        %3670 = vmatpush1.xpose.msra.mxu0 %v3637
        %3671 = vmatprep.subr.mxu0 0.0
        %3672 = vmatpush1.xpose.msra.mxu0 %v3639
        %3673 = vmatprep.subr.mxu0 0.0
        %3674 = vmatpush1.xpose.msra.mxu0 %v3641
        %3675 = vmatprep.subr.mxu0 0.0
        %3676 = vmatpush1.xpose.msra.mxu0 %v3643
        %3677 = vmatprep.subr.mxu0 0.0
        %3678 = vmatpush1.xpose.msra.mxu0 %v3645
        %3679 = vmatprep.subr.mxu0 0.0
        %3680 = vmatpush1.xpose.msra.mxu0 %v3647
        %3681 = vmatprep.subr.mxu0 0.0
        %3682 = vmatpush1.xpose.msra.mxu0 %v3649
        %3683 = vmatprep.subr.mxu0 0.0
        %3684 = vmatpush1.xpose.msra.mxu0 %v3651
        %3685 = vmatprep.subr.mxu0 0.0
        %3686 = vmatpush1.xpose.msra.mxu0 %v3653
        %3687 = vmatprep.subr.mxu0 0.0
        %3688 = vmatpush1.xpose.msra.mxu0 %v3655
        %3689 = vmatprep.subr.mxu0 0.0
        %3690 = vmatpush1.xpose.msra.mxu0 %v3657
        %3691 = vmatprep.subr.mxu0 0.0
        %3692 = vmatpush1.xpose.msra.mxu0 %v3659
        %3693 = vmatprep.subr.mxu0 0.0
        %3694 = vmatpush1.xpose.msra.mxu0 %v3661
        %3695 = vmatprep.subr.mxu0 0.0
        %3696 = vmatpush1.xpose.msra.mxu0 0.0
        %3697 = vmatprep.subr.mxu0 0.0
        %3698 = vmatpush1.xpose.msra.mxu0 0.0
        %3699 = vmatprep.subr.mxu0 0.0
        %3700 = vmatpush1.xpose.msra.mxu0 0.0
        %3701 = vmatprep.subr.mxu0 0.0
        %3702 = vmatpush1.xpose.msra.mxu0 0.0
        %3703 = vmatprep.subr.mxu0 0.0
        %3704 = vmatpush1.xpose.msra.mxu0 0.0
        %3705 = vmatprep.subr.mxu0 0.0
        %3706 = vmatpush1.xpose.msra.mxu0 0.0
        %3707 = vmatprep.subr.mxu0 0.0
        %3708 = vmatpush1.xpose.msra.mxu0 0.0
        %3709 = vmatprep.subr.mxu0 0.0
        %3710 = vmatpush1.xpose.msra.mxu0 0.0
        %3711 = vmatprep.subr.mxu0 0.0
        %3712 = vmatpush1.xpose.msra.mxu0 0.0
        %3713 = vmatprep.subr.mxu0 0.0
        %3714 = vmatpush1.xpose.msra.mxu0 0.0
        %3715 = vmatprep.subr.mxu0 0.0
        %3716 = vmatpush1.xpose.msra.mxu0 0.0
        %3717 = vmatprep.subr.mxu0 0.0
        %3718 = vmatpush1.xpose.msra.mxu0 0.0
        %3719 = vmatprep.subr.mxu0 0.0
        %3720 = vmatpush1.xpose.msra.mxu0 0.0
        %3721 = vmatprep.subr.mxu0 0.0
        %3722 = vmatpush1.xpose.msra.mxu0 0.0
        %3723 = vmatprep.subr.mxu0 0.0
        %3724 = vmatpush1.xpose.msra.mxu0 0.0
        %3725 = vmatprep.subr.mxu0 0.0
        %3726 = vmatpush1.xpose.msra.mxu0 0.0
        %3727 = vmatprep.mubr.f32.mxu0 0.0
        %3728 = vmatmul.mubr.f32.gmra.mrb[0].mxu0 %v3599
        %v3729 = vpop.f32.mrb[0].mxu0
        %v3730 = vadd.f32 0.0, %v3729
        %v3731 = vpop.f32.mrb[0].mxu0
        %3732 = vmatprep.mubr.f32.mxu0 0.0
        %3733 = vmatmul.mubr.f32.gmra.mrb[0].mxu0 %v3601
        %v3734 = vpop.f32.mrb[0].mxu0
        %v3735 = vadd.f32 0.0, %v3734
        %v3736 = vpop.f32.mrb[0].mxu0
        %3737 = vmatprep.mubr.f32.mxu0 0.0
        %3738 = vmatmul.mubr.f32.gmra.mrb[0].mxu0 %v3603
        %v3739 = vpop.f32.mrb[0].mxu0
        %v3740 = vadd.f32 0.0, %v3739
        %v3741 = vpop.f32.mrb[0].mxu0
        %3742 = vmatprep.mubr.f32.mxu0 0.0
        %3743 = vmatmul.mubr.f32.gmra.mrb[0].mxu0 %v3605
        %v3744 = vpop.f32.mrb[0].mxu0
        %v3745 = vadd.f32 0.0, %v3744
        %v3746 = vpop.f32.mrb[0].mxu0
        %3747 = vmatprep.mubr.f32.mxu0 0.0
        %3748 = vmatmul.mubr.f32.gmra.mrb[0].mxu0 %v3607
        %v3749 = vpop.f32.mrb[0].mxu0
        %v3750 = vadd.f32 0.0, %v3749
        %v3751 = vpop.f32.mrb[0].mxu0
        %3752 = vmatprep.mubr.f32.mxu0 0.0
        %3753 = vmatmul.mubr.f32.gmra.mrb[0].mxu0 %v3609
        %v3754 = vpop.f32.mrb[0].mxu0
        %v3755 = vadd.f32 0.0, %v3754
        %v3756 = vpop.f32.mrb[0].mxu0
        %3757 = vmatprep.mubr.f32.mxu0 0.0
        %3758 = vmatmul.mubr.f32.gmra.mrb[0].mxu0 %v3611
        %v3759 = vpop.f32.mrb[0].mxu0
        %v3760 = vadd.f32 0.0, %v3759
        %v3761 = vpop.f32.mrb[0].mxu0
        %3762 = vmatprep.mubr.f32.mxu0 0.0
        %3763 = vmatmul.mubr.f32.gmra.mrb[0].mxu0 %v3613
        %v3764 = vpop.f32.mrb[0].mxu0
        %v3765 = vadd.f32 0.0, %v3764
        %v3766 = vpop.f32.mrb[0].mxu0
        %3767 = vmatprep.mubr.f32.mxu0 0.0
        %3768 = vmatmul.mubr.f32.gmra.mrb[0].mxu0 %v3615
        %v3769 = vpop.f32.mrb[0].mxu0
        %v3770 = vadd.f32 0.0, %v3769
        %v3771 = vpop.f32.mrb[0].mxu0
        %3772 = vmatprep.mubr.f32.mxu0 0.0
        %3773 = vmatmul.mubr.f32.gmra.mrb[0].mxu0 %v3617
        %v3774 = vpop.f32.mrb[0].mxu0
        %v3775 = vadd.f32 0.0, %v3774
        %v3776 = vpop.f32.mrb[0].mxu0
        %3777 = vmatprep.mubr.f32.mxu0 0.0
        %3778 = vmatmul.mubr.f32.gmra.mrb[0].mxu0 %v3619
        %v3779 = vpop.f32.mrb[0].mxu0
        %v3780 = vadd.f32 0.0, %v3779
        %v3781 = vpop.f32.mrb[0].mxu0
        %3782 = vmatprep.mubr.f32.mxu0 0.0
        %3783 = vmatmul.mubr.f32.gmra.mrb[0].mxu0 %v3621
        %v3784 = vpop.f32.mrb[0].mxu0
        %v3785 = vadd.f32 0.0, %v3784
        %v3786 = vpop.f32.mrb[0].mxu0
        %3787 = vmatprep.mubr.f32.mxu0 0.0
        %3788 = vmatmul.mubr.f32.gmra.mrb[0].mxu0 %v3623
        %v3789 = vpop.f32.mrb[0].mxu0
        %v3790 = vadd.f32 0.0, %v3789
        %v3791 = vpop.f32.mrb[0].mxu0
        %3792 = vmatprep.mubr.f32.mxu0 0.0
        %3793 = vmatmul.mubr.f32.gmra.mrb[0].mxu0 %v3625
        %v3794 = vpop.f32.mrb[0].mxu0
        %v3795 = vadd.f32 0.0, %v3794
        %v3796 = vpop.f32.mrb[0].mxu0
        %3797 = vmatprep.mubr.f32.mxu0 0.0
        %3798 = vmatmul.mubr.f32.gmra.mrb[0].mxu0 %v3627
        %v3799 = vpop.f32.mrb[0].mxu0
        %v3800 = vadd.f32 0.0, %v3799
        %v3801 = vpop.f32.mrb[0].mxu0
        %3802 = vmatprep.mubr.f32.mxu0 0.0
        %3803 = vmatmul.mubr.f32.gmra.mrb[0].mxu0 %v3629
        %v3804 = vpop.f32.mrb[0].mxu0
        %v3805 = vadd.f32 0.0, %v3804
        %v3806 = vpop.f32.mrb[0].mxu0
        %3807 = vdwg.mxu0
        %3824 = vrot.lane.b32.xlu0 %v2363, 64
        %v3825 = vpop.permute.xlu0 %3824
        %3826 = vrot.lane.b32.xlu0 %v2369, 64
        %v3827 = vpop.permute.xlu0 %3826
        %3828 = vrot.lane.b32.xlu0 %v2375, 64
        %v3829 = vpop.permute.xlu0 %3828
        %3830 = vrot.lane.b32.xlu0 %v2381, 64
        %v3831 = vpop.permute.xlu0 %3830
        %3832 = vrot.lane.b32.xlu0 %v2387, 64
        %v3833 = vpop.permute.xlu0 %3832
        %3834 = vrot.lane.b32.xlu0 %v2393, 64
        %v3835 = vpop.permute.xlu0 %3834
        %3836 = vrot.lane.b32.xlu0 %v2399, 64
        %v3837 = vpop.permute.xlu0 %3836
        %3838 = vrot.lane.b32.xlu0 %v2405, 64
        %v3839 = vpop.permute.xlu0 %3838
        %3840 = vrot.lane.b32.xlu0 %v2411, 64
        %v3841 = vpop.permute.xlu0 %3840
        %3842 = vrot.lane.b32.xlu0 %v2417, 64
        %v3843 = vpop.permute.xlu0 %3842
        %3844 = vrot.lane.b32.xlu0 %v2423, 64
        %v3845 = vpop.permute.xlu0 %3844
        %3846 = vrot.lane.b32.xlu0 %v2429, 64
        %v3847 = vpop.permute.xlu0 %3846
        %3848 = vrot.lane.b32.xlu0 %v2435, 64
        %v3849 = vpop.permute.xlu0 %3848
        %3850 = vrot.lane.b32.xlu0 %v2441, 64
        %v3851 = vpop.permute.xlu0 %3850
        %3852 = vrot.lane.b32.xlu0 %v2447, 64
        %v3853 = vpop.permute.xlu0 %3852
        %3854 = vrot.lane.b32.xlu0 %v2453, 64
        %v3855 = vpop.permute.xlu0 %3854
        %v3856 = vsel %vm2827, %v2363, 0
        %v3858 = vsel %vm2827, %v2369, 0
        %v3860 = vsel %vm2827, %v2375, 0
        %v3862 = vsel %vm2827, %v2381, 0
        %v3864 = vsel %vm2827, %v2387, 0
        %v3866 = vsel %vm2827, %v2393, 0
        %v3868 = vsel %vm2827, %v2399, 0
        %v3870 = vsel %vm2827, %v2405, 0
        %v3872 = vsel %vm2827, %v2411, 0
        %v3874 = vsel %vm2827, %v2417, 0
        %v3876 = vsel %vm2827, %v2423, 0
        %v3878 = vsel %vm2827, %v2429, 0
        %v3880 = vsel %vm2827, %v2435, 0
        %v3882 = vsel %vm2827, %v2441, 0
        %v3884 = vsel %vm2827, %v2447, 0
        %v3886 = vsel %vm2827, %v2453, 0
        %v3888 = vsel %vm2827, %v3825, 0
        %v3890 = vsel %vm2827, %v3827, 0
        %v3892 = vsel %vm2827, %v3829, 0
        %v3894 = vsel %vm2827, %v3831, 0
        %v3896 = vsel %vm2827, %v3833, 0
        %v3898 = vsel %vm2827, %v3835, 0
        %v3900 = vsel %vm2827, %v3837, 0
        %v3902 = vsel %vm2827, %v3839, 0
        %v3904 = vsel %vm2827, %v3841, 0
        %v3906 = vsel %vm2827, %v3843, 0
        %v3908 = vsel %vm2827, %v3845, 0
        %v3910 = vsel %vm2827, %v3847, 0
        %v3912 = vsel %vm2827, %v3849, 0
        %v3914 = vsel %vm2827, %v3851, 0
        %v3916 = vsel %vm2827, %v3853, 0
        %v3918 = vsel %vm2827, %v3855, 0
        %3920 = vmatprep.subr.mxu0 0.0
        %3921 = vmatpush1.xpose.msra.mxu0 %v3888
        %3922 = vmatprep.subr.mxu0 0.0
        %3923 = vmatpush1.xpose.msra.mxu0 %v3890
        %3924 = vmatprep.subr.mxu0 0.0
        %3925 = vmatpush1.xpose.msra.mxu0 %v3892
        %3926 = vmatprep.subr.mxu0 0.0
        %3927 = vmatpush1.xpose.msra.mxu0 %v3894
        %3928 = vmatprep.subr.mxu0 0.0
        %3929 = vmatpush1.xpose.msra.mxu0 %v3896
        %3930 = vmatprep.subr.mxu0 0.0
        %3931 = vmatpush1.xpose.msra.mxu0 %v3898
        %3932 = vmatprep.subr.mxu0 0.0
        %3933 = vmatpush1.xpose.msra.mxu0 %v3900
        %3934 = vmatprep.subr.mxu0 0.0
        %3935 = vmatpush1.xpose.msra.mxu0 %v3902
        %3936 = vmatprep.subr.mxu0 0.0
        %3937 = vmatpush1.xpose.msra.mxu0 %v3904
        %3938 = vmatprep.subr.mxu0 0.0
        %3939 = vmatpush1.xpose.msra.mxu0 %v3906
        %3940 = vmatprep.subr.mxu0 0.0
        %3941 = vmatpush1.xpose.msra.mxu0 %v3908
        %3942 = vmatprep.subr.mxu0 0.0
        %3943 = vmatpush1.xpose.msra.mxu0 %v3910
        %3944 = vmatprep.subr.mxu0 0.0
        %3945 = vmatpush1.xpose.msra.mxu0 %v3912
        %3946 = vmatprep.subr.mxu0 0.0
        %3947 = vmatpush1.xpose.msra.mxu0 %v3914
        %3948 = vmatprep.subr.mxu0 0.0
        %3949 = vmatpush1.xpose.msra.mxu0 %v3916
        %3950 = vmatprep.subr.mxu0 0.0
        %3951 = vmatpush1.xpose.msra.mxu0 %v3918
        %3952 = vmatprep.subr.mxu0 0.0
        %3953 = vmatpush1.xpose.msra.mxu0 0.0
        %3954 = vmatprep.subr.mxu0 0.0
        %3955 = vmatpush1.xpose.msra.mxu0 0.0
        %3956 = vmatprep.subr.mxu0 0.0
        %3957 = vmatpush1.xpose.msra.mxu0 0.0
        %3958 = vmatprep.subr.mxu0 0.0
        %3959 = vmatpush1.xpose.msra.mxu0 0.0
        %3960 = vmatprep.subr.mxu0 0.0
        %3961 = vmatpush1.xpose.msra.mxu0 0.0
        %3962 = vmatprep.subr.mxu0 0.0
        %3963 = vmatpush1.xpose.msra.mxu0 0.0
        %3964 = vmatprep.subr.mxu0 0.0
        %3965 = vmatpush1.xpose.msra.mxu0 0.0
        %3966 = vmatprep.subr.mxu0 0.0
        %3967 = vmatpush1.xpose.msra.mxu0 0.0
        %3968 = vmatprep.subr.mxu0 0.0
        %3969 = vmatpush1.xpose.msra.mxu0 0.0
        %3970 = vmatprep.subr.mxu0 0.0
        %3971 = vmatpush1.xpose.msra.mxu0 0.0
        %3972 = vmatprep.subr.mxu0 0.0
        %3973 = vmatpush1.xpose.msra.mxu0 0.0
        %3974 = vmatprep.subr.mxu0 0.0
        %3975 = vmatpush1.xpose.msra.mxu0 0.0
        %3976 = vmatprep.subr.mxu0 0.0
        %3977 = vmatpush1.xpose.msra.mxu0 0.0
        %3978 = vmatprep.subr.mxu0 0.0
        %3979 = vmatpush1.xpose.msra.mxu0 0.0
        %3980 = vmatprep.subr.mxu0 0.0
        %3981 = vmatpush1.xpose.msra.mxu0 0.0
        %3982 = vmatprep.subr.mxu0 0.0
        %3983 = vmatpush1.xpose.msra.mxu0 0.0
        %3984 = vmatprep.mubr.f32.mxu0 0.0
        %3985 = vmatmul.mubr.f32.gmra.mrb[0].mxu0 %v3856
        %v3986 = vpop.f32.mrb[0].mxu0
        %v3987 = vadd.f32 0.0, %v3986
        %v3988 = vpop.f32.mrb[0].mxu0
        %3989 = vmatprep.mubr.f32.mxu0 0.0
        %3990 = vmatmul.mubr.f32.gmra.mrb[0].mxu0 %v3858
        %v3991 = vpop.f32.mrb[0].mxu0
        %v3992 = vadd.f32 0.0, %v3991
        %v3993 = vpop.f32.mrb[0].mxu0
        %3994 = vmatprep.mubr.f32.mxu0 0.0
        %3995 = vmatmul.mubr.f32.gmra.mrb[0].mxu0 %v3860
        %v3996 = vpop.f32.mrb[0].mxu0
        %v3997 = vadd.f32 0.0, %v3996
        %v3998 = vpop.f32.mrb[0].mxu0
        %3999 = vmatprep.mubr.f32.mxu0 0.0
        %4000 = vmatmul.mubr.f32.gmra.mrb[0].mxu0 %v3862
        %v4001 = vpop.f32.mrb[0].mxu0
        %v4002 = vadd.f32 0.0, %v4001
        %v4003 = vpop.f32.mrb[0].mxu0
        %4004 = vmatprep.mubr.f32.mxu0 0.0
        %4005 = vmatmul.mubr.f32.gmra.mrb[0].mxu0 %v3864
        %v4006 = vpop.f32.mrb[0].mxu0
        %v4007 = vadd.f32 0.0, %v4006
        %v4008 = vpop.f32.mrb[0].mxu0
        %4009 = vmatprep.mubr.f32.mxu0 0.0
        %4010 = vmatmul.mubr.f32.gmra.mrb[0].mxu0 %v3866
        %v4011 = vpop.f32.mrb[0].mxu0
        %v4012 = vadd.f32 0.0, %v4011
        %v4013 = vpop.f32.mrb[0].mxu0
        %4014 = vmatprep.mubr.f32.mxu0 0.0
        %4015 = vmatmul.mubr.f32.gmra.mrb[0].mxu0 %v3868
        %v4016 = vpop.f32.mrb[0].mxu0
        %v4017 = vadd.f32 0.0, %v4016
        %v4018 = vpop.f32.mrb[0].mxu0
        %4019 = vmatprep.mubr.f32.mxu0 0.0
        %4020 = vmatmul.mubr.f32.gmra.mrb[0].mxu0 %v3870
        %v4021 = vpop.f32.mrb[0].mxu0
        %v4022 = vadd.f32 0.0, %v4021
        %v4023 = vpop.f32.mrb[0].mxu0
        %4024 = vmatprep.mubr.f32.mxu0 0.0
        %4025 = vmatmul.mubr.f32.gmra.mrb[0].mxu0 %v3872
        %v4026 = vpop.f32.mrb[0].mxu0
        %v4027 = vadd.f32 0.0, %v4026
        %v4028 = vpop.f32.mrb[0].mxu0
        %4029 = vmatprep.mubr.f32.mxu0 0.0
        %4030 = vmatmul.mubr.f32.gmra.mrb[0].mxu0 %v3874
        %v4031 = vpop.f32.mrb[0].mxu0
        %v4032 = vadd.f32 0.0, %v4031
        %v4033 = vpop.f32.mrb[0].mxu0
        %4034 = vmatprep.mubr.f32.mxu0 0.0
        %4035 = vmatmul.mubr.f32.gmra.mrb[0].mxu0 %v3876
        %v4036 = vpop.f32.mrb[0].mxu0
        %v4037 = vadd.f32 0.0, %v4036
        %v4038 = vpop.f32.mrb[0].mxu0
        %4039 = vmatprep.mubr.f32.mxu0 0.0
        %4040 = vmatmul.mubr.f32.gmra.mrb[0].mxu0 %v3878
        %v4041 = vpop.f32.mrb[0].mxu0
        %v4042 = vadd.f32 0.0, %v4041
        %v4043 = vpop.f32.mrb[0].mxu0
        %4044 = vmatprep.mubr.f32.mxu0 0.0
        %4045 = vmatmul.mubr.f32.gmra.mrb[0].mxu0 %v3880
        %v4046 = vpop.f32.mrb[0].mxu0
        %v4047 = vadd.f32 0.0, %v4046
        %v4048 = vpop.f32.mrb[0].mxu0
        %4049 = vmatprep.mubr.f32.mxu0 0.0
        %4050 = vmatmul.mubr.f32.gmra.mrb[0].mxu0 %v3882
        %v4051 = vpop.f32.mrb[0].mxu0
        %v4052 = vadd.f32 0.0, %v4051
        %v4053 = vpop.f32.mrb[0].mxu0
        %4054 = vmatprep.mubr.f32.mxu0 0.0
        %4055 = vmatmul.mubr.f32.gmra.mrb[0].mxu0 %v3884
        %v4056 = vpop.f32.mrb[0].mxu0
        %v4057 = vadd.f32 0.0, %v4056
        %v4058 = vpop.f32.mrb[0].mxu0
        %4059 = vmatprep.mubr.f32.mxu0 0.0
        %4060 = vmatmul.mubr.f32.gmra.mrb[0].mxu0 %v3886
        %v4061 = vpop.f32.mrb[0].mxu0
        %v4062 = vadd.f32 0.0, %v4061
        %v4063 = vpop.f32.mrb[0].mxu0
        %4064 = vdwg.mxu0
        %4081 = vrot.lane.b32.xlu0 %v2685, 64
        %v4082 = vpop.permute.xlu0 %4081
        %4083 = vrot.lane.b32.xlu0 %v2691, 64
        %v4084 = vpop.permute.xlu0 %4083
        %4085 = vrot.lane.b32.xlu0 %v2697, 64
        %v4086 = vpop.permute.xlu0 %4085
        %4087 = vrot.lane.b32.xlu0 %v2703, 64
        %v4088 = vpop.permute.xlu0 %4087
        %4089 = vrot.lane.b32.xlu0 %v2709, 64
        %v4090 = vpop.permute.xlu0 %4089
        %4091 = vrot.lane.b32.xlu0 %v2715, 64
        %v4092 = vpop.permute.xlu0 %4091
        %4093 = vrot.lane.b32.xlu0 %v2721, 64
        %v4094 = vpop.permute.xlu0 %4093
        %4095 = vrot.lane.b32.xlu0 %v2727, 64
        %v4096 = vpop.permute.xlu0 %4095
        %4097 = vrot.lane.b32.xlu0 %v2733, 64
        %v4098 = vpop.permute.xlu0 %4097
        %4099 = vrot.lane.b32.xlu0 %v2739, 64
        %v4100 = vpop.permute.xlu0 %4099
        %4101 = vrot.lane.b32.xlu0 %v2745, 64
        %v4102 = vpop.permute.xlu0 %4101
        %4103 = vrot.lane.b32.xlu0 %v2751, 64
        %v4104 = vpop.permute.xlu0 %4103
        %4105 = vrot.lane.b32.xlu0 %v2757, 64
        %v4106 = vpop.permute.xlu0 %4105
        %4107 = vrot.lane.b32.xlu0 %v2763, 64
        %v4108 = vpop.permute.xlu0 %4107
        %4109 = vrot.lane.b32.xlu0 %v2769, 64
        %v4110 = vpop.permute.xlu0 %4109
        %4111 = vrot.lane.b32.xlu0 %v2775, 64
        %v4112 = vpop.permute.xlu0 %4111
        %v4113 = vsel %vm2827, %v2685, 0
        %v4115 = vsel %vm2827, %v2691, 0
        %v4117 = vsel %vm2827, %v2697, 0
        %v4119 = vsel %vm2827, %v2703, 0
        %v4121 = vsel %vm2827, %v2709, 0
        %v4123 = vsel %vm2827, %v2715, 0
        %v4125 = vsel %vm2827, %v2721, 0
        %v4127 = vsel %vm2827, %v2727, 0
        %v4129 = vsel %vm2827, %v2733, 0
        %v4131 = vsel %vm2827, %v2739, 0
        %v4133 = vsel %vm2827, %v2745, 0
        %v4135 = vsel %vm2827, %v2751, 0
        %v4137 = vsel %vm2827, %v2757, 0
        %v4139 = vsel %vm2827, %v2763, 0
        %v4141 = vsel %vm2827, %v2769, 0
        %v4143 = vsel %vm2827, %v2775, 0
        %v4145 = vsel %vm2827, %v4082, 0
        %v4147 = vsel %vm2827, %v4084, 0
        %v4149 = vsel %vm2827, %v4086, 0
        %v4151 = vsel %vm2827, %v4088, 0
        %v4153 = vsel %vm2827, %v4090, 0
        %v4155 = vsel %vm2827, %v4092, 0
        %v4157 = vsel %vm2827, %v4094, 0
        %v4159 = vsel %vm2827, %v4096, 0
        %v4161 = vsel %vm2827, %v4098, 0
        %v4163 = vsel %vm2827, %v4100, 0
        %v4165 = vsel %vm2827, %v4102, 0
        %v4167 = vsel %vm2827, %v4104, 0
        %v4169 = vsel %vm2827, %v4106, 0
        %v4171 = vsel %vm2827, %v4108, 0
        %v4173 = vsel %vm2827, %v4110, 0
        %v4175 = vsel %vm2827, %v4112, 0
        %4177 = vmatprep.subr.mxu0 0.0
        %4178 = vmatpush1.xpose.msra.mxu0 %v4145
        %4179 = vmatprep.subr.mxu0 0.0
        %4180 = vmatpush1.xpose.msra.mxu0 %v4147
        %4181 = vmatprep.subr.mxu0 0.0
        %4182 = vmatpush1.xpose.msra.mxu0 %v4149
        %4183 = vmatprep.subr.mxu0 0.0
        %4184 = vmatpush1.xpose.msra.mxu0 %v4151
        %4185 = vmatprep.subr.mxu0 0.0
        %4186 = vmatpush1.xpose.msra.mxu0 %v4153
        %4187 = vmatprep.subr.mxu0 0.0
        %4188 = vmatpush1.xpose.msra.mxu0 %v4155
        %4189 = vmatprep.subr.mxu0 0.0
        %4190 = vmatpush1.xpose.msra.mxu0 %v4157
        %4191 = vmatprep.subr.mxu0 0.0
        %4192 = vmatpush1.xpose.msra.mxu0 %v4159
        %4193 = vmatprep.subr.mxu0 0.0
        %4194 = vmatpush1.xpose.msra.mxu0 %v4161
        %4195 = vmatprep.subr.mxu0 0.0
        %4196 = vmatpush1.xpose.msra.mxu0 %v4163
        %4197 = vmatprep.subr.mxu0 0.0
        %4198 = vmatpush1.xpose.msra.mxu0 %v4165
        %4199 = vmatprep.subr.mxu0 0.0
        %4200 = vmatpush1.xpose.msra.mxu0 %v4167
        %4201 = vmatprep.subr.mxu0 0.0
        %4202 = vmatpush1.xpose.msra.mxu0 %v4169
        %4203 = vmatprep.subr.mxu0 0.0
        %4204 = vmatpush1.xpose.msra.mxu0 %v4171
        %4205 = vmatprep.subr.mxu0 0.0
        %4206 = vmatpush1.xpose.msra.mxu0 %v4173
        %4207 = vmatprep.subr.mxu0 0.0
        %4208 = vmatpush1.xpose.msra.mxu0 %v4175
        %4209 = vmatprep.subr.mxu0 0.0
        %4210 = vmatpush1.xpose.msra.mxu0 0.0
        %4211 = vmatprep.subr.mxu0 0.0
        %4212 = vmatpush1.xpose.msra.mxu0 0.0
        %4213 = vmatprep.subr.mxu0 0.0
        %4214 = vmatpush1.xpose.msra.mxu0 0.0
        %4215 = vmatprep.subr.mxu0 0.0
        %4216 = vmatpush1.xpose.msra.mxu0 0.0
        %4217 = vmatprep.subr.mxu0 0.0
        %4218 = vmatpush1.xpose.msra.mxu0 0.0
        %4219 = vmatprep.subr.mxu0 0.0
        %4220 = vmatpush1.xpose.msra.mxu0 0.0
        %4221 = vmatprep.subr.mxu0 0.0
        %4222 = vmatpush1.xpose.msra.mxu0 0.0
        %4223 = vmatprep.subr.mxu0 0.0
        %4224 = vmatpush1.xpose.msra.mxu0 0.0
        %4225 = vmatprep.subr.mxu0 0.0
        %4226 = vmatpush1.xpose.msra.mxu0 0.0
        %4227 = vmatprep.subr.mxu0 0.0
        %4228 = vmatpush1.xpose.msra.mxu0 0.0
        %4229 = vmatprep.subr.mxu0 0.0
        %4230 = vmatpush1.xpose.msra.mxu0 0.0
        %4231 = vmatprep.subr.mxu0 0.0
        %4232 = vmatpush1.xpose.msra.mxu0 0.0
        %4233 = vmatprep.subr.mxu0 0.0
        %4234 = vmatpush1.xpose.msra.mxu0 0.0
        %4235 = vmatprep.subr.mxu0 0.0
        %4236 = vmatpush1.xpose.msra.mxu0 0.0
        %4237 = vmatprep.subr.mxu0 0.0
        %4238 = vmatpush1.xpose.msra.mxu0 0.0
        %4239 = vmatprep.subr.mxu0 0.0
        %4240 = vmatpush1.xpose.msra.mxu0 0.0
        %4241 = vmatprep.mubr.f32.mxu0 0.0
        %4242 = vmatmul.mubr.f32.gmra.mrb[0].mxu0 %v4113
        %v4243 = vpop.f32.mrb[0].mxu0
        %v4244 = vadd.f32 0.0, %v4243
        %v4245 = vpop.f32.mrb[0].mxu0
        %4246 = vmatprep.mubr.f32.mxu0 0.0
        %4247 = vmatmul.mubr.f32.gmra.mrb[0].mxu0 %v4115
        %v4248 = vpop.f32.mrb[0].mxu0
        %v4249 = vadd.f32 0.0, %v4248
        %v4250 = vpop.f32.mrb[0].mxu0
        %4251 = vmatprep.mubr.f32.mxu0 0.0
        %4252 = vmatmul.mubr.f32.gmra.mrb[0].mxu0 %v4117
        %v4253 = vpop.f32.mrb[0].mxu0
        %v4254 = vadd.f32 0.0, %v4253
        %v4255 = vpop.f32.mrb[0].mxu0
        %4256 = vmatprep.mubr.f32.mxu0 0.0
        %4257 = vmatmul.mubr.f32.gmra.mrb[0].mxu0 %v4119
        %v4258 = vpop.f32.mrb[0].mxu0
        %v4259 = vadd.f32 0.0, %v4258
        %v4260 = vpop.f32.mrb[0].mxu0
        %4261 = vmatprep.mubr.f32.mxu0 0.0
        %4262 = vmatmul.mubr.f32.gmra.mrb[0].mxu0 %v4121
        %v4263 = vpop.f32.mrb[0].mxu0
        %v4264 = vadd.f32 0.0, %v4263
        %v4265 = vpop.f32.mrb[0].mxu0
        %4266 = vmatprep.mubr.f32.mxu0 0.0
        %4267 = vmatmul.mubr.f32.gmra.mrb[0].mxu0 %v4123
        %v4268 = vpop.f32.mrb[0].mxu0
        %v4269 = vadd.f32 0.0, %v4268
        %v4270 = vpop.f32.mrb[0].mxu0
        %4271 = vmatprep.mubr.f32.mxu0 0.0
        %4272 = vmatmul.mubr.f32.gmra.mrb[0].mxu0 %v4125
        %v4273 = vpop.f32.mrb[0].mxu0
        %v4274 = vadd.f32 0.0, %v4273
        %v4275 = vpop.f32.mrb[0].mxu0
        %4276 = vmatprep.mubr.f32.mxu0 0.0
        %4277 = vmatmul.mubr.f32.gmra.mrb[0].mxu0 %v4127
        %v4278 = vpop.f32.mrb[0].mxu0
        %v4279 = vadd.f32 0.0, %v4278
        %v4280 = vpop.f32.mrb[0].mxu0
        %4281 = vmatprep.mubr.f32.mxu0 0.0
        %4282 = vmatmul.mubr.f32.gmra.mrb[0].mxu0 %v4129
        %v4283 = vpop.f32.mrb[0].mxu0
        %v4284 = vadd.f32 0.0, %v4283
        %v4285 = vpop.f32.mrb[0].mxu0
        %4286 = vmatprep.mubr.f32.mxu0 0.0
        %4287 = vmatmul.mubr.f32.gmra.mrb[0].mxu0 %v4131
        %v4288 = vpop.f32.mrb[0].mxu0
        %v4289 = vadd.f32 0.0, %v4288
        %v4290 = vpop.f32.mrb[0].mxu0
        %4291 = vmatprep.mubr.f32.mxu0 0.0
        %4292 = vmatmul.mubr.f32.gmra.mrb[0].mxu0 %v4133
        %v4293 = vpop.f32.mrb[0].mxu0
        %v4294 = vadd.f32 0.0, %v4293
        %v4295 = vpop.f32.mrb[0].mxu0
        %4296 = vmatprep.mubr.f32.mxu0 0.0
        %4297 = vmatmul.mubr.f32.gmra.mrb[0].mxu0 %v4135
        %v4298 = vpop.f32.mrb[0].mxu0
        %v4299 = vadd.f32 0.0, %v4298
        %v4300 = vpop.f32.mrb[0].mxu0
        %4301 = vmatprep.mubr.f32.mxu0 0.0
        %4302 = vmatmul.mubr.f32.gmra.mrb[0].mxu0 %v4137
        %v4303 = vpop.f32.mrb[0].mxu0
        %v4304 = vadd.f32 0.0, %v4303
        %v4305 = vpop.f32.mrb[0].mxu0
        %4306 = vmatprep.mubr.f32.mxu0 0.0
        %4307 = vmatmul.mubr.f32.gmra.mrb[0].mxu0 %v4139
        %v4308 = vpop.f32.mrb[0].mxu0
        %v4309 = vadd.f32 0.0, %v4308
        %v4310 = vpop.f32.mrb[0].mxu0
        %4311 = vmatprep.mubr.f32.mxu0 0.0
        %4312 = vmatmul.mubr.f32.gmra.mrb[0].mxu0 %v4141
        %v4313 = vpop.f32.mrb[0].mxu0
        %v4314 = vadd.f32 0.0, %v4313
        %v4315 = vpop.f32.mrb[0].mxu0
        %4316 = vmatprep.mubr.f32.mxu0 0.0
        %4317 = vmatmul.mubr.f32.gmra.mrb[0].mxu0 %v4143
        %v4318 = vpop.f32.mrb[0].mxu0
        %v4319 = vadd.f32 0.0, %v4318
        %v4320 = vpop.f32.mrb[0].mxu0
        %4321 = vdwg.mxu0
        %v4322 = vmul.f32 %v2959, 0.125
        %v4323 = vmul.f32 %v2964, 0.125
        %v4324 = vmul.f32 %v2969, 0.125
        %v4325 = vmul.f32 %v2974, 0.125
        %v4326 = vmul.f32 %v2979, 0.125
        %v4327 = vmul.f32 %v2984, 0.125
        %v4328 = vmul.f32 %v2989, 0.125
        %v4329 = vmul.f32 %v2994, 0.125
        %v4330 = vmul.f32 %v2999, 0.125
        %v4331 = vmul.f32 %v3004, 0.125
        %v4332 = vmul.f32 %v3009, 0.125
        %v4333 = vmul.f32 %v3014, 0.125
        %v4334 = vmul.f32 %v3019, 0.125
        %v4335 = vmul.f32 %v3024, 0.125
        %v4336 = vmul.f32 %v3029, 0.125
        %v4337 = vmul.f32 %v3034, 0.125
        %v4338 = vmul.f32 %v3216, 0.125
        %v4339 = vmul.f32 %v3221, 0.125
        %v4340 = vmul.f32 %v3226, 0.125
        %v4341 = vmul.f32 %v3231, 0.125
        %v4342 = vmul.f32 %v3236, 0.125
        %v4343 = vmul.f32 %v3241, 0.125
        %v4344 = vmul.f32 %v3246, 0.125
        %v4345 = vmul.f32 %v3251, 0.125
        %v4346 = vmul.f32 %v3256, 0.125
        %v4347 = vmul.f32 %v3261, 0.125
        %v4348 = vmul.f32 %v3266, 0.125
        %v4349 = vmul.f32 %v3271, 0.125
        %v4350 = vmul.f32 %v3276, 0.125
        %v4351 = vmul.f32 %v3281, 0.125
        %v4352 = vmul.f32 %v3286, 0.125
        %v4353 = vmul.f32 %v3291, 0.125
        %v4354 = vmul.f32 %v3473, 0.125
        %v4355 = vmul.f32 %v3478, 0.125
        %v4356 = vmul.f32 %v3483, 0.125
        %v4357 = vmul.f32 %v3488, 0.125
        %v4358 = vmul.f32 %v3493, 0.125
        %v4359 = vmul.f32 %v3498, 0.125
        %v4360 = vmul.f32 %v3503, 0.125
        %v4361 = vmul.f32 %v3508, 0.125
        %v4362 = vmul.f32 %v3513, 0.125
        %v4363 = vmul.f32 %v3518, 0.125
        %v4364 = vmul.f32 %v3523, 0.125
        %v4365 = vmul.f32 %v3528, 0.125
        %v4366 = vmul.f32 %v3533, 0.125
        %v4367 = vmul.f32 %v3538, 0.125
        %v4368 = vmul.f32 %v3543, 0.125
        %v4369 = vmul.f32 %v3548, 0.125
        %v4370 = vmul.f32 %v3730, 0.125
        %v4371 = vmul.f32 %v3735, 0.125
        %v4372 = vmul.f32 %v3740, 0.125
        %v4373 = vmul.f32 %v3745, 0.125
        %v4374 = vmul.f32 %v3750, 0.125
        %v4375 = vmul.f32 %v3755, 0.125
        %v4376 = vmul.f32 %v3760, 0.125
        %v4377 = vmul.f32 %v3765, 0.125
        %v4378 = vmul.f32 %v3770, 0.125
        %v4379 = vmul.f32 %v3775, 0.125
        %v4380 = vmul.f32 %v3780, 0.125
        %v4381 = vmul.f32 %v3785, 0.125
        %v4382 = vmul.f32 %v3790, 0.125
        %v4383 = vmul.f32 %v3795, 0.125
        %v4384 = vmul.f32 %v3800, 0.125
        %v4385 = vmul.f32 %v3805, 0.125
        %v4386 = vmul.f32 %v3987, 0.125
        %v4387 = vmul.f32 %v3992, 0.125
        %v4388 = vmul.f32 %v3997, 0.125
        %v4389 = vmul.f32 %v4002, 0.125
        %v4390 = vmul.f32 %v4007, 0.125
        %v4391 = vmul.f32 %v4012, 0.125
        %v4392 = vmul.f32 %v4017, 0.125
        %v4393 = vmul.f32 %v4022, 0.125
        %v4394 = vmul.f32 %v4027, 0.125
        %v4395 = vmul.f32 %v4032, 0.125
        %v4396 = vmul.f32 %v4037, 0.125
        %v4397 = vmul.f32 %v4042, 0.125
        %v4398 = vmul.f32 %v4047, 0.125
        %v4399 = vmul.f32 %v4052, 0.125
        %v4400 = vmul.f32 %v4057, 0.125
        %v4401 = vmul.f32 %v4062, 0.125
        %v4402 = vmul.f32 %v4244, 0.125
        %v4403 = vmul.f32 %v4249, 0.125
        %v4404 = vmul.f32 %v4254, 0.125
        %v4405 = vmul.f32 %v4259, 0.125
        %v4406 = vmul.f32 %v4264, 0.125
        %v4407 = vmul.f32 %v4269, 0.125
        %v4408 = vmul.f32 %v4274, 0.125
        %v4409 = vmul.f32 %v4279, 0.125
        %v4410 = vmul.f32 %v4284, 0.125
        %v4411 = vmul.f32 %v4289, 0.125
        %v4412 = vmul.f32 %v4294, 0.125
        %v4413 = vmul.f32 %v4299, 0.125
        %v4414 = vmul.f32 %v4304, 0.125
        %v4415 = vmul.f32 %v4309, 0.125
        %v4416 = vmul.f32 %v4314, 0.125
        %v4417 = vmul.f32 %v4319, 0.125
        %v4418 = vld [vmem:[%s1] sm:$0xff]
        %v4419 = vld [vmem:[%s1 + $0x8] sm:$0xff]
        %v4420 = vld [vmem:[%s1 + $0x10] sm:$0xff]
        %v4421 = vld [vmem:[%s1 + $0x18] sm:$0xff]
        %v4422 = vld [vmem:[%s1 + $0x20] sm:$0xff]
        %v4423 = vld [vmem:[%s1 + $0x28] sm:$0xff]
        %v4424 = vld [vmem:[%s1 + $0x30] sm:$0xff]
        %v4425 = vld [vmem:[%s1 + $0x38] sm:$0xff]
        %v4426 = vld [vmem:[%s1 + $0x40] sm:$0xff]
        %v4427 = vld [vmem:[%s1 + $0x48] sm:$0xff]
        %v4428 = vld [vmem:[%s1 + $0x50] sm:$0xff]
        %v4429 = vld [vmem:[%s1 + $0x58] sm:$0xff]
        %v4430 = vld [vmem:[%s1 + $0x60] sm:$0xff]
        %v4431 = vld [vmem:[%s1 + $0x68] sm:$0xff]
        %v4432 = vld [vmem:[%s1 + $0x70] sm:$0xff]
        %v4433 = vld [vmem:[%s1 + $0x78] sm:$0xff]
        %v4434 = vadd.f32 %v4322, %v4418
        %v4435 = vadd.f32 %v4323, %v4419
        %v4436 = vadd.f32 %v4324, %v4420
        %v4437 = vadd.f32 %v4325, %v4421
        %v4438 = vadd.f32 %v4326, %v4422
        %v4439 = vadd.f32 %v4327, %v4423
        %v4440 = vadd.f32 %v4328, %v4424
        %v4441 = vadd.f32 %v4329, %v4425
        %v4442 = vadd.f32 %v4330, %v4426
        %v4443 = vadd.f32 %v4331, %v4427
        %v4444 = vadd.f32 %v4332, %v4428
        %v4445 = vadd.f32 %v4333, %v4429
        %v4446 = vadd.f32 %v4334, %v4430
        %v4447 = vadd.f32 %v4335, %v4431
        %v4448 = vadd.f32 %v4336, %v4432
        %v4449 = vadd.f32 %v4337, %v4433
        %v4450 = vadd.f32 %v4338, %v4418
        %v4451 = vadd.f32 %v4339, %v4419
        %v4452 = vadd.f32 %v4340, %v4420
        %v4453 = vadd.f32 %v4341, %v4421
        %v4454 = vadd.f32 %v4342, %v4422
        %v4455 = vadd.f32 %v4343, %v4423
        %v4456 = vadd.f32 %v4344, %v4424
        %v4457 = vadd.f32 %v4345, %v4425
        %v4458 = vadd.f32 %v4346, %v4426
        %v4459 = vadd.f32 %v4347, %v4427
        %v4460 = vadd.f32 %v4348, %v4428
        %v4461 = vadd.f32 %v4349, %v4429
        %v4462 = vadd.f32 %v4350, %v4430
        %v4463 = vadd.f32 %v4351, %v4431
        %v4464 = vadd.f32 %v4352, %v4432
        %v4465 = vadd.f32 %v4353, %v4433
        %v4466 = vadd.f32 %v4354, %v4418
        %v4467 = vadd.f32 %v4355, %v4419
        %v4468 = vadd.f32 %v4356, %v4420
        %v4469 = vadd.f32 %v4357, %v4421
        %v4470 = vadd.f32 %v4358, %v4422
        %v4471 = vadd.f32 %v4359, %v4423
        %v4472 = vadd.f32 %v4360, %v4424
        %v4473 = vadd.f32 %v4361, %v4425
        %v4474 = vadd.f32 %v4362, %v4426
        %v4475 = vadd.f32 %v4363, %v4427
        %v4476 = vadd.f32 %v4364, %v4428
        %v4477 = vadd.f32 %v4365, %v4429
        %v4478 = vadd.f32 %v4366, %v4430
        %v4479 = vadd.f32 %v4367, %v4431
        %v4480 = vadd.f32 %v4368, %v4432
        %v4481 = vadd.f32 %v4369, %v4433
        %v4482 = vadd.f32 %v4370, %v4418
        %v4483 = vadd.f32 %v4371, %v4419
        %v4484 = vadd.f32 %v4372, %v4420
        %v4485 = vadd.f32 %v4373, %v4421
        %v4486 = vadd.f32 %v4374, %v4422
        %v4487 = vadd.f32 %v4375, %v4423
        %v4488 = vadd.f32 %v4376, %v4424
        %v4489 = vadd.f32 %v4377, %v4425
        %v4490 = vadd.f32 %v4378, %v4426
        %v4491 = vadd.f32 %v4379, %v4427
        %v4492 = vadd.f32 %v4380, %v4428
        %v4493 = vadd.f32 %v4381, %v4429
        %v4494 = vadd.f32 %v4382, %v4430
        %v4495 = vadd.f32 %v4383, %v4431
        %v4496 = vadd.f32 %v4384, %v4432
        %v4497 = vadd.f32 %v4385, %v4433
        %v4498 = vadd.f32 %v4386, %v4418
        %v4499 = vadd.f32 %v4387, %v4419
        %v4500 = vadd.f32 %v4388, %v4420
        %v4501 = vadd.f32 %v4389, %v4421
        %v4502 = vadd.f32 %v4390, %v4422
        %v4503 = vadd.f32 %v4391, %v4423
        %v4504 = vadd.f32 %v4392, %v4424
        %v4505 = vadd.f32 %v4393, %v4425
        %v4506 = vadd.f32 %v4394, %v4426
        %v4507 = vadd.f32 %v4395, %v4427
        %v4508 = vadd.f32 %v4396, %v4428
        %v4509 = vadd.f32 %v4397, %v4429
        %v4510 = vadd.f32 %v4398, %v4430
        %v4511 = vadd.f32 %v4399, %v4431
        %v4512 = vadd.f32 %v4400, %v4432
        %v4513 = vadd.f32 %v4401, %v4433
        %v4514 = vadd.f32 %v4402, %v4418
        %v4515 = vadd.f32 %v4403, %v4419
        %v4516 = vadd.f32 %v4404, %v4420
        %v4517 = vadd.f32 %v4405, %v4421
        %v4518 = vadd.f32 %v4406, %v4422
        %v4519 = vadd.f32 %v4407, %v4423
        %v4520 = vadd.f32 %v4408, %v4424
        %v4521 = vadd.f32 %v4409, %v4425
        %v4522 = vadd.f32 %v4410, %v4426
        %v4523 = vadd.f32 %v4411, %v4427
        %v4524 = vadd.f32 %v4412, %v4428
        %v4525 = vadd.f32 %v4413, %v4429
        %v4526 = vadd.f32 %v4414, %v4430
        %v4527 = vadd.f32 %v4415, %v4431
        %v4528 = vadd.f32 %v4416, %v4432
        %v4529 = vadd.f32 %v4417, %v4433
        %4530 = vmax.xlane.f32.xlu0 %v4434
        %v4531 = vpop.xlane.xlu0 %4530
        %4532 = vmax.xlane.f32.xlu0 %v4435
        %v4533 = vpop.xlane.xlu0 %4532
        %4534 = vmax.xlane.f32.xlu0 %v4436
        %v4535 = vpop.xlane.xlu0 %4534
        %4536 = vmax.xlane.f32.xlu0 %v4437
        %v4537 = vpop.xlane.xlu0 %4536
        %4538 = vmax.xlane.f32.xlu0 %v4438
        %v4539 = vpop.xlane.xlu0 %4538
        %4540 = vmax.xlane.f32.xlu0 %v4439
        %v4541 = vpop.xlane.xlu0 %4540
        %4542 = vmax.xlane.f32.xlu0 %v4440
        %v4543 = vpop.xlane.xlu0 %4542
        %4544 = vmax.xlane.f32.xlu0 %v4441
        %v4545 = vpop.xlane.xlu0 %4544
        %4546 = vmax.xlane.f32.xlu0 %v4442
        %v4547 = vpop.xlane.xlu0 %4546
        %4548 = vmax.xlane.f32.xlu0 %v4443
        %v4549 = vpop.xlane.xlu0 %4548
        %4550 = vmax.xlane.f32.xlu0 %v4444
        %v4551 = vpop.xlane.xlu0 %4550
        %4552 = vmax.xlane.f32.xlu0 %v4445
        %v4553 = vpop.xlane.xlu0 %4552
        %4554 = vmax.xlane.f32.xlu0 %v4446
        %v4555 = vpop.xlane.xlu0 %4554
        %4556 = vmax.xlane.f32.xlu0 %v4447
        %v4557 = vpop.xlane.xlu0 %4556
        %4558 = vmax.xlane.f32.xlu0 %v4448
        %v4559 = vpop.xlane.xlu0 %4558
        %4560 = vmax.xlane.f32.xlu0 %v4449
        %v4561 = vpop.xlane.xlu0 %4560
        %4562 = vmax.xlane.f32.xlu0 %v4450
        %v4563 = vpop.xlane.xlu0 %4562
        %4564 = vmax.xlane.f32.xlu0 %v4451
        %v4565 = vpop.xlane.xlu0 %4564
        %4566 = vmax.xlane.f32.xlu0 %v4452
        %v4567 = vpop.xlane.xlu0 %4566
        %4568 = vmax.xlane.f32.xlu0 %v4453
        %v4569 = vpop.xlane.xlu0 %4568
        %4570 = vmax.xlane.f32.xlu0 %v4454
        %v4571 = vpop.xlane.xlu0 %4570
        %4572 = vmax.xlane.f32.xlu0 %v4455
        %v4573 = vpop.xlane.xlu0 %4572
        %4574 = vmax.xlane.f32.xlu0 %v4456
        %v4575 = vpop.xlane.xlu0 %4574
        %4576 = vmax.xlane.f32.xlu0 %v4457
        %v4577 = vpop.xlane.xlu0 %4576
        %4578 = vmax.xlane.f32.xlu0 %v4458
        %v4579 = vpop.xlane.xlu0 %4578
        %4580 = vmax.xlane.f32.xlu0 %v4459
        %v4581 = vpop.xlane.xlu0 %4580
        %4582 = vmax.xlane.f32.xlu0 %v4460
        %v4583 = vpop.xlane.xlu0 %4582
        %4584 = vmax.xlane.f32.xlu0 %v4461
        %v4585 = vpop.xlane.xlu0 %4584
        %4586 = vmax.xlane.f32.xlu0 %v4462
        %v4587 = vpop.xlane.xlu0 %4586
        %4588 = vmax.xlane.f32.xlu0 %v4463
        %v4589 = vpop.xlane.xlu0 %4588
        %4590 = vmax.xlane.f32.xlu0 %v4464
        %v4591 = vpop.xlane.xlu0 %4590
        %4592 = vmax.xlane.f32.xlu0 %v4465
        %v4593 = vpop.xlane.xlu0 %4592
        %4594 = vmax.xlane.f32.xlu0 %v4466
        %v4595 = vpop.xlane.xlu0 %4594
        %4596 = vmax.xlane.f32.xlu0 %v4467
        %v4597 = vpop.xlane.xlu0 %4596
        %4598 = vmax.xlane.f32.xlu0 %v4468
        %v4599 = vpop.xlane.xlu0 %4598
        %4600 = vmax.xlane.f32.xlu0 %v4469
        %v4601 = vpop.xlane.xlu0 %4600
        %4602 = vmax.xlane.f32.xlu0 %v4470
        %v4603 = vpop.xlane.xlu0 %4602
        %4604 = vmax.xlane.f32.xlu0 %v4471
        %v4605 = vpop.xlane.xlu0 %4604
        %4606 = vmax.xlane.f32.xlu0 %v4472
        %v4607 = vpop.xlane.xlu0 %4606
        %4608 = vmax.xlane.f32.xlu0 %v4473
        %v4609 = vpop.xlane.xlu0 %4608
        %4610 = vmax.xlane.f32.xlu0 %v4474
        %v4611 = vpop.xlane.xlu0 %4610
        %4612 = vmax.xlane.f32.xlu0 %v4475
        %v4613 = vpop.xlane.xlu0 %4612
        %4614 = vmax.xlane.f32.xlu0 %v4476
        %v4615 = vpop.xlane.xlu0 %4614
        %4616 = vmax.xlane.f32.xlu0 %v4477
        %v4617 = vpop.xlane.xlu0 %4616
        %4618 = vmax.xlane.f32.xlu0 %v4478
        %v4619 = vpop.xlane.xlu0 %4618
        %4620 = vmax.xlane.f32.xlu0 %v4479
        %v4621 = vpop.xlane.xlu0 %4620
        %4622 = vmax.xlane.f32.xlu0 %v4480
        %v4623 = vpop.xlane.xlu0 %4622
        %4624 = vmax.xlane.f32.xlu0 %v4481
        %v4625 = vpop.xlane.xlu0 %4624
        %4626 = vmax.xlane.f32.xlu0 %v4482
        %v4627 = vpop.xlane.xlu0 %4626
        %4628 = vmax.xlane.f32.xlu0 %v4483
        %v4629 = vpop.xlane.xlu0 %4628
        %4630 = vmax.xlane.f32.xlu0 %v4484
        %v4631 = vpop.xlane.xlu0 %4630
        %4632 = vmax.xlane.f32.xlu0 %v4485
        %v4633 = vpop.xlane.xlu0 %4632
        %4634 = vmax.xlane.f32.xlu0 %v4486
        %v4635 = vpop.xlane.xlu0 %4634
        %4636 = vmax.xlane.f32.xlu0 %v4487
        %v4637 = vpop.xlane.xlu0 %4636
        %4638 = vmax.xlane.f32.xlu0 %v4488
        %v4639 = vpop.xlane.xlu0 %4638
        %4640 = vmax.xlane.f32.xlu0 %v4489
        %v4641 = vpop.xlane.xlu0 %4640
        %4642 = vmax.xlane.f32.xlu0 %v4490
        %v4643 = vpop.xlane.xlu0 %4642
        %4644 = vmax.xlane.f32.xlu0 %v4491
        %v4645 = vpop.xlane.xlu0 %4644
        %4646 = vmax.xlane.f32.xlu0 %v4492
        %v4647 = vpop.xlane.xlu0 %4646
        %4648 = vmax.xlane.f32.xlu0 %v4493
        %v4649 = vpop.xlane.xlu0 %4648
        %4650 = vmax.xlane.f32.xlu0 %v4494
        %v4651 = vpop.xlane.xlu0 %4650
        %4652 = vmax.xlane.f32.xlu0 %v4495
        %v4653 = vpop.xlane.xlu0 %4652
        %4654 = vmax.xlane.f32.xlu0 %v4496
        %v4655 = vpop.xlane.xlu0 %4654
        %4656 = vmax.xlane.f32.xlu0 %v4497
        %v4657 = vpop.xlane.xlu0 %4656
        %4658 = vmax.xlane.f32.xlu0 %v4498
        %v4659 = vpop.xlane.xlu0 %4658
        %4660 = vmax.xlane.f32.xlu0 %v4499
        %v4661 = vpop.xlane.xlu0 %4660
        %4662 = vmax.xlane.f32.xlu0 %v4500
        %v4663 = vpop.xlane.xlu0 %4662
        %4664 = vmax.xlane.f32.xlu0 %v4501
        %v4665 = vpop.xlane.xlu0 %4664
        %4666 = vmax.xlane.f32.xlu0 %v4502
        %v4667 = vpop.xlane.xlu0 %4666
        %4668 = vmax.xlane.f32.xlu0 %v4503
        %v4669 = vpop.xlane.xlu0 %4668
        %4670 = vmax.xlane.f32.xlu0 %v4504
        %v4671 = vpop.xlane.xlu0 %4670
        %4672 = vmax.xlane.f32.xlu0 %v4505
        %v4673 = vpop.xlane.xlu0 %4672
        %4674 = vmax.xlane.f32.xlu0 %v4506
        %v4675 = vpop.xlane.xlu0 %4674
        %4676 = vmax.xlane.f32.xlu0 %v4507
        %v4677 = vpop.xlane.xlu0 %4676
        %4678 = vmax.xlane.f32.xlu0 %v4508
        %v4679 = vpop.xlane.xlu0 %4678
        %4680 = vmax.xlane.f32.xlu0 %v4509
        %v4681 = vpop.xlane.xlu0 %4680
        %4682 = vmax.xlane.f32.xlu0 %v4510
        %v4683 = vpop.xlane.xlu0 %4682
        %4684 = vmax.xlane.f32.xlu0 %v4511
        %v4685 = vpop.xlane.xlu0 %4684
        %4686 = vmax.xlane.f32.xlu0 %v4512
        %v4687 = vpop.xlane.xlu0 %4686
        %4688 = vmax.xlane.f32.xlu0 %v4513
        %v4689 = vpop.xlane.xlu0 %4688
        %4690 = vmax.xlane.f32.xlu0 %v4514
        %v4691 = vpop.xlane.xlu0 %4690
        %4692 = vmax.xlane.f32.xlu0 %v4515
        %v4693 = vpop.xlane.xlu0 %4692
        %4694 = vmax.xlane.f32.xlu0 %v4516
        %v4695 = vpop.xlane.xlu0 %4694
        %4696 = vmax.xlane.f32.xlu0 %v4517
        %v4697 = vpop.xlane.xlu0 %4696
        %4698 = vmax.xlane.f32.xlu0 %v4518
        %v4699 = vpop.xlane.xlu0 %4698
        %4700 = vmax.xlane.f32.xlu0 %v4519
        %v4701 = vpop.xlane.xlu0 %4700
        %4702 = vmax.xlane.f32.xlu0 %v4520
        %v4703 = vpop.xlane.xlu0 %4702
        %4704 = vmax.xlane.f32.xlu0 %v4521
        %v4705 = vpop.xlane.xlu0 %4704
        %4706 = vmax.xlane.f32.xlu0 %v4522
        %v4707 = vpop.xlane.xlu0 %4706
        %4708 = vmax.xlane.f32.xlu0 %v4523
        %v4709 = vpop.xlane.xlu0 %4708
        %4710 = vmax.xlane.f32.xlu0 %v4524
        %v4711 = vpop.xlane.xlu0 %4710
        %4712 = vmax.xlane.f32.xlu0 %v4525
        %v4713 = vpop.xlane.xlu0 %4712
        %4714 = vmax.xlane.f32.xlu0 %v4526
        %v4715 = vpop.xlane.xlu0 %4714
        %4716 = vmax.xlane.f32.xlu0 %v4527
        %v4717 = vpop.xlane.xlu0 %4716
        %4718 = vmax.xlane.f32.xlu0 %v4528
        %v4719 = vpop.xlane.xlu0 %4718
        %4720 = vmax.xlane.f32.xlu0 %v4529
        %v4721 = vpop.xlane.xlu0 %4720
        %v4722 = vsub.f32 %v4434, %v4531
        %v4723 = vsub.f32 %v4435, %v4533
        %v4724 = vsub.f32 %v4436, %v4535
        %v4725 = vsub.f32 %v4437, %v4537
        %v4726 = vsub.f32 %v4438, %v4539
        %v4727 = vsub.f32 %v4439, %v4541
        %v4728 = vsub.f32 %v4440, %v4543
        %v4729 = vsub.f32 %v4441, %v4545
        %v4730 = vsub.f32 %v4442, %v4547
        %v4731 = vsub.f32 %v4443, %v4549
        %v4732 = vsub.f32 %v4444, %v4551
        %v4733 = vsub.f32 %v4445, %v4553
        %v4734 = vsub.f32 %v4446, %v4555
        %v4735 = vsub.f32 %v4447, %v4557
        %v4736 = vsub.f32 %v4448, %v4559
        %v4737 = vsub.f32 %v4449, %v4561
        %v4738 = vsub.f32 %v4450, %v4563
        %v4739 = vsub.f32 %v4451, %v4565
        %v4740 = vsub.f32 %v4452, %v4567
        %v4741 = vsub.f32 %v4453, %v4569
        %v4742 = vsub.f32 %v4454, %v4571
        %v4743 = vsub.f32 %v4455, %v4573
        %v4744 = vsub.f32 %v4456, %v4575
        %v4745 = vsub.f32 %v4457, %v4577
        %v4746 = vsub.f32 %v4458, %v4579
        %v4747 = vsub.f32 %v4459, %v4581
        %v4748 = vsub.f32 %v4460, %v4583
        %v4749 = vsub.f32 %v4461, %v4585
        %v4750 = vsub.f32 %v4462, %v4587
        %v4751 = vsub.f32 %v4463, %v4589
        %v4752 = vsub.f32 %v4464, %v4591
        %v4753 = vsub.f32 %v4465, %v4593
        %v4754 = vsub.f32 %v4466, %v4595
        %v4755 = vsub.f32 %v4467, %v4597
        %v4756 = vsub.f32 %v4468, %v4599
        %v4757 = vsub.f32 %v4469, %v4601
        %v4758 = vsub.f32 %v4470, %v4603
        %v4759 = vsub.f32 %v4471, %v4605
        %v4760 = vsub.f32 %v4472, %v4607
        %v4761 = vsub.f32 %v4473, %v4609
        %v4762 = vsub.f32 %v4474, %v4611
        %v4763 = vsub.f32 %v4475, %v4613
        %v4764 = vsub.f32 %v4476, %v4615
        %v4765 = vsub.f32 %v4477, %v4617
        %v4766 = vsub.f32 %v4478, %v4619
        %v4767 = vsub.f32 %v4479, %v4621
        %v4768 = vsub.f32 %v4480, %v4623
        %v4769 = vsub.f32 %v4481, %v4625
        %v4770 = vsub.f32 %v4482, %v4627
        %v4771 = vsub.f32 %v4483, %v4629
        %v4772 = vsub.f32 %v4484, %v4631
        %v4773 = vsub.f32 %v4485, %v4633
        %v4774 = vsub.f32 %v4486, %v4635
        %v4775 = vsub.f32 %v4487, %v4637
        %v4776 = vsub.f32 %v4488, %v4639
        %v4777 = vsub.f32 %v4489, %v4641
        %v4778 = vsub.f32 %v4490, %v4643
        %v4779 = vsub.f32 %v4491, %v4645
        %v4780 = vsub.f32 %v4492, %v4647
        %v4781 = vsub.f32 %v4493, %v4649
        %v4782 = vsub.f32 %v4494, %v4651
        %v4783 = vsub.f32 %v4495, %v4653
        %v4784 = vsub.f32 %v4496, %v4655
        %v4785 = vsub.f32 %v4497, %v4657
        %v4786 = vsub.f32 %v4498, %v4659
        %v4787 = vsub.f32 %v4499, %v4661
        %v4788 = vsub.f32 %v4500, %v4663
        %v4789 = vsub.f32 %v4501, %v4665
        %v4790 = vsub.f32 %v4502, %v4667
        %v4791 = vsub.f32 %v4503, %v4669
        %v4792 = vsub.f32 %v4504, %v4671
        %v4793 = vsub.f32 %v4505, %v4673
        %v4794 = vsub.f32 %v4506, %v4675
        %v4795 = vsub.f32 %v4507, %v4677
        %v4796 = vsub.f32 %v4508, %v4679
        %v4797 = vsub.f32 %v4509, %v4681
        %v4798 = vsub.f32 %v4510, %v4683
        %v4799 = vsub.f32 %v4511, %v4685
        %v4800 = vsub.f32 %v4512, %v4687
        %v4801 = vsub.f32 %v4513, %v4689
        %v4802 = vsub.f32 %v4514, %v4691
        %v4803 = vsub.f32 %v4515, %v4693
        %v4804 = vsub.f32 %v4516, %v4695
        %v4805 = vsub.f32 %v4517, %v4697
        %v4806 = vsub.f32 %v4518, %v4699
        %v4807 = vsub.f32 %v4519, %v4701
        %v4808 = vsub.f32 %v4520, %v4703
        %v4809 = vsub.f32 %v4521, %v4705
        %v4810 = vsub.f32 %v4522, %v4707
        %v4811 = vsub.f32 %v4523, %v4709
        %v4812 = vsub.f32 %v4524, %v4711
        %v4813 = vsub.f32 %v4525, %v4713
        %v4814 = vsub.f32 %v4526, %v4715
        %v4815 = vsub.f32 %v4527, %v4717
        %v4816 = vsub.f32 %v4528, %v4719
        %v4817 = vsub.f32 %v4529, %v4721
        %v4818 = vmul.f32 %v4722, 1.442695
        %v4819 = vpow.pop %v4818
        %v4820 = vmul.f32 %v4723, 1.442695
        %v4821 = vpow.pop %v4820
        %v4822 = vmul.f32 %v4724, 1.442695
        %v4823 = vpow.pop %v4822
        %v4824 = vmul.f32 %v4725, 1.442695
        %v4825 = vpow.pop %v4824
        %v4826 = vmul.f32 %v4726, 1.442695
        %v4827 = vpow.pop %v4826
        %v4828 = vmul.f32 %v4727, 1.442695
        %v4829 = vpow.pop %v4828
        %v4830 = vmul.f32 %v4728, 1.442695
        %v4831 = vpow.pop %v4830
        %v4832 = vmul.f32 %v4729, 1.442695
        %v4833 = vpow.pop %v4832
        %v4834 = vmul.f32 %v4730, 1.442695
        %v4835 = vpow.pop %v4834
        %v4836 = vmul.f32 %v4731, 1.442695
        %v4837 = vpow.pop %v4836
        %v4838 = vmul.f32 %v4732, 1.442695
        %v4839 = vpow.pop %v4838
        %v4840 = vmul.f32 %v4733, 1.442695
        %v4841 = vpow.pop %v4840
        %v4842 = vmul.f32 %v4734, 1.442695
        %v4843 = vpow.pop %v4842
        %v4844 = vmul.f32 %v4735, 1.442695
        %v4845 = vpow.pop %v4844
        %v4846 = vmul.f32 %v4736, 1.442695
        %v4847 = vpow.pop %v4846
        %v4848 = vmul.f32 %v4737, 1.442695
        %v4849 = vpow.pop %v4848
        %v4850 = vmul.f32 %v4738, 1.442695
        %v4851 = vpow.pop %v4850
        %v4852 = vmul.f32 %v4739, 1.442695
        %v4853 = vpow.pop %v4852
        %v4854 = vmul.f32 %v4740, 1.442695
        %v4855 = vpow.pop %v4854
        %v4856 = vmul.f32 %v4741, 1.442695
        %v4857 = vpow.pop %v4856
        %v4858 = vmul.f32 %v4742, 1.442695
        %v4859 = vpow.pop %v4858
        %v4860 = vmul.f32 %v4743, 1.442695
        %v4861 = vpow.pop %v4860
        %v4862 = vmul.f32 %v4744, 1.442695
        %v4863 = vpow.pop %v4862
        %v4864 = vmul.f32 %v4745, 1.442695
        %v4865 = vpow.pop %v4864
        %v4866 = vmul.f32 %v4746, 1.442695
        %v4867 = vpow.pop %v4866
        %v4868 = vmul.f32 %v4747, 1.442695
        %v4869 = vpow.pop %v4868
        %v4870 = vmul.f32 %v4748, 1.442695
        %v4871 = vpow.pop %v4870
        %v4872 = vmul.f32 %v4749, 1.442695
        %v4873 = vpow.pop %v4872
        %v4874 = vmul.f32 %v4750, 1.442695
        %v4875 = vpow.pop %v4874
        %v4876 = vmul.f32 %v4751, 1.442695
        %v4877 = vpow.pop %v4876
        %v4878 = vmul.f32 %v4752, 1.442695
        %v4879 = vpow.pop %v4878
        %v4880 = vmul.f32 %v4753, 1.442695
        %v4881 = vpow.pop %v4880
        %v4882 = vmul.f32 %v4754, 1.442695
        %v4883 = vpow.pop %v4882
        %v4884 = vmul.f32 %v4755, 1.442695
        %v4885 = vpow.pop %v4884
        %v4886 = vmul.f32 %v4756, 1.442695
        %v4887 = vpow.pop %v4886
        %v4888 = vmul.f32 %v4757, 1.442695
        %v4889 = vpow.pop %v4888
        %v4890 = vmul.f32 %v4758, 1.442695
        %v4891 = vpow.pop %v4890
        %v4892 = vmul.f32 %v4759, 1.442695
        %v4893 = vpow.pop %v4892
        %v4894 = vmul.f32 %v4760, 1.442695
        %v4895 = vpow.pop %v4894
        %v4896 = vmul.f32 %v4761, 1.442695
        %v4897 = vpow.pop %v4896
        %v4898 = vmul.f32 %v4762, 1.442695
        %v4899 = vpow.pop %v4898
        %v4900 = vmul.f32 %v4763, 1.442695
        %v4901 = vpow.pop %v4900
        %v4902 = vmul.f32 %v4764, 1.442695
        %v4903 = vpow.pop %v4902
        %v4904 = vmul.f32 %v4765, 1.442695
        %v4905 = vpow.pop %v4904
        %v4906 = vmul.f32 %v4766, 1.442695
        %v4907 = vpow.pop %v4906
        %v4908 = vmul.f32 %v4767, 1.442695
        %v4909 = vpow.pop %v4908
        %v4910 = vmul.f32 %v4768, 1.442695
        %v4911 = vpow.pop %v4910
        %v4912 = vmul.f32 %v4769, 1.442695
        %v4913 = vpow.pop %v4912
        %v4914 = vmul.f32 %v4770, 1.442695
        %v4915 = vpow.pop %v4914
        %v4916 = vmul.f32 %v4771, 1.442695
        %v4917 = vpow.pop %v4916
        %v4918 = vmul.f32 %v4772, 1.442695
        %v4919 = vpow.pop %v4918
        %v4920 = vmul.f32 %v4773, 1.442695
        %v4921 = vpow.pop %v4920
        %v4922 = vmul.f32 %v4774, 1.442695
        %v4923 = vpow.pop %v4922
        %v4924 = vmul.f32 %v4775, 1.442695
        %v4925 = vpow.pop %v4924
        %v4926 = vmul.f32 %v4776, 1.442695
        %v4927 = vpow.pop %v4926
        %v4928 = vmul.f32 %v4777, 1.442695
        %v4929 = vpow.pop %v4928
        %v4930 = vmul.f32 %v4778, 1.442695
        %v4931 = vpow.pop %v4930
        %v4932 = vmul.f32 %v4779, 1.442695
        %v4933 = vpow.pop %v4932
        %v4934 = vmul.f32 %v4780, 1.442695
        %v4935 = vpow.pop %v4934
        %v4936 = vmul.f32 %v4781, 1.442695
        %v4937 = vpow.pop %v4936
        %v4938 = vmul.f32 %v4782, 1.442695
        %v4939 = vpow.pop %v4938
        %v4940 = vmul.f32 %v4783, 1.442695
        %v4941 = vpow.pop %v4940
        %v4942 = vmul.f32 %v4784, 1.442695
        %v4943 = vpow.pop %v4942
        %v4944 = vmul.f32 %v4785, 1.442695
        %v4945 = vpow.pop %v4944
        %v4946 = vmul.f32 %v4786, 1.442695
        %v4947 = vpow.pop %v4946
        %v4948 = vmul.f32 %v4787, 1.442695
        %v4949 = vpow.pop %v4948
        %v4950 = vmul.f32 %v4788, 1.442695
        %v4951 = vpow.pop %v4950
        %v4952 = vmul.f32 %v4789, 1.442695
        %v4953 = vpow.pop %v4952
        %v4954 = vmul.f32 %v4790, 1.442695
        %v4955 = vpow.pop %v4954
        %v4956 = vmul.f32 %v4791, 1.442695
        %v4957 = vpow.pop %v4956
        %v4958 = vmul.f32 %v4792, 1.442695
        %v4959 = vpow.pop %v4958
        %v4960 = vmul.f32 %v4793, 1.442695
        %v4961 = vpow.pop %v4960
        %v4962 = vmul.f32 %v4794, 1.442695
        %v4963 = vpow.pop %v4962
        %v4964 = vmul.f32 %v4795, 1.442695
        %v4965 = vpow.pop %v4964
        %v4966 = vmul.f32 %v4796, 1.442695
        %v4967 = vpow.pop %v4966
        %v4968 = vmul.f32 %v4797, 1.442695
        %v4969 = vpow.pop %v4968
        %v4970 = vmul.f32 %v4798, 1.442695
        %v4971 = vpow.pop %v4970
        %v4972 = vmul.f32 %v4799, 1.442695
        %v4973 = vpow.pop %v4972
        %v4974 = vmul.f32 %v4800, 1.442695
        %v4975 = vpow.pop %v4974
        %v4976 = vmul.f32 %v4801, 1.442695
        %v4977 = vpow.pop %v4976
        %v4978 = vmul.f32 %v4802, 1.442695
        %v4979 = vpow.pop %v4978
        %v4980 = vmul.f32 %v4803, 1.442695
        %v4981 = vpow.pop %v4980
        %v4982 = vmul.f32 %v4804, 1.442695
        %v4983 = vpow.pop %v4982
        %v4984 = vmul.f32 %v4805, 1.442695
        %v4985 = vpow.pop %v4984
        %v4986 = vmul.f32 %v4806, 1.442695
        %v4987 = vpow.pop %v4986
        %v4988 = vmul.f32 %v4807, 1.442695
        %v4989 = vpow.pop %v4988
        %v4990 = vmul.f32 %v4808, 1.442695
        %v4991 = vpow.pop %v4990
        %v4992 = vmul.f32 %v4809, 1.442695
        %v4993 = vpow.pop %v4992
        %v4994 = vmul.f32 %v4810, 1.442695
        %v4995 = vpow.pop %v4994
        %v4996 = vmul.f32 %v4811, 1.442695
        %v4997 = vpow.pop %v4996
        %v4998 = vmul.f32 %v4812, 1.442695
        %v4999 = vpow.pop %v4998
        %v5000 = vmul.f32 %v4813, 1.442695
        %v5001 = vpow.pop %v5000
        %v5002 = vmul.f32 %v4814, 1.442695
        %v5003 = vpow.pop %v5002
        %v5004 = vmul.f32 %v4815, 1.442695
        %v5005 = vpow.pop %v5004
        %v5006 = vmul.f32 %v4816, 1.442695
        %v5007 = vpow.pop %v5006
        %v5008 = vmul.f32 %v4817, 1.442695
        %v5009 = vpow.pop %v5008
        %5010 = vadd.xlane.f32.xlu0 %v4819
        %v5011 = vpop.xlane.xlu0 %5010
        %5012 = vadd.xlane.f32.xlu0 %v4821
        %v5013 = vpop.xlane.xlu0 %5012
        %5014 = vadd.xlane.f32.xlu0 %v4823
        %v5015 = vpop.xlane.xlu0 %5014
        %5016 = vadd.xlane.f32.xlu0 %v4825
        %v5017 = vpop.xlane.xlu0 %5016
        %5018 = vadd.xlane.f32.xlu0 %v4827
        %v5019 = vpop.xlane.xlu0 %5018
        %5020 = vadd.xlane.f32.xlu0 %v4829
        %v5021 = vpop.xlane.xlu0 %5020
        %5022 = vadd.xlane.f32.xlu0 %v4831
        %v5023 = vpop.xlane.xlu0 %5022
        %5024 = vadd.xlane.f32.xlu0 %v4833
        %v5025 = vpop.xlane.xlu0 %5024
        %5026 = vadd.xlane.f32.xlu0 %v4835
        %v5027 = vpop.xlane.xlu0 %5026
        %5028 = vadd.xlane.f32.xlu0 %v4837
        %v5029 = vpop.xlane.xlu0 %5028
        %5030 = vadd.xlane.f32.xlu0 %v4839
        %v5031 = vpop.xlane.xlu0 %5030
        %5032 = vadd.xlane.f32.xlu0 %v4841
        %v5033 = vpop.xlane.xlu0 %5032
        %5034 = vadd.xlane.f32.xlu0 %v4843
        %v5035 = vpop.xlane.xlu0 %5034
        %5036 = vadd.xlane.f32.xlu0 %v4845
        %v5037 = vpop.xlane.xlu0 %5036
        %5038 = vadd.xlane.f32.xlu0 %v4847
        %v5039 = vpop.xlane.xlu0 %5038
        %5040 = vadd.xlane.f32.xlu0 %v4849
        %v5041 = vpop.xlane.xlu0 %5040
        %5042 = vadd.xlane.f32.xlu0 %v4851
        %v5043 = vpop.xlane.xlu0 %5042
        %5044 = vadd.xlane.f32.xlu0 %v4853
        %v5045 = vpop.xlane.xlu0 %5044
        %5046 = vadd.xlane.f32.xlu0 %v4855
        %v5047 = vpop.xlane.xlu0 %5046
        %5048 = vadd.xlane.f32.xlu0 %v4857
        %v5049 = vpop.xlane.xlu0 %5048
        %5050 = vadd.xlane.f32.xlu0 %v4859
        %v5051 = vpop.xlane.xlu0 %5050
        %5052 = vadd.xlane.f32.xlu0 %v4861
        %v5053 = vpop.xlane.xlu0 %5052
        %5054 = vadd.xlane.f32.xlu0 %v4863
        %v5055 = vpop.xlane.xlu0 %5054
        %5056 = vadd.xlane.f32.xlu0 %v4865
        %v5057 = vpop.xlane.xlu0 %5056
        %5058 = vadd.xlane.f32.xlu0 %v4867
        %v5059 = vpop.xlane.xlu0 %5058
        %5060 = vadd.xlane.f32.xlu0 %v4869
        %v5061 = vpop.xlane.xlu0 %5060
        %5062 = vadd.xlane.f32.xlu0 %v4871
        %v5063 = vpop.xlane.xlu0 %5062
        %5064 = vadd.xlane.f32.xlu0 %v4873
        %v5065 = vpop.xlane.xlu0 %5064
        %5066 = vadd.xlane.f32.xlu0 %v4875
        %v5067 = vpop.xlane.xlu0 %5066
        %5068 = vadd.xlane.f32.xlu0 %v4877
        %v5069 = vpop.xlane.xlu0 %5068
        %5070 = vadd.xlane.f32.xlu0 %v4879
        %v5071 = vpop.xlane.xlu0 %5070
        %5072 = vadd.xlane.f32.xlu0 %v4881
        %v5073 = vpop.xlane.xlu0 %5072
        %5074 = vadd.xlane.f32.xlu0 %v4883
        %v5075 = vpop.xlane.xlu0 %5074
        %5076 = vadd.xlane.f32.xlu0 %v4885
        %v5077 = vpop.xlane.xlu0 %5076
        %5078 = vadd.xlane.f32.xlu0 %v4887
        %v5079 = vpop.xlane.xlu0 %5078
        %5080 = vadd.xlane.f32.xlu0 %v4889
        %v5081 = vpop.xlane.xlu0 %5080
        %5082 = vadd.xlane.f32.xlu0 %v4891
        %v5083 = vpop.xlane.xlu0 %5082
        %5084 = vadd.xlane.f32.xlu0 %v4893
        %v5085 = vpop.xlane.xlu0 %5084
        %5086 = vadd.xlane.f32.xlu0 %v4895
        %v5087 = vpop.xlane.xlu0 %5086
        %5088 = vadd.xlane.f32.xlu0 %v4897
        %v5089 = vpop.xlane.xlu0 %5088
        %5090 = vadd.xlane.f32.xlu0 %v4899
        %v5091 = vpop.xlane.xlu0 %5090
        %5092 = vadd.xlane.f32.xlu0 %v4901
        %v5093 = vpop.xlane.xlu0 %5092
        %5094 = vadd.xlane.f32.xlu0 %v4903
        %v5095 = vpop.xlane.xlu0 %5094
        %5096 = vadd.xlane.f32.xlu0 %v4905
        %v5097 = vpop.xlane.xlu0 %5096
        %5098 = vadd.xlane.f32.xlu0 %v4907
        %v5099 = vpop.xlane.xlu0 %5098
        %5100 = vadd.xlane.f32.xlu0 %v4909
        %v5101 = vpop.xlane.xlu0 %5100
        %5102 = vadd.xlane.f32.xlu0 %v4911
        %v5103 = vpop.xlane.xlu0 %5102
        %5104 = vadd.xlane.f32.xlu0 %v4913
        %v5105 = vpop.xlane.xlu0 %5104
        %5106 = vadd.xlane.f32.xlu0 %v4915
        %v5107 = vpop.xlane.xlu0 %5106
        %5108 = vadd.xlane.f32.xlu0 %v4917
        %v5109 = vpop.xlane.xlu0 %5108
        %5110 = vadd.xlane.f32.xlu0 %v4919
        %v5111 = vpop.xlane.xlu0 %5110
        %5112 = vadd.xlane.f32.xlu0 %v4921
        %v5113 = vpop.xlane.xlu0 %5112
        %5114 = vadd.xlane.f32.xlu0 %v4923
        %v5115 = vpop.xlane.xlu0 %5114
        %5116 = vadd.xlane.f32.xlu0 %v4925
        %v5117 = vpop.xlane.xlu0 %5116
        %5118 = vadd.xlane.f32.xlu0 %v4927
        %v5119 = vpop.xlane.xlu0 %5118
        %5120 = vadd.xlane.f32.xlu0 %v4929
        %v5121 = vpop.xlane.xlu0 %5120
        %5122 = vadd.xlane.f32.xlu0 %v4931
        %v5123 = vpop.xlane.xlu0 %5122
        %5124 = vadd.xlane.f32.xlu0 %v4933
        %v5125 = vpop.xlane.xlu0 %5124
        %5126 = vadd.xlane.f32.xlu0 %v4935
        %v5127 = vpop.xlane.xlu0 %5126
        %5128 = vadd.xlane.f32.xlu0 %v4937
        %v5129 = vpop.xlane.xlu0 %5128
        %5130 = vadd.xlane.f32.xlu0 %v4939
        %v5131 = vpop.xlane.xlu0 %5130
        %5132 = vadd.xlane.f32.xlu0 %v4941
        %v5133 = vpop.xlane.xlu0 %5132
        %5134 = vadd.xlane.f32.xlu0 %v4943
        %v5135 = vpop.xlane.xlu0 %5134
        %5136 = vadd.xlane.f32.xlu0 %v4945
        %v5137 = vpop.xlane.xlu0 %5136
        %5138 = vadd.xlane.f32.xlu0 %v4947
        %v5139 = vpop.xlane.xlu0 %5138
        %5140 = vadd.xlane.f32.xlu0 %v4949
        %v5141 = vpop.xlane.xlu0 %5140
        %5142 = vadd.xlane.f32.xlu0 %v4951
        %v5143 = vpop.xlane.xlu0 %5142
        %5144 = vadd.xlane.f32.xlu0 %v4953
        %v5145 = vpop.xlane.xlu0 %5144
        %5146 = vadd.xlane.f32.xlu0 %v4955
        %v5147 = vpop.xlane.xlu0 %5146
        %5148 = vadd.xlane.f32.xlu0 %v4957
        %v5149 = vpop.xlane.xlu0 %5148
        %5150 = vadd.xlane.f32.xlu0 %v4959
        %v5151 = vpop.xlane.xlu0 %5150
        %5152 = vadd.xlane.f32.xlu0 %v4961
        %v5153 = vpop.xlane.xlu0 %5152
        %5154 = vadd.xlane.f32.xlu0 %v4963
        %v5155 = vpop.xlane.xlu0 %5154
        %5156 = vadd.xlane.f32.xlu0 %v4965
        %v5157 = vpop.xlane.xlu0 %5156
        %5158 = vadd.xlane.f32.xlu0 %v4967
        %v5159 = vpop.xlane.xlu0 %5158
        %5160 = vadd.xlane.f32.xlu0 %v4969
        %v5161 = vpop.xlane.xlu0 %5160
        %5162 = vadd.xlane.f32.xlu0 %v4971
        %v5163 = vpop.xlane.xlu0 %5162
        %5164 = vadd.xlane.f32.xlu0 %v4973
        %v5165 = vpop.xlane.xlu0 %5164
        %5166 = vadd.xlane.f32.xlu0 %v4975
        %v5167 = vpop.xlane.xlu0 %5166
        %5168 = vadd.xlane.f32.xlu0 %v4977
        %v5169 = vpop.xlane.xlu0 %5168
        %5170 = vadd.xlane.f32.xlu0 %v4979
        %v5171 = vpop.xlane.xlu0 %5170
        %5172 = vadd.xlane.f32.xlu0 %v4981
        %v5173 = vpop.xlane.xlu0 %5172
        %5174 = vadd.xlane.f32.xlu0 %v4983
        %v5175 = vpop.xlane.xlu0 %5174
        %5176 = vadd.xlane.f32.xlu0 %v4985
        %v5177 = vpop.xlane.xlu0 %5176
        %5178 = vadd.xlane.f32.xlu0 %v4987
        %v5179 = vpop.xlane.xlu0 %5178
        %5180 = vadd.xlane.f32.xlu0 %v4989
        %v5181 = vpop.xlane.xlu0 %5180
        %5182 = vadd.xlane.f32.xlu0 %v4991
        %v5183 = vpop.xlane.xlu0 %5182
        %5184 = vadd.xlane.f32.xlu0 %v4993
        %v5185 = vpop.xlane.xlu0 %5184
        %5186 = vadd.xlane.f32.xlu0 %v4995
        %v5187 = vpop.xlane.xlu0 %5186
        %5188 = vadd.xlane.f32.xlu0 %v4997
        %v5189 = vpop.xlane.xlu0 %5188
        %5190 = vadd.xlane.f32.xlu0 %v4999
        %v5191 = vpop.xlane.xlu0 %5190
        %5192 = vadd.xlane.f32.xlu0 %v5001
        %v5193 = vpop.xlane.xlu0 %5192
        %5194 = vadd.xlane.f32.xlu0 %v5003
        %v5195 = vpop.xlane.xlu0 %5194
        %5196 = vadd.xlane.f32.xlu0 %v5005
        %v5197 = vpop.xlane.xlu0 %5196
        %5198 = vadd.xlane.f32.xlu0 %v5007
        %v5199 = vpop.xlane.xlu0 %5198
        %5200 = vadd.xlane.f32.xlu0 %v5009
        %v5201 = vpop.xlane.xlu0 %5200
        %v5202 = vrcp.pop %v5011
        %v5203 = vrcp.pop %v5013
        %v5204 = vrcp.pop %v5015
        %v5205 = vrcp.pop %v5017
        %v5206 = vrcp.pop %v5019
        %v5207 = vrcp.pop %v5021
        %v5208 = vrcp.pop %v5023
        %v5209 = vrcp.pop %v5025
        %v5210 = vrcp.pop %v5027
        %v5211 = vrcp.pop %v5029
        %v5212 = vrcp.pop %v5031
        %v5213 = vrcp.pop %v5033
        %v5214 = vrcp.pop %v5035
        %v5215 = vrcp.pop %v5037
        %v5216 = vrcp.pop %v5039
        %v5217 = vrcp.pop %v5041
        %v5218 = vrcp.pop %v5043
        %v5219 = vrcp.pop %v5045
        %v5220 = vrcp.pop %v5047
        %v5221 = vrcp.pop %v5049
        %v5222 = vrcp.pop %v5051
        %v5223 = vrcp.pop %v5053
        %v5224 = vrcp.pop %v5055
        %v5225 = vrcp.pop %v5057
        %v5226 = vrcp.pop %v5059
        %v5227 = vrcp.pop %v5061
        %v5228 = vrcp.pop %v5063
        %v5229 = vrcp.pop %v5065
        %v5230 = vrcp.pop %v5067
        %v5231 = vrcp.pop %v5069
        %v5232 = vrcp.pop %v5071
        %v5233 = vrcp.pop %v5073
        %v5234 = vrcp.pop %v5075
        %v5235 = vrcp.pop %v5077
        %v5236 = vrcp.pop %v5079
        %v5237 = vrcp.pop %v5081
        %v5238 = vrcp.pop %v5083
        %v5239 = vrcp.pop %v5085
        %v5240 = vrcp.pop %v5087
        %v5241 = vrcp.pop %v5089
        %v5242 = vrcp.pop %v5091
        %v5243 = vrcp.pop %v5093
        %v5244 = vrcp.pop %v5095
        %v5245 = vrcp.pop %v5097
        %v5246 = vrcp.pop %v5099
        %v5247 = vrcp.pop %v5101
        %v5248 = vrcp.pop %v5103
        %v5249 = vrcp.pop %v5105
        %v5250 = vrcp.pop %v5107
        %v5251 = vrcp.pop %v5109
        %v5252 = vrcp.pop %v5111
        %v5253 = vrcp.pop %v5113
        %v5254 = vrcp.pop %v5115
        %v5255 = vrcp.pop %v5117
        %v5256 = vrcp.pop %v5119
        %v5257 = vrcp.pop %v5121
        %v5258 = vrcp.pop %v5123
        %v5259 = vrcp.pop %v5125
        %v5260 = vrcp.pop %v5127
        %v5261 = vrcp.pop %v5129
        %v5262 = vrcp.pop %v5131
        %v5263 = vrcp.pop %v5133
        %v5264 = vrcp.pop %v5135
        %v5265 = vrcp.pop %v5137
        %v5266 = vrcp.pop %v5139
        %v5267 = vrcp.pop %v5141
        %v5268 = vrcp.pop %v5143
        %v5269 = vrcp.pop %v5145
        %v5270 = vrcp.pop %v5147
        %v5271 = vrcp.pop %v5149
        %v5272 = vrcp.pop %v5151
        %v5273 = vrcp.pop %v5153
        %v5274 = vrcp.pop %v5155
        %v5275 = vrcp.pop %v5157
        %v5276 = vrcp.pop %v5159
        %v5277 = vrcp.pop %v5161
        %v5278 = vrcp.pop %v5163
        %v5279 = vrcp.pop %v5165
        %v5280 = vrcp.pop %v5167
        %v5281 = vrcp.pop %v5169
        %v5282 = vrcp.pop %v5171
        %v5283 = vrcp.pop %v5173
        %v5284 = vrcp.pop %v5175
        %v5285 = vrcp.pop %v5177
        %v5286 = vrcp.pop %v5179
        %v5287 = vrcp.pop %v5181
        %v5288 = vrcp.pop %v5183
        %v5289 = vrcp.pop %v5185
        %v5290 = vrcp.pop %v5187
        %v5291 = vrcp.pop %v5189
        %v5292 = vrcp.pop %v5191
        %v5293 = vrcp.pop %v5193
        %v5294 = vrcp.pop %v5195
        %v5295 = vrcp.pop %v5197
        %v5296 = vrcp.pop %v5199
        %v5297 = vrcp.pop %v5201
        %v5298 = vmul.f32 %v4819, %v5202
        %v5299 = vmul.f32 %v4821, %v5203
        %v5300 = vmul.f32 %v4823, %v5204
        %v5301 = vmul.f32 %v4825, %v5205
        %v5302 = vmul.f32 %v4827, %v5206
        %v5303 = vmul.f32 %v4829, %v5207
        %v5304 = vmul.f32 %v4831, %v5208
        %v5305 = vmul.f32 %v4833, %v5209
        %v5306 = vmul.f32 %v4835, %v5210
        %v5307 = vmul.f32 %v4837, %v5211
        %v5308 = vmul.f32 %v4839, %v5212
        %v5309 = vmul.f32 %v4841, %v5213
        %v5310 = vmul.f32 %v4843, %v5214
        %v5311 = vmul.f32 %v4845, %v5215
        %v5312 = vmul.f32 %v4847, %v5216
        %v5313 = vmul.f32 %v4849, %v5217
        %v5314 = vmul.f32 %v4851, %v5218
        %v5315 = vmul.f32 %v4853, %v5219
        %v5316 = vmul.f32 %v4855, %v5220
        %v5317 = vmul.f32 %v4857, %v5221
        %v5318 = vmul.f32 %v4859, %v5222
        %v5319 = vmul.f32 %v4861, %v5223
        %v5320 = vmul.f32 %v4863, %v5224
        %v5321 = vmul.f32 %v4865, %v5225
        %v5322 = vmul.f32 %v4867, %v5226
        %v5323 = vmul.f32 %v4869, %v5227
        %v5324 = vmul.f32 %v4871, %v5228
        %v5325 = vmul.f32 %v4873, %v5229
        %v5326 = vmul.f32 %v4875, %v5230
        %v5327 = vmul.f32 %v4877, %v5231
        %v5328 = vmul.f32 %v4879, %v5232
        %v5329 = vmul.f32 %v4881, %v5233
        %v5330 = vmul.f32 %v4883, %v5234
        %v5331 = vmul.f32 %v4885, %v5235
        %v5332 = vmul.f32 %v4887, %v5236
        %v5333 = vmul.f32 %v4889, %v5237
        %v5334 = vmul.f32 %v4891, %v5238
        %v5335 = vmul.f32 %v4893, %v5239
        %v5336 = vmul.f32 %v4895, %v5240
        %v5337 = vmul.f32 %v4897, %v5241
        %v5338 = vmul.f32 %v4899, %v5242
        %v5339 = vmul.f32 %v4901, %v5243
        %v5340 = vmul.f32 %v4903, %v5244
        %v5341 = vmul.f32 %v4905, %v5245
        %v5342 = vmul.f32 %v4907, %v5246
        %v5343 = vmul.f32 %v4909, %v5247
        %v5344 = vmul.f32 %v4911, %v5248
        %v5345 = vmul.f32 %v4913, %v5249
        %v5346 = vmul.f32 %v4915, %v5250
        %v5347 = vmul.f32 %v4917, %v5251
        %v5348 = vmul.f32 %v4919, %v5252
        %v5349 = vmul.f32 %v4921, %v5253
        %v5350 = vmul.f32 %v4923, %v5254
        %v5351 = vmul.f32 %v4925, %v5255
        %v5352 = vmul.f32 %v4927, %v5256
        %v5353 = vmul.f32 %v4929, %v5257
        %v5354 = vmul.f32 %v4931, %v5258
        %v5355 = vmul.f32 %v4933, %v5259
        %v5356 = vmul.f32 %v4935, %v5260
        %v5357 = vmul.f32 %v4937, %v5261
        %v5358 = vmul.f32 %v4939, %v5262
        %v5359 = vmul.f32 %v4941, %v5263
        %v5360 = vmul.f32 %v4943, %v5264
        %v5361 = vmul.f32 %v4945, %v5265
        %v5362 = vmul.f32 %v4947, %v5266
        %v5363 = vmul.f32 %v4949, %v5267
        %v5364 = vmul.f32 %v4951, %v5268
        %v5365 = vmul.f32 %v4953, %v5269
        %v5366 = vmul.f32 %v4955, %v5270
        %v5367 = vmul.f32 %v4957, %v5271
        %v5368 = vmul.f32 %v4959, %v5272
        %v5369 = vmul.f32 %v4961, %v5273
        %v5370 = vmul.f32 %v4963, %v5274
        %v5371 = vmul.f32 %v4965, %v5275
        %v5372 = vmul.f32 %v4967, %v5276
        %v5373 = vmul.f32 %v4969, %v5277
        %v5374 = vmul.f32 %v4971, %v5278
        %v5375 = vmul.f32 %v4973, %v5279
        %v5376 = vmul.f32 %v4975, %v5280
        %v5377 = vmul.f32 %v4977, %v5281
        %v5378 = vmul.f32 %v4979, %v5282
        %v5379 = vmul.f32 %v4981, %v5283
        %v5380 = vmul.f32 %v4983, %v5284
        %v5381 = vmul.f32 %v4985, %v5285
        %v5382 = vmul.f32 %v4987, %v5286
        %v5383 = vmul.f32 %v4989, %v5287
        %v5384 = vmul.f32 %v4991, %v5288
        %v5385 = vmul.f32 %v4993, %v5289
        %v5386 = vmul.f32 %v4995, %v5290
        %v5387 = vmul.f32 %v4997, %v5291
        %v5388 = vmul.f32 %v4999, %v5292
        %v5389 = vmul.f32 %v5001, %v5293
        %v5390 = vmul.f32 %v5003, %v5294
        %v5391 = vmul.f32 %v5005, %v5295
        %v5392 = vmul.f32 %v5007, %v5296
        %v5393 = vmul.f32 %v5009, %v5297
        %5394 = vmatprep.subr.mxu0 0.0
        %5395 = vmatpush1.msra.mxu0 %v1077
        %5396 = vmatprep.subr.mxu0 0.0
        %5397 = vmatpush1.msra.mxu0 %v1083
        %5398 = vmatprep.subr.mxu0 0.0
        %5399 = vmatpush1.msra.mxu0 %v1089
        %5400 = vmatprep.subr.mxu0 0.0
        %5401 = vmatpush1.msra.mxu0 %v1095
        %5402 = vmatprep.subr.mxu0 0.0
        %5403 = vmatpush1.msra.mxu0 %v1101
        %5404 = vmatprep.subr.mxu0 0.0
        %5405 = vmatpush1.msra.mxu0 %v1107
        %5406 = vmatprep.subr.mxu0 0.0
        %5407 = vmatpush1.msra.mxu0 %v1113
        %5408 = vmatprep.subr.mxu0 0.0
        %5409 = vmatpush1.msra.mxu0 %v1119
        %5410 = vmatprep.subr.mxu0 0.0
        %5411 = vmatpush1.msra.mxu0 %v1125
        %5412 = vmatprep.subr.mxu0 0.0
        %5413 = vmatpush1.msra.mxu0 %v1131
        %5414 = vmatprep.subr.mxu0 0.0
        %5415 = vmatpush1.msra.mxu0 %v1137
        %5416 = vmatprep.subr.mxu0 0.0
        %5417 = vmatpush1.msra.mxu0 %v1143
        %5418 = vmatprep.subr.mxu0 0.0
        %5419 = vmatpush1.msra.mxu0 %v1149
        %5420 = vmatprep.subr.mxu0 0.0
        %5421 = vmatpush1.msra.mxu0 %v1155
        %5422 = vmatprep.subr.mxu0 0.0
        %5423 = vmatpush1.msra.mxu0 %v1161
        %5424 = vmatprep.subr.mxu0 0.0
        %5425 = vmatpush1.msra.mxu0 %v1167
        %5426 = vmatprep.subr.mxu0 0.0
        %5427 = vmatpush1.msra.mxu0 0.0
        %5428 = vmatprep.subr.mxu0 0.0
        %5429 = vmatpush1.msra.mxu0 0.0
        %5430 = vmatprep.subr.mxu0 0.0
        %5431 = vmatpush1.msra.mxu0 0.0
        %5432 = vmatprep.subr.mxu0 0.0
        %5433 = vmatpush1.msra.mxu0 0.0
        %5434 = vmatprep.subr.mxu0 0.0
        %5435 = vmatpush1.msra.mxu0 0.0
        %5436 = vmatprep.subr.mxu0 0.0
        %5437 = vmatpush1.msra.mxu0 0.0
        %5438 = vmatprep.subr.mxu0 0.0
        %5439 = vmatpush1.msra.mxu0 0.0
        %5440 = vmatprep.subr.mxu0 0.0
        %5441 = vmatpush1.msra.mxu0 0.0
        %5442 = vmatprep.subr.mxu0 0.0
        %5443 = vmatpush1.msra.mxu0 0.0
        %5444 = vmatprep.subr.mxu0 0.0
        %5445 = vmatpush1.msra.mxu0 0.0
        %5446 = vmatprep.subr.mxu0 0.0
        %5447 = vmatpush1.msra.mxu0 0.0
        %5448 = vmatprep.subr.mxu0 0.0
        %5449 = vmatpush1.msra.mxu0 0.0
        %5450 = vmatprep.subr.mxu0 0.0
        %5451 = vmatpush1.msra.mxu0 0.0
        %5452 = vmatprep.subr.mxu0 0.0
        %5453 = vmatpush1.msra.mxu0 0.0
        %5454 = vmatprep.subr.mxu0 0.0
        %5455 = vmatpush1.msra.mxu0 0.0
        %5456 = vmatprep.subr.mxu0 0.0
        %5457 = vmatpush1.msra.mxu0 0.0
        %5458 = vmatprep.mubr.f32.mxu0 0.0
        %5459 = vmatmul.mubr.f32.gmra.mrb[0].mxu0 %v5298
        %v5460 = vpop.f32.mrb[0].mxu0
        %v5461 = vadd.f32 0.0, %v5460
        %v5462 = vpop.f32.mrb[0].mxu0
        %5463 = vmatprep.mubr.f32.mxu0 0.0
        %5464 = vmatmul.mubr.f32.gmra.mrb[0].mxu0 %v5299
        %v5465 = vpop.f32.mrb[0].mxu0
        %v5466 = vadd.f32 0.0, %v5465
        %v5467 = vpop.f32.mrb[0].mxu0
        %5468 = vmatprep.mubr.f32.mxu0 0.0
        %5469 = vmatmul.mubr.f32.gmra.mrb[0].mxu0 %v5300
        %v5470 = vpop.f32.mrb[0].mxu0
        %v5471 = vadd.f32 0.0, %v5470
        %v5472 = vpop.f32.mrb[0].mxu0
        %5473 = vmatprep.mubr.f32.mxu0 0.0
        %5474 = vmatmul.mubr.f32.gmra.mrb[0].mxu0 %v5301
        %v5475 = vpop.f32.mrb[0].mxu0
        %v5476 = vadd.f32 0.0, %v5475
        %v5477 = vpop.f32.mrb[0].mxu0
        %5478 = vmatprep.mubr.f32.mxu0 0.0
        %5479 = vmatmul.mubr.f32.gmra.mrb[0].mxu0 %v5302
        %v5480 = vpop.f32.mrb[0].mxu0
        %v5481 = vadd.f32 0.0, %v5480
        %v5482 = vpop.f32.mrb[0].mxu0
        %5483 = vmatprep.mubr.f32.mxu0 0.0
        %5484 = vmatmul.mubr.f32.gmra.mrb[0].mxu0 %v5303
        %v5485 = vpop.f32.mrb[0].mxu0
        %v5486 = vadd.f32 0.0, %v5485
        %v5487 = vpop.f32.mrb[0].mxu0
        %5488 = vmatprep.mubr.f32.mxu0 0.0
        %5489 = vmatmul.mubr.f32.gmra.mrb[0].mxu0 %v5304
        %v5490 = vpop.f32.mrb[0].mxu0
        %v5491 = vadd.f32 0.0, %v5490
        %v5492 = vpop.f32.mrb[0].mxu0
        %5493 = vmatprep.mubr.f32.mxu0 0.0
        %5494 = vmatmul.mubr.f32.gmra.mrb[0].mxu0 %v5305
        %v5495 = vpop.f32.mrb[0].mxu0
        %v5496 = vadd.f32 0.0, %v5495
        %v5497 = vpop.f32.mrb[0].mxu0
        %5498 = vmatprep.mubr.f32.mxu0 0.0
        %5499 = vmatmul.mubr.f32.gmra.mrb[0].mxu0 %v5306
        %v5500 = vpop.f32.mrb[0].mxu0
        %v5501 = vadd.f32 0.0, %v5500
        %v5502 = vpop.f32.mrb[0].mxu0
        %5503 = vmatprep.mubr.f32.mxu0 0.0
        %5504 = vmatmul.mubr.f32.gmra.mrb[0].mxu0 %v5307
        %v5505 = vpop.f32.mrb[0].mxu0
        %v5506 = vadd.f32 0.0, %v5505
        %v5507 = vpop.f32.mrb[0].mxu0
        %5508 = vmatprep.mubr.f32.mxu0 0.0
        %5509 = vmatmul.mubr.f32.gmra.mrb[0].mxu0 %v5308
        %v5510 = vpop.f32.mrb[0].mxu0
        %v5511 = vadd.f32 0.0, %v5510
        %v5512 = vpop.f32.mrb[0].mxu0
        %5513 = vmatprep.mubr.f32.mxu0 0.0
        %5514 = vmatmul.mubr.f32.gmra.mrb[0].mxu0 %v5309
        %v5515 = vpop.f32.mrb[0].mxu0
        %v5516 = vadd.f32 0.0, %v5515
        %v5517 = vpop.f32.mrb[0].mxu0
        %5518 = vmatprep.mubr.f32.mxu0 0.0
        %5519 = vmatmul.mubr.f32.gmra.mrb[0].mxu0 %v5310
        %v5520 = vpop.f32.mrb[0].mxu0
        %v5521 = vadd.f32 0.0, %v5520
        %v5522 = vpop.f32.mrb[0].mxu0
        %5523 = vmatprep.mubr.f32.mxu0 0.0
        %5524 = vmatmul.mubr.f32.gmra.mrb[0].mxu0 %v5311
        %v5525 = vpop.f32.mrb[0].mxu0
        %v5526 = vadd.f32 0.0, %v5525
        %v5527 = vpop.f32.mrb[0].mxu0
        %5528 = vmatprep.mubr.f32.mxu0 0.0
        %5529 = vmatmul.mubr.f32.gmra.mrb[0].mxu0 %v5312
        %v5530 = vpop.f32.mrb[0].mxu0
        %v5531 = vadd.f32 0.0, %v5530
        %v5532 = vpop.f32.mrb[0].mxu0
        %5533 = vmatprep.mubr.f32.mxu0 0.0
        %5534 = vmatmul.mubr.f32.gmra.mrb[0].mxu0 %v5313
        %v5535 = vpop.f32.mrb[0].mxu0
        %v5536 = vadd.f32 0.0, %v5535
        %v5537 = vpop.f32.mrb[0].mxu0
        %5538 = vdwg.mxu0
        %5539 = vmatprep.subr.mxu0 0.0
        %5540 = vmatpush1.msra.mxu0 %v1399
        %5541 = vmatprep.subr.mxu0 0.0
        %5542 = vmatpush1.msra.mxu0 %v1405
        %5543 = vmatprep.subr.mxu0 0.0
        %5544 = vmatpush1.msra.mxu0 %v1411
        %5545 = vmatprep.subr.mxu0 0.0
        %5546 = vmatpush1.msra.mxu0 %v1417
        %5547 = vmatprep.subr.mxu0 0.0
        %5548 = vmatpush1.msra.mxu0 %v1423
        %5549 = vmatprep.subr.mxu0 0.0
        %5550 = vmatpush1.msra.mxu0 %v1429
        %5551 = vmatprep.subr.mxu0 0.0
        %5552 = vmatpush1.msra.mxu0 %v1435
        %5553 = vmatprep.subr.mxu0 0.0
        %5554 = vmatpush1.msra.mxu0 %v1441
        %5555 = vmatprep.subr.mxu0 0.0
        %5556 = vmatpush1.msra.mxu0 %v1447
        %5557 = vmatprep.subr.mxu0 0.0
        %5558 = vmatpush1.msra.mxu0 %v1453
        %5559 = vmatprep.subr.mxu0 0.0
        %5560 = vmatpush1.msra.mxu0 %v1459
        %5561 = vmatprep.subr.mxu0 0.0
        %5562 = vmatpush1.msra.mxu0 %v1465
        %5563 = vmatprep.subr.mxu0 0.0
        %5564 = vmatpush1.msra.mxu0 %v1471
        %5565 = vmatprep.subr.mxu0 0.0
        %5566 = vmatpush1.msra.mxu0 %v1477
        %5567 = vmatprep.subr.mxu0 0.0
        %5568 = vmatpush1.msra.mxu0 %v1483
        %5569 = vmatprep.subr.mxu0 0.0
        %5570 = vmatpush1.msra.mxu0 %v1489
        %5571 = vmatprep.subr.mxu0 0.0
        %5572 = vmatpush1.msra.mxu0 0.0
        %5573 = vmatprep.subr.mxu0 0.0
        %5574 = vmatpush1.msra.mxu0 0.0
        %5575 = vmatprep.subr.mxu0 0.0
        %5576 = vmatpush1.msra.mxu0 0.0
        %5577 = vmatprep.subr.mxu0 0.0
        %5578 = vmatpush1.msra.mxu0 0.0
        %5579 = vmatprep.subr.mxu0 0.0
        %5580 = vmatpush1.msra.mxu0 0.0
        %5581 = vmatprep.subr.mxu0 0.0
        %5582 = vmatpush1.msra.mxu0 0.0
        %5583 = vmatprep.subr.mxu0 0.0
        %5584 = vmatpush1.msra.mxu0 0.0
        %5585 = vmatprep.subr.mxu0 0.0
        %5586 = vmatpush1.msra.mxu0 0.0
        %5587 = vmatprep.subr.mxu0 0.0
        %5588 = vmatpush1.msra.mxu0 0.0
        %5589 = vmatprep.subr.mxu0 0.0
        %5590 = vmatpush1.msra.mxu0 0.0
        %5591 = vmatprep.subr.mxu0 0.0
        %5592 = vmatpush1.msra.mxu0 0.0
        %5593 = vmatprep.subr.mxu0 0.0
        %5594 = vmatpush1.msra.mxu0 0.0
        %5595 = vmatprep.subr.mxu0 0.0
        %5596 = vmatpush1.msra.mxu0 0.0
        %5597 = vmatprep.subr.mxu0 0.0
        %5598 = vmatpush1.msra.mxu0 0.0
        %5599 = vmatprep.subr.mxu0 0.0
        %5600 = vmatpush1.msra.mxu0 0.0
        %5601 = vmatprep.subr.mxu0 0.0
        %5602 = vmatpush1.msra.mxu0 0.0
        %5603 = vmatprep.mubr.f32.mxu0 0.0
        %5604 = vmatmul.mubr.f32.gmra.mrb[0].mxu0 %v5314
        %v5605 = vpop.f32.mrb[0].mxu0
        %v5606 = vadd.f32 0.0, %v5605
        %v5607 = vpop.f32.mrb[0].mxu0
        %5608 = vmatprep.mubr.f32.mxu0 0.0
        %5609 = vmatmul.mubr.f32.gmra.mrb[0].mxu0 %v5315
        %v5610 = vpop.f32.mrb[0].mxu0
        %v5611 = vadd.f32 0.0, %v5610
        %v5612 = vpop.f32.mrb[0].mxu0
        %5613 = vmatprep.mubr.f32.mxu0 0.0
        %5614 = vmatmul.mubr.f32.gmra.mrb[0].mxu0 %v5316
        %v5615 = vpop.f32.mrb[0].mxu0
        %v5616 = vadd.f32 0.0, %v5615
        %v5617 = vpop.f32.mrb[0].mxu0
        %5618 = vmatprep.mubr.f32.mxu0 0.0
        %5619 = vmatmul.mubr.f32.gmra.mrb[0].mxu0 %v5317
        %v5620 = vpop.f32.mrb[0].mxu0
        %v5621 = vadd.f32 0.0, %v5620
        %v5622 = vpop.f32.mrb[0].mxu0
        %5623 = vmatprep.mubr.f32.mxu0 0.0
        %5624 = vmatmul.mubr.f32.gmra.mrb[0].mxu0 %v5318
        %v5625 = vpop.f32.mrb[0].mxu0
        %v5626 = vadd.f32 0.0, %v5625
        %v5627 = vpop.f32.mrb[0].mxu0
        %5628 = vmatprep.mubr.f32.mxu0 0.0
        %5629 = vmatmul.mubr.f32.gmra.mrb[0].mxu0 %v5319
        %v5630 = vpop.f32.mrb[0].mxu0
        %v5631 = vadd.f32 0.0, %v5630
        %v5632 = vpop.f32.mrb[0].mxu0
        %5633 = vmatprep.mubr.f32.mxu0 0.0
        %5634 = vmatmul.mubr.f32.gmra.mrb[0].mxu0 %v5320
        %v5635 = vpop.f32.mrb[0].mxu0
        %v5636 = vadd.f32 0.0, %v5635
        %v5637 = vpop.f32.mrb[0].mxu0
        %5638 = vmatprep.mubr.f32.mxu0 0.0
        %5639 = vmatmul.mubr.f32.gmra.mrb[0].mxu0 %v5321
        %v5640 = vpop.f32.mrb[0].mxu0
        %v5641 = vadd.f32 0.0, %v5640
        %v5642 = vpop.f32.mrb[0].mxu0
        %5643 = vmatprep.mubr.f32.mxu0 0.0
        %5644 = vmatmul.mubr.f32.gmra.mrb[0].mxu0 %v5322
        %v5645 = vpop.f32.mrb[0].mxu0
        %v5646 = vadd.f32 0.0, %v5645
        %v5647 = vpop.f32.mrb[0].mxu0
        %5648 = vmatprep.mubr.f32.mxu0 0.0
        %5649 = vmatmul.mubr.f32.gmra.mrb[0].mxu0 %v5323
        %v5650 = vpop.f32.mrb[0].mxu0
        %v5651 = vadd.f32 0.0, %v5650
        %v5652 = vpop.f32.mrb[0].mxu0
        %5653 = vmatprep.mubr.f32.mxu0 0.0
        %5654 = vmatmul.mubr.f32.gmra.mrb[0].mxu0 %v5324
        %v5655 = vpop.f32.mrb[0].mxu0
        %v5656 = vadd.f32 0.0, %v5655
        %v5657 = vpop.f32.mrb[0].mxu0
        %5658 = vmatprep.mubr.f32.mxu0 0.0
        %5659 = vmatmul.mubr.f32.gmra.mrb[0].mxu0 %v5325
        %v5660 = vpop.f32.mrb[0].mxu0
        %v5661 = vadd.f32 0.0, %v5660
        %v5662 = vpop.f32.mrb[0].mxu0
        %5663 = vmatprep.mubr.f32.mxu0 0.0
        %5664 = vmatmul.mubr.f32.gmra.mrb[0].mxu0 %v5326
        %v5665 = vpop.f32.mrb[0].mxu0
        %v5666 = vadd.f32 0.0, %v5665
        %v5667 = vpop.f32.mrb[0].mxu0
        %5668 = vmatprep.mubr.f32.mxu0 0.0
        %5669 = vmatmul.mubr.f32.gmra.mrb[0].mxu0 %v5327
        %v5670 = vpop.f32.mrb[0].mxu0
        %v5671 = vadd.f32 0.0, %v5670
        %v5672 = vpop.f32.mrb[0].mxu0
        %5673 = vmatprep.mubr.f32.mxu0 0.0
        %5674 = vmatmul.mubr.f32.gmra.mrb[0].mxu0 %v5328
        %v5675 = vpop.f32.mrb[0].mxu0
        %v5676 = vadd.f32 0.0, %v5675
        %v5677 = vpop.f32.mrb[0].mxu0
        %5678 = vmatprep.mubr.f32.mxu0 0.0
        %5679 = vmatmul.mubr.f32.gmra.mrb[0].mxu0 %v5329
        %v5680 = vpop.f32.mrb[0].mxu0
        %v5681 = vadd.f32 0.0, %v5680
        %v5682 = vpop.f32.mrb[0].mxu0
        %5683 = vdwg.mxu0
        %5684 = vmatprep.subr.mxu0 0.0
        %5685 = vmatpush1.msra.mxu0 %v1721
        %5686 = vmatprep.subr.mxu0 0.0
        %5687 = vmatpush1.msra.mxu0 %v1727
        %5688 = vmatprep.subr.mxu0 0.0
        %5689 = vmatpush1.msra.mxu0 %v1733
        %5690 = vmatprep.subr.mxu0 0.0
        %5691 = vmatpush1.msra.mxu0 %v1739
        %5692 = vmatprep.subr.mxu0 0.0
        %5693 = vmatpush1.msra.mxu0 %v1745
        %5694 = vmatprep.subr.mxu0 0.0
        %5695 = vmatpush1.msra.mxu0 %v1751
        %5696 = vmatprep.subr.mxu0 0.0
        %5697 = vmatpush1.msra.mxu0 %v1757
        %5698 = vmatprep.subr.mxu0 0.0
        %5699 = vmatpush1.msra.mxu0 %v1763
        %5700 = vmatprep.subr.mxu0 0.0
        %5701 = vmatpush1.msra.mxu0 %v1769
        %5702 = vmatprep.subr.mxu0 0.0
        %5703 = vmatpush1.msra.mxu0 %v1775
        %5704 = vmatprep.subr.mxu0 0.0
        %5705 = vmatpush1.msra.mxu0 %v1781
        %5706 = vmatprep.subr.mxu0 0.0
        %5707 = vmatpush1.msra.mxu0 %v1787
        %5708 = vmatprep.subr.mxu0 0.0
        %5709 = vmatpush1.msra.mxu0 %v1793
        %5710 = vmatprep.subr.mxu0 0.0
        %5711 = vmatpush1.msra.mxu0 %v1799
        %5712 = vmatprep.subr.mxu0 0.0
        %5713 = vmatpush1.msra.mxu0 %v1805
        %5714 = vmatprep.subr.mxu0 0.0
        %5715 = vmatpush1.msra.mxu0 %v1811
        %5716 = vmatprep.subr.mxu0 0.0
        %5717 = vmatpush1.msra.mxu0 0.0
        %5718 = vmatprep.subr.mxu0 0.0
        %5719 = vmatpush1.msra.mxu0 0.0
        %5720 = vmatprep.subr.mxu0 0.0
        %5721 = vmatpush1.msra.mxu0 0.0
        %5722 = vmatprep.subr.mxu0 0.0
        %5723 = vmatpush1.msra.mxu0 0.0
        %5724 = vmatprep.subr.mxu0 0.0
        %5725 = vmatpush1.msra.mxu0 0.0
        %5726 = vmatprep.subr.mxu0 0.0
        %5727 = vmatpush1.msra.mxu0 0.0
        %5728 = vmatprep.subr.mxu0 0.0
        %5729 = vmatpush1.msra.mxu0 0.0
        %5730 = vmatprep.subr.mxu0 0.0
        %5731 = vmatpush1.msra.mxu0 0.0
        %5732 = vmatprep.subr.mxu0 0.0
        %5733 = vmatpush1.msra.mxu0 0.0
        %5734 = vmatprep.subr.mxu0 0.0
        %5735 = vmatpush1.msra.mxu0 0.0
        %5736 = vmatprep.subr.mxu0 0.0
        %5737 = vmatpush1.msra.mxu0 0.0
        %5738 = vmatprep.subr.mxu0 0.0
        %5739 = vmatpush1.msra.mxu0 0.0
        %5740 = vmatprep.subr.mxu0 0.0
        %5741 = vmatpush1.msra.mxu0 0.0
        %5742 = vmatprep.subr.mxu0 0.0
        %5743 = vmatpush1.msra.mxu0 0.0
        %5744 = vmatprep.subr.mxu0 0.0
        %5745 = vmatpush1.msra.mxu0 0.0
        %5746 = vmatprep.subr.mxu0 0.0
        %5747 = vmatpush1.msra.mxu0 0.0
        %5748 = vmatprep.mubr.f32.mxu0 0.0
        %5749 = vmatmul.mubr.f32.gmra.mrb[0].mxu0 %v5330
        %v5750 = vpop.f32.mrb[0].mxu0
        %v5751 = vadd.f32 0.0, %v5750
        %v5752 = vpop.f32.mrb[0].mxu0
        %5753 = vmatprep.mubr.f32.mxu0 0.0
        %5754 = vmatmul.mubr.f32.gmra.mrb[0].mxu0 %v5331
        %v5755 = vpop.f32.mrb[0].mxu0
        %v5756 = vadd.f32 0.0, %v5755
        %v5757 = vpop.f32.mrb[0].mxu0
        %5758 = vmatprep.mubr.f32.mxu0 0.0
        %5759 = vmatmul.mubr.f32.gmra.mrb[0].mxu0 %v5332
        %v5760 = vpop.f32.mrb[0].mxu0
        %v5761 = vadd.f32 0.0, %v5760
        %v5762 = vpop.f32.mrb[0].mxu0
        %5763 = vmatprep.mubr.f32.mxu0 0.0
        %5764 = vmatmul.mubr.f32.gmra.mrb[0].mxu0 %v5333
        %v5765 = vpop.f32.mrb[0].mxu0
        %v5766 = vadd.f32 0.0, %v5765
        %v5767 = vpop.f32.mrb[0].mxu0
        %5768 = vmatprep.mubr.f32.mxu0 0.0
        %5769 = vmatmul.mubr.f32.gmra.mrb[0].mxu0 %v5334
        %v5770 = vpop.f32.mrb[0].mxu0
        %v5771 = vadd.f32 0.0, %v5770
        %v5772 = vpop.f32.mrb[0].mxu0
        %5773 = vmatprep.mubr.f32.mxu0 0.0
        %5774 = vmatmul.mubr.f32.gmra.mrb[0].mxu0 %v5335
        %v5775 = vpop.f32.mrb[0].mxu0
        %v5776 = vadd.f32 0.0, %v5775
        %v5777 = vpop.f32.mrb[0].mxu0
        %5778 = vmatprep.mubr.f32.mxu0 0.0
        %5779 = vmatmul.mubr.f32.gmra.mrb[0].mxu0 %v5336
        %v5780 = vpop.f32.mrb[0].mxu0
        %v5781 = vadd.f32 0.0, %v5780
        %v5782 = vpop.f32.mrb[0].mxu0
        %5783 = vmatprep.mubr.f32.mxu0 0.0
        %5784 = vmatmul.mubr.f32.gmra.mrb[0].mxu0 %v5337
        %v5785 = vpop.f32.mrb[0].mxu0
        %v5786 = vadd.f32 0.0, %v5785
        %v5787 = vpop.f32.mrb[0].mxu0
        %5788 = vmatprep.mubr.f32.mxu0 0.0
        %5789 = vmatmul.mubr.f32.gmra.mrb[0].mxu0 %v5338
        %v5790 = vpop.f32.mrb[0].mxu0
        %v5791 = vadd.f32 0.0, %v5790
        %v5792 = vpop.f32.mrb[0].mxu0
        %5793 = vmatprep.mubr.f32.mxu0 0.0
        %5794 = vmatmul.mubr.f32.gmra.mrb[0].mxu0 %v5339
        %v5795 = vpop.f32.mrb[0].mxu0
        %v5796 = vadd.f32 0.0, %v5795
        %v5797 = vpop.f32.mrb[0].mxu0
        %5798 = vmatprep.mubr.f32.mxu0 0.0
        %5799 = vmatmul.mubr.f32.gmra.mrb[0].mxu0 %v5340
        %v5800 = vpop.f32.mrb[0].mxu0
        %v5801 = vadd.f32 0.0, %v5800
        %v5802 = vpop.f32.mrb[0].mxu0
        %5803 = vmatprep.mubr.f32.mxu0 0.0
        %5804 = vmatmul.mubr.f32.gmra.mrb[0].mxu0 %v5341
        %v5805 = vpop.f32.mrb[0].mxu0
        %v5806 = vadd.f32 0.0, %v5805
        %v5807 = vpop.f32.mrb[0].mxu0
        %5808 = vmatprep.mubr.f32.mxu0 0.0
        %5809 = vmatmul.mubr.f32.gmra.mrb[0].mxu0 %v5342
        %v5810 = vpop.f32.mrb[0].mxu0
        %v5811 = vadd.f32 0.0, %v5810
        %v5812 = vpop.f32.mrb[0].mxu0
        %5813 = vmatprep.mubr.f32.mxu0 0.0
        %5814 = vmatmul.mubr.f32.gmra.mrb[0].mxu0 %v5343
        %v5815 = vpop.f32.mrb[0].mxu0
        %v5816 = vadd.f32 0.0, %v5815
        %v5817 = vpop.f32.mrb[0].mxu0
        %5818 = vmatprep.mubr.f32.mxu0 0.0
        %5819 = vmatmul.mubr.f32.gmra.mrb[0].mxu0 %v5344
        %v5820 = vpop.f32.mrb[0].mxu0
        %v5821 = vadd.f32 0.0, %v5820
        %v5822 = vpop.f32.mrb[0].mxu0
        %5823 = vmatprep.mubr.f32.mxu0 0.0
        %5824 = vmatmul.mubr.f32.gmra.mrb[0].mxu0 %v5345
        %v5825 = vpop.f32.mrb[0].mxu0
        %v5826 = vadd.f32 0.0, %v5825
        %v5827 = vpop.f32.mrb[0].mxu0
        %5828 = vdwg.mxu0
        %5829 = vmatprep.subr.mxu0 0.0
        %5830 = vmatpush1.msra.mxu0 %v2043
        %5831 = vmatprep.subr.mxu0 0.0
        %5832 = vmatpush1.msra.mxu0 %v2049
        %5833 = vmatprep.subr.mxu0 0.0
        %5834 = vmatpush1.msra.mxu0 %v2055
        %5835 = vmatprep.subr.mxu0 0.0
        %5836 = vmatpush1.msra.mxu0 %v2061
        %5837 = vmatprep.subr.mxu0 0.0
        %5838 = vmatpush1.msra.mxu0 %v2067
        %5839 = vmatprep.subr.mxu0 0.0
        %5840 = vmatpush1.msra.mxu0 %v2073
        %5841 = vmatprep.subr.mxu0 0.0
        %5842 = vmatpush1.msra.mxu0 %v2079
        %5843 = vmatprep.subr.mxu0 0.0
        %5844 = vmatpush1.msra.mxu0 %v2085
        %5845 = vmatprep.subr.mxu0 0.0
        %5846 = vmatpush1.msra.mxu0 %v2091
        %5847 = vmatprep.subr.mxu0 0.0
        %5848 = vmatpush1.msra.mxu0 %v2097
        %5849 = vmatprep.subr.mxu0 0.0
        %5850 = vmatpush1.msra.mxu0 %v2103
        %5851 = vmatprep.subr.mxu0 0.0
        %5852 = vmatpush1.msra.mxu0 %v2109
        %5853 = vmatprep.subr.mxu0 0.0
        %5854 = vmatpush1.msra.mxu0 %v2115
        %5855 = vmatprep.subr.mxu0 0.0
        %5856 = vmatpush1.msra.mxu0 %v2121
        %5857 = vmatprep.subr.mxu0 0.0
        %5858 = vmatpush1.msra.mxu0 %v2127
        %5859 = vmatprep.subr.mxu0 0.0
        %5860 = vmatpush1.msra.mxu0 %v2133
        %5861 = vmatprep.subr.mxu0 0.0
        %5862 = vmatpush1.msra.mxu0 0.0
        %5863 = vmatprep.subr.mxu0 0.0
        %5864 = vmatpush1.msra.mxu0 0.0
        %5865 = vmatprep.subr.mxu0 0.0
        %5866 = vmatpush1.msra.mxu0 0.0
        %5867 = vmatprep.subr.mxu0 0.0
        %5868 = vmatpush1.msra.mxu0 0.0
        %5869 = vmatprep.subr.mxu0 0.0
        %5870 = vmatpush1.msra.mxu0 0.0
        %5871 = vmatprep.subr.mxu0 0.0
        %5872 = vmatpush1.msra.mxu0 0.0
        %5873 = vmatprep.subr.mxu0 0.0
        %5874 = vmatpush1.msra.mxu0 0.0
        %5875 = vmatprep.subr.mxu0 0.0
        %5876 = vmatpush1.msra.mxu0 0.0
        %5877 = vmatprep.subr.mxu0 0.0
        %5878 = vmatpush1.msra.mxu0 0.0
        %5879 = vmatprep.subr.mxu0 0.0
        %5880 = vmatpush1.msra.mxu0 0.0
        %5881 = vmatprep.subr.mxu0 0.0
        %5882 = vmatpush1.msra.mxu0 0.0
        %5883 = vmatprep.subr.mxu0 0.0
        %5884 = vmatpush1.msra.mxu0 0.0
        %5885 = vmatprep.subr.mxu0 0.0
        %5886 = vmatpush1.msra.mxu0 0.0
        %5887 = vmatprep.subr.mxu0 0.0
        %5888 = vmatpush1.msra.mxu0 0.0
        %5889 = vmatprep.subr.mxu0 0.0
        %5890 = vmatpush1.msra.mxu0 0.0
        %5891 = vmatprep.subr.mxu0 0.0
        %5892 = vmatpush1.msra.mxu0 0.0
        %5893 = vmatprep.mubr.f32.mxu0 0.0
        %5894 = vmatmul.mubr.f32.gmra.mrb[0].mxu0 %v5346
        %v5895 = vpop.f32.mrb[0].mxu0
        %v5896 = vadd.f32 0.0, %v5895
        %v5897 = vpop.f32.mrb[0].mxu0
        %5898 = vmatprep.mubr.f32.mxu0 0.0
        %5899 = vmatmul.mubr.f32.gmra.mrb[0].mxu0 %v5347
        %v5900 = vpop.f32.mrb[0].mxu0
        %v5901 = vadd.f32 0.0, %v5900
        %v5902 = vpop.f32.mrb[0].mxu0
        %5903 = vmatprep.mubr.f32.mxu0 0.0
        %5904 = vmatmul.mubr.f32.gmra.mrb[0].mxu0 %v5348
        %v5905 = vpop.f32.mrb[0].mxu0
        %v5906 = vadd.f32 0.0, %v5905
        %v5907 = vpop.f32.mrb[0].mxu0
        %5908 = vmatprep.mubr.f32.mxu0 0.0
        %5909 = vmatmul.mubr.f32.gmra.mrb[0].mxu0 %v5349
        %v5910 = vpop.f32.mrb[0].mxu0
        %v5911 = vadd.f32 0.0, %v5910
        %v5912 = vpop.f32.mrb[0].mxu0
        %5913 = vmatprep.mubr.f32.mxu0 0.0
        %5914 = vmatmul.mubr.f32.gmra.mrb[0].mxu0 %v5350
        %v5915 = vpop.f32.mrb[0].mxu0
        %v5916 = vadd.f32 0.0, %v5915
        %v5917 = vpop.f32.mrb[0].mxu0
        %5918 = vmatprep.mubr.f32.mxu0 0.0
        %5919 = vmatmul.mubr.f32.gmra.mrb[0].mxu0 %v5351
        %v5920 = vpop.f32.mrb[0].mxu0
        %v5921 = vadd.f32 0.0, %v5920
        %v5922 = vpop.f32.mrb[0].mxu0
        %5923 = vmatprep.mubr.f32.mxu0 0.0
        %5924 = vmatmul.mubr.f32.gmra.mrb[0].mxu0 %v5352
        %v5925 = vpop.f32.mrb[0].mxu0
        %v5926 = vadd.f32 0.0, %v5925
        %v5927 = vpop.f32.mrb[0].mxu0
        %5928 = vmatprep.mubr.f32.mxu0 0.0
        %5929 = vmatmul.mubr.f32.gmra.mrb[0].mxu0 %v5353
        %v5930 = vpop.f32.mrb[0].mxu0
        %v5931 = vadd.f32 0.0, %v5930
        %v5932 = vpop.f32.mrb[0].mxu0
        %5933 = vmatprep.mubr.f32.mxu0 0.0
        %5934 = vmatmul.mubr.f32.gmra.mrb[0].mxu0 %v5354
        %v5935 = vpop.f32.mrb[0].mxu0
        %v5936 = vadd.f32 0.0, %v5935
        %v5937 = vpop.f32.mrb[0].mxu0
        %5938 = vmatprep.mubr.f32.mxu0 0.0
        %5939 = vmatmul.mubr.f32.gmra.mrb[0].mxu0 %v5355
        %v5940 = vpop.f32.mrb[0].mxu0
        %v5941 = vadd.f32 0.0, %v5940
        %v5942 = vpop.f32.mrb[0].mxu0
        %5943 = vmatprep.mubr.f32.mxu0 0.0
        %5944 = vmatmul.mubr.f32.gmra.mrb[0].mxu0 %v5356
        %v5945 = vpop.f32.mrb[0].mxu0
        %v5946 = vadd.f32 0.0, %v5945
        %v5947 = vpop.f32.mrb[0].mxu0
        %5948 = vmatprep.mubr.f32.mxu0 0.0
        %5949 = vmatmul.mubr.f32.gmra.mrb[0].mxu0 %v5357
        %v5950 = vpop.f32.mrb[0].mxu0
        %v5951 = vadd.f32 0.0, %v5950
        %v5952 = vpop.f32.mrb[0].mxu0
        %5953 = vmatprep.mubr.f32.mxu0 0.0
        %5954 = vmatmul.mubr.f32.gmra.mrb[0].mxu0 %v5358
        %v5955 = vpop.f32.mrb[0].mxu0
        %v5956 = vadd.f32 0.0, %v5955
        %v5957 = vpop.f32.mrb[0].mxu0
        %5958 = vmatprep.mubr.f32.mxu0 0.0
        %5959 = vmatmul.mubr.f32.gmra.mrb[0].mxu0 %v5359
        %v5960 = vpop.f32.mrb[0].mxu0
        %v5961 = vadd.f32 0.0, %v5960
        %v5962 = vpop.f32.mrb[0].mxu0
        %5963 = vmatprep.mubr.f32.mxu0 0.0
        %5964 = vmatmul.mubr.f32.gmra.mrb[0].mxu0 %v5360
        %v5965 = vpop.f32.mrb[0].mxu0
        %v5966 = vadd.f32 0.0, %v5965
        %v5967 = vpop.f32.mrb[0].mxu0
        %5968 = vmatprep.mubr.f32.mxu0 0.0
        %5969 = vmatmul.mubr.f32.gmra.mrb[0].mxu0 %v5361
        %v5970 = vpop.f32.mrb[0].mxu0
        %v5971 = vadd.f32 0.0, %v5970
        %v5972 = vpop.f32.mrb[0].mxu0
        %5973 = vdwg.mxu0
        %5974 = vmatprep.subr.mxu0 0.0
        %5975 = vmatpush1.msra.mxu0 %v2365
        %5976 = vmatprep.subr.mxu0 0.0
        %5977 = vmatpush1.msra.mxu0 %v2371
        %5978 = vmatprep.subr.mxu0 0.0
        %5979 = vmatpush1.msra.mxu0 %v2377
        %5980 = vmatprep.subr.mxu0 0.0
        %5981 = vmatpush1.msra.mxu0 %v2383
        %5982 = vmatprep.subr.mxu0 0.0
        %5983 = vmatpush1.msra.mxu0 %v2389
        %5984 = vmatprep.subr.mxu0 0.0
        %5985 = vmatpush1.msra.mxu0 %v2395
        %5986 = vmatprep.subr.mxu0 0.0
        %5987 = vmatpush1.msra.mxu0 %v2401
        %5988 = vmatprep.subr.mxu0 0.0
        %5989 = vmatpush1.msra.mxu0 %v2407
        %5990 = vmatprep.subr.mxu0 0.0
        %5991 = vmatpush1.msra.mxu0 %v2413
        %5992 = vmatprep.subr.mxu0 0.0
        %5993 = vmatpush1.msra.mxu0 %v2419
        %5994 = vmatprep.subr.mxu0 0.0
        %5995 = vmatpush1.msra.mxu0 %v2425
        %5996 = vmatprep.subr.mxu0 0.0
        %5997 = vmatpush1.msra.mxu0 %v2431
        %5998 = vmatprep.subr.mxu0 0.0
        %5999 = vmatpush1.msra.mxu0 %v2437
        %6000 = vmatprep.subr.mxu0 0.0
        %6001 = vmatpush1.msra.mxu0 %v2443
        %6002 = vmatprep.subr.mxu0 0.0
        %6003 = vmatpush1.msra.mxu0 %v2449
        %6004 = vmatprep.subr.mxu0 0.0
        %6005 = vmatpush1.msra.mxu0 %v2455
        %6006 = vmatprep.subr.mxu0 0.0
        %6007 = vmatpush1.msra.mxu0 0.0
        %6008 = vmatprep.subr.mxu0 0.0
        %6009 = vmatpush1.msra.mxu0 0.0
        %6010 = vmatprep.subr.mxu0 0.0
        %6011 = vmatpush1.msra.mxu0 0.0
        %6012 = vmatprep.subr.mxu0 0.0
        %6013 = vmatpush1.msra.mxu0 0.0
        %6014 = vmatprep.subr.mxu0 0.0
        %6015 = vmatpush1.msra.mxu0 0.0
        %6016 = vmatprep.subr.mxu0 0.0
        %6017 = vmatpush1.msra.mxu0 0.0
        %6018 = vmatprep.subr.mxu0 0.0
        %6019 = vmatpush1.msra.mxu0 0.0
        %6020 = vmatprep.subr.mxu0 0.0
        %6021 = vmatpush1.msra.mxu0 0.0
        %6022 = vmatprep.subr.mxu0 0.0
        %6023 = vmatpush1.msra.mxu0 0.0
        %6024 = vmatprep.subr.mxu0 0.0
        %6025 = vmatpush1.msra.mxu0 0.0
        %6026 = vmatprep.subr.mxu0 0.0
        %6027 = vmatpush1.msra.mxu0 0.0
        %6028 = vmatprep.subr.mxu0 0.0
        %6029 = vmatpush1.msra.mxu0 0.0
        %6030 = vmatprep.subr.mxu0 0.0
        %6031 = vmatpush1.msra.mxu0 0.0
        %6032 = vmatprep.subr.mxu0 0.0
        %6033 = vmatpush1.msra.mxu0 0.0
        %6034 = vmatprep.subr.mxu0 0.0
        %6035 = vmatpush1.msra.mxu0 0.0
        %6036 = vmatprep.subr.mxu0 0.0
        %6037 = vmatpush1.msra.mxu0 0.0
        %6038 = vmatprep.mubr.f32.mxu0 0.0
        %6039 = vmatmul.mubr.f32.gmra.mrb[0].mxu0 %v5362
        %v6040 = vpop.f32.mrb[0].mxu0
        %v6041 = vadd.f32 0.0, %v6040
        %v6042 = vpop.f32.mrb[0].mxu0
        %6043 = vmatprep.mubr.f32.mxu0 0.0
        %6044 = vmatmul.mubr.f32.gmra.mrb[0].mxu0 %v5363
        %v6045 = vpop.f32.mrb[0].mxu0
        %v6046 = vadd.f32 0.0, %v6045
        %v6047 = vpop.f32.mrb[0].mxu0
        %6048 = vmatprep.mubr.f32.mxu0 0.0
        %6049 = vmatmul.mubr.f32.gmra.mrb[0].mxu0 %v5364
        %v6050 = vpop.f32.mrb[0].mxu0
        %v6051 = vadd.f32 0.0, %v6050
        %v6052 = vpop.f32.mrb[0].mxu0
        %6053 = vmatprep.mubr.f32.mxu0 0.0
        %6054 = vmatmul.mubr.f32.gmra.mrb[0].mxu0 %v5365
        %v6055 = vpop.f32.mrb[0].mxu0
        %v6056 = vadd.f32 0.0, %v6055
        %v6057 = vpop.f32.mrb[0].mxu0
        %6058 = vmatprep.mubr.f32.mxu0 0.0
        %6059 = vmatmul.mubr.f32.gmra.mrb[0].mxu0 %v5366
        %v6060 = vpop.f32.mrb[0].mxu0
        %v6061 = vadd.f32 0.0, %v6060
        %v6062 = vpop.f32.mrb[0].mxu0
        %6063 = vmatprep.mubr.f32.mxu0 0.0
        %6064 = vmatmul.mubr.f32.gmra.mrb[0].mxu0 %v5367
        %v6065 = vpop.f32.mrb[0].mxu0
        %v6066 = vadd.f32 0.0, %v6065
        %v6067 = vpop.f32.mrb[0].mxu0
        %6068 = vmatprep.mubr.f32.mxu0 0.0
        %6069 = vmatmul.mubr.f32.gmra.mrb[0].mxu0 %v5368
        %v6070 = vpop.f32.mrb[0].mxu0
        %v6071 = vadd.f32 0.0, %v6070
        %v6072 = vpop.f32.mrb[0].mxu0
        %6073 = vmatprep.mubr.f32.mxu0 0.0
        %6074 = vmatmul.mubr.f32.gmra.mrb[0].mxu0 %v5369
        %v6075 = vpop.f32.mrb[0].mxu0
        %v6076 = vadd.f32 0.0, %v6075
        %v6077 = vpop.f32.mrb[0].mxu0
        %6078 = vmatprep.mubr.f32.mxu0 0.0
        %6079 = vmatmul.mubr.f32.gmra.mrb[0].mxu0 %v5370
        %v6080 = vpop.f32.mrb[0].mxu0
        %v6081 = vadd.f32 0.0, %v6080
        %v6082 = vpop.f32.mrb[0].mxu0
        %6083 = vmatprep.mubr.f32.mxu0 0.0
        %6084 = vmatmul.mubr.f32.gmra.mrb[0].mxu0 %v5371
        %v6085 = vpop.f32.mrb[0].mxu0
        %v6086 = vadd.f32 0.0, %v6085
        %v6087 = vpop.f32.mrb[0].mxu0
        %6088 = vmatprep.mubr.f32.mxu0 0.0
        %6089 = vmatmul.mubr.f32.gmra.mrb[0].mxu0 %v5372
        %v6090 = vpop.f32.mrb[0].mxu0
        %v6091 = vadd.f32 0.0, %v6090
        %v6092 = vpop.f32.mrb[0].mxu0
        %6093 = vmatprep.mubr.f32.mxu0 0.0
        %6094 = vmatmul.mubr.f32.gmra.mrb[0].mxu0 %v5373
        %v6095 = vpop.f32.mrb[0].mxu0
        %v6096 = vadd.f32 0.0, %v6095
        %v6097 = vpop.f32.mrb[0].mxu0
        %6098 = vmatprep.mubr.f32.mxu0 0.0
        %6099 = vmatmul.mubr.f32.gmra.mrb[0].mxu0 %v5374
        %v6100 = vpop.f32.mrb[0].mxu0
        %v6101 = vadd.f32 0.0, %v6100
        %v6102 = vpop.f32.mrb[0].mxu0
        %6103 = vmatprep.mubr.f32.mxu0 0.0
        %6104 = vmatmul.mubr.f32.gmra.mrb[0].mxu0 %v5375
        %v6105 = vpop.f32.mrb[0].mxu0
        %v6106 = vadd.f32 0.0, %v6105
        %v6107 = vpop.f32.mrb[0].mxu0
        %6108 = vmatprep.mubr.f32.mxu0 0.0
        %6109 = vmatmul.mubr.f32.gmra.mrb[0].mxu0 %v5376
        %v6110 = vpop.f32.mrb[0].mxu0
        %v6111 = vadd.f32 0.0, %v6110
        %v6112 = vpop.f32.mrb[0].mxu0
        %6113 = vmatprep.mubr.f32.mxu0 0.0
        %6114 = vmatmul.mubr.f32.gmra.mrb[0].mxu0 %v5377
        %v6115 = vpop.f32.mrb[0].mxu0
        %v6116 = vadd.f32 0.0, %v6115
        %v6117 = vpop.f32.mrb[0].mxu0
        %6118 = vdwg.mxu0
        %6119 = vmatprep.subr.mxu0 0.0
        %6120 = vmatpush1.msra.mxu0 %v2687
        %6121 = vmatprep.subr.mxu0 0.0
        %6122 = vmatpush1.msra.mxu0 %v2693
        %6123 = vmatprep.subr.mxu0 0.0
        %6124 = vmatpush1.msra.mxu0 %v2699
        %6125 = vmatprep.subr.mxu0 0.0
        %6126 = vmatpush1.msra.mxu0 %v2705
        %6127 = vmatprep.subr.mxu0 0.0
        %6128 = vmatpush1.msra.mxu0 %v2711
        %6129 = vmatprep.subr.mxu0 0.0
        %6130 = vmatpush1.msra.mxu0 %v2717
        %6131 = vmatprep.subr.mxu0 0.0
        %6132 = vmatpush1.msra.mxu0 %v2723
        %6133 = vmatprep.subr.mxu0 0.0
        %6134 = vmatpush1.msra.mxu0 %v2729
        %6135 = vmatprep.subr.mxu0 0.0
        %6136 = vmatpush1.msra.mxu0 %v2735
        %6137 = vmatprep.subr.mxu0 0.0
        %6138 = vmatpush1.msra.mxu0 %v2741
        %6139 = vmatprep.subr.mxu0 0.0
        %6140 = vmatpush1.msra.mxu0 %v2747
        %6141 = vmatprep.subr.mxu0 0.0
        %6142 = vmatpush1.msra.mxu0 %v2753
        %6143 = vmatprep.subr.mxu0 0.0
        %6144 = vmatpush1.msra.mxu0 %v2759
        %6145 = vmatprep.subr.mxu0 0.0
        %6146 = vmatpush1.msra.mxu0 %v2765
        %6147 = vmatprep.subr.mxu0 0.0
        %6148 = vmatpush1.msra.mxu0 %v2771
        %6149 = vmatprep.subr.mxu0 0.0
        %6150 = vmatpush1.msra.mxu0 %v2777
        %6151 = vmatprep.subr.mxu0 0.0
        %6152 = vmatpush1.msra.mxu0 0.0
        %6153 = vmatprep.subr.mxu0 0.0
        %6154 = vmatpush1.msra.mxu0 0.0
        %6155 = vmatprep.subr.mxu0 0.0
        %6156 = vmatpush1.msra.mxu0 0.0
        %6157 = vmatprep.subr.mxu0 0.0
        %6158 = vmatpush1.msra.mxu0 0.0
        %6159 = vmatprep.subr.mxu0 0.0
        %6160 = vmatpush1.msra.mxu0 0.0
        %6161 = vmatprep.subr.mxu0 0.0
        %6162 = vmatpush1.msra.mxu0 0.0
        %6163 = vmatprep.subr.mxu0 0.0
        %6164 = vmatpush1.msra.mxu0 0.0
        %6165 = vmatprep.subr.mxu0 0.0
        %6166 = vmatpush1.msra.mxu0 0.0
        %6167 = vmatprep.subr.mxu0 0.0
        %6168 = vmatpush1.msra.mxu0 0.0
        %6169 = vmatprep.subr.mxu0 0.0
        %6170 = vmatpush1.msra.mxu0 0.0
        %6171 = vmatprep.subr.mxu0 0.0
        %6172 = vmatpush1.msra.mxu0 0.0
        %6173 = vmatprep.subr.mxu0 0.0
        %6174 = vmatpush1.msra.mxu0 0.0
        %6175 = vmatprep.subr.mxu0 0.0
        %6176 = vmatpush1.msra.mxu0 0.0
        %6177 = vmatprep.subr.mxu0 0.0
        %6178 = vmatpush1.msra.mxu0 0.0
        %6179 = vmatprep.subr.mxu0 0.0
        %6180 = vmatpush1.msra.mxu0 0.0
        %6181 = vmatprep.subr.mxu0 0.0
        %6182 = vmatpush1.msra.mxu0 0.0
        %6183 = vmatprep.mubr.f32.mxu0 0.0
        %6184 = vmatmul.mubr.f32.gmra.mrb[0].mxu0 %v5378
        %v6185 = vpop.f32.mrb[0].mxu0
        %v6186 = vadd.f32 0.0, %v6185
        %v6187 = vpop.f32.mrb[0].mxu0
        %6188 = vmatprep.mubr.f32.mxu0 0.0
        %6189 = vmatmul.mubr.f32.gmra.mrb[0].mxu0 %v5379
        %v6190 = vpop.f32.mrb[0].mxu0
        %v6191 = vadd.f32 0.0, %v6190
        %v6192 = vpop.f32.mrb[0].mxu0
        %6193 = vmatprep.mubr.f32.mxu0 0.0
        %6194 = vmatmul.mubr.f32.gmra.mrb[0].mxu0 %v5380
        %v6195 = vpop.f32.mrb[0].mxu0
        %v6196 = vadd.f32 0.0, %v6195
        %v6197 = vpop.f32.mrb[0].mxu0
        %6198 = vmatprep.mubr.f32.mxu0 0.0
        %6199 = vmatmul.mubr.f32.gmra.mrb[0].mxu0 %v5381
        %v6200 = vpop.f32.mrb[0].mxu0
        %v6201 = vadd.f32 0.0, %v6200
        %v6202 = vpop.f32.mrb[0].mxu0
        %6203 = vmatprep.mubr.f32.mxu0 0.0
        %6204 = vmatmul.mubr.f32.gmra.mrb[0].mxu0 %v5382
        %v6205 = vpop.f32.mrb[0].mxu0
        %v6206 = vadd.f32 0.0, %v6205
        %v6207 = vpop.f32.mrb[0].mxu0
        %6208 = vmatprep.mubr.f32.mxu0 0.0
        %6209 = vmatmul.mubr.f32.gmra.mrb[0].mxu0 %v5383
        %v6210 = vpop.f32.mrb[0].mxu0
        %v6211 = vadd.f32 0.0, %v6210
        %v6212 = vpop.f32.mrb[0].mxu0
        %6213 = vmatprep.mubr.f32.mxu0 0.0
        %6214 = vmatmul.mubr.f32.gmra.mrb[0].mxu0 %v5384
        %v6215 = vpop.f32.mrb[0].mxu0
        %v6216 = vadd.f32 0.0, %v6215
        %v6217 = vpop.f32.mrb[0].mxu0
        %6218 = vmatprep.mubr.f32.mxu0 0.0
        %6219 = vmatmul.mubr.f32.gmra.mrb[0].mxu0 %v5385
        %v6220 = vpop.f32.mrb[0].mxu0
        %v6221 = vadd.f32 0.0, %v6220
        %v6222 = vpop.f32.mrb[0].mxu0
        %6223 = vmatprep.mubr.f32.mxu0 0.0
        %6224 = vmatmul.mubr.f32.gmra.mrb[0].mxu0 %v5386
        %v6225 = vpop.f32.mrb[0].mxu0
        %v6226 = vadd.f32 0.0, %v6225
        %v6227 = vpop.f32.mrb[0].mxu0
        %6228 = vmatprep.mubr.f32.mxu0 0.0
        %6229 = vmatmul.mubr.f32.gmra.mrb[0].mxu0 %v5387
        %v6230 = vpop.f32.mrb[0].mxu0
        %v6231 = vadd.f32 0.0, %v6230
        %v6232 = vpop.f32.mrb[0].mxu0
        %6233 = vmatprep.mubr.f32.mxu0 0.0
        %6234 = vmatmul.mubr.f32.gmra.mrb[0].mxu0 %v5388
        %v6235 = vpop.f32.mrb[0].mxu0
        %v6236 = vadd.f32 0.0, %v6235
        %v6237 = vpop.f32.mrb[0].mxu0
        %6238 = vmatprep.mubr.f32.mxu0 0.0
        %6239 = vmatmul.mubr.f32.gmra.mrb[0].mxu0 %v5389
        %v6240 = vpop.f32.mrb[0].mxu0
        %v6241 = vadd.f32 0.0, %v6240
        %v6242 = vpop.f32.mrb[0].mxu0
        %6243 = vmatprep.mubr.f32.mxu0 0.0
        %6244 = vmatmul.mubr.f32.gmra.mrb[0].mxu0 %v5390
        %v6245 = vpop.f32.mrb[0].mxu0
        %v6246 = vadd.f32 0.0, %v6245
        %v6247 = vpop.f32.mrb[0].mxu0
        %6248 = vmatprep.mubr.f32.mxu0 0.0
        %6249 = vmatmul.mubr.f32.gmra.mrb[0].mxu0 %v5391
        %v6250 = vpop.f32.mrb[0].mxu0
        %v6251 = vadd.f32 0.0, %v6250
        %v6252 = vpop.f32.mrb[0].mxu0
        %6253 = vmatprep.mubr.f32.mxu0 0.0
        %6254 = vmatmul.mubr.f32.gmra.mrb[0].mxu0 %v5392
        %v6255 = vpop.f32.mrb[0].mxu0
        %v6256 = vadd.f32 0.0, %v6255
        %v6257 = vpop.f32.mrb[0].mxu0
        %6258 = vmatprep.mubr.f32.mxu0 0.0
        %6259 = vmatmul.mubr.f32.gmra.mrb[0].mxu0 %v5393
        %v6260 = vpop.f32.mrb[0].mxu0
        %v6261 = vadd.f32 0.0, %v6260
        %v6262 = vpop.f32.mrb[0].mxu0
        %6263 = vdwg.mxu0
        %v6264 = vld [vmem:[%s3] sm:$0xff]
        %v6265 = vld [vmem:[%s3 + $0x8] sm:$0xff]
        %v6266 = vld [vmem:[%s3 + $0x10] sm:$0xff]
        %v6267 = vld [vmem:[%s3 + $0x18] sm:$0xff]
        %v6268 = vld [vmem:[%s3 + $0x20] sm:$0xff]
        %v6269 = vld [vmem:[%s3 + $0x28] sm:$0xff]
        %v6270 = vld [vmem:[%s3 + $0x30] sm:$0xff]
        %v6271 = vld [vmem:[%s3 + $0x38] sm:$0xff]
        %v6272 = vld [vmem:[%s3 + $0x40] sm:$0xff]
        %v6273 = vld [vmem:[%s3 + $0x48] sm:$0xff]
        %v6274 = vld [vmem:[%s3 + $0x50] sm:$0xff]
        %v6275 = vld [vmem:[%s3 + $0x58] sm:$0xff]
        %v6276 = vld [vmem:[%s3 + $0x60] sm:$0xff]
        %v6277 = vld [vmem:[%s3 + $0x68] sm:$0xff]
        %v6278 = vld [vmem:[%s3 + $0x70] sm:$0xff]
        %v6279 = vld [vmem:[%s3 + $0x78] sm:$0xff]
        %v6280 = vld [vmem:[%s3 + $0x80] sm:$0xff]
        %v6281 = vld [vmem:[%s3 + $0x88] sm:$0xff]
        %v6282 = vld [vmem:[%s3 + $0x90] sm:$0xff]
        %v6283 = vld [vmem:[%s3 + $0x98] sm:$0xff]
        %v6284 = vld [vmem:[%s3 + $0xa0] sm:$0xff]
        %v6285 = vld [vmem:[%s3 + $0xa8] sm:$0xff]
        %v6286 = vld [vmem:[%s3 + $0xb0] sm:$0xff]
        %v6287 = vld [vmem:[%s3 + $0xb8] sm:$0xff]
        %v6288 = vld [vmem:[%s3 + $0xc0] sm:$0xff]
        %v6289 = vld [vmem:[%s3 + $0xc8] sm:$0xff]
        %v6290 = vld [vmem:[%s3 + $0xd0] sm:$0xff]
        %v6291 = vld [vmem:[%s3 + $0xd8] sm:$0xff]
        %v6292 = vld [vmem:[%s3 + $0xe0] sm:$0xff]
        %v6293 = vld [vmem:[%s3 + $0xe8] sm:$0xff]
        %v6294 = vld [vmem:[%s3 + $0xf0] sm:$0xff]
        %v6295 = vld [vmem:[%s3 + $0xf8] sm:$0xff]
        %v6296 = vld [vmem:[%s3 + $0x100] sm:$0xff]
        %v6297 = vld [vmem:[%s3 + $0x108] sm:$0xff]
        %v6298 = vld [vmem:[%s3 + $0x110] sm:$0xff]
        %v6299 = vld [vmem:[%s3 + $0x118] sm:$0xff]
        %v6300 = vld [vmem:[%s3 + $0x120] sm:$0xff]
        %v6301 = vld [vmem:[%s3 + $0x128] sm:$0xff]
        %v6302 = vld [vmem:[%s3 + $0x130] sm:$0xff]
        %v6303 = vld [vmem:[%s3 + $0x138] sm:$0xff]
        %v6304 = vld [vmem:[%s3 + $0x140] sm:$0xff]
        %v6305 = vld [vmem:[%s3 + $0x148] sm:$0xff]
        %v6306 = vld [vmem:[%s3 + $0x150] sm:$0xff]
        %v6307 = vld [vmem:[%s3 + $0x158] sm:$0xff]
        %v6308 = vld [vmem:[%s3 + $0x160] sm:$0xff]
        %v6309 = vld [vmem:[%s3 + $0x168] sm:$0xff]
        %v6310 = vld [vmem:[%s3 + $0x170] sm:$0xff]
        %v6311 = vld [vmem:[%s3 + $0x178] sm:$0xff]
        %v6312 = vld [vmem:[%s3 + $0x180] sm:$0xff]
        %v6313 = vld [vmem:[%s3 + $0x188] sm:$0xff]
        %v6314 = vld [vmem:[%s3 + $0x190] sm:$0xff]
        %v6315 = vld [vmem:[%s3 + $0x198] sm:$0xff]
        %v6316 = vld [vmem:[%s3 + $0x1a0] sm:$0xff]
        %v6317 = vld [vmem:[%s3 + $0x1a8] sm:$0xff]
        %v6318 = vld [vmem:[%s3 + $0x1b0] sm:$0xff]
        %v6319 = vld [vmem:[%s3 + $0x1b8] sm:$0xff]
        %v6320 = vld [vmem:[%s3 + $0x1c0] sm:$0xff]
        %v6321 = vld [vmem:[%s3 + $0x1c8] sm:$0xff]
        %v6322 = vld [vmem:[%s3 + $0x1d0] sm:$0xff]
        %v6323 = vld [vmem:[%s3 + $0x1d8] sm:$0xff]
        %v6324 = vld [vmem:[%s3 + $0x1e0] sm:$0xff]
        %v6325 = vld [vmem:[%s3 + $0x1e8] sm:$0xff]
        %v6326 = vld [vmem:[%s3 + $0x1f0] sm:$0xff]
        %v6327 = vld [vmem:[%s3 + $0x1f8] sm:$0xff]
        %v6328 = vld [vmem:[%s3 + $0x200] sm:$0xff]
        %v6329 = vld [vmem:[%s3 + $0x208] sm:$0xff]
        %v6330 = vld [vmem:[%s3 + $0x210] sm:$0xff]
        %v6331 = vld [vmem:[%s3 + $0x218] sm:$0xff]
        %v6332 = vld [vmem:[%s3 + $0x220] sm:$0xff]
        %v6333 = vld [vmem:[%s3 + $0x228] sm:$0xff]
        %v6334 = vld [vmem:[%s3 + $0x230] sm:$0xff]
        %v6335 = vld [vmem:[%s3 + $0x238] sm:$0xff]
        %v6336 = vld [vmem:[%s3 + $0x240] sm:$0xff]
        %v6337 = vld [vmem:[%s3 + $0x248] sm:$0xff]
        %v6338 = vld [vmem:[%s3 + $0x250] sm:$0xff]
        %v6339 = vld [vmem:[%s3 + $0x258] sm:$0xff]
        %v6340 = vld [vmem:[%s3 + $0x260] sm:$0xff]
        %v6341 = vld [vmem:[%s3 + $0x268] sm:$0xff]
        %v6342 = vld [vmem:[%s3 + $0x270] sm:$0xff]
        %v6343 = vld [vmem:[%s3 + $0x278] sm:$0xff]
        %v6344 = vld [vmem:[%s3 + $0x280] sm:$0xff]
        %v6345 = vld [vmem:[%s3 + $0x288] sm:$0xff]
        %v6346 = vld [vmem:[%s3 + $0x290] sm:$0xff]
        %v6347 = vld [vmem:[%s3 + $0x298] sm:$0xff]
        %v6348 = vld [vmem:[%s3 + $0x2a0] sm:$0xff]
        %v6349 = vld [vmem:[%s3 + $0x2a8] sm:$0xff]
        %v6350 = vld [vmem:[%s3 + $0x2b0] sm:$0xff]
        %v6351 = vld [vmem:[%s3 + $0x2b8] sm:$0xff]
        %v6352 = vld [vmem:[%s3 + $0x2c0] sm:$0xff]
        %v6353 = vld [vmem:[%s3 + $0x2c8] sm:$0xff]
        %v6354 = vld [vmem:[%s3 + $0x2d0] sm:$0xff]
        %v6355 = vld [vmem:[%s3 + $0x2d8] sm:$0xff]
        %v6356 = vld [vmem:[%s3 + $0x2e0] sm:$0xff]
        %v6357 = vld [vmem:[%s3 + $0x2e8] sm:$0xff]
        %v6358 = vld [vmem:[%s3 + $0x2f0] sm:$0xff]
        %v6359 = vld [vmem:[%s3 + $0x2f8] sm:$0xff]
        %v6360 = vld [vmem:[%s3 + $0x300] sm:$0xff]
        %v6361 = vld [vmem:[%s3 + $0x308] sm:$0xff]
        %v6362 = vld [vmem:[%s3 + $0x310] sm:$0xff]
        %v6363 = vld [vmem:[%s3 + $0x318] sm:$0xff]
        %v6364 = vld [vmem:[%s3 + $0x320] sm:$0xff]
        %v6365 = vld [vmem:[%s3 + $0x328] sm:$0xff]
        %v6366 = vld [vmem:[%s3 + $0x330] sm:$0xff]
        %v6367 = vld [vmem:[%s3 + $0x338] sm:$0xff]
        %v6368 = vld [vmem:[%s3 + $0x340] sm:$0xff]
        %v6369 = vld [vmem:[%s3 + $0x348] sm:$0xff]
        %v6370 = vld [vmem:[%s3 + $0x350] sm:$0xff]
        %v6371 = vld [vmem:[%s3 + $0x358] sm:$0xff]
        %v6372 = vld [vmem:[%s3 + $0x360] sm:$0xff]
        %v6373 = vld [vmem:[%s3 + $0x368] sm:$0xff]
        %v6374 = vld [vmem:[%s3 + $0x370] sm:$0xff]
        %v6375 = vld [vmem:[%s3 + $0x378] sm:$0xff]
        %v6376 = vld [vmem:[%s3 + $0x380] sm:$0xff]
        %v6377 = vld [vmem:[%s3 + $0x388] sm:$0xff]
        %v6378 = vld [vmem:[%s3 + $0x390] sm:$0xff]
        %v6379 = vld [vmem:[%s3 + $0x398] sm:$0xff]
        %v6380 = vld [vmem:[%s3 + $0x3a0] sm:$0xff]
        %v6381 = vld [vmem:[%s3 + $0x3a8] sm:$0xff]
        %v6382 = vld [vmem:[%s3 + $0x3b0] sm:$0xff]
        %v6383 = vld [vmem:[%s3 + $0x3b8] sm:$0xff]
        %v6384 = vld [vmem:[%s3 + $0x3c0] sm:$0xff]
        %v6385 = vld [vmem:[%s3 + $0x3c8] sm:$0xff]
        %v6386 = vld [vmem:[%s3 + $0x3d0] sm:$0xff]
        %v6387 = vld [vmem:[%s3 + $0x3d8] sm:$0xff]
        %v6388 = vld [vmem:[%s3 + $0x3e0] sm:$0xff]
        %v6389 = vld [vmem:[%s3 + $0x3e8] sm:$0xff]
        %v6390 = vld [vmem:[%s3 + $0x3f0] sm:$0xff]
        %v6391 = vld [vmem:[%s3 + $0x3f8] sm:$0xff]
        %v6392 = vld [vmem:[%s3 + $0x400] sm:$0xff]
        %v6393 = vld [vmem:[%s3 + $0x408] sm:$0xff]
        %v6394 = vld [vmem:[%s3 + $0x410] sm:$0xff]
        %v6395 = vld [vmem:[%s3 + $0x418] sm:$0xff]
        %v6396 = vld [vmem:[%s3 + $0x420] sm:$0xff]
        %v6397 = vld [vmem:[%s3 + $0x428] sm:$0xff]
        %v6398 = vld [vmem:[%s3 + $0x430] sm:$0xff]
        %v6399 = vld [vmem:[%s3 + $0x438] sm:$0xff]
        %v6400 = vld [vmem:[%s3 + $0x440] sm:$0xff]
        %v6401 = vld [vmem:[%s3 + $0x448] sm:$0xff]
        %v6402 = vld [vmem:[%s3 + $0x450] sm:$0xff]
        %v6403 = vld [vmem:[%s3 + $0x458] sm:$0xff]
        %v6404 = vld [vmem:[%s3 + $0x460] sm:$0xff]
        %v6405 = vld [vmem:[%s3 + $0x468] sm:$0xff]
        %v6406 = vld [vmem:[%s3 + $0x470] sm:$0xff]
        %v6407 = vld [vmem:[%s3 + $0x478] sm:$0xff]
        %v6409 = vsel %vm2827, %v5461, 0
        %v6412 = vsel %vm2827, %v5466, 0
        %v6415 = vsel %vm2827, %v5471, 0
        %v6418 = vsel %vm2827, %v5476, 0
        %v6421 = vsel %vm2827, %v5481, 0
        %v6424 = vsel %vm2827, %v5486, 0
        %v6427 = vsel %vm2827, %v5491, 0
        %v6430 = vsel %vm2827, %v5496, 0
        %v6433 = vsel %vm2827, %v5501, 0
        %v6436 = vsel %vm2827, %v5506, 0
        %v6439 = vsel %vm2827, %v5511, 0
        %v6442 = vsel %vm2827, %v5516, 0
        %v6445 = vsel %vm2827, %v5521, 0
        %v6448 = vsel %vm2827, %v5526, 0
        %v6451 = vsel %vm2827, %v5531, 0
        %v6454 = vsel %vm2827, %v5536, 0
        %6456 = vmatprep.subr.mxu0 %v6265
        %6457 = vmatpush1.msra.mxu0 %v6264
        %6458 = vmatprep.subr.mxu0 %v6268
        %6459 = vmatpush1.msra.mxu0 %v6267
        %6460 = vmatprep.subr.mxu0 %v6271
        %6461 = vmatpush1.msra.mxu0 %v6270
        %6462 = vmatprep.subr.mxu0 %v6274
        %6463 = vmatpush1.msra.mxu0 %v6273
        %6464 = vmatprep.subr.mxu0 %v6277
        %6465 = vmatpush1.msra.mxu0 %v6276
        %6466 = vmatprep.subr.mxu0 %v6280
        %6467 = vmatpush1.msra.mxu0 %v6279
        %6468 = vmatprep.subr.mxu0 %v6283
        %6469 = vmatpush1.msra.mxu0 %v6282
        %6470 = vmatprep.subr.mxu0 %v6286
        %6471 = vmatpush1.msra.mxu0 %v6285
        %6472 = vmatprep.subr.mxu0 0.0
        %6473 = vmatpush1.msra.mxu0 0.0
        %6474 = vmatprep.subr.mxu0 0.0
        %6475 = vmatpush1.msra.mxu0 0.0
        %6476 = vmatprep.subr.mxu0 0.0
        %6477 = vmatpush1.msra.mxu0 0.0
        %6478 = vmatprep.subr.mxu0 0.0
        %6479 = vmatpush1.msra.mxu0 0.0
        %6480 = vmatprep.subr.mxu0 0.0
        %6481 = vmatpush1.msra.mxu0 0.0
        %6482 = vmatprep.subr.mxu0 0.0
        %6483 = vmatpush1.msra.mxu0 0.0
        %6484 = vmatprep.subr.mxu0 0.0
        %6485 = vmatpush1.msra.mxu0 0.0
        %6486 = vmatprep.subr.mxu0 0.0
        %6487 = vmatpush1.msra.mxu0 0.0
        %6488 = vmatprep.subr.mxu0 0.0
        %6489 = vmatpush1.msra.mxu0 0.0
        %6490 = vmatprep.subr.mxu0 0.0
        %6491 = vmatpush1.msra.mxu0 0.0
        %6492 = vmatprep.subr.mxu0 0.0
        %6493 = vmatpush1.msra.mxu0 0.0
        %6494 = vmatprep.subr.mxu0 0.0
        %6495 = vmatpush1.msra.mxu0 0.0
        %6496 = vmatprep.subr.mxu0 0.0
        %6497 = vmatpush1.msra.mxu0 0.0
        %6498 = vmatprep.subr.mxu0 0.0
        %6499 = vmatpush1.msra.mxu0 0.0
        %6500 = vmatprep.subr.mxu0 0.0
        %6501 = vmatpush1.msra.mxu0 0.0
        %6502 = vmatprep.subr.mxu0 0.0
        %6503 = vmatpush1.msra.mxu0 0.0
        %6504 = vmatprep.subr.mxu0 0.0
        %6505 = vmatpush1.msra.mxu0 0.0
        %6506 = vmatprep.subr.mxu0 0.0
        %6507 = vmatpush1.msra.mxu0 0.0
        %6508 = vmatprep.subr.mxu0 0.0
        %6509 = vmatpush1.msra.mxu0 0.0
        %6510 = vmatprep.subr.mxu0 0.0
        %6511 = vmatpush1.msra.mxu0 0.0
        %6512 = vmatprep.subr.mxu0 0.0
        %6513 = vmatpush1.msra.mxu0 0.0
        %6514 = vmatprep.subr.mxu0 0.0
        %6515 = vmatpush1.msra.mxu0 0.0
        %6516 = vmatprep.subr.mxu0 0.0
        %6517 = vmatpush1.msra.mxu0 0.0
        %6518 = vmatprep.subr.mxu0 0.0
        %6519 = vmatpush1.msra.mxu0 0.0
        %6520 = vmatprep.mubr.f32.mxu0 0.0
        %6521 = vmatmul.mubr.f32.gmra.mrb[0].mxu0 %v6409
        %v6522 = vpop.f32.mrb[0].mxu0
        %v6523 = vadd.f32 0.0, %v6522
        %v6524 = vpop.f32.mrb[0].mxu0
        %v6525 = vadd.f32 0.0, %v6524
        %6526 = vmatprep.mubr.f32.mxu0 0.0
        %6527 = vmatmul.mubr.f32.gmra.mrb[0].mxu0 %v6412
        %v6528 = vpop.f32.mrb[0].mxu0
        %v6529 = vadd.f32 0.0, %v6528
        %v6530 = vpop.f32.mrb[0].mxu0
        %v6531 = vadd.f32 0.0, %v6530
        %6532 = vmatprep.mubr.f32.mxu0 0.0
        %6533 = vmatmul.mubr.f32.gmra.mrb[0].mxu0 %v6415
        %v6534 = vpop.f32.mrb[0].mxu0
        %v6535 = vadd.f32 0.0, %v6534
        %v6536 = vpop.f32.mrb[0].mxu0
        %v6537 = vadd.f32 0.0, %v6536
        %6538 = vmatprep.mubr.f32.mxu0 0.0
        %6539 = vmatmul.mubr.f32.gmra.mrb[0].mxu0 %v6418
        %v6540 = vpop.f32.mrb[0].mxu0
        %v6541 = vadd.f32 0.0, %v6540
        %v6542 = vpop.f32.mrb[0].mxu0
        %v6543 = vadd.f32 0.0, %v6542
        %6544 = vmatprep.mubr.f32.mxu0 0.0
        %6545 = vmatmul.mubr.f32.gmra.mrb[0].mxu0 %v6421
        %v6546 = vpop.f32.mrb[0].mxu0
        %v6547 = vadd.f32 0.0, %v6546
        %v6548 = vpop.f32.mrb[0].mxu0
        %v6549 = vadd.f32 0.0, %v6548
        %6550 = vmatprep.mubr.f32.mxu0 0.0
        %6551 = vmatmul.mubr.f32.gmra.mrb[0].mxu0 %v6424
        %v6552 = vpop.f32.mrb[0].mxu0
        %v6553 = vadd.f32 0.0, %v6552
        %v6554 = vpop.f32.mrb[0].mxu0
        %v6555 = vadd.f32 0.0, %v6554
        %6556 = vmatprep.mubr.f32.mxu0 0.0
        %6557 = vmatmul.mubr.f32.gmra.mrb[0].mxu0 %v6427
        %v6558 = vpop.f32.mrb[0].mxu0
        %v6559 = vadd.f32 0.0, %v6558
        %v6560 = vpop.f32.mrb[0].mxu0
        %v6561 = vadd.f32 0.0, %v6560
        %6562 = vmatprep.mubr.f32.mxu0 0.0
        %6563 = vmatmul.mubr.f32.gmra.mrb[0].mxu0 %v6430
        %v6564 = vpop.f32.mrb[0].mxu0
        %v6565 = vadd.f32 0.0, %v6564
        %v6566 = vpop.f32.mrb[0].mxu0
        %v6567 = vadd.f32 0.0, %v6566
        %6568 = vmatprep.mubr.f32.mxu0 0.0
        %6569 = vmatmul.mubr.f32.gmra.mrb[0].mxu0 %v6433
        %v6570 = vpop.f32.mrb[0].mxu0
        %v6571 = vadd.f32 0.0, %v6570
        %v6572 = vpop.f32.mrb[0].mxu0
        %v6573 = vadd.f32 0.0, %v6572
        %6574 = vmatprep.mubr.f32.mxu0 0.0
        %6575 = vmatmul.mubr.f32.gmra.mrb[0].mxu0 %v6436
        %v6576 = vpop.f32.mrb[0].mxu0
        %v6577 = vadd.f32 0.0, %v6576
        %v6578 = vpop.f32.mrb[0].mxu0
        %v6579 = vadd.f32 0.0, %v6578
        %6580 = vmatprep.mubr.f32.mxu0 0.0
        %6581 = vmatmul.mubr.f32.gmra.mrb[0].mxu0 %v6439
        %v6582 = vpop.f32.mrb[0].mxu0
        %v6583 = vadd.f32 0.0, %v6582
        %v6584 = vpop.f32.mrb[0].mxu0
        %v6585 = vadd.f32 0.0, %v6584
        %6586 = vmatprep.mubr.f32.mxu0 0.0
        %6587 = vmatmul.mubr.f32.gmra.mrb[0].mxu0 %v6442
        %v6588 = vpop.f32.mrb[0].mxu0
        %v6589 = vadd.f32 0.0, %v6588
        %v6590 = vpop.f32.mrb[0].mxu0
        %v6591 = vadd.f32 0.0, %v6590
        %6592 = vmatprep.mubr.f32.mxu0 0.0
        %6593 = vmatmul.mubr.f32.gmra.mrb[0].mxu0 %v6445
        %v6594 = vpop.f32.mrb[0].mxu0
        %v6595 = vadd.f32 0.0, %v6594
        %v6596 = vpop.f32.mrb[0].mxu0
        %v6597 = vadd.f32 0.0, %v6596
        %6598 = vmatprep.mubr.f32.mxu0 0.0
        %6599 = vmatmul.mubr.f32.gmra.mrb[0].mxu0 %v6448
        %v6600 = vpop.f32.mrb[0].mxu0
        %v6601 = vadd.f32 0.0, %v6600
        %v6602 = vpop.f32.mrb[0].mxu0
        %v6603 = vadd.f32 0.0, %v6602
        %6604 = vmatprep.mubr.f32.mxu0 0.0
        %6605 = vmatmul.mubr.f32.gmra.mrb[0].mxu0 %v6451
        %v6606 = vpop.f32.mrb[0].mxu0
        %v6607 = vadd.f32 0.0, %v6606
        %v6608 = vpop.f32.mrb[0].mxu0
        %v6609 = vadd.f32 0.0, %v6608
        %6610 = vmatprep.mubr.f32.mxu0 0.0
        %6611 = vmatmul.mubr.f32.gmra.mrb[0].mxu0 %v6454
        %v6612 = vpop.f32.mrb[0].mxu0
        %v6613 = vadd.f32 0.0, %v6612
        %v6614 = vpop.f32.mrb[0].mxu0
        %v6615 = vadd.f32 0.0, %v6614
        %6616 = vdwg.mxu0
        %6617 = vmatprep.subr.mxu0 0.0
        %6618 = vmatpush1.msra.mxu0 %v6266
        %6619 = vmatprep.subr.mxu0 0.0
        %6620 = vmatpush1.msra.mxu0 %v6269
        %6621 = vmatprep.subr.mxu0 0.0
        %6622 = vmatpush1.msra.mxu0 %v6272
        %6623 = vmatprep.subr.mxu0 0.0
        %6624 = vmatpush1.msra.mxu0 %v6275
        %6625 = vmatprep.subr.mxu0 0.0
        %6626 = vmatpush1.msra.mxu0 %v6278
        %6627 = vmatprep.subr.mxu0 0.0
        %6628 = vmatpush1.msra.mxu0 %v6281
        %6629 = vmatprep.subr.mxu0 0.0
        %6630 = vmatpush1.msra.mxu0 %v6284
        %6631 = vmatprep.subr.mxu0 0.0
        %6632 = vmatpush1.msra.mxu0 %v6287
        %6633 = vmatprep.subr.mxu0 0.0
        %6634 = vmatpush1.msra.mxu0 0.0
        %6635 = vmatprep.subr.mxu0 0.0
        %6636 = vmatpush1.msra.mxu0 0.0
        %6637 = vmatprep.subr.mxu0 0.0
        %6638 = vmatpush1.msra.mxu0 0.0
        %6639 = vmatprep.subr.mxu0 0.0
        %6640 = vmatpush1.msra.mxu0 0.0
        %6641 = vmatprep.subr.mxu0 0.0
        %6642 = vmatpush1.msra.mxu0 0.0
        %6643 = vmatprep.subr.mxu0 0.0
        %6644 = vmatpush1.msra.mxu0 0.0
        %6645 = vmatprep.subr.mxu0 0.0
        %6646 = vmatpush1.msra.mxu0 0.0
        %6647 = vmatprep.subr.mxu0 0.0
        %6648 = vmatpush1.msra.mxu0 0.0
        %6649 = vmatprep.subr.mxu0 0.0
        %6650 = vmatpush1.msra.mxu0 0.0
        %6651 = vmatprep.subr.mxu0 0.0
        %6652 = vmatpush1.msra.mxu0 0.0
        %6653 = vmatprep.subr.mxu0 0.0
        %6654 = vmatpush1.msra.mxu0 0.0
        %6655 = vmatprep.subr.mxu0 0.0
        %6656 = vmatpush1.msra.mxu0 0.0
        %6657 = vmatprep.subr.mxu0 0.0
        %6658 = vmatpush1.msra.mxu0 0.0
        %6659 = vmatprep.subr.mxu0 0.0
        %6660 = vmatpush1.msra.mxu0 0.0
        %6661 = vmatprep.subr.mxu0 0.0
        %6662 = vmatpush1.msra.mxu0 0.0
        %6663 = vmatprep.subr.mxu0 0.0
        %6664 = vmatpush1.msra.mxu0 0.0
        %6665 = vmatprep.subr.mxu0 0.0
        %6666 = vmatpush1.msra.mxu0 0.0
        %6667 = vmatprep.subr.mxu0 0.0
        %6668 = vmatpush1.msra.mxu0 0.0
        %6669 = vmatprep.subr.mxu0 0.0
        %6670 = vmatpush1.msra.mxu0 0.0
        %6671 = vmatprep.subr.mxu0 0.0
        %6672 = vmatpush1.msra.mxu0 0.0
        %6673 = vmatprep.subr.mxu0 0.0
        %6674 = vmatpush1.msra.mxu0 0.0
        %6675 = vmatprep.subr.mxu0 0.0
        %6676 = vmatpush1.msra.mxu0 0.0
        %6677 = vmatprep.subr.mxu0 0.0
        %6678 = vmatpush1.msra.mxu0 0.0
        %6679 = vmatprep.subr.mxu0 0.0
        %6680 = vmatpush1.msra.mxu0 0.0
        %6681 = vmatprep.mubr.f32.mxu0 0.0
        %6682 = vmatmul.mubr.f32.gmra.mrb[0].mxu0 %v6409
        %v6683 = vpop.f32.mrb[0].mxu0
        %v6684 = vadd.f32 0.0, %v6683
        %v6685 = vpop.f32.mrb[0].mxu0
        %6686 = vmatprep.mubr.f32.mxu0 0.0
        %6687 = vmatmul.mubr.f32.gmra.mrb[0].mxu0 %v6412
        %v6688 = vpop.f32.mrb[0].mxu0
        %v6689 = vadd.f32 0.0, %v6688
        %v6690 = vpop.f32.mrb[0].mxu0
        %6691 = vmatprep.mubr.f32.mxu0 0.0
        %6692 = vmatmul.mubr.f32.gmra.mrb[0].mxu0 %v6415
        %v6693 = vpop.f32.mrb[0].mxu0
        %v6694 = vadd.f32 0.0, %v6693
        %v6695 = vpop.f32.mrb[0].mxu0
        %6696 = vmatprep.mubr.f32.mxu0 0.0
        %6697 = vmatmul.mubr.f32.gmra.mrb[0].mxu0 %v6418
        %v6698 = vpop.f32.mrb[0].mxu0
        %v6699 = vadd.f32 0.0, %v6698
        %v6700 = vpop.f32.mrb[0].mxu0
        %6701 = vmatprep.mubr.f32.mxu0 0.0
        %6702 = vmatmul.mubr.f32.gmra.mrb[0].mxu0 %v6421
        %v6703 = vpop.f32.mrb[0].mxu0
        %v6704 = vadd.f32 0.0, %v6703
        %v6705 = vpop.f32.mrb[0].mxu0
        %6706 = vmatprep.mubr.f32.mxu0 0.0
        %6707 = vmatmul.mubr.f32.gmra.mrb[0].mxu0 %v6424
        %v6708 = vpop.f32.mrb[0].mxu0
        %v6709 = vadd.f32 0.0, %v6708
        %v6710 = vpop.f32.mrb[0].mxu0
        %6711 = vmatprep.mubr.f32.mxu0 0.0
        %6712 = vmatmul.mubr.f32.gmra.mrb[0].mxu0 %v6427
        %v6713 = vpop.f32.mrb[0].mxu0
        %v6714 = vadd.f32 0.0, %v6713
        %v6715 = vpop.f32.mrb[0].mxu0
        %6716 = vmatprep.mubr.f32.mxu0 0.0
        %6717 = vmatmul.mubr.f32.gmra.mrb[0].mxu0 %v6430
        %v6718 = vpop.f32.mrb[0].mxu0
        %v6719 = vadd.f32 0.0, %v6718
        %v6720 = vpop.f32.mrb[0].mxu0
        %6721 = vmatprep.mubr.f32.mxu0 0.0
        %6722 = vmatmul.mubr.f32.gmra.mrb[0].mxu0 %v6433
        %v6723 = vpop.f32.mrb[0].mxu0
        %v6724 = vadd.f32 0.0, %v6723
        %v6725 = vpop.f32.mrb[0].mxu0
        %6726 = vmatprep.mubr.f32.mxu0 0.0
        %6727 = vmatmul.mubr.f32.gmra.mrb[0].mxu0 %v6436
        %v6728 = vpop.f32.mrb[0].mxu0
        %v6729 = vadd.f32 0.0, %v6728
        %v6730 = vpop.f32.mrb[0].mxu0
        %6731 = vmatprep.mubr.f32.mxu0 0.0
        %6732 = vmatmul.mubr.f32.gmra.mrb[0].mxu0 %v6439
        %v6733 = vpop.f32.mrb[0].mxu0
        %v6734 = vadd.f32 0.0, %v6733
        %v6735 = vpop.f32.mrb[0].mxu0
        %6736 = vmatprep.mubr.f32.mxu0 0.0
        %6737 = vmatmul.mubr.f32.gmra.mrb[0].mxu0 %v6442
        %v6738 = vpop.f32.mrb[0].mxu0
        %v6739 = vadd.f32 0.0, %v6738
        %v6740 = vpop.f32.mrb[0].mxu0
        %6741 = vmatprep.mubr.f32.mxu0 0.0
        %6742 = vmatmul.mubr.f32.gmra.mrb[0].mxu0 %v6445
        %v6743 = vpop.f32.mrb[0].mxu0
        %v6744 = vadd.f32 0.0, %v6743
        %v6745 = vpop.f32.mrb[0].mxu0
        %6746 = vmatprep.mubr.f32.mxu0 0.0
        %6747 = vmatmul.mubr.f32.gmra.mrb[0].mxu0 %v6448
        %v6748 = vpop.f32.mrb[0].mxu0
        %v6749 = vadd.f32 0.0, %v6748
        %v6750 = vpop.f32.mrb[0].mxu0
        %6751 = vmatprep.mubr.f32.mxu0 0.0
        %6752 = vmatmul.mubr.f32.gmra.mrb[0].mxu0 %v6451
        %v6753 = vpop.f32.mrb[0].mxu0
        %v6754 = vadd.f32 0.0, %v6753
        %v6755 = vpop.f32.mrb[0].mxu0
        %6756 = vmatprep.mubr.f32.mxu0 0.0
        %6757 = vmatmul.mubr.f32.gmra.mrb[0].mxu0 %v6454
        %v6758 = vpop.f32.mrb[0].mxu0
        %v6759 = vadd.f32 0.0, %v6758
        %v6760 = vpop.f32.mrb[0].mxu0
        %6761 = vdwg.mxu0
        %v6763 = vsel %vm2827, %v5606, 0
        %v6766 = vsel %vm2827, %v5611, 0
        %v6769 = vsel %vm2827, %v5616, 0
        %v6772 = vsel %vm2827, %v5621, 0
        %v6775 = vsel %vm2827, %v5626, 0
        %v6778 = vsel %vm2827, %v5631, 0
        %v6781 = vsel %vm2827, %v5636, 0
        %v6784 = vsel %vm2827, %v5641, 0
        %v6787 = vsel %vm2827, %v5646, 0
        %v6790 = vsel %vm2827, %v5651, 0
        %v6793 = vsel %vm2827, %v5656, 0
        %v6796 = vsel %vm2827, %v5661, 0
        %v6799 = vsel %vm2827, %v5666, 0
        %v6802 = vsel %vm2827, %v5671, 0
        %v6805 = vsel %vm2827, %v5676, 0
        %v6808 = vsel %vm2827, %v5681, 0
        %6810 = vmatprep.subr.mxu0 %v6289
        %6811 = vmatpush1.msra.mxu0 %v6288
        %6812 = vmatprep.subr.mxu0 %v6292
        %6813 = vmatpush1.msra.mxu0 %v6291
        %6814 = vmatprep.subr.mxu0 %v6295
        %6815 = vmatpush1.msra.mxu0 %v6294
        %6816 = vmatprep.subr.mxu0 %v6298
        %6817 = vmatpush1.msra.mxu0 %v6297
        %6818 = vmatprep.subr.mxu0 %v6301
        %6819 = vmatpush1.msra.mxu0 %v6300
        %6820 = vmatprep.subr.mxu0 %v6304
        %6821 = vmatpush1.msra.mxu0 %v6303
        %6822 = vmatprep.subr.mxu0 %v6307
        %6823 = vmatpush1.msra.mxu0 %v6306
        %6824 = vmatprep.subr.mxu0 %v6310
        %6825 = vmatpush1.msra.mxu0 %v6309
        %6826 = vmatprep.subr.mxu0 0.0
        %6827 = vmatpush1.msra.mxu0 0.0
        %6828 = vmatprep.subr.mxu0 0.0
        %6829 = vmatpush1.msra.mxu0 0.0
        %6830 = vmatprep.subr.mxu0 0.0
        %6831 = vmatpush1.msra.mxu0 0.0
        %6832 = vmatprep.subr.mxu0 0.0
        %6833 = vmatpush1.msra.mxu0 0.0
        %6834 = vmatprep.subr.mxu0 0.0
        %6835 = vmatpush1.msra.mxu0 0.0
        %6836 = vmatprep.subr.mxu0 0.0
        %6837 = vmatpush1.msra.mxu0 0.0
        %6838 = vmatprep.subr.mxu0 0.0
        %6839 = vmatpush1.msra.mxu0 0.0
        %6840 = vmatprep.subr.mxu0 0.0
        %6841 = vmatpush1.msra.mxu0 0.0
        %6842 = vmatprep.subr.mxu0 0.0
        %6843 = vmatpush1.msra.mxu0 0.0
        %6844 = vmatprep.subr.mxu0 0.0
        %6845 = vmatpush1.msra.mxu0 0.0
        %6846 = vmatprep.subr.mxu0 0.0
        %6847 = vmatpush1.msra.mxu0 0.0
        %6848 = vmatprep.subr.mxu0 0.0
        %6849 = vmatpush1.msra.mxu0 0.0
        %6850 = vmatprep.subr.mxu0 0.0
        %6851 = vmatpush1.msra.mxu0 0.0
        %6852 = vmatprep.subr.mxu0 0.0
        %6853 = vmatpush1.msra.mxu0 0.0
        %6854 = vmatprep.subr.mxu0 0.0
        %6855 = vmatpush1.msra.mxu0 0.0
        %6856 = vmatprep.subr.mxu0 0.0
        %6857 = vmatpush1.msra.mxu0 0.0
        %6858 = vmatprep.subr.mxu0 0.0
        %6859 = vmatpush1.msra.mxu0 0.0
        %6860 = vmatprep.subr.mxu0 0.0
        %6861 = vmatpush1.msra.mxu0 0.0
        %6862 = vmatprep.subr.mxu0 0.0
        %6863 = vmatpush1.msra.mxu0 0.0
        %6864 = vmatprep.subr.mxu0 0.0
        %6865 = vmatpush1.msra.mxu0 0.0
        %6866 = vmatprep.subr.mxu0 0.0
        %6867 = vmatpush1.msra.mxu0 0.0
        %6868 = vmatprep.subr.mxu0 0.0
        %6869 = vmatpush1.msra.mxu0 0.0
        %6870 = vmatprep.subr.mxu0 0.0
        %6871 = vmatpush1.msra.mxu0 0.0
        %6872 = vmatprep.subr.mxu0 0.0
        %6873 = vmatpush1.msra.mxu0 0.0
        %6874 = vmatprep.mubr.f32.mxu0 0.0
        %6875 = vmatmul.mubr.f32.gmra.mrb[0].mxu0 %v6763
        %v6876 = vpop.f32.mrb[0].mxu0
        %v6877 = vadd.f32 0.0, %v6876
        %v6878 = vpop.f32.mrb[0].mxu0
        %v6879 = vadd.f32 0.0, %v6878
        %6880 = vmatprep.mubr.f32.mxu0 0.0
        %6881 = vmatmul.mubr.f32.gmra.mrb[0].mxu0 %v6766
        %v6882 = vpop.f32.mrb[0].mxu0
        %v6883 = vadd.f32 0.0, %v6882
        %v6884 = vpop.f32.mrb[0].mxu0
        %v6885 = vadd.f32 0.0, %v6884
        %6886 = vmatprep.mubr.f32.mxu0 0.0
        %6887 = vmatmul.mubr.f32.gmra.mrb[0].mxu0 %v6769
        %v6888 = vpop.f32.mrb[0].mxu0
        %v6889 = vadd.f32 0.0, %v6888
        %v6890 = vpop.f32.mrb[0].mxu0
        %v6891 = vadd.f32 0.0, %v6890
        %6892 = vmatprep.mubr.f32.mxu0 0.0
        %6893 = vmatmul.mubr.f32.gmra.mrb[0].mxu0 %v6772
        %v6894 = vpop.f32.mrb[0].mxu0
        %v6895 = vadd.f32 0.0, %v6894
        %v6896 = vpop.f32.mrb[0].mxu0
        %v6897 = vadd.f32 0.0, %v6896
        %6898 = vmatprep.mubr.f32.mxu0 0.0
        %6899 = vmatmul.mubr.f32.gmra.mrb[0].mxu0 %v6775
        %v6900 = vpop.f32.mrb[0].mxu0
        %v6901 = vadd.f32 0.0, %v6900
        %v6902 = vpop.f32.mrb[0].mxu0
        %v6903 = vadd.f32 0.0, %v6902
        %6904 = vmatprep.mubr.f32.mxu0 0.0
        %6905 = vmatmul.mubr.f32.gmra.mrb[0].mxu0 %v6778
        %v6906 = vpop.f32.mrb[0].mxu0
        %v6907 = vadd.f32 0.0, %v6906
        %v6908 = vpop.f32.mrb[0].mxu0
        %v6909 = vadd.f32 0.0, %v6908
        %6910 = vmatprep.mubr.f32.mxu0 0.0
        %6911 = vmatmul.mubr.f32.gmra.mrb[0].mxu0 %v6781
        %v6912 = vpop.f32.mrb[0].mxu0
        %v6913 = vadd.f32 0.0, %v6912
        %v6914 = vpop.f32.mrb[0].mxu0
        %v6915 = vadd.f32 0.0, %v6914
        %6916 = vmatprep.mubr.f32.mxu0 0.0
        %6917 = vmatmul.mubr.f32.gmra.mrb[0].mxu0 %v6784
        %v6918 = vpop.f32.mrb[0].mxu0
        %v6919 = vadd.f32 0.0, %v6918
        %v6920 = vpop.f32.mrb[0].mxu0
        %v6921 = vadd.f32 0.0, %v6920
        %6922 = vmatprep.mubr.f32.mxu0 0.0
        %6923 = vmatmul.mubr.f32.gmra.mrb[0].mxu0 %v6787
        %v6924 = vpop.f32.mrb[0].mxu0
        %v6925 = vadd.f32 0.0, %v6924
        %v6926 = vpop.f32.mrb[0].mxu0
        %v6927 = vadd.f32 0.0, %v6926
        %6928 = vmatprep.mubr.f32.mxu0 0.0
        %6929 = vmatmul.mubr.f32.gmra.mrb[0].mxu0 %v6790
        %v6930 = vpop.f32.mrb[0].mxu0
        %v6931 = vadd.f32 0.0, %v6930
        %v6932 = vpop.f32.mrb[0].mxu0
        %v6933 = vadd.f32 0.0, %v6932
        %6934 = vmatprep.mubr.f32.mxu0 0.0
        %6935 = vmatmul.mubr.f32.gmra.mrb[0].mxu0 %v6793
        %v6936 = vpop.f32.mrb[0].mxu0
        %v6937 = vadd.f32 0.0, %v6936
        %v6938 = vpop.f32.mrb[0].mxu0
        %v6939 = vadd.f32 0.0, %v6938
        %6940 = vmatprep.mubr.f32.mxu0 0.0
        %6941 = vmatmul.mubr.f32.gmra.mrb[0].mxu0 %v6796
        %v6942 = vpop.f32.mrb[0].mxu0
        %v6943 = vadd.f32 0.0, %v6942
        %v6944 = vpop.f32.mrb[0].mxu0
        %v6945 = vadd.f32 0.0, %v6944
        %6946 = vmatprep.mubr.f32.mxu0 0.0
        %6947 = vmatmul.mubr.f32.gmra.mrb[0].mxu0 %v6799
        %v6948 = vpop.f32.mrb[0].mxu0
        %v6949 = vadd.f32 0.0, %v6948
        %v6950 = vpop.f32.mrb[0].mxu0
        %v6951 = vadd.f32 0.0, %v6950
        %6952 = vmatprep.mubr.f32.mxu0 0.0
        %6953 = vmatmul.mubr.f32.gmra.mrb[0].mxu0 %v6802
        %v6954 = vpop.f32.mrb[0].mxu0
        %v6955 = vadd.f32 0.0, %v6954
        %v6956 = vpop.f32.mrb[0].mxu0
        %v6957 = vadd.f32 0.0, %v6956
        %6958 = vmatprep.mubr.f32.mxu0 0.0
        %6959 = vmatmul.mubr.f32.gmra.mrb[0].mxu0 %v6805
        %v6960 = vpop.f32.mrb[0].mxu0
        %v6961 = vadd.f32 0.0, %v6960
        %v6962 = vpop.f32.mrb[0].mxu0
        %v6963 = vadd.f32 0.0, %v6962
        %6964 = vmatprep.mubr.f32.mxu0 0.0
        %6965 = vmatmul.mubr.f32.gmra.mrb[0].mxu0 %v6808
        %v6966 = vpop.f32.mrb[0].mxu0
        %v6967 = vadd.f32 0.0, %v6966
        %v6968 = vpop.f32.mrb[0].mxu0
        %v6969 = vadd.f32 0.0, %v6968
        %6970 = vdwg.mxu0
        %6971 = vmatprep.subr.mxu0 0.0
        %6972 = vmatpush1.msra.mxu0 %v6290
        %6973 = vmatprep.subr.mxu0 0.0
        %6974 = vmatpush1.msra.mxu0 %v6293
        %6975 = vmatprep.subr.mxu0 0.0
        %6976 = vmatpush1.msra.mxu0 %v6296
        %6977 = vmatprep.subr.mxu0 0.0
        %6978 = vmatpush1.msra.mxu0 %v6299
        %6979 = vmatprep.subr.mxu0 0.0
        %6980 = vmatpush1.msra.mxu0 %v6302
        %6981 = vmatprep.subr.mxu0 0.0
        %6982 = vmatpush1.msra.mxu0 %v6305
        %6983 = vmatprep.subr.mxu0 0.0
        %6984 = vmatpush1.msra.mxu0 %v6308
        %6985 = vmatprep.subr.mxu0 0.0
        %6986 = vmatpush1.msra.mxu0 %v6311
        %6987 = vmatprep.subr.mxu0 0.0
        %6988 = vmatpush1.msra.mxu0 0.0
        %6989 = vmatprep.subr.mxu0 0.0
        %6990 = vmatpush1.msra.mxu0 0.0
        %6991 = vmatprep.subr.mxu0 0.0
        %6992 = vmatpush1.msra.mxu0 0.0
        %6993 = vmatprep.subr.mxu0 0.0
        %6994 = vmatpush1.msra.mxu0 0.0
        %6995 = vmatprep.subr.mxu0 0.0
        %6996 = vmatpush1.msra.mxu0 0.0
        %6997 = vmatprep.subr.mxu0 0.0
        %6998 = vmatpush1.msra.mxu0 0.0
        %6999 = vmatprep.subr.mxu0 0.0
        %7000 = vmatpush1.msra.mxu0 0.0
        %7001 = vmatprep.subr.mxu0 0.0
        %7002 = vmatpush1.msra.mxu0 0.0
        %7003 = vmatprep.subr.mxu0 0.0
        %7004 = vmatpush1.msra.mxu0 0.0
        %7005 = vmatprep.subr.mxu0 0.0
        %7006 = vmatpush1.msra.mxu0 0.0
        %7007 = vmatprep.subr.mxu0 0.0
        %7008 = vmatpush1.msra.mxu0 0.0
        %7009 = vmatprep.subr.mxu0 0.0
        %7010 = vmatpush1.msra.mxu0 0.0
        %7011 = vmatprep.subr.mxu0 0.0
        %7012 = vmatpush1.msra.mxu0 0.0
        %7013 = vmatprep.subr.mxu0 0.0
        %7014 = vmatpush1.msra.mxu0 0.0
        %7015 = vmatprep.subr.mxu0 0.0
        %7016 = vmatpush1.msra.mxu0 0.0
        %7017 = vmatprep.subr.mxu0 0.0
        %7018 = vmatpush1.msra.mxu0 0.0
        %7019 = vmatprep.subr.mxu0 0.0
        %7020 = vmatpush1.msra.mxu0 0.0
        %7021 = vmatprep.subr.mxu0 0.0
        %7022 = vmatpush1.msra.mxu0 0.0
        %7023 = vmatprep.subr.mxu0 0.0
        %7024 = vmatpush1.msra.mxu0 0.0
        %7025 = vmatprep.subr.mxu0 0.0
        %7026 = vmatpush1.msra.mxu0 0.0
        %7027 = vmatprep.subr.mxu0 0.0
        %7028 = vmatpush1.msra.mxu0 0.0
        %7029 = vmatprep.subr.mxu0 0.0
        %7030 = vmatpush1.msra.mxu0 0.0
        %7031 = vmatprep.subr.mxu0 0.0
        %7032 = vmatpush1.msra.mxu0 0.0
        %7033 = vmatprep.subr.mxu0 0.0
        %7034 = vmatpush1.msra.mxu0 0.0
        %7035 = vmatprep.mubr.f32.mxu0 0.0
        %7036 = vmatmul.mubr.f32.gmra.mrb[0].mxu0 %v6763
        %v7037 = vpop.f32.mrb[0].mxu0
        %v7038 = vadd.f32 0.0, %v7037
        %v7039 = vpop.f32.mrb[0].mxu0
        %7040 = vmatprep.mubr.f32.mxu0 0.0
        %7041 = vmatmul.mubr.f32.gmra.mrb[0].mxu0 %v6766
        %v7042 = vpop.f32.mrb[0].mxu0
        %v7043 = vadd.f32 0.0, %v7042
        %v7044 = vpop.f32.mrb[0].mxu0
        %7045 = vmatprep.mubr.f32.mxu0 0.0
        %7046 = vmatmul.mubr.f32.gmra.mrb[0].mxu0 %v6769
        %v7047 = vpop.f32.mrb[0].mxu0
        %v7048 = vadd.f32 0.0, %v7047
        %v7049 = vpop.f32.mrb[0].mxu0
        %7050 = vmatprep.mubr.f32.mxu0 0.0
        %7051 = vmatmul.mubr.f32.gmra.mrb[0].mxu0 %v6772
        %v7052 = vpop.f32.mrb[0].mxu0
        %v7053 = vadd.f32 0.0, %v7052
        %v7054 = vpop.f32.mrb[0].mxu0
        %7055 = vmatprep.mubr.f32.mxu0 0.0
        %7056 = vmatmul.mubr.f32.gmra.mrb[0].mxu0 %v6775
        %v7057 = vpop.f32.mrb[0].mxu0
        %v7058 = vadd.f32 0.0, %v7057
        %v7059 = vpop.f32.mrb[0].mxu0
        %7060 = vmatprep.mubr.f32.mxu0 0.0
        %7061 = vmatmul.mubr.f32.gmra.mrb[0].mxu0 %v6778
        %v7062 = vpop.f32.mrb[0].mxu0
        %v7063 = vadd.f32 0.0, %v7062
        %v7064 = vpop.f32.mrb[0].mxu0
        %7065 = vmatprep.mubr.f32.mxu0 0.0
        %7066 = vmatmul.mubr.f32.gmra.mrb[0].mxu0 %v6781
        %v7067 = vpop.f32.mrb[0].mxu0
        %v7068 = vadd.f32 0.0, %v7067
        %v7069 = vpop.f32.mrb[0].mxu0
        %7070 = vmatprep.mubr.f32.mxu0 0.0
        %7071 = vmatmul.mubr.f32.gmra.mrb[0].mxu0 %v6784
        %v7072 = vpop.f32.mrb[0].mxu0
        %v7073 = vadd.f32 0.0, %v7072
        %v7074 = vpop.f32.mrb[0].mxu0
        %7075 = vmatprep.mubr.f32.mxu0 0.0
        %7076 = vmatmul.mubr.f32.gmra.mrb[0].mxu0 %v6787
        %v7077 = vpop.f32.mrb[0].mxu0
        %v7078 = vadd.f32 0.0, %v7077
        %v7079 = vpop.f32.mrb[0].mxu0
        %7080 = vmatprep.mubr.f32.mxu0 0.0
        %7081 = vmatmul.mubr.f32.gmra.mrb[0].mxu0 %v6790
        %v7082 = vpop.f32.mrb[0].mxu0
        %v7083 = vadd.f32 0.0, %v7082
        %v7084 = vpop.f32.mrb[0].mxu0
        %7085 = vmatprep.mubr.f32.mxu0 0.0
        %7086 = vmatmul.mubr.f32.gmra.mrb[0].mxu0 %v6793
        %v7087 = vpop.f32.mrb[0].mxu0
        %v7088 = vadd.f32 0.0, %v7087
        %v7089 = vpop.f32.mrb[0].mxu0
        %7090 = vmatprep.mubr.f32.mxu0 0.0
        %7091 = vmatmul.mubr.f32.gmra.mrb[0].mxu0 %v6796
        %v7092 = vpop.f32.mrb[0].mxu0
        %v7093 = vadd.f32 0.0, %v7092
        %v7094 = vpop.f32.mrb[0].mxu0
        %7095 = vmatprep.mubr.f32.mxu0 0.0
        %7096 = vmatmul.mubr.f32.gmra.mrb[0].mxu0 %v6799
        %v7097 = vpop.f32.mrb[0].mxu0
        %v7098 = vadd.f32 0.0, %v7097
        %v7099 = vpop.f32.mrb[0].mxu0
        %7100 = vmatprep.mubr.f32.mxu0 0.0
        %7101 = vmatmul.mubr.f32.gmra.mrb[0].mxu0 %v6802
        %v7102 = vpop.f32.mrb[0].mxu0
        %v7103 = vadd.f32 0.0, %v7102
        %v7104 = vpop.f32.mrb[0].mxu0
        %7105 = vmatprep.mubr.f32.mxu0 0.0
        %7106 = vmatmul.mubr.f32.gmra.mrb[0].mxu0 %v6805
        %v7107 = vpop.f32.mrb[0].mxu0
        %v7108 = vadd.f32 0.0, %v7107
        %v7109 = vpop.f32.mrb[0].mxu0
        %7110 = vmatprep.mubr.f32.mxu0 0.0
        %7111 = vmatmul.mubr.f32.gmra.mrb[0].mxu0 %v6808
        %v7112 = vpop.f32.mrb[0].mxu0
        %v7113 = vadd.f32 0.0, %v7112
        %v7114 = vpop.f32.mrb[0].mxu0
        %7115 = vdwg.mxu0
        %v7117 = vsel %vm2827, %v5751, 0
        %v7120 = vsel %vm2827, %v5756, 0
        %v7123 = vsel %vm2827, %v5761, 0
        %v7126 = vsel %vm2827, %v5766, 0
        %v7129 = vsel %vm2827, %v5771, 0
        %v7132 = vsel %vm2827, %v5776, 0
        %v7135 = vsel %vm2827, %v5781, 0
        %v7138 = vsel %vm2827, %v5786, 0
        %v7141 = vsel %vm2827, %v5791, 0
        %v7144 = vsel %vm2827, %v5796, 0
        %v7147 = vsel %vm2827, %v5801, 0
        %v7150 = vsel %vm2827, %v5806, 0
        %v7153 = vsel %vm2827, %v5811, 0
        %v7156 = vsel %vm2827, %v5816, 0
        %v7159 = vsel %vm2827, %v5821, 0
        %v7162 = vsel %vm2827, %v5826, 0
        %7164 = vmatprep.subr.mxu0 %v6313
        %7165 = vmatpush1.msra.mxu0 %v6312
        %7166 = vmatprep.subr.mxu0 %v6316
        %7167 = vmatpush1.msra.mxu0 %v6315
        %7168 = vmatprep.subr.mxu0 %v6319
        %7169 = vmatpush1.msra.mxu0 %v6318
        %7170 = vmatprep.subr.mxu0 %v6322
        %7171 = vmatpush1.msra.mxu0 %v6321
        %7172 = vmatprep.subr.mxu0 %v6325
        %7173 = vmatpush1.msra.mxu0 %v6324
        %7174 = vmatprep.subr.mxu0 %v6328
        %7175 = vmatpush1.msra.mxu0 %v6327
        %7176 = vmatprep.subr.mxu0 %v6331
        %7177 = vmatpush1.msra.mxu0 %v6330
        %7178 = vmatprep.subr.mxu0 %v6334
        %7179 = vmatpush1.msra.mxu0 %v6333
        %7180 = vmatprep.subr.mxu0 0.0
        %7181 = vmatpush1.msra.mxu0 0.0
        %7182 = vmatprep.subr.mxu0 0.0
        %7183 = vmatpush1.msra.mxu0 0.0
        %7184 = vmatprep.subr.mxu0 0.0
        %7185 = vmatpush1.msra.mxu0 0.0
        %7186 = vmatprep.subr.mxu0 0.0
        %7187 = vmatpush1.msra.mxu0 0.0
        %7188 = vmatprep.subr.mxu0 0.0
        %7189 = vmatpush1.msra.mxu0 0.0
        %7190 = vmatprep.subr.mxu0 0.0
        %7191 = vmatpush1.msra.mxu0 0.0
        %7192 = vmatprep.subr.mxu0 0.0
        %7193 = vmatpush1.msra.mxu0 0.0
        %7194 = vmatprep.subr.mxu0 0.0
        %7195 = vmatpush1.msra.mxu0 0.0
        %7196 = vmatprep.subr.mxu0 0.0
        %7197 = vmatpush1.msra.mxu0 0.0
        %7198 = vmatprep.subr.mxu0 0.0
        %7199 = vmatpush1.msra.mxu0 0.0
        %7200 = vmatprep.subr.mxu0 0.0
        %7201 = vmatpush1.msra.mxu0 0.0
        %7202 = vmatprep.subr.mxu0 0.0
        %7203 = vmatpush1.msra.mxu0 0.0
        %7204 = vmatprep.subr.mxu0 0.0
        %7205 = vmatpush1.msra.mxu0 0.0
        %7206 = vmatprep.subr.mxu0 0.0
        %7207 = vmatpush1.msra.mxu0 0.0
        %7208 = vmatprep.subr.mxu0 0.0
        %7209 = vmatpush1.msra.mxu0 0.0
        %7210 = vmatprep.subr.mxu0 0.0
        %7211 = vmatpush1.msra.mxu0 0.0
        %7212 = vmatprep.subr.mxu0 0.0
        %7213 = vmatpush1.msra.mxu0 0.0
        %7214 = vmatprep.subr.mxu0 0.0
        %7215 = vmatpush1.msra.mxu0 0.0
        %7216 = vmatprep.subr.mxu0 0.0
        %7217 = vmatpush1.msra.mxu0 0.0
        %7218 = vmatprep.subr.mxu0 0.0
        %7219 = vmatpush1.msra.mxu0 0.0
        %7220 = vmatprep.subr.mxu0 0.0
        %7221 = vmatpush1.msra.mxu0 0.0
        %7222 = vmatprep.subr.mxu0 0.0
        %7223 = vmatpush1.msra.mxu0 0.0
        %7224 = vmatprep.subr.mxu0 0.0
        %7225 = vmatpush1.msra.mxu0 0.0
        %7226 = vmatprep.subr.mxu0 0.0
        %7227 = vmatpush1.msra.mxu0 0.0
        %7228 = vmatprep.mubr.f32.mxu0 0.0
        %7229 = vmatmul.mubr.f32.gmra.mrb[0].mxu0 %v7117
        %v7230 = vpop.f32.mrb[0].mxu0
        %v7231 = vadd.f32 0.0, %v7230
        %v7232 = vpop.f32.mrb[0].mxu0
        %v7233 = vadd.f32 0.0, %v7232
        %7234 = vmatprep.mubr.f32.mxu0 0.0
        %7235 = vmatmul.mubr.f32.gmra.mrb[0].mxu0 %v7120
        %v7236 = vpop.f32.mrb[0].mxu0
        %v7237 = vadd.f32 0.0, %v7236
        %v7238 = vpop.f32.mrb[0].mxu0
        %v7239 = vadd.f32 0.0, %v7238
        %7240 = vmatprep.mubr.f32.mxu0 0.0
        %7241 = vmatmul.mubr.f32.gmra.mrb[0].mxu0 %v7123
        %v7242 = vpop.f32.mrb[0].mxu0
        %v7243 = vadd.f32 0.0, %v7242
        %v7244 = vpop.f32.mrb[0].mxu0
        %v7245 = vadd.f32 0.0, %v7244
        %7246 = vmatprep.mubr.f32.mxu0 0.0
        %7247 = vmatmul.mubr.f32.gmra.mrb[0].mxu0 %v7126
        %v7248 = vpop.f32.mrb[0].mxu0
        %v7249 = vadd.f32 0.0, %v7248
        %v7250 = vpop.f32.mrb[0].mxu0
        %v7251 = vadd.f32 0.0, %v7250
        %7252 = vmatprep.mubr.f32.mxu0 0.0
        %7253 = vmatmul.mubr.f32.gmra.mrb[0].mxu0 %v7129
        %v7254 = vpop.f32.mrb[0].mxu0
        %v7255 = vadd.f32 0.0, %v7254
        %v7256 = vpop.f32.mrb[0].mxu0
        %v7257 = vadd.f32 0.0, %v7256
        %7258 = vmatprep.mubr.f32.mxu0 0.0
        %7259 = vmatmul.mubr.f32.gmra.mrb[0].mxu0 %v7132
        %v7260 = vpop.f32.mrb[0].mxu0
        %v7261 = vadd.f32 0.0, %v7260
        %v7262 = vpop.f32.mrb[0].mxu0
        %v7263 = vadd.f32 0.0, %v7262
        %7264 = vmatprep.mubr.f32.mxu0 0.0
        %7265 = vmatmul.mubr.f32.gmra.mrb[0].mxu0 %v7135
        %v7266 = vpop.f32.mrb[0].mxu0
        %v7267 = vadd.f32 0.0, %v7266
        %v7268 = vpop.f32.mrb[0].mxu0
        %v7269 = vadd.f32 0.0, %v7268
        %7270 = vmatprep.mubr.f32.mxu0 0.0
        %7271 = vmatmul.mubr.f32.gmra.mrb[0].mxu0 %v7138
        %v7272 = vpop.f32.mrb[0].mxu0
        %v7273 = vadd.f32 0.0, %v7272
        %v7274 = vpop.f32.mrb[0].mxu0
        %v7275 = vadd.f32 0.0, %v7274
        %7276 = vmatprep.mubr.f32.mxu0 0.0
        %7277 = vmatmul.mubr.f32.gmra.mrb[0].mxu0 %v7141
        %v7278 = vpop.f32.mrb[0].mxu0
        %v7279 = vadd.f32 0.0, %v7278
        %v7280 = vpop.f32.mrb[0].mxu0
        %v7281 = vadd.f32 0.0, %v7280
        %7282 = vmatprep.mubr.f32.mxu0 0.0
        %7283 = vmatmul.mubr.f32.gmra.mrb[0].mxu0 %v7144
        %v7284 = vpop.f32.mrb[0].mxu0
        %v7285 = vadd.f32 0.0, %v7284
        %v7286 = vpop.f32.mrb[0].mxu0
        %v7287 = vadd.f32 0.0, %v7286
        %7288 = vmatprep.mubr.f32.mxu0 0.0
        %7289 = vmatmul.mubr.f32.gmra.mrb[0].mxu0 %v7147
        %v7290 = vpop.f32.mrb[0].mxu0
        %v7291 = vadd.f32 0.0, %v7290
        %v7292 = vpop.f32.mrb[0].mxu0
        %v7293 = vadd.f32 0.0, %v7292
        %7294 = vmatprep.mubr.f32.mxu0 0.0
        %7295 = vmatmul.mubr.f32.gmra.mrb[0].mxu0 %v7150
        %v7296 = vpop.f32.mrb[0].mxu0
        %v7297 = vadd.f32 0.0, %v7296
        %v7298 = vpop.f32.mrb[0].mxu0
        %v7299 = vadd.f32 0.0, %v7298
        %7300 = vmatprep.mubr.f32.mxu0 0.0
        %7301 = vmatmul.mubr.f32.gmra.mrb[0].mxu0 %v7153
        %v7302 = vpop.f32.mrb[0].mxu0
        %v7303 = vadd.f32 0.0, %v7302
        %v7304 = vpop.f32.mrb[0].mxu0
        %v7305 = vadd.f32 0.0, %v7304
        %7306 = vmatprep.mubr.f32.mxu0 0.0
        %7307 = vmatmul.mubr.f32.gmra.mrb[0].mxu0 %v7156
        %v7308 = vpop.f32.mrb[0].mxu0
        %v7309 = vadd.f32 0.0, %v7308
        %v7310 = vpop.f32.mrb[0].mxu0
        %v7311 = vadd.f32 0.0, %v7310
        %7312 = vmatprep.mubr.f32.mxu0 0.0
        %7313 = vmatmul.mubr.f32.gmra.mrb[0].mxu0 %v7159
        %v7314 = vpop.f32.mrb[0].mxu0
        %v7315 = vadd.f32 0.0, %v7314
        %v7316 = vpop.f32.mrb[0].mxu0
        %v7317 = vadd.f32 0.0, %v7316
        %7318 = vmatprep.mubr.f32.mxu0 0.0
        %7319 = vmatmul.mubr.f32.gmra.mrb[0].mxu0 %v7162
        %v7320 = vpop.f32.mrb[0].mxu0
        %v7321 = vadd.f32 0.0, %v7320
        %v7322 = vpop.f32.mrb[0].mxu0
        %v7323 = vadd.f32 0.0, %v7322
        %7324 = vdwg.mxu0
        %7325 = vmatprep.subr.mxu0 0.0
        %7326 = vmatpush1.msra.mxu0 %v6314
        %7327 = vmatprep.subr.mxu0 0.0
        %7328 = vmatpush1.msra.mxu0 %v6317
        %7329 = vmatprep.subr.mxu0 0.0
        %7330 = vmatpush1.msra.mxu0 %v6320
        %7331 = vmatprep.subr.mxu0 0.0
        %7332 = vmatpush1.msra.mxu0 %v6323
        %7333 = vmatprep.subr.mxu0 0.0
        %7334 = vmatpush1.msra.mxu0 %v6326
        %7335 = vmatprep.subr.mxu0 0.0
        %7336 = vmatpush1.msra.mxu0 %v6329
        %7337 = vmatprep.subr.mxu0 0.0
        %7338 = vmatpush1.msra.mxu0 %v6332
        %7339 = vmatprep.subr.mxu0 0.0
        %7340 = vmatpush1.msra.mxu0 %v6335
        %7341 = vmatprep.subr.mxu0 0.0
        %7342 = vmatpush1.msra.mxu0 0.0
        %7343 = vmatprep.subr.mxu0 0.0
        %7344 = vmatpush1.msra.mxu0 0.0
        %7345 = vmatprep.subr.mxu0 0.0
        %7346 = vmatpush1.msra.mxu0 0.0
        %7347 = vmatprep.subr.mxu0 0.0
        %7348 = vmatpush1.msra.mxu0 0.0
        %7349 = vmatprep.subr.mxu0 0.0
        %7350 = vmatpush1.msra.mxu0 0.0
        %7351 = vmatprep.subr.mxu0 0.0
        %7352 = vmatpush1.msra.mxu0 0.0
        %7353 = vmatprep.subr.mxu0 0.0
        %7354 = vmatpush1.msra.mxu0 0.0
        %7355 = vmatprep.subr.mxu0 0.0
        %7356 = vmatpush1.msra.mxu0 0.0
        %7357 = vmatprep.subr.mxu0 0.0
        %7358 = vmatpush1.msra.mxu0 0.0
        %7359 = vmatprep.subr.mxu0 0.0
        %7360 = vmatpush1.msra.mxu0 0.0
        %7361 = vmatprep.subr.mxu0 0.0
        %7362 = vmatpush1.msra.mxu0 0.0
        %7363 = vmatprep.subr.mxu0 0.0
        %7364 = vmatpush1.msra.mxu0 0.0
        %7365 = vmatprep.subr.mxu0 0.0
        %7366 = vmatpush1.msra.mxu0 0.0
        %7367 = vmatprep.subr.mxu0 0.0
        %7368 = vmatpush1.msra.mxu0 0.0
        %7369 = vmatprep.subr.mxu0 0.0
        %7370 = vmatpush1.msra.mxu0 0.0
        %7371 = vmatprep.subr.mxu0 0.0
        %7372 = vmatpush1.msra.mxu0 0.0
        %7373 = vmatprep.subr.mxu0 0.0
        %7374 = vmatpush1.msra.mxu0 0.0
        %7375 = vmatprep.subr.mxu0 0.0
        %7376 = vmatpush1.msra.mxu0 0.0
        %7377 = vmatprep.subr.mxu0 0.0
        %7378 = vmatpush1.msra.mxu0 0.0
        %7379 = vmatprep.subr.mxu0 0.0
        %7380 = vmatpush1.msra.mxu0 0.0
        %7381 = vmatprep.subr.mxu0 0.0
        %7382 = vmatpush1.msra.mxu0 0.0
        %7383 = vmatprep.subr.mxu0 0.0
        %7384 = vmatpush1.msra.mxu0 0.0
        %7385 = vmatprep.subr.mxu0 0.0
        %7386 = vmatpush1.msra.mxu0 0.0
        %7387 = vmatprep.subr.mxu0 0.0
        %7388 = vmatpush1.msra.mxu0 0.0
        %7389 = vmatprep.mubr.f32.mxu0 0.0
        %7390 = vmatmul.mubr.f32.gmra.mrb[0].mxu0 %v7117
        %v7391 = vpop.f32.mrb[0].mxu0
        %v7392 = vadd.f32 0.0, %v7391
        %v7393 = vpop.f32.mrb[0].mxu0
        %7394 = vmatprep.mubr.f32.mxu0 0.0
        %7395 = vmatmul.mubr.f32.gmra.mrb[0].mxu0 %v7120
        %v7396 = vpop.f32.mrb[0].mxu0
        %v7397 = vadd.f32 0.0, %v7396
        %v7398 = vpop.f32.mrb[0].mxu0
        %7399 = vmatprep.mubr.f32.mxu0 0.0
        %7400 = vmatmul.mubr.f32.gmra.mrb[0].mxu0 %v7123
        %v7401 = vpop.f32.mrb[0].mxu0
        %v7402 = vadd.f32 0.0, %v7401
        %v7403 = vpop.f32.mrb[0].mxu0
        %7404 = vmatprep.mubr.f32.mxu0 0.0
        %7405 = vmatmul.mubr.f32.gmra.mrb[0].mxu0 %v7126
        %v7406 = vpop.f32.mrb[0].mxu0
        %v7407 = vadd.f32 0.0, %v7406
        %v7408 = vpop.f32.mrb[0].mxu0
        %7409 = vmatprep.mubr.f32.mxu0 0.0
        %7410 = vmatmul.mubr.f32.gmra.mrb[0].mxu0 %v7129
        %v7411 = vpop.f32.mrb[0].mxu0
        %v7412 = vadd.f32 0.0, %v7411
        %v7413 = vpop.f32.mrb[0].mxu0
        %7414 = vmatprep.mubr.f32.mxu0 0.0
        %7415 = vmatmul.mubr.f32.gmra.mrb[0].mxu0 %v7132
        %v7416 = vpop.f32.mrb[0].mxu0
        %v7417 = vadd.f32 0.0, %v7416
        %v7418 = vpop.f32.mrb[0].mxu0
        %7419 = vmatprep.mubr.f32.mxu0 0.0
        %7420 = vmatmul.mubr.f32.gmra.mrb[0].mxu0 %v7135
        %v7421 = vpop.f32.mrb[0].mxu0
        %v7422 = vadd.f32 0.0, %v7421
        %v7423 = vpop.f32.mrb[0].mxu0
        %7424 = vmatprep.mubr.f32.mxu0 0.0
        %7425 = vmatmul.mubr.f32.gmra.mrb[0].mxu0 %v7138
        %v7426 = vpop.f32.mrb[0].mxu0
        %v7427 = vadd.f32 0.0, %v7426
        %v7428 = vpop.f32.mrb[0].mxu0
        %7429 = vmatprep.mubr.f32.mxu0 0.0
        %7430 = vmatmul.mubr.f32.gmra.mrb[0].mxu0 %v7141
        %v7431 = vpop.f32.mrb[0].mxu0
        %v7432 = vadd.f32 0.0, %v7431
        %v7433 = vpop.f32.mrb[0].mxu0
        %7434 = vmatprep.mubr.f32.mxu0 0.0
        %7435 = vmatmul.mubr.f32.gmra.mrb[0].mxu0 %v7144
        %v7436 = vpop.f32.mrb[0].mxu0
        %v7437 = vadd.f32 0.0, %v7436
        %v7438 = vpop.f32.mrb[0].mxu0
        %7439 = vmatprep.mubr.f32.mxu0 0.0
        %7440 = vmatmul.mubr.f32.gmra.mrb[0].mxu0 %v7147
        %v7441 = vpop.f32.mrb[0].mxu0
        %v7442 = vadd.f32 0.0, %v7441
        %v7443 = vpop.f32.mrb[0].mxu0
        %7444 = vmatprep.mubr.f32.mxu0 0.0
        %7445 = vmatmul.mubr.f32.gmra.mrb[0].mxu0 %v7150
        %v7446 = vpop.f32.mrb[0].mxu0
        %v7447 = vadd.f32 0.0, %v7446
        %v7448 = vpop.f32.mrb[0].mxu0
        %7449 = vmatprep.mubr.f32.mxu0 0.0
        %7450 = vmatmul.mubr.f32.gmra.mrb[0].mxu0 %v7153
        %v7451 = vpop.f32.mrb[0].mxu0
        %v7452 = vadd.f32 0.0, %v7451
        %v7453 = vpop.f32.mrb[0].mxu0
        %7454 = vmatprep.mubr.f32.mxu0 0.0
        %7455 = vmatmul.mubr.f32.gmra.mrb[0].mxu0 %v7156
        %v7456 = vpop.f32.mrb[0].mxu0
        %v7457 = vadd.f32 0.0, %v7456
        %v7458 = vpop.f32.mrb[0].mxu0
        %7459 = vmatprep.mubr.f32.mxu0 0.0
        %7460 = vmatmul.mubr.f32.gmra.mrb[0].mxu0 %v7159
        %v7461 = vpop.f32.mrb[0].mxu0
        %v7462 = vadd.f32 0.0, %v7461
        %v7463 = vpop.f32.mrb[0].mxu0
        %7464 = vmatprep.mubr.f32.mxu0 0.0
        %7465 = vmatmul.mubr.f32.gmra.mrb[0].mxu0 %v7162
        %v7466 = vpop.f32.mrb[0].mxu0
        %v7467 = vadd.f32 0.0, %v7466
        %v7468 = vpop.f32.mrb[0].mxu0
        %7469 = vdwg.mxu0
        %v7471 = vsel %vm2827, %v5896, 0
        %v7474 = vsel %vm2827, %v5901, 0
        %v7477 = vsel %vm2827, %v5906, 0
        %v7480 = vsel %vm2827, %v5911, 0
        %v7483 = vsel %vm2827, %v5916, 0
        %v7486 = vsel %vm2827, %v5921, 0
        %v7489 = vsel %vm2827, %v5926, 0
        %v7492 = vsel %vm2827, %v5931, 0
        %v7495 = vsel %vm2827, %v5936, 0
        %v7498 = vsel %vm2827, %v5941, 0
        %v7501 = vsel %vm2827, %v5946, 0
        %v7504 = vsel %vm2827, %v5951, 0
        %v7507 = vsel %vm2827, %v5956, 0
        %v7510 = vsel %vm2827, %v5961, 0
        %v7513 = vsel %vm2827, %v5966, 0
        %v7516 = vsel %vm2827, %v5971, 0
        %7518 = vmatprep.subr.mxu0 %v6337
        %7519 = vmatpush1.msra.mxu0 %v6336
        %7520 = vmatprep.subr.mxu0 %v6340
        %7521 = vmatpush1.msra.mxu0 %v6339
        %7522 = vmatprep.subr.mxu0 %v6343
        %7523 = vmatpush1.msra.mxu0 %v6342
        %7524 = vmatprep.subr.mxu0 %v6346
        %7525 = vmatpush1.msra.mxu0 %v6345
        %7526 = vmatprep.subr.mxu0 %v6349
        %7527 = vmatpush1.msra.mxu0 %v6348
        %7528 = vmatprep.subr.mxu0 %v6352
        %7529 = vmatpush1.msra.mxu0 %v6351
        %7530 = vmatprep.subr.mxu0 %v6355
        %7531 = vmatpush1.msra.mxu0 %v6354
        %7532 = vmatprep.subr.mxu0 %v6358
        %7533 = vmatpush1.msra.mxu0 %v6357
        %7534 = vmatprep.subr.mxu0 0.0
        %7535 = vmatpush1.msra.mxu0 0.0
        %7536 = vmatprep.subr.mxu0 0.0
        %7537 = vmatpush1.msra.mxu0 0.0
        %7538 = vmatprep.subr.mxu0 0.0
        %7539 = vmatpush1.msra.mxu0 0.0
        %7540 = vmatprep.subr.mxu0 0.0
        %7541 = vmatpush1.msra.mxu0 0.0
        %7542 = vmatprep.subr.mxu0 0.0
        %7543 = vmatpush1.msra.mxu0 0.0
        %7544 = vmatprep.subr.mxu0 0.0
        %7545 = vmatpush1.msra.mxu0 0.0
        %7546 = vmatprep.subr.mxu0 0.0
        %7547 = vmatpush1.msra.mxu0 0.0
        %7548 = vmatprep.subr.mxu0 0.0
        %7549 = vmatpush1.msra.mxu0 0.0
        %7550 = vmatprep.subr.mxu0 0.0
        %7551 = vmatpush1.msra.mxu0 0.0
        %7552 = vmatprep.subr.mxu0 0.0
        %7553 = vmatpush1.msra.mxu0 0.0
        %7554 = vmatprep.subr.mxu0 0.0
        %7555 = vmatpush1.msra.mxu0 0.0
        %7556 = vmatprep.subr.mxu0 0.0
        %7557 = vmatpush1.msra.mxu0 0.0
        %7558 = vmatprep.subr.mxu0 0.0
        %7559 = vmatpush1.msra.mxu0 0.0
        %7560 = vmatprep.subr.mxu0 0.0
        %7561 = vmatpush1.msra.mxu0 0.0
        %7562 = vmatprep.subr.mxu0 0.0
        %7563 = vmatpush1.msra.mxu0 0.0
        %7564 = vmatprep.subr.mxu0 0.0
        %7565 = vmatpush1.msra.mxu0 0.0
        %7566 = vmatprep.subr.mxu0 0.0
        %7567 = vmatpush1.msra.mxu0 0.0
        %7568 = vmatprep.subr.mxu0 0.0
        %7569 = vmatpush1.msra.mxu0 0.0
        %7570 = vmatprep.subr.mxu0 0.0
        %7571 = vmatpush1.msra.mxu0 0.0
        %7572 = vmatprep.subr.mxu0 0.0
        %7573 = vmatpush1.msra.mxu0 0.0
        %7574 = vmatprep.subr.mxu0 0.0
        %7575 = vmatpush1.msra.mxu0 0.0
        %7576 = vmatprep.subr.mxu0 0.0
        %7577 = vmatpush1.msra.mxu0 0.0
        %7578 = vmatprep.subr.mxu0 0.0
        %7579 = vmatpush1.msra.mxu0 0.0
        %7580 = vmatprep.subr.mxu0 0.0
        %7581 = vmatpush1.msra.mxu0 0.0
        %7582 = vmatprep.mubr.f32.mxu0 0.0
        %7583 = vmatmul.mubr.f32.gmra.mrb[0].mxu0 %v7471
        %v7584 = vpop.f32.mrb[0].mxu0
        %v7585 = vadd.f32 0.0, %v7584
        %v7586 = vpop.f32.mrb[0].mxu0
        %v7587 = vadd.f32 0.0, %v7586
        %7588 = vmatprep.mubr.f32.mxu0 0.0
        %7589 = vmatmul.mubr.f32.gmra.mrb[0].mxu0 %v7474
        %v7590 = vpop.f32.mrb[0].mxu0
        %v7591 = vadd.f32 0.0, %v7590
        %v7592 = vpop.f32.mrb[0].mxu0
        %v7593 = vadd.f32 0.0, %v7592
        %7594 = vmatprep.mubr.f32.mxu0 0.0
        %7595 = vmatmul.mubr.f32.gmra.mrb[0].mxu0 %v7477
        %v7596 = vpop.f32.mrb[0].mxu0
        %v7597 = vadd.f32 0.0, %v7596
        %v7598 = vpop.f32.mrb[0].mxu0
        %v7599 = vadd.f32 0.0, %v7598
        %7600 = vmatprep.mubr.f32.mxu0 0.0
        %7601 = vmatmul.mubr.f32.gmra.mrb[0].mxu0 %v7480
        %v7602 = vpop.f32.mrb[0].mxu0
        %v7603 = vadd.f32 0.0, %v7602
        %v7604 = vpop.f32.mrb[0].mxu0
        %v7605 = vadd.f32 0.0, %v7604
        %7606 = vmatprep.mubr.f32.mxu0 0.0
        %7607 = vmatmul.mubr.f32.gmra.mrb[0].mxu0 %v7483
        %v7608 = vpop.f32.mrb[0].mxu0
        %v7609 = vadd.f32 0.0, %v7608
        %v7610 = vpop.f32.mrb[0].mxu0
        %v7611 = vadd.f32 0.0, %v7610
        %7612 = vmatprep.mubr.f32.mxu0 0.0
        %7613 = vmatmul.mubr.f32.gmra.mrb[0].mxu0 %v7486
        %v7614 = vpop.f32.mrb[0].mxu0
        %v7615 = vadd.f32 0.0, %v7614
        %v7616 = vpop.f32.mrb[0].mxu0
        %v7617 = vadd.f32 0.0, %v7616
        %7618 = vmatprep.mubr.f32.mxu0 0.0
        %7619 = vmatmul.mubr.f32.gmra.mrb[0].mxu0 %v7489
        %v7620 = vpop.f32.mrb[0].mxu0
        %v7621 = vadd.f32 0.0, %v7620
        %v7622 = vpop.f32.mrb[0].mxu0
        %v7623 = vadd.f32 0.0, %v7622
        %7624 = vmatprep.mubr.f32.mxu0 0.0
        %7625 = vmatmul.mubr.f32.gmra.mrb[0].mxu0 %v7492
        %v7626 = vpop.f32.mrb[0].mxu0
        %v7627 = vadd.f32 0.0, %v7626
        %v7628 = vpop.f32.mrb[0].mxu0
        %v7629 = vadd.f32 0.0, %v7628
        %7630 = vmatprep.mubr.f32.mxu0 0.0
        %7631 = vmatmul.mubr.f32.gmra.mrb[0].mxu0 %v7495
        %v7632 = vpop.f32.mrb[0].mxu0
        %v7633 = vadd.f32 0.0, %v7632
        %v7634 = vpop.f32.mrb[0].mxu0
        %v7635 = vadd.f32 0.0, %v7634
        %7636 = vmatprep.mubr.f32.mxu0 0.0
        %7637 = vmatmul.mubr.f32.gmra.mrb[0].mxu0 %v7498
        %v7638 = vpop.f32.mrb[0].mxu0
        %v7639 = vadd.f32 0.0, %v7638
        %v7640 = vpop.f32.mrb[0].mxu0
        %v7641 = vadd.f32 0.0, %v7640
        %7642 = vmatprep.mubr.f32.mxu0 0.0
        %7643 = vmatmul.mubr.f32.gmra.mrb[0].mxu0 %v7501
        %v7644 = vpop.f32.mrb[0].mxu0
        %v7645 = vadd.f32 0.0, %v7644
        %v7646 = vpop.f32.mrb[0].mxu0
        %v7647 = vadd.f32 0.0, %v7646
        %7648 = vmatprep.mubr.f32.mxu0 0.0
        %7649 = vmatmul.mubr.f32.gmra.mrb[0].mxu0 %v7504
        %v7650 = vpop.f32.mrb[0].mxu0
        %v7651 = vadd.f32 0.0, %v7650
        %v7652 = vpop.f32.mrb[0].mxu0
        %v7653 = vadd.f32 0.0, %v7652
        %7654 = vmatprep.mubr.f32.mxu0 0.0
        %7655 = vmatmul.mubr.f32.gmra.mrb[0].mxu0 %v7507
        %v7656 = vpop.f32.mrb[0].mxu0
        %v7657 = vadd.f32 0.0, %v7656
        %v7658 = vpop.f32.mrb[0].mxu0
        %v7659 = vadd.f32 0.0, %v7658
        %7660 = vmatprep.mubr.f32.mxu0 0.0
        %7661 = vmatmul.mubr.f32.gmra.mrb[0].mxu0 %v7510
        %v7662 = vpop.f32.mrb[0].mxu0
        %v7663 = vadd.f32 0.0, %v7662
        %v7664 = vpop.f32.mrb[0].mxu0
        %v7665 = vadd.f32 0.0, %v7664
        %7666 = vmatprep.mubr.f32.mxu0 0.0
        %7667 = vmatmul.mubr.f32.gmra.mrb[0].mxu0 %v7513
        %v7668 = vpop.f32.mrb[0].mxu0
        %v7669 = vadd.f32 0.0, %v7668
        %v7670 = vpop.f32.mrb[0].mxu0
        %v7671 = vadd.f32 0.0, %v7670
        %7672 = vmatprep.mubr.f32.mxu0 0.0
        %7673 = vmatmul.mubr.f32.gmra.mrb[0].mxu0 %v7516
        %v7674 = vpop.f32.mrb[0].mxu0
        %v7675 = vadd.f32 0.0, %v7674
        %v7676 = vpop.f32.mrb[0].mxu0
        %v7677 = vadd.f32 0.0, %v7676
        %7678 = vdwg.mxu0
        %7679 = vmatprep.subr.mxu0 0.0
        %7680 = vmatpush1.msra.mxu0 %v6338
        %7681 = vmatprep.subr.mxu0 0.0
        %7682 = vmatpush1.msra.mxu0 %v6341
        %7683 = vmatprep.subr.mxu0 0.0
        %7684 = vmatpush1.msra.mxu0 %v6344
        %7685 = vmatprep.subr.mxu0 0.0
        %7686 = vmatpush1.msra.mxu0 %v6347
        %7687 = vmatprep.subr.mxu0 0.0
        %7688 = vmatpush1.msra.mxu0 %v6350
        %7689 = vmatprep.subr.mxu0 0.0
        %7690 = vmatpush1.msra.mxu0 %v6353
        %7691 = vmatprep.subr.mxu0 0.0
        %7692 = vmatpush1.msra.mxu0 %v6356
        %7693 = vmatprep.subr.mxu0 0.0
        %7694 = vmatpush1.msra.mxu0 %v6359
        %7695 = vmatprep.subr.mxu0 0.0
        %7696 = vmatpush1.msra.mxu0 0.0
        %7697 = vmatprep.subr.mxu0 0.0
        %7698 = vmatpush1.msra.mxu0 0.0
        %7699 = vmatprep.subr.mxu0 0.0
        %7700 = vmatpush1.msra.mxu0 0.0
        %7701 = vmatprep.subr.mxu0 0.0
        %7702 = vmatpush1.msra.mxu0 0.0
        %7703 = vmatprep.subr.mxu0 0.0
        %7704 = vmatpush1.msra.mxu0 0.0
        %7705 = vmatprep.subr.mxu0 0.0
        %7706 = vmatpush1.msra.mxu0 0.0
        %7707 = vmatprep.subr.mxu0 0.0
        %7708 = vmatpush1.msra.mxu0 0.0
        %7709 = vmatprep.subr.mxu0 0.0
        %7710 = vmatpush1.msra.mxu0 0.0
        %7711 = vmatprep.subr.mxu0 0.0
        %7712 = vmatpush1.msra.mxu0 0.0
        %7713 = vmatprep.subr.mxu0 0.0
        %7714 = vmatpush1.msra.mxu0 0.0
        %7715 = vmatprep.subr.mxu0 0.0
        %7716 = vmatpush1.msra.mxu0 0.0
        %7717 = vmatprep.subr.mxu0 0.0
        %7718 = vmatpush1.msra.mxu0 0.0
        %7719 = vmatprep.subr.mxu0 0.0
        %7720 = vmatpush1.msra.mxu0 0.0
        %7721 = vmatprep.subr.mxu0 0.0
        %7722 = vmatpush1.msra.mxu0 0.0
        %7723 = vmatprep.subr.mxu0 0.0
        %7724 = vmatpush1.msra.mxu0 0.0
        %7725 = vmatprep.subr.mxu0 0.0
        %7726 = vmatpush1.msra.mxu0 0.0
        %7727 = vmatprep.subr.mxu0 0.0
        %7728 = vmatpush1.msra.mxu0 0.0
        %7729 = vmatprep.subr.mxu0 0.0
        %7730 = vmatpush1.msra.mxu0 0.0
        %7731 = vmatprep.subr.mxu0 0.0
        %7732 = vmatpush1.msra.mxu0 0.0
        %7733 = vmatprep.subr.mxu0 0.0
        %7734 = vmatpush1.msra.mxu0 0.0
        %7735 = vmatprep.subr.mxu0 0.0
        %7736 = vmatpush1.msra.mxu0 0.0
        %7737 = vmatprep.subr.mxu0 0.0
        %7738 = vmatpush1.msra.mxu0 0.0
        %7739 = vmatprep.subr.mxu0 0.0
        %7740 = vmatpush1.msra.mxu0 0.0
        %7741 = vmatprep.subr.mxu0 0.0
        %7742 = vmatpush1.msra.mxu0 0.0
        %7743 = vmatprep.mubr.f32.mxu0 0.0
        %7744 = vmatmul.mubr.f32.gmra.mrb[0].mxu0 %v7471
        %v7745 = vpop.f32.mrb[0].mxu0
        %v7746 = vadd.f32 0.0, %v7745
        %v7747 = vpop.f32.mrb[0].mxu0
        %7748 = vmatprep.mubr.f32.mxu0 0.0
        %7749 = vmatmul.mubr.f32.gmra.mrb[0].mxu0 %v7474
        %v7750 = vpop.f32.mrb[0].mxu0
        %v7751 = vadd.f32 0.0, %v7750
        %v7752 = vpop.f32.mrb[0].mxu0
        %7753 = vmatprep.mubr.f32.mxu0 0.0
        %7754 = vmatmul.mubr.f32.gmra.mrb[0].mxu0 %v7477
        %v7755 = vpop.f32.mrb[0].mxu0
        %v7756 = vadd.f32 0.0, %v7755
        %v7757 = vpop.f32.mrb[0].mxu0
        %7758 = vmatprep.mubr.f32.mxu0 0.0
        %7759 = vmatmul.mubr.f32.gmra.mrb[0].mxu0 %v7480
        %v7760 = vpop.f32.mrb[0].mxu0
        %v7761 = vadd.f32 0.0, %v7760
        %v7762 = vpop.f32.mrb[0].mxu0
        %7763 = vmatprep.mubr.f32.mxu0 0.0
        %7764 = vmatmul.mubr.f32.gmra.mrb[0].mxu0 %v7483
        %v7765 = vpop.f32.mrb[0].mxu0
        %v7766 = vadd.f32 0.0, %v7765
        %v7767 = vpop.f32.mrb[0].mxu0
        %7768 = vmatprep.mubr.f32.mxu0 0.0
        %7769 = vmatmul.mubr.f32.gmra.mrb[0].mxu0 %v7486
        %v7770 = vpop.f32.mrb[0].mxu0
        %v7771 = vadd.f32 0.0, %v7770
        %v7772 = vpop.f32.mrb[0].mxu0
        %7773 = vmatprep.mubr.f32.mxu0 0.0
        %7774 = vmatmul.mubr.f32.gmra.mrb[0].mxu0 %v7489
        %v7775 = vpop.f32.mrb[0].mxu0
        %v7776 = vadd.f32 0.0, %v7775
        %v7777 = vpop.f32.mrb[0].mxu0
        %7778 = vmatprep.mubr.f32.mxu0 0.0
        %7779 = vmatmul.mubr.f32.gmra.mrb[0].mxu0 %v7492
        %v7780 = vpop.f32.mrb[0].mxu0
        %v7781 = vadd.f32 0.0, %v7780
        %v7782 = vpop.f32.mrb[0].mxu0
        %7783 = vmatprep.mubr.f32.mxu0 0.0
        %7784 = vmatmul.mubr.f32.gmra.mrb[0].mxu0 %v7495
        %v7785 = vpop.f32.mrb[0].mxu0
        %v7786 = vadd.f32 0.0, %v7785
        %v7787 = vpop.f32.mrb[0].mxu0
        %7788 = vmatprep.mubr.f32.mxu0 0.0
        %7789 = vmatmul.mubr.f32.gmra.mrb[0].mxu0 %v7498
        %v7790 = vpop.f32.mrb[0].mxu0
        %v7791 = vadd.f32 0.0, %v7790
        %v7792 = vpop.f32.mrb[0].mxu0
        %7793 = vmatprep.mubr.f32.mxu0 0.0
        %7794 = vmatmul.mubr.f32.gmra.mrb[0].mxu0 %v7501
        %v7795 = vpop.f32.mrb[0].mxu0
        %v7796 = vadd.f32 0.0, %v7795
        %v7797 = vpop.f32.mrb[0].mxu0
        %7798 = vmatprep.mubr.f32.mxu0 0.0
        %7799 = vmatmul.mubr.f32.gmra.mrb[0].mxu0 %v7504
        %v7800 = vpop.f32.mrb[0].mxu0
        %v7801 = vadd.f32 0.0, %v7800
        %v7802 = vpop.f32.mrb[0].mxu0
        %7803 = vmatprep.mubr.f32.mxu0 0.0
        %7804 = vmatmul.mubr.f32.gmra.mrb[0].mxu0 %v7507
        %v7805 = vpop.f32.mrb[0].mxu0
        %v7806 = vadd.f32 0.0, %v7805
        %v7807 = vpop.f32.mrb[0].mxu0
        %7808 = vmatprep.mubr.f32.mxu0 0.0
        %7809 = vmatmul.mubr.f32.gmra.mrb[0].mxu0 %v7510
        %v7810 = vpop.f32.mrb[0].mxu0
        %v7811 = vadd.f32 0.0, %v7810
        %v7812 = vpop.f32.mrb[0].mxu0
        %7813 = vmatprep.mubr.f32.mxu0 0.0
        %7814 = vmatmul.mubr.f32.gmra.mrb[0].mxu0 %v7513
        %v7815 = vpop.f32.mrb[0].mxu0
        %v7816 = vadd.f32 0.0, %v7815
        %v7817 = vpop.f32.mrb[0].mxu0
        %7818 = vmatprep.mubr.f32.mxu0 0.0
        %7819 = vmatmul.mubr.f32.gmra.mrb[0].mxu0 %v7516
        %v7820 = vpop.f32.mrb[0].mxu0
        %v7821 = vadd.f32 0.0, %v7820
        %v7822 = vpop.f32.mrb[0].mxu0
        %7823 = vdwg.mxu0
        %v7825 = vsel %vm2827, %v6041, 0
        %v7828 = vsel %vm2827, %v6046, 0
        %v7831 = vsel %vm2827, %v6051, 0
        %v7834 = vsel %vm2827, %v6056, 0
        %v7837 = vsel %vm2827, %v6061, 0
        %v7840 = vsel %vm2827, %v6066, 0
        %v7843 = vsel %vm2827, %v6071, 0
        %v7846 = vsel %vm2827, %v6076, 0
        %v7849 = vsel %vm2827, %v6081, 0
        %v7852 = vsel %vm2827, %v6086, 0
        %v7855 = vsel %vm2827, %v6091, 0
        %v7858 = vsel %vm2827, %v6096, 0
        %v7861 = vsel %vm2827, %v6101, 0
        %v7864 = vsel %vm2827, %v6106, 0
        %v7867 = vsel %vm2827, %v6111, 0
        %v7870 = vsel %vm2827, %v6116, 0
        %7872 = vmatprep.subr.mxu0 %v6361
        %7873 = vmatpush1.msra.mxu0 %v6360
        %7874 = vmatprep.subr.mxu0 %v6364
        %7875 = vmatpush1.msra.mxu0 %v6363
        %7876 = vmatprep.subr.mxu0 %v6367
        %7877 = vmatpush1.msra.mxu0 %v6366
        %7878 = vmatprep.subr.mxu0 %v6370
        %7879 = vmatpush1.msra.mxu0 %v6369
        %7880 = vmatprep.subr.mxu0 %v6373
        %7881 = vmatpush1.msra.mxu0 %v6372
        %7882 = vmatprep.subr.mxu0 %v6376
        %7883 = vmatpush1.msra.mxu0 %v6375
        %7884 = vmatprep.subr.mxu0 %v6379
        %7885 = vmatpush1.msra.mxu0 %v6378
        %7886 = vmatprep.subr.mxu0 %v6382
        %7887 = vmatpush1.msra.mxu0 %v6381
        %7888 = vmatprep.subr.mxu0 0.0
        %7889 = vmatpush1.msra.mxu0 0.0
        %7890 = vmatprep.subr.mxu0 0.0
        %7891 = vmatpush1.msra.mxu0 0.0
        %7892 = vmatprep.subr.mxu0 0.0
        %7893 = vmatpush1.msra.mxu0 0.0
        %7894 = vmatprep.subr.mxu0 0.0
        %7895 = vmatpush1.msra.mxu0 0.0
        %7896 = vmatprep.subr.mxu0 0.0
        %7897 = vmatpush1.msra.mxu0 0.0
        %7898 = vmatprep.subr.mxu0 0.0
        %7899 = vmatpush1.msra.mxu0 0.0
        %7900 = vmatprep.subr.mxu0 0.0
        %7901 = vmatpush1.msra.mxu0 0.0
        %7902 = vmatprep.subr.mxu0 0.0
        %7903 = vmatpush1.msra.mxu0 0.0
        %7904 = vmatprep.subr.mxu0 0.0
        %7905 = vmatpush1.msra.mxu0 0.0
        %7906 = vmatprep.subr.mxu0 0.0
        %7907 = vmatpush1.msra.mxu0 0.0
        %7908 = vmatprep.subr.mxu0 0.0
        %7909 = vmatpush1.msra.mxu0 0.0
        %7910 = vmatprep.subr.mxu0 0.0
        %7911 = vmatpush1.msra.mxu0 0.0
        %7912 = vmatprep.subr.mxu0 0.0
        %7913 = vmatpush1.msra.mxu0 0.0
        %7914 = vmatprep.subr.mxu0 0.0
        %7915 = vmatpush1.msra.mxu0 0.0
        %7916 = vmatprep.subr.mxu0 0.0
        %7917 = vmatpush1.msra.mxu0 0.0
        %7918 = vmatprep.subr.mxu0 0.0
        %7919 = vmatpush1.msra.mxu0 0.0
        %7920 = vmatprep.subr.mxu0 0.0
        %7921 = vmatpush1.msra.mxu0 0.0
        %7922 = vmatprep.subr.mxu0 0.0
        %7923 = vmatpush1.msra.mxu0 0.0
        %7924 = vmatprep.subr.mxu0 0.0
        %7925 = vmatpush1.msra.mxu0 0.0
        %7926 = vmatprep.subr.mxu0 0.0
        %7927 = vmatpush1.msra.mxu0 0.0
        %7928 = vmatprep.subr.mxu0 0.0
        %7929 = vmatpush1.msra.mxu0 0.0
        %7930 = vmatprep.subr.mxu0 0.0
        %7931 = vmatpush1.msra.mxu0 0.0
        %7932 = vmatprep.subr.mxu0 0.0
        %7933 = vmatpush1.msra.mxu0 0.0
        %7934 = vmatprep.subr.mxu0 0.0
        %7935 = vmatpush1.msra.mxu0 0.0
        %7936 = vmatprep.mubr.f32.mxu0 0.0
        %7937 = vmatmul.mubr.f32.gmra.mrb[0].mxu0 %v7825
        %v7938 = vpop.f32.mrb[0].mxu0
        %v7939 = vadd.f32 0.0, %v7938
        %v7940 = vpop.f32.mrb[0].mxu0
        %v7941 = vadd.f32 0.0, %v7940
        %7942 = vmatprep.mubr.f32.mxu0 0.0
        %7943 = vmatmul.mubr.f32.gmra.mrb[0].mxu0 %v7828
        %v7944 = vpop.f32.mrb[0].mxu0
        %v7945 = vadd.f32 0.0, %v7944
        %v7946 = vpop.f32.mrb[0].mxu0
        %v7947 = vadd.f32 0.0, %v7946
        %7948 = vmatprep.mubr.f32.mxu0 0.0
        %7949 = vmatmul.mubr.f32.gmra.mrb[0].mxu0 %v7831
        %v7950 = vpop.f32.mrb[0].mxu0
        %v7951 = vadd.f32 0.0, %v7950
        %v7952 = vpop.f32.mrb[0].mxu0
        %v7953 = vadd.f32 0.0, %v7952
        %7954 = vmatprep.mubr.f32.mxu0 0.0
        %7955 = vmatmul.mubr.f32.gmra.mrb[0].mxu0 %v7834
        %v7956 = vpop.f32.mrb[0].mxu0
        %v7957 = vadd.f32 0.0, %v7956
        %v7958 = vpop.f32.mrb[0].mxu0
        %v7959 = vadd.f32 0.0, %v7958
        %7960 = vmatprep.mubr.f32.mxu0 0.0
        %7961 = vmatmul.mubr.f32.gmra.mrb[0].mxu0 %v7837
        %v7962 = vpop.f32.mrb[0].mxu0
        %v7963 = vadd.f32 0.0, %v7962
        %v7964 = vpop.f32.mrb[0].mxu0
        %v7965 = vadd.f32 0.0, %v7964
        %7966 = vmatprep.mubr.f32.mxu0 0.0
        %7967 = vmatmul.mubr.f32.gmra.mrb[0].mxu0 %v7840
        %v7968 = vpop.f32.mrb[0].mxu0
        %v7969 = vadd.f32 0.0, %v7968
        %v7970 = vpop.f32.mrb[0].mxu0
        %v7971 = vadd.f32 0.0, %v7970
        %7972 = vmatprep.mubr.f32.mxu0 0.0
        %7973 = vmatmul.mubr.f32.gmra.mrb[0].mxu0 %v7843
        %v7974 = vpop.f32.mrb[0].mxu0
        %v7975 = vadd.f32 0.0, %v7974
        %v7976 = vpop.f32.mrb[0].mxu0
        %v7977 = vadd.f32 0.0, %v7976
        %7978 = vmatprep.mubr.f32.mxu0 0.0
        %7979 = vmatmul.mubr.f32.gmra.mrb[0].mxu0 %v7846
        %v7980 = vpop.f32.mrb[0].mxu0
        %v7981 = vadd.f32 0.0, %v7980
        %v7982 = vpop.f32.mrb[0].mxu0
        %v7983 = vadd.f32 0.0, %v7982
        %7984 = vmatprep.mubr.f32.mxu0 0.0
        %7985 = vmatmul.mubr.f32.gmra.mrb[0].mxu0 %v7849
        %v7986 = vpop.f32.mrb[0].mxu0
        %v7987 = vadd.f32 0.0, %v7986
        %v7988 = vpop.f32.mrb[0].mxu0
        %v7989 = vadd.f32 0.0, %v7988
        %7990 = vmatprep.mubr.f32.mxu0 0.0
        %7991 = vmatmul.mubr.f32.gmra.mrb[0].mxu0 %v7852
        %v7992 = vpop.f32.mrb[0].mxu0
        %v7993 = vadd.f32 0.0, %v7992
        %v7994 = vpop.f32.mrb[0].mxu0
        %v7995 = vadd.f32 0.0, %v7994
        %7996 = vmatprep.mubr.f32.mxu0 0.0
        %7997 = vmatmul.mubr.f32.gmra.mrb[0].mxu0 %v7855
        %v7998 = vpop.f32.mrb[0].mxu0
        %v7999 = vadd.f32 0.0, %v7998
        %v8000 = vpop.f32.mrb[0].mxu0
        %v8001 = vadd.f32 0.0, %v8000
        %8002 = vmatprep.mubr.f32.mxu0 0.0
        %8003 = vmatmul.mubr.f32.gmra.mrb[0].mxu0 %v7858
        %v8004 = vpop.f32.mrb[0].mxu0
        %v8005 = vadd.f32 0.0, %v8004
        %v8006 = vpop.f32.mrb[0].mxu0
        %v8007 = vadd.f32 0.0, %v8006
        %8008 = vmatprep.mubr.f32.mxu0 0.0
        %8009 = vmatmul.mubr.f32.gmra.mrb[0].mxu0 %v7861
        %v8010 = vpop.f32.mrb[0].mxu0
        %v8011 = vadd.f32 0.0, %v8010
        %v8012 = vpop.f32.mrb[0].mxu0
        %v8013 = vadd.f32 0.0, %v8012
        %8014 = vmatprep.mubr.f32.mxu0 0.0
        %8015 = vmatmul.mubr.f32.gmra.mrb[0].mxu0 %v7864
        %v8016 = vpop.f32.mrb[0].mxu0
        %v8017 = vadd.f32 0.0, %v8016
        %v8018 = vpop.f32.mrb[0].mxu0
        %v8019 = vadd.f32 0.0, %v8018
        %8020 = vmatprep.mubr.f32.mxu0 0.0
        %8021 = vmatmul.mubr.f32.gmra.mrb[0].mxu0 %v7867
        %v8022 = vpop.f32.mrb[0].mxu0
        %v8023 = vadd.f32 0.0, %v8022
        %v8024 = vpop.f32.mrb[0].mxu0
        %v8025 = vadd.f32 0.0, %v8024
        %8026 = vmatprep.mubr.f32.mxu0 0.0
        %8027 = vmatmul.mubr.f32.gmra.mrb[0].mxu0 %v7870
        %v8028 = vpop.f32.mrb[0].mxu0
        %v8029 = vadd.f32 0.0, %v8028
        %v8030 = vpop.f32.mrb[0].mxu0
        %v8031 = vadd.f32 0.0, %v8030
        %8032 = vdwg.mxu0
        %8033 = vmatprep.subr.mxu0 0.0
        %8034 = vmatpush1.msra.mxu0 %v6362
        %8035 = vmatprep.subr.mxu0 0.0
        %8036 = vmatpush1.msra.mxu0 %v6365
        %8037 = vmatprep.subr.mxu0 0.0
        %8038 = vmatpush1.msra.mxu0 %v6368
        %8039 = vmatprep.subr.mxu0 0.0
        %8040 = vmatpush1.msra.mxu0 %v6371
        %8041 = vmatprep.subr.mxu0 0.0
        %8042 = vmatpush1.msra.mxu0 %v6374
        %8043 = vmatprep.subr.mxu0 0.0
        %8044 = vmatpush1.msra.mxu0 %v6377
        %8045 = vmatprep.subr.mxu0 0.0
        %8046 = vmatpush1.msra.mxu0 %v6380
        %8047 = vmatprep.subr.mxu0 0.0
        %8048 = vmatpush1.msra.mxu0 %v6383
        %8049 = vmatprep.subr.mxu0 0.0
        %8050 = vmatpush1.msra.mxu0 0.0
        %8051 = vmatprep.subr.mxu0 0.0
        %8052 = vmatpush1.msra.mxu0 0.0
        %8053 = vmatprep.subr.mxu0 0.0
        %8054 = vmatpush1.msra.mxu0 0.0
        %8055 = vmatprep.subr.mxu0 0.0
        %8056 = vmatpush1.msra.mxu0 0.0
        %8057 = vmatprep.subr.mxu0 0.0
        %8058 = vmatpush1.msra.mxu0 0.0
        %8059 = vmatprep.subr.mxu0 0.0
        %8060 = vmatpush1.msra.mxu0 0.0
        %8061 = vmatprep.subr.mxu0 0.0
        %8062 = vmatpush1.msra.mxu0 0.0
        %8063 = vmatprep.subr.mxu0 0.0
        %8064 = vmatpush1.msra.mxu0 0.0
        %8065 = vmatprep.subr.mxu0 0.0
        %8066 = vmatpush1.msra.mxu0 0.0
        %8067 = vmatprep.subr.mxu0 0.0
        %8068 = vmatpush1.msra.mxu0 0.0
        %8069 = vmatprep.subr.mxu0 0.0
        %8070 = vmatpush1.msra.mxu0 0.0
        %8071 = vmatprep.subr.mxu0 0.0
        %8072 = vmatpush1.msra.mxu0 0.0
        %8073 = vmatprep.subr.mxu0 0.0
        %8074 = vmatpush1.msra.mxu0 0.0
        %8075 = vmatprep.subr.mxu0 0.0
        %8076 = vmatpush1.msra.mxu0 0.0
        %8077 = vmatprep.subr.mxu0 0.0
        %8078 = vmatpush1.msra.mxu0 0.0
        %8079 = vmatprep.subr.mxu0 0.0
        %8080 = vmatpush1.msra.mxu0 0.0
        %8081 = vmatprep.subr.mxu0 0.0
        %8082 = vmatpush1.msra.mxu0 0.0
        %8083 = vmatprep.subr.mxu0 0.0
        %8084 = vmatpush1.msra.mxu0 0.0
        %8085 = vmatprep.subr.mxu0 0.0
        %8086 = vmatpush1.msra.mxu0 0.0
        %8087 = vmatprep.subr.mxu0 0.0
        %8088 = vmatpush1.msra.mxu0 0.0
        %8089 = vmatprep.subr.mxu0 0.0
        %8090 = vmatpush1.msra.mxu0 0.0
        %8091 = vmatprep.subr.mxu0 0.0
        %8092 = vmatpush1.msra.mxu0 0.0
        %8093 = vmatprep.subr.mxu0 0.0
        %8094 = vmatpush1.msra.mxu0 0.0
        %8095 = vmatprep.subr.mxu0 0.0
        %8096 = vmatpush1.msra.mxu0 0.0
        %8097 = vmatprep.mubr.f32.mxu0 0.0
        %8098 = vmatmul.mubr.f32.gmra.mrb[0].mxu0 %v7825
        %v8099 = vpop.f32.mrb[0].mxu0
        %v8100 = vadd.f32 0.0, %v8099
        %v8101 = vpop.f32.mrb[0].mxu0
        %8102 = vmatprep.mubr.f32.mxu0 0.0
        %8103 = vmatmul.mubr.f32.gmra.mrb[0].mxu0 %v7828
        %v8104 = vpop.f32.mrb[0].mxu0
        %v8105 = vadd.f32 0.0, %v8104
        %v8106 = vpop.f32.mrb[0].mxu0
        %8107 = vmatprep.mubr.f32.mxu0 0.0
        %8108 = vmatmul.mubr.f32.gmra.mrb[0].mxu0 %v7831
        %v8109 = vpop.f32.mrb[0].mxu0
        %v8110 = vadd.f32 0.0, %v8109
        %v8111 = vpop.f32.mrb[0].mxu0
        %8112 = vmatprep.mubr.f32.mxu0 0.0
        %8113 = vmatmul.mubr.f32.gmra.mrb[0].mxu0 %v7834
        %v8114 = vpop.f32.mrb[0].mxu0
        %v8115 = vadd.f32 0.0, %v8114
        %v8116 = vpop.f32.mrb[0].mxu0
        %8117 = vmatprep.mubr.f32.mxu0 0.0
        %8118 = vmatmul.mubr.f32.gmra.mrb[0].mxu0 %v7837
        %v8119 = vpop.f32.mrb[0].mxu0
        %v8120 = vadd.f32 0.0, %v8119
        %v8121 = vpop.f32.mrb[0].mxu0
        %8122 = vmatprep.mubr.f32.mxu0 0.0
        %8123 = vmatmul.mubr.f32.gmra.mrb[0].mxu0 %v7840
        %v8124 = vpop.f32.mrb[0].mxu0
        %v8125 = vadd.f32 0.0, %v8124
        %v8126 = vpop.f32.mrb[0].mxu0
        %8127 = vmatprep.mubr.f32.mxu0 0.0
        %8128 = vmatmul.mubr.f32.gmra.mrb[0].mxu0 %v7843
        %v8129 = vpop.f32.mrb[0].mxu0
        %v8130 = vadd.f32 0.0, %v8129
        %v8131 = vpop.f32.mrb[0].mxu0
        %8132 = vmatprep.mubr.f32.mxu0 0.0
        %8133 = vmatmul.mubr.f32.gmra.mrb[0].mxu0 %v7846
        %v8134 = vpop.f32.mrb[0].mxu0
        %v8135 = vadd.f32 0.0, %v8134
        %v8136 = vpop.f32.mrb[0].mxu0
        %8137 = vmatprep.mubr.f32.mxu0 0.0
        %8138 = vmatmul.mubr.f32.gmra.mrb[0].mxu0 %v7849
        %v8139 = vpop.f32.mrb[0].mxu0
        %v8140 = vadd.f32 0.0, %v8139
        %v8141 = vpop.f32.mrb[0].mxu0
        %8142 = vmatprep.mubr.f32.mxu0 0.0
        %8143 = vmatmul.mubr.f32.gmra.mrb[0].mxu0 %v7852
        %v8144 = vpop.f32.mrb[0].mxu0
        %v8145 = vadd.f32 0.0, %v8144
        %v8146 = vpop.f32.mrb[0].mxu0
        %8147 = vmatprep.mubr.f32.mxu0 0.0
        %8148 = vmatmul.mubr.f32.gmra.mrb[0].mxu0 %v7855
        %v8149 = vpop.f32.mrb[0].mxu0
        %v8150 = vadd.f32 0.0, %v8149
        %v8151 = vpop.f32.mrb[0].mxu0
        %8152 = vmatprep.mubr.f32.mxu0 0.0
        %8153 = vmatmul.mubr.f32.gmra.mrb[0].mxu0 %v7858
        %v8154 = vpop.f32.mrb[0].mxu0
        %v8155 = vadd.f32 0.0, %v8154
        %v8156 = vpop.f32.mrb[0].mxu0
        %8157 = vmatprep.mubr.f32.mxu0 0.0
        %8158 = vmatmul.mubr.f32.gmra.mrb[0].mxu0 %v7861
        %v8159 = vpop.f32.mrb[0].mxu0
        %v8160 = vadd.f32 0.0, %v8159
        %v8161 = vpop.f32.mrb[0].mxu0
        %8162 = vmatprep.mubr.f32.mxu0 0.0
        %8163 = vmatmul.mubr.f32.gmra.mrb[0].mxu0 %v7864
        %v8164 = vpop.f32.mrb[0].mxu0
        %v8165 = vadd.f32 0.0, %v8164
        %v8166 = vpop.f32.mrb[0].mxu0
        %8167 = vmatprep.mubr.f32.mxu0 0.0
        %8168 = vmatmul.mubr.f32.gmra.mrb[0].mxu0 %v7867
        %v8169 = vpop.f32.mrb[0].mxu0
        %v8170 = vadd.f32 0.0, %v8169
        %v8171 = vpop.f32.mrb[0].mxu0
        %8172 = vmatprep.mubr.f32.mxu0 0.0
        %8173 = vmatmul.mubr.f32.gmra.mrb[0].mxu0 %v7870
        %v8174 = vpop.f32.mrb[0].mxu0
        %v8175 = vadd.f32 0.0, %v8174
        %v8176 = vpop.f32.mrb[0].mxu0
        %8177 = vdwg.mxu0
        %v8179 = vsel %vm2827, %v6186, 0
        %v8182 = vsel %vm2827, %v6191, 0
        %v8185 = vsel %vm2827, %v6196, 0
        %v8188 = vsel %vm2827, %v6201, 0
        %v8191 = vsel %vm2827, %v6206, 0
        %v8194 = vsel %vm2827, %v6211, 0
        %v8197 = vsel %vm2827, %v6216, 0
        %v8200 = vsel %vm2827, %v6221, 0
        %v8203 = vsel %vm2827, %v6226, 0
        %v8206 = vsel %vm2827, %v6231, 0
        %v8209 = vsel %vm2827, %v6236, 0
        %v8212 = vsel %vm2827, %v6241, 0
        %v8215 = vsel %vm2827, %v6246, 0
        %v8218 = vsel %vm2827, %v6251, 0
        %v8221 = vsel %vm2827, %v6256, 0
        %v8224 = vsel %vm2827, %v6261, 0
        %8226 = vmatprep.subr.mxu0 %v6385
        %8227 = vmatpush1.msra.mxu0 %v6384
        %8228 = vmatprep.subr.mxu0 %v6388
        %8229 = vmatpush1.msra.mxu0 %v6387
        %8230 = vmatprep.subr.mxu0 %v6391
        %8231 = vmatpush1.msra.mxu0 %v6390
        %8232 = vmatprep.subr.mxu0 %v6394
        %8233 = vmatpush1.msra.mxu0 %v6393
        %8234 = vmatprep.subr.mxu0 %v6397
        %8235 = vmatpush1.msra.mxu0 %v6396
        %8236 = vmatprep.subr.mxu0 %v6400
        %8237 = vmatpush1.msra.mxu0 %v6399
        %8238 = vmatprep.subr.mxu0 %v6403
        %8239 = vmatpush1.msra.mxu0 %v6402
        %8240 = vmatprep.subr.mxu0 %v6406
        %8241 = vmatpush1.msra.mxu0 %v6405
        %8242 = vmatprep.subr.mxu0 0.0
        %8243 = vmatpush1.msra.mxu0 0.0
        %8244 = vmatprep.subr.mxu0 0.0
        %8245 = vmatpush1.msra.mxu0 0.0
        %8246 = vmatprep.subr.mxu0 0.0
        %8247 = vmatpush1.msra.mxu0 0.0
        %8248 = vmatprep.subr.mxu0 0.0
        %8249 = vmatpush1.msra.mxu0 0.0
        %8250 = vmatprep.subr.mxu0 0.0
        %8251 = vmatpush1.msra.mxu0 0.0
        %8252 = vmatprep.subr.mxu0 0.0
        %8253 = vmatpush1.msra.mxu0 0.0
        %8254 = vmatprep.subr.mxu0 0.0
        %8255 = vmatpush1.msra.mxu0 0.0
        %8256 = vmatprep.subr.mxu0 0.0
        %8257 = vmatpush1.msra.mxu0 0.0
        %8258 = vmatprep.subr.mxu0 0.0
        %8259 = vmatpush1.msra.mxu0 0.0
        %8260 = vmatprep.subr.mxu0 0.0
        %8261 = vmatpush1.msra.mxu0 0.0
        %8262 = vmatprep.subr.mxu0 0.0
        %8263 = vmatpush1.msra.mxu0 0.0
        %8264 = vmatprep.subr.mxu0 0.0
        %8265 = vmatpush1.msra.mxu0 0.0
        %8266 = vmatprep.subr.mxu0 0.0
        %8267 = vmatpush1.msra.mxu0 0.0
        %8268 = vmatprep.subr.mxu0 0.0
        %8269 = vmatpush1.msra.mxu0 0.0
        %8270 = vmatprep.subr.mxu0 0.0
        %8271 = vmatpush1.msra.mxu0 0.0
        %8272 = vmatprep.subr.mxu0 0.0
        %8273 = vmatpush1.msra.mxu0 0.0
        %8274 = vmatprep.subr.mxu0 0.0
        %8275 = vmatpush1.msra.mxu0 0.0
        %8276 = vmatprep.subr.mxu0 0.0
        %8277 = vmatpush1.msra.mxu0 0.0
        %8278 = vmatprep.subr.mxu0 0.0
        %8279 = vmatpush1.msra.mxu0 0.0
        %8280 = vmatprep.subr.mxu0 0.0
        %8281 = vmatpush1.msra.mxu0 0.0
        %8282 = vmatprep.subr.mxu0 0.0
        %8283 = vmatpush1.msra.mxu0 0.0
        %8284 = vmatprep.subr.mxu0 0.0
        %8285 = vmatpush1.msra.mxu0 0.0
        %8286 = vmatprep.subr.mxu0 0.0
        %8287 = vmatpush1.msra.mxu0 0.0
        %8288 = vmatprep.subr.mxu0 0.0
        %8289 = vmatpush1.msra.mxu0 0.0
        %8290 = vmatprep.mubr.f32.mxu0 0.0
        %8291 = vmatmul.mubr.f32.gmra.mrb[0].mxu0 %v8179
        %v8292 = vpop.f32.mrb[0].mxu0
        %v8293 = vadd.f32 0.0, %v8292
        %v8294 = vpop.f32.mrb[0].mxu0
        %v8295 = vadd.f32 0.0, %v8294
        %8296 = vmatprep.mubr.f32.mxu0 0.0
        %8297 = vmatmul.mubr.f32.gmra.mrb[0].mxu0 %v8182
        %v8298 = vpop.f32.mrb[0].mxu0
        %v8299 = vadd.f32 0.0, %v8298
        %v8300 = vpop.f32.mrb[0].mxu0
        %v8301 = vadd.f32 0.0, %v8300
        %8302 = vmatprep.mubr.f32.mxu0 0.0
        %8303 = vmatmul.mubr.f32.gmra.mrb[0].mxu0 %v8185
        %v8304 = vpop.f32.mrb[0].mxu0
        %v8305 = vadd.f32 0.0, %v8304
        %v8306 = vpop.f32.mrb[0].mxu0
        %v8307 = vadd.f32 0.0, %v8306
        %8308 = vmatprep.mubr.f32.mxu0 0.0
        %8309 = vmatmul.mubr.f32.gmra.mrb[0].mxu0 %v8188
        %v8310 = vpop.f32.mrb[0].mxu0
        %v8311 = vadd.f32 0.0, %v8310
        %v8312 = vpop.f32.mrb[0].mxu0
        %v8313 = vadd.f32 0.0, %v8312
        %8314 = vmatprep.mubr.f32.mxu0 0.0
        %8315 = vmatmul.mubr.f32.gmra.mrb[0].mxu0 %v8191
        %v8316 = vpop.f32.mrb[0].mxu0
        %v8317 = vadd.f32 0.0, %v8316
        %v8318 = vpop.f32.mrb[0].mxu0
        %v8319 = vadd.f32 0.0, %v8318
        %8320 = vmatprep.mubr.f32.mxu0 0.0
        %8321 = vmatmul.mubr.f32.gmra.mrb[0].mxu0 %v8194
        %v8322 = vpop.f32.mrb[0].mxu0
        %v8323 = vadd.f32 0.0, %v8322
        %v8324 = vpop.f32.mrb[0].mxu0
        %v8325 = vadd.f32 0.0, %v8324
        %8326 = vmatprep.mubr.f32.mxu0 0.0
        %8327 = vmatmul.mubr.f32.gmra.mrb[0].mxu0 %v8197
        %v8328 = vpop.f32.mrb[0].mxu0
        %v8329 = vadd.f32 0.0, %v8328
        %v8330 = vpop.f32.mrb[0].mxu0
        %v8331 = vadd.f32 0.0, %v8330
        %8332 = vmatprep.mubr.f32.mxu0 0.0
        %8333 = vmatmul.mubr.f32.gmra.mrb[0].mxu0 %v8200
        %v8334 = vpop.f32.mrb[0].mxu0
        %v8335 = vadd.f32 0.0, %v8334
        %v8336 = vpop.f32.mrb[0].mxu0
        %v8337 = vadd.f32 0.0, %v8336
        %8338 = vmatprep.mubr.f32.mxu0 0.0
        %8339 = vmatmul.mubr.f32.gmra.mrb[0].mxu0 %v8203
        %v8340 = vpop.f32.mrb[0].mxu0
        %v8341 = vadd.f32 0.0, %v8340
        %v8342 = vpop.f32.mrb[0].mxu0
        %v8343 = vadd.f32 0.0, %v8342
        %8344 = vmatprep.mubr.f32.mxu0 0.0
        %8345 = vmatmul.mubr.f32.gmra.mrb[0].mxu0 %v8206
        %v8346 = vpop.f32.mrb[0].mxu0
        %v8347 = vadd.f32 0.0, %v8346
        %v8348 = vpop.f32.mrb[0].mxu0
        %v8349 = vadd.f32 0.0, %v8348
        %8350 = vmatprep.mubr.f32.mxu0 0.0
        %8351 = vmatmul.mubr.f32.gmra.mrb[0].mxu0 %v8209
        %v8352 = vpop.f32.mrb[0].mxu0
        %v8353 = vadd.f32 0.0, %v8352
        %v8354 = vpop.f32.mrb[0].mxu0
        %v8355 = vadd.f32 0.0, %v8354
        %8356 = vmatprep.mubr.f32.mxu0 0.0
        %8357 = vmatmul.mubr.f32.gmra.mrb[0].mxu0 %v8212
        %v8358 = vpop.f32.mrb[0].mxu0
        %v8359 = vadd.f32 0.0, %v8358
        %v8360 = vpop.f32.mrb[0].mxu0
        %v8361 = vadd.f32 0.0, %v8360
        %8362 = vmatprep.mubr.f32.mxu0 0.0
        %8363 = vmatmul.mubr.f32.gmra.mrb[0].mxu0 %v8215
        %v8364 = vpop.f32.mrb[0].mxu0
        %v8365 = vadd.f32 0.0, %v8364
        %v8366 = vpop.f32.mrb[0].mxu0
        %v8367 = vadd.f32 0.0, %v8366
        %8368 = vmatprep.mubr.f32.mxu0 0.0
        %8369 = vmatmul.mubr.f32.gmra.mrb[0].mxu0 %v8218
        %v8370 = vpop.f32.mrb[0].mxu0
        %v8371 = vadd.f32 0.0, %v8370
        %v8372 = vpop.f32.mrb[0].mxu0
        %v8373 = vadd.f32 0.0, %v8372
        %8374 = vmatprep.mubr.f32.mxu0 0.0
        %8375 = vmatmul.mubr.f32.gmra.mrb[0].mxu0 %v8221
        %v8376 = vpop.f32.mrb[0].mxu0
        %v8377 = vadd.f32 0.0, %v8376
        %v8378 = vpop.f32.mrb[0].mxu0
        %v8379 = vadd.f32 0.0, %v8378
        %8380 = vmatprep.mubr.f32.mxu0 0.0
        %8381 = vmatmul.mubr.f32.gmra.mrb[0].mxu0 %v8224
        %v8382 = vpop.f32.mrb[0].mxu0
        %v8383 = vadd.f32 0.0, %v8382
        %v8384 = vpop.f32.mrb[0].mxu0
        %v8385 = vadd.f32 0.0, %v8384
        %8386 = vdwg.mxu0
        %8387 = vmatprep.subr.mxu0 0.0
        %8388 = vmatpush1.msra.mxu0 %v6386
        %8389 = vmatprep.subr.mxu0 0.0
        %8390 = vmatpush1.msra.mxu0 %v6389
        %8391 = vmatprep.subr.mxu0 0.0
        %8392 = vmatpush1.msra.mxu0 %v6392
        %8393 = vmatprep.subr.mxu0 0.0
        %8394 = vmatpush1.msra.mxu0 %v6395
        %8395 = vmatprep.subr.mxu0 0.0
        %8396 = vmatpush1.msra.mxu0 %v6398
        %8397 = vmatprep.subr.mxu0 0.0
        %8398 = vmatpush1.msra.mxu0 %v6401
        %8399 = vmatprep.subr.mxu0 0.0
        %8400 = vmatpush1.msra.mxu0 %v6404
        %8401 = vmatprep.subr.mxu0 0.0
        %8402 = vmatpush1.msra.mxu0 %v6407
        %8403 = vmatprep.subr.mxu0 0.0
        %8404 = vmatpush1.msra.mxu0 0.0
        %8405 = vmatprep.subr.mxu0 0.0
        %8406 = vmatpush1.msra.mxu0 0.0
        %8407 = vmatprep.subr.mxu0 0.0
        %8408 = vmatpush1.msra.mxu0 0.0
        %8409 = vmatprep.subr.mxu0 0.0
        %8410 = vmatpush1.msra.mxu0 0.0
        %8411 = vmatprep.subr.mxu0 0.0
        %8412 = vmatpush1.msra.mxu0 0.0
        %8413 = vmatprep.subr.mxu0 0.0
        %8414 = vmatpush1.msra.mxu0 0.0
        %8415 = vmatprep.subr.mxu0 0.0
        %8416 = vmatpush1.msra.mxu0 0.0
        %8417 = vmatprep.subr.mxu0 0.0
        %8418 = vmatpush1.msra.mxu0 0.0
        %8419 = vmatprep.subr.mxu0 0.0
        %8420 = vmatpush1.msra.mxu0 0.0
        %8421 = vmatprep.subr.mxu0 0.0
        %8422 = vmatpush1.msra.mxu0 0.0
        %8423 = vmatprep.subr.mxu0 0.0
        %8424 = vmatpush1.msra.mxu0 0.0
        %8425 = vmatprep.subr.mxu0 0.0
        %8426 = vmatpush1.msra.mxu0 0.0
        %8427 = vmatprep.subr.mxu0 0.0
        %8428 = vmatpush1.msra.mxu0 0.0
        %8429 = vmatprep.subr.mxu0 0.0
        %8430 = vmatpush1.msra.mxu0 0.0
        %8431 = vmatprep.subr.mxu0 0.0
        %8432 = vmatpush1.msra.mxu0 0.0
        %8433 = vmatprep.subr.mxu0 0.0
        %8434 = vmatpush1.msra.mxu0 0.0
        %8435 = vmatprep.subr.mxu0 0.0
        %8436 = vmatpush1.msra.mxu0 0.0
        %8437 = vmatprep.subr.mxu0 0.0
        %8438 = vmatpush1.msra.mxu0 0.0
        %8439 = vmatprep.subr.mxu0 0.0
        %8440 = vmatpush1.msra.mxu0 0.0
        %8441 = vmatprep.subr.mxu0 0.0
        %8442 = vmatpush1.msra.mxu0 0.0
        %8443 = vmatprep.subr.mxu0 0.0
        %8444 = vmatpush1.msra.mxu0 0.0
        %8445 = vmatprep.subr.mxu0 0.0
        %8446 = vmatpush1.msra.mxu0 0.0
        %8447 = vmatprep.subr.mxu0 0.0
        %8448 = vmatpush1.msra.mxu0 0.0
        %8449 = vmatprep.subr.mxu0 0.0
        %8450 = vmatpush1.msra.mxu0 0.0
        %8451 = vmatprep.mubr.f32.mxu0 0.0
        %8452 = vmatmul.mubr.f32.gmra.mrb[0].mxu0 %v8179
        %v8453 = vpop.f32.mrb[0].mxu0
        %v8454 = vadd.f32 0.0, %v8453
        %v8455 = vpop.f32.mrb[0].mxu0
        %8456 = vmatprep.mubr.f32.mxu0 0.0
        %8457 = vmatmul.mubr.f32.gmra.mrb[0].mxu0 %v8182
        %v8458 = vpop.f32.mrb[0].mxu0
        %v8459 = vadd.f32 0.0, %v8458
        %v8460 = vpop.f32.mrb[0].mxu0
        %8461 = vmatprep.mubr.f32.mxu0 0.0
        %8462 = vmatmul.mubr.f32.gmra.mrb[0].mxu0 %v8185
        %v8463 = vpop.f32.mrb[0].mxu0
        %v8464 = vadd.f32 0.0, %v8463
        %v8465 = vpop.f32.mrb[0].mxu0
        %8466 = vmatprep.mubr.f32.mxu0 0.0
        %8467 = vmatmul.mubr.f32.gmra.mrb[0].mxu0 %v8188
        %v8468 = vpop.f32.mrb[0].mxu0
        %v8469 = vadd.f32 0.0, %v8468
        %v8470 = vpop.f32.mrb[0].mxu0
        %8471 = vmatprep.mubr.f32.mxu0 0.0
        %8472 = vmatmul.mubr.f32.gmra.mrb[0].mxu0 %v8191
        %v8473 = vpop.f32.mrb[0].mxu0
        %v8474 = vadd.f32 0.0, %v8473
        %v8475 = vpop.f32.mrb[0].mxu0
        %8476 = vmatprep.mubr.f32.mxu0 0.0
        %8477 = vmatmul.mubr.f32.gmra.mrb[0].mxu0 %v8194
        %v8478 = vpop.f32.mrb[0].mxu0
        %v8479 = vadd.f32 0.0, %v8478
        %v8480 = vpop.f32.mrb[0].mxu0
        %8481 = vmatprep.mubr.f32.mxu0 0.0
        %8482 = vmatmul.mubr.f32.gmra.mrb[0].mxu0 %v8197
        %v8483 = vpop.f32.mrb[0].mxu0
        %v8484 = vadd.f32 0.0, %v8483
        %v8485 = vpop.f32.mrb[0].mxu0
        %8486 = vmatprep.mubr.f32.mxu0 0.0
        %8487 = vmatmul.mubr.f32.gmra.mrb[0].mxu0 %v8200
        %v8488 = vpop.f32.mrb[0].mxu0
        %v8489 = vadd.f32 0.0, %v8488
        %v8490 = vpop.f32.mrb[0].mxu0
        %8491 = vmatprep.mubr.f32.mxu0 0.0
        %8492 = vmatmul.mubr.f32.gmra.mrb[0].mxu0 %v8203
        %v8493 = vpop.f32.mrb[0].mxu0
        %v8494 = vadd.f32 0.0, %v8493
        %v8495 = vpop.f32.mrb[0].mxu0
        %8496 = vmatprep.mubr.f32.mxu0 0.0
        %8497 = vmatmul.mubr.f32.gmra.mrb[0].mxu0 %v8206
        %v8498 = vpop.f32.mrb[0].mxu0
        %v8499 = vadd.f32 0.0, %v8498
        %v8500 = vpop.f32.mrb[0].mxu0
        %8501 = vmatprep.mubr.f32.mxu0 0.0
        %8502 = vmatmul.mubr.f32.gmra.mrb[0].mxu0 %v8209
        %v8503 = vpop.f32.mrb[0].mxu0
        %v8504 = vadd.f32 0.0, %v8503
        %v8505 = vpop.f32.mrb[0].mxu0
        %8506 = vmatprep.mubr.f32.mxu0 0.0
        %8507 = vmatmul.mubr.f32.gmra.mrb[0].mxu0 %v8212
        %v8508 = vpop.f32.mrb[0].mxu0
        %v8509 = vadd.f32 0.0, %v8508
        %v8510 = vpop.f32.mrb[0].mxu0
        %8511 = vmatprep.mubr.f32.mxu0 0.0
        %8512 = vmatmul.mubr.f32.gmra.mrb[0].mxu0 %v8215
        %v8513 = vpop.f32.mrb[0].mxu0
        %v8514 = vadd.f32 0.0, %v8513
        %v8515 = vpop.f32.mrb[0].mxu0
        %8516 = vmatprep.mubr.f32.mxu0 0.0
        %8517 = vmatmul.mubr.f32.gmra.mrb[0].mxu0 %v8218
        %v8518 = vpop.f32.mrb[0].mxu0
        %v8519 = vadd.f32 0.0, %v8518
        %v8520 = vpop.f32.mrb[0].mxu0
        %8521 = vmatprep.mubr.f32.mxu0 0.0
        %8522 = vmatmul.mubr.f32.gmra.mrb[0].mxu0 %v8221
        %v8523 = vpop.f32.mrb[0].mxu0
        %v8524 = vadd.f32 0.0, %v8523
        %v8525 = vpop.f32.mrb[0].mxu0
        %8526 = vmatprep.mubr.f32.mxu0 0.0
        %8527 = vmatmul.mubr.f32.gmra.mrb[0].mxu0 %v8224
        %v8528 = vpop.f32.mrb[0].mxu0
        %v8529 = vadd.f32 0.0, %v8528
        %v8530 = vpop.f32.mrb[0].mxu0
        %8531 = vdwg.mxu0
        %v8532 = vadd.f32 %v6523, %v6877
        %v8533 = vadd.f32 %v8532, %v7231
        %v8534 = vadd.f32 %v8533, %v7585
        %v8535 = vadd.f32 %v8534, %v7939
        %v8536 = vadd.f32 %v8535, %v8293
        %v8537 = vadd.f32 %v6525, %v6879
        %v8538 = vadd.f32 %v8537, %v7233
        %v8539 = vadd.f32 %v8538, %v7587
        %v8540 = vadd.f32 %v8539, %v7941
        %v8541 = vadd.f32 %v8540, %v8295
        %v8542 = vadd.f32 %v6684, %v7038
        %v8543 = vadd.f32 %v8542, %v7392
        %v8544 = vadd.f32 %v8543, %v7746
        %v8545 = vadd.f32 %v8544, %v8100
        %v8546 = vadd.f32 %v8545, %v8454
        %v8547 = vadd.f32 %v6529, %v6883
        %v8548 = vadd.f32 %v8547, %v7237
        %v8549 = vadd.f32 %v8548, %v7591
        %v8550 = vadd.f32 %v8549, %v7945
        %v8551 = vadd.f32 %v8550, %v8299
        %v8552 = vadd.f32 %v6531, %v6885
        %v8553 = vadd.f32 %v8552, %v7239
        %v8554 = vadd.f32 %v8553, %v7593
        %v8555 = vadd.f32 %v8554, %v7947
        %v8556 = vadd.f32 %v8555, %v8301
        %v8557 = vadd.f32 %v6689, %v7043
        %v8558 = vadd.f32 %v8557, %v7397
        %v8559 = vadd.f32 %v8558, %v7751
        %v8560 = vadd.f32 %v8559, %v8105
        %v8561 = vadd.f32 %v8560, %v8459
        %v8562 = vadd.f32 %v6535, %v6889
        %v8563 = vadd.f32 %v8562, %v7243
        %v8564 = vadd.f32 %v8563, %v7597
        %v8565 = vadd.f32 %v8564, %v7951
        %v8566 = vadd.f32 %v8565, %v8305
        %v8567 = vadd.f32 %v6537, %v6891
        %v8568 = vadd.f32 %v8567, %v7245
        %v8569 = vadd.f32 %v8568, %v7599
        %v8570 = vadd.f32 %v8569, %v7953
        %v8571 = vadd.f32 %v8570, %v8307
        %v8572 = vadd.f32 %v6694, %v7048
        %v8573 = vadd.f32 %v8572, %v7402
        %v8574 = vadd.f32 %v8573, %v7756
        %v8575 = vadd.f32 %v8574, %v8110
        %v8576 = vadd.f32 %v8575, %v8464
        %v8577 = vadd.f32 %v6541, %v6895
        %v8578 = vadd.f32 %v8577, %v7249
        %v8579 = vadd.f32 %v8578, %v7603
        %v8580 = vadd.f32 %v8579, %v7957
        %v8581 = vadd.f32 %v8580, %v8311
        %v8582 = vadd.f32 %v6543, %v6897
        %v8583 = vadd.f32 %v8582, %v7251
        %v8584 = vadd.f32 %v8583, %v7605
        %v8585 = vadd.f32 %v8584, %v7959
        %v8586 = vadd.f32 %v8585, %v8313
        %v8587 = vadd.f32 %v6699, %v7053
        %v8588 = vadd.f32 %v8587, %v7407
        %v8589 = vadd.f32 %v8588, %v7761
        %v8590 = vadd.f32 %v8589, %v8115
        %v8591 = vadd.f32 %v8590, %v8469
        %v8592 = vadd.f32 %v6547, %v6901
        %v8593 = vadd.f32 %v8592, %v7255
        %v8594 = vadd.f32 %v8593, %v7609
        %v8595 = vadd.f32 %v8594, %v7963
        %v8596 = vadd.f32 %v8595, %v8317
        %v8597 = vadd.f32 %v6549, %v6903
        %v8598 = vadd.f32 %v8597, %v7257
        %v8599 = vadd.f32 %v8598, %v7611
        %v8600 = vadd.f32 %v8599, %v7965
        %v8601 = vadd.f32 %v8600, %v8319
        %v8602 = vadd.f32 %v6704, %v7058
        %v8603 = vadd.f32 %v8602, %v7412
        %v8604 = vadd.f32 %v8603, %v7766
        %v8605 = vadd.f32 %v8604, %v8120
        %v8606 = vadd.f32 %v8605, %v8474
        %v8607 = vadd.f32 %v6553, %v6907
        %v8608 = vadd.f32 %v8607, %v7261
        %v8609 = vadd.f32 %v8608, %v7615
        %v8610 = vadd.f32 %v8609, %v7969
        %v8611 = vadd.f32 %v8610, %v8323
        %v8612 = vadd.f32 %v6555, %v6909
        %v8613 = vadd.f32 %v8612, %v7263
        %v8614 = vadd.f32 %v8613, %v7617
        %v8615 = vadd.f32 %v8614, %v7971
        %v8616 = vadd.f32 %v8615, %v8325
        %v8617 = vadd.f32 %v6709, %v7063
        %v8618 = vadd.f32 %v8617, %v7417
        %v8619 = vadd.f32 %v8618, %v7771
        %v8620 = vadd.f32 %v8619, %v8125
        %v8621 = vadd.f32 %v8620, %v8479
        %v8622 = vadd.f32 %v6559, %v6913
        %v8623 = vadd.f32 %v8622, %v7267
        %v8624 = vadd.f32 %v8623, %v7621
        %v8625 = vadd.f32 %v8624, %v7975
        %v8626 = vadd.f32 %v8625, %v8329
        %v8627 = vadd.f32 %v6561, %v6915
        %v8628 = vadd.f32 %v8627, %v7269
        %v8629 = vadd.f32 %v8628, %v7623
        %v8630 = vadd.f32 %v8629, %v7977
        %v8631 = vadd.f32 %v8630, %v8331
        %v8632 = vadd.f32 %v6714, %v7068
        %v8633 = vadd.f32 %v8632, %v7422
        %v8634 = vadd.f32 %v8633, %v7776
        %v8635 = vadd.f32 %v8634, %v8130
        %v8636 = vadd.f32 %v8635, %v8484
        %v8637 = vadd.f32 %v6565, %v6919
        %v8638 = vadd.f32 %v8637, %v7273
        %v8639 = vadd.f32 %v8638, %v7627
        %v8640 = vadd.f32 %v8639, %v7981
        %v8641 = vadd.f32 %v8640, %v8335
        %v8642 = vadd.f32 %v6567, %v6921
        %v8643 = vadd.f32 %v8642, %v7275
        %v8644 = vadd.f32 %v8643, %v7629
        %v8645 = vadd.f32 %v8644, %v7983
        %v8646 = vadd.f32 %v8645, %v8337
        %v8647 = vadd.f32 %v6719, %v7073
        %v8648 = vadd.f32 %v8647, %v7427
        %v8649 = vadd.f32 %v8648, %v7781
        %v8650 = vadd.f32 %v8649, %v8135
        %v8651 = vadd.f32 %v8650, %v8489
        %v8652 = vadd.f32 %v6571, %v6925
        %v8653 = vadd.f32 %v8652, %v7279
        %v8654 = vadd.f32 %v8653, %v7633
        %v8655 = vadd.f32 %v8654, %v7987
        %v8656 = vadd.f32 %v8655, %v8341
        %v8657 = vadd.f32 %v6573, %v6927
        %v8658 = vadd.f32 %v8657, %v7281
        %v8659 = vadd.f32 %v8658, %v7635
        %v8660 = vadd.f32 %v8659, %v7989
        %v8661 = vadd.f32 %v8660, %v8343
        %v8662 = vadd.f32 %v6724, %v7078
        %v8663 = vadd.f32 %v8662, %v7432
        %v8664 = vadd.f32 %v8663, %v7786
        %v8665 = vadd.f32 %v8664, %v8140
        %v8666 = vadd.f32 %v8665, %v8494
        %v8667 = vadd.f32 %v6577, %v6931
        %v8668 = vadd.f32 %v8667, %v7285
        %v8669 = vadd.f32 %v8668, %v7639
        %v8670 = vadd.f32 %v8669, %v7993
        %v8671 = vadd.f32 %v8670, %v8347
        %v8672 = vadd.f32 %v6579, %v6933
        %v8673 = vadd.f32 %v8672, %v7287
        %v8674 = vadd.f32 %v8673, %v7641
        %v8675 = vadd.f32 %v8674, %v7995
        %v8676 = vadd.f32 %v8675, %v8349
        %v8677 = vadd.f32 %v6729, %v7083
        %v8678 = vadd.f32 %v8677, %v7437
        %v8679 = vadd.f32 %v8678, %v7791
        %v8680 = vadd.f32 %v8679, %v8145
        %v8681 = vadd.f32 %v8680, %v8499
        %v8682 = vadd.f32 %v6583, %v6937
        %v8683 = vadd.f32 %v8682, %v7291
        %v8684 = vadd.f32 %v8683, %v7645
        %v8685 = vadd.f32 %v8684, %v7999
        %v8686 = vadd.f32 %v8685, %v8353
        %v8687 = vadd.f32 %v6585, %v6939
        %v8688 = vadd.f32 %v8687, %v7293
        %v8689 = vadd.f32 %v8688, %v7647
        %v8690 = vadd.f32 %v8689, %v8001
        %v8691 = vadd.f32 %v8690, %v8355
        %v8692 = vadd.f32 %v6734, %v7088
        %v8693 = vadd.f32 %v8692, %v7442
        %v8694 = vadd.f32 %v8693, %v7796
        %v8695 = vadd.f32 %v8694, %v8150
        %v8696 = vadd.f32 %v8695, %v8504
        %v8697 = vadd.f32 %v6589, %v6943
        %v8698 = vadd.f32 %v8697, %v7297
        %v8699 = vadd.f32 %v8698, %v7651
        %v8700 = vadd.f32 %v8699, %v8005
        %v8701 = vadd.f32 %v8700, %v8359
        %v8702 = vadd.f32 %v6591, %v6945
        %v8703 = vadd.f32 %v8702, %v7299
        %v8704 = vadd.f32 %v8703, %v7653
        %v8705 = vadd.f32 %v8704, %v8007
        %v8706 = vadd.f32 %v8705, %v8361
        %v8707 = vadd.f32 %v6739, %v7093
        %v8708 = vadd.f32 %v8707, %v7447
        %v8709 = vadd.f32 %v8708, %v7801
        %v8710 = vadd.f32 %v8709, %v8155
        %v8711 = vadd.f32 %v8710, %v8509
        %v8712 = vadd.f32 %v6595, %v6949
        %v8713 = vadd.f32 %v8712, %v7303
        %v8714 = vadd.f32 %v8713, %v7657
        %v8715 = vadd.f32 %v8714, %v8011
        %v8716 = vadd.f32 %v8715, %v8365
        %v8717 = vadd.f32 %v6597, %v6951
        %v8718 = vadd.f32 %v8717, %v7305
        %v8719 = vadd.f32 %v8718, %v7659
        %v8720 = vadd.f32 %v8719, %v8013
        %v8721 = vadd.f32 %v8720, %v8367
        %v8722 = vadd.f32 %v6744, %v7098
        %v8723 = vadd.f32 %v8722, %v7452
        %v8724 = vadd.f32 %v8723, %v7806
        %v8725 = vadd.f32 %v8724, %v8160
        %v8726 = vadd.f32 %v8725, %v8514
        %v8727 = vadd.f32 %v6601, %v6955
        %v8728 = vadd.f32 %v8727, %v7309
        %v8729 = vadd.f32 %v8728, %v7663
        %v8730 = vadd.f32 %v8729, %v8017
        %v8731 = vadd.f32 %v8730, %v8371
        %v8732 = vadd.f32 %v6603, %v6957
        %v8733 = vadd.f32 %v8732, %v7311
        %v8734 = vadd.f32 %v8733, %v7665
        %v8735 = vadd.f32 %v8734, %v8019
        %v8736 = vadd.f32 %v8735, %v8373
        %v8737 = vadd.f32 %v6749, %v7103
        %v8738 = vadd.f32 %v8737, %v7457
        %v8739 = vadd.f32 %v8738, %v7811
        %v8740 = vadd.f32 %v8739, %v8165
        %v8741 = vadd.f32 %v8740, %v8519
        %v8742 = vadd.f32 %v6607, %v6961
        %v8743 = vadd.f32 %v8742, %v7315
        %v8744 = vadd.f32 %v8743, %v7669
        %v8745 = vadd.f32 %v8744, %v8023
        %v8746 = vadd.f32 %v8745, %v8377
        %v8747 = vadd.f32 %v6609, %v6963
        %v8748 = vadd.f32 %v8747, %v7317
        %v8749 = vadd.f32 %v8748, %v7671
        %v8750 = vadd.f32 %v8749, %v8025
        %v8751 = vadd.f32 %v8750, %v8379
        %v8752 = vadd.f32 %v6754, %v7108
        %v8753 = vadd.f32 %v8752, %v7462
        %v8754 = vadd.f32 %v8753, %v7816
        %v8755 = vadd.f32 %v8754, %v8170
        %v8756 = vadd.f32 %v8755, %v8524
        %v8757 = vadd.f32 %v6613, %v6967
        %v8758 = vadd.f32 %v8757, %v7321
        %v8759 = vadd.f32 %v8758, %v7675
        %v8760 = vadd.f32 %v8759, %v8029
        %v8761 = vadd.f32 %v8760, %v8383
        %v8762 = vadd.f32 %v6615, %v6969
        %v8763 = vadd.f32 %v8762, %v7323
        %v8764 = vadd.f32 %v8763, %v7677
        %v8765 = vadd.f32 %v8764, %v8031
        %v8766 = vadd.f32 %v8765, %v8385
        %v8767 = vadd.f32 %v6759, %v7113
        %v8768 = vadd.f32 %v8767, %v7467
        %v8769 = vadd.f32 %v8768, %v7821
        %v8770 = vadd.f32 %v8769, %v8175
        %v8771 = vadd.f32 %v8770, %v8529
        %v8772 = vld [vmem:[%s4] sm:$0x7]
        %v8774 = vlaneseq
        %v8775 = vshrl.u32 %v8774, 7
        %v8776 = vsub.s32 0, %v8775
        %v8777 = vrot.slane %v8772, %v8776
        %v8778 = vlaneseq
        %v8779 = vshrl.u32 %v8778, 7
        %v8780 = vsub.s32 1, %v8779
        %v8781 = vrot.slane %v8772, %v8780
        %v8782 = vlaneseq
        %v8783 = vshrl.u32 %v8782, 7
        %v8784 = vsub.s32 2, %v8783
        %v8785 = vrot.slane %v8772, %v8784
        %v8789 = vadd.f32 %v8536, %v8777
        %v8790 = vadd.f32 %v8541, %v8781
        %v8791 = vadd.f32 %v8546, %v8785
        %v8792 = vadd.f32 %v8551, %v8777
        %v8793 = vadd.f32 %v8556, %v8781
        %v8794 = vadd.f32 %v8561, %v8785
        %v8795 = vadd.f32 %v8566, %v8777
        %v8796 = vadd.f32 %v8571, %v8781
        %v8797 = vadd.f32 %v8576, %v8785
        %v8798 = vadd.f32 %v8581, %v8777
        %v8799 = vadd.f32 %v8586, %v8781
        %v8800 = vadd.f32 %v8591, %v8785
        %v8801 = vadd.f32 %v8596, %v8777
        %v8802 = vadd.f32 %v8601, %v8781
        %v8803 = vadd.f32 %v8606, %v8785
        %v8804 = vadd.f32 %v8611, %v8777
        %v8805 = vadd.f32 %v8616, %v8781
        %v8806 = vadd.f32 %v8621, %v8785
        %v8807 = vadd.f32 %v8626, %v8777
        %v8808 = vadd.f32 %v8631, %v8781
        %v8809 = vadd.f32 %v8636, %v8785
        %v8810 = vadd.f32 %v8641, %v8777
        %v8811 = vadd.f32 %v8646, %v8781
        %v8812 = vadd.f32 %v8651, %v8785
        %v8813 = vadd.f32 %v8656, %v8777
        %v8814 = vadd.f32 %v8661, %v8781
        %v8815 = vadd.f32 %v8666, %v8785
        %v8816 = vadd.f32 %v8671, %v8777
        %v8817 = vadd.f32 %v8676, %v8781
        %v8818 = vadd.f32 %v8681, %v8785
        %v8819 = vadd.f32 %v8686, %v8777
        %v8820 = vadd.f32 %v8691, %v8781
        %v8821 = vadd.f32 %v8696, %v8785
        %v8822 = vadd.f32 %v8701, %v8777
        %v8823 = vadd.f32 %v8706, %v8781
        %v8824 = vadd.f32 %v8711, %v8785
        %v8825 = vadd.f32 %v8716, %v8777
        %v8826 = vadd.f32 %v8721, %v8781
        %v8827 = vadd.f32 %v8726, %v8785
        %v8828 = vadd.f32 %v8731, %v8777
        %v8829 = vadd.f32 %v8736, %v8781
        %v8830 = vadd.f32 %v8741, %v8785
        %v8831 = vadd.f32 %v8746, %v8777
        %v8832 = vadd.f32 %v8751, %v8781
        %v8833 = vadd.f32 %v8756, %v8785
        %v8834 = vadd.f32 %v8761, %v8777
        %v8835 = vadd.f32 %v8766, %v8781
        %v8836 = vadd.f32 %v8771, %v8785
        %8837 = vst [vmem:[%s217] sm:$0xff] %v8789
        %8838 = vst [vmem:[%s217 + $0x8] sm:$0xff] %v8790
        %8839 = vst [vmem:[%s217 + $0x10] sm:$0xff] %v8791
        %8840 = vst [vmem:[%s217 + $0x18] sm:$0xff] %v8792
        %8841 = vst [vmem:[%s217 + $0x20] sm:$0xff] %v8793
        %8842 = vst [vmem:[%s217 + $0x28] sm:$0xff] %v8794
        %8843 = vst [vmem:[%s217 + $0x30] sm:$0xff] %v8795
        %8844 = vst [vmem:[%s217 + $0x38] sm:$0xff] %v8796
        %8845 = vst [vmem:[%s217 + $0x40] sm:$0xff] %v8797
        %8846 = vst [vmem:[%s217 + $0x48] sm:$0xff] %v8798
        %8847 = vst [vmem:[%s217 + $0x50] sm:$0xff] %v8799
        %8848 = vst [vmem:[%s217 + $0x58] sm:$0xff] %v8800
        %8849 = vst [vmem:[%s217 + $0x60] sm:$0xff] %v8801
        %8850 = vst [vmem:[%s217 + $0x68] sm:$0xff] %v8802
        %8851 = vst [vmem:[%s217 + $0x70] sm:$0xff] %v8803
        %8852 = vst [vmem:[%s217 + $0x78] sm:$0xff] %v8804
        %8853 = vst [vmem:[%s217 + $0x80] sm:$0xff] %v8805
        %8854 = vst [vmem:[%s217 + $0x88] sm:$0xff] %v8806
        %8855 = vst [vmem:[%s217 + $0x90] sm:$0xff] %v8807
        %8856 = vst [vmem:[%s217 + $0x98] sm:$0xff] %v8808
        %8857 = vst [vmem:[%s217 + $0xa0] sm:$0xff] %v8809
        %8858 = vst [vmem:[%s217 + $0xa8] sm:$0xff] %v8810
        %8859 = vst [vmem:[%s217 + $0xb0] sm:$0xff] %v8811
        %8860 = vst [vmem:[%s217 + $0xb8] sm:$0xff] %v8812
        %8861 = vst [vmem:[%s217 + $0xc0] sm:$0xff] %v8813
        %8862 = vst [vmem:[%s217 + $0xc8] sm:$0xff] %v8814
        %8863 = vst [vmem:[%s217 + $0xd0] sm:$0xff] %v8815
        %8864 = vst [vmem:[%s217 + $0xd8] sm:$0xff] %v8816
        %8865 = vst [vmem:[%s217 + $0xe0] sm:$0xff] %v8817
        %8866 = vst [vmem:[%s217 + $0xe8] sm:$0xff] %v8818
        %8867 = vst [vmem:[%s217 + $0xf0] sm:$0xff] %v8819
        %8868 = vst [vmem:[%s217 + $0xf8] sm:$0xff] %v8820
        %8869 = vst [vmem:[%s217 + $0x100] sm:$0xff] %v8821
        %8870 = vst [vmem:[%s217 + $0x108] sm:$0xff] %v8822
        %8871 = vst [vmem:[%s217 + $0x110] sm:$0xff] %v8823
        %8872 = vst [vmem:[%s217 + $0x118] sm:$0xff] %v8824
        %8873 = vst [vmem:[%s217 + $0x120] sm:$0xff] %v8825
        %8874 = vst [vmem:[%s217 + $0x128] sm:$0xff] %v8826
        %8875 = vst [vmem:[%s217 + $0x130] sm:$0xff] %v8827
        %8876 = vst [vmem:[%s217 + $0x138] sm:$0xff] %v8828
        %8877 = vst [vmem:[%s217 + $0x140] sm:$0xff] %v8829
        %8878 = vst [vmem:[%s217 + $0x148] sm:$0xff] %v8830
        %8879 = vst [vmem:[%s217 + $0x150] sm:$0xff] %v8831
        %8880 = vst [vmem:[%s217 + $0x158] sm:$0xff] %v8832
        %8881 = vst [vmem:[%s217 + $0x160] sm:$0xff] %v8833
        %8882 = vst [vmem:[%s217 + $0x168] sm:$0xff] %v8834
        %8883 = vst [vmem:[%s217 + $0x170] sm:$0xff] %v8835
        %8884 = vst [vmem:[%s217 + $0x178] sm:$0xff] %v8836
        %s8885 = sand.u32 %s137, 1
        %s8886 = scalar_lea.sflag [#allocation3], %s8885
        %s8887 = sand.u32 %s137, 1
        %s8888 = smul.addr %s8887, 384
        %s8889 = scalar_lea.vmem [#allocation2], %s8888
        // Predicated region
        $region41: #{tpu_custom_call.1} parent=39 // pred_check
          %p8890 = pneg %p147
        $region42: #{tpu_custom_call.1} parent=39 // pred_check_branch
          %8892 = sbr.rel (%p8890) target = $region44
        $region43: #{tpu_custom_call.1} parent=39 // pred_region
          %s8894 = ssub.s32 6144, 6144
          %8895 = vsyncadd %s8886, %s8894
          %s8896 = smul.addr %s19, 48
          %s8897 = smul.addr %s8896, 128
          %s8898 = scalar_lea.hbm %s5, %s8897
          %s8899 = sshll.u32 %s8889, 4
          %s8900 = int_to_ptr.vmem [resolvable:$true] %s8899
          %8905 = dma.vmem_to_hbm [thread:$0]  %s8900, 6144, %s8898, %s8886, 384, 384, 24
        $region44: #{tpu_custom_call.1} parent=39 // pred_fallthru
          _
      $region40: #{tpu_custom_call.1} parent=5 // pred_fallthru
        _
      %p8906 = scmp.le.s32.totalorder 2, %s14
      // Predicated region
      $region45: #{tpu_custom_call.1} parent=5 // pred_check
        %p8907 = pneg %p8906
      $region46: #{tpu_custom_call.1} parent=5 // pred_check_branch
        %8909 = sbr.rel (%p8907) target = $region48
      $region47: #{tpu_custom_call.1} parent=5 // pred_region
        %s8910 = ssub.s32 %s14, 2
        // Predicated region
        $region49: #{tpu_custom_call.1} parent=47 // pred_check
          %p8911 = pneg %p153
        $region50: #{tpu_custom_call.1} parent=47 // pred_check_branch
          %8913 = sbr.rel (%p8911) target = $region52
        $region51: #{tpu_custom_call.1} parent=47 // pred_region
          %s8914 = sand.u32 %s138, 1
          %s8915 = scalar_lea.sflag [#allocation3], %s8914
          %s8916 = sand.u32 %s138, 1
          %s8917 = smul.addr %s8916, 384
          %s8918 = scalar_lea.vmem [#allocation2], %s8917
          %8919 = dma.done %s8915, 6144
        $region52: #{tpu_custom_call.1} parent=47 // pred_fallthru
          _
      $region48: #{tpu_custom_call.1} parent=5 // pred_fallthru
        _
    $region6: #{tpu_custom_call.1} parent=1 // loop_footer
      %s18 = sadd.s32 1, %s14
    $region7: #{tpu_custom_call.1} parent=1 // loop_footer_branch
      %13 = sbr.rel target = $region3
    $region8: #{tpu_custom_call.1} parent=1 // loop_exit
      _
    %8920 = vsyncpa [#allocation3], 1
    %s8921 = scalar_lea.sflag [#allocation3], 1
    %8922 = vsyncpa %s8921, 1

</llo_original>
